<compile_context>
chip_gen: v7x
topology: tpu7x:2x2x1
jax: 0.10.0
libtpu: 0.0.40
codegen_flags: <defaults>
</compile_context>

<pallas_src>
import functools

import jax
import jax.numpy as jnp
from jax import lax
from jax.experimental import pallas as pl
from jax.experimental.pallas import tpu as pltpu

WIDTH = 2048
NUM_HIDDEN = 5          # five 2048 -> 2048 hidden layers
IN_FEATURES = 11
TN = 1024               # output-feature tile (multiple of 256, divides WIDTH)


def _fused_mlp_kernel(x_ref, w0_ref, b0_ref, wh_ref, bh_ref, wo_ref, bo_ref,
                      out_ref, act_ref, *, tn):
    """One grid step = (hidden layer l, output-feature tile j).

    act_ref: (2, B, WIDTH) f32 ping-pong scratch with previous/current layer
    activations. Layer 0 runs once at step (0, 0); the final 2048->1 layer
    runs at the last step, after the current buffer holds the last hidden
    activations.
    """
    l = pl.program_id(0)
    j = pl.program_id(1)
    n_l = pl.num_programs(0)
    n_j = pl.num_programs(1)

    cur = lax.rem(l, 2)
    prev = 1 - cur

    # ---- Layer 0: Linear(11 -> WIDTH) + ReLU (f32; K=11 is tiny). ----------
    @pl.when(jnp.logical_and(l == 0, j == 0))
    def _():
        h0 = jnp.dot(x_ref[...], w0_ref[...],
                     preferred_element_type=jnp.float32)
        act_ref[1] = jnp.maximum(h0 + b0_ref[...], 0.0)   # "prev" slot for l == 0

    # ---- Hidden layer l: Linear(WIDTH -> WIDTH) + ReLU, output tile j. -----
    h_prev = act_ref[prev].astype(jnp.bfloat16)            # (B, WIDTH)
    acc = jnp.dot(h_prev, wh_ref[0], preferred_element_type=jnp.float32)
    acc = jnp.maximum(acc + bh_ref[0], 0.0)                # (B, tn) f32
    start = pl.multiple_of(j * tn, tn)
    act_ref[cur, :, pl.ds(start, tn)] = acc

    # ---- Final layer: Linear(WIDTH -> 1), once all of layer n_l-1 is done. --
    @pl.when(jnp.logical_and(l == n_l - 1, j == n_j - 1))
    def _():
        h_last = act_ref[cur].astype(jnp.bfloat16)
        out = jnp.dot(h_last, wo_ref[...], preferred_element_type=jnp.float32)
        out_ref[...] = (out + bo_ref[...]).astype(out_ref.dtype)


def neunet_pallas(x, packed, *, tn=TN):
    """Full NeuNet forward for x:(B, 11), B a multiple of 8. Returns (B, 1)."""
    B, in_features = x.shape
    w0, b0 = packed["w0"], packed["b0"]
    wh, bh = packed["wh"], packed["bh"]
    wo, bo = packed["wo"], packed["bo"]
    width = w0.shape[1]
    n_hidden = wh.shape[0]
    assert width % tn == 0 and tn % 256 == 0 and B % 8 == 0

    kernel = functools.partial(_fused_mlp_kernel, tn=tn)
    return pl.pallas_call(
        kernel,
        out_shape=jax.ShapeDtypeStruct((B, 1), jnp.float32),
        grid_spec=pltpu.PrefetchScalarGridSpec(
            num_scalar_prefetch=0,
            grid=(n_hidden, width // tn),
            in_specs=[
                pl.BlockSpec((B, in_features), lambda l, j: (0, 0)),       # x (f32)
                pl.BlockSpec((in_features, width), lambda l, j: (0, 0)),   # w0 (f32)
                pl.BlockSpec((1, width), lambda l, j: (0, 0)),             # b0 (f32)
                pl.BlockSpec((1, width, tn), lambda l, j: (l, 0, j)),      # wh (bf16, streamed)
                pl.BlockSpec((1, 1, tn), lambda l, j: (l, 0, j)),          # bh (f32)
                pl.BlockSpec((width, 1), lambda l, j: (0, 0)),             # wo (bf16)
                pl.BlockSpec((1, 1), lambda l, j: (0, 0)),                 # bo (f32)
            ],
            out_specs=pl.BlockSpec((B, 1), lambda l, j: (0, 0)),
            scratch_shapes=[pltpu.VMEM((2, B, width), jnp.float32)],
        ),
        compiler_params=pltpu.CompilerParams(
            # Cross-layer dependency flows through the VMEM scratch -> both
            # grid axes must execute sequentially on one TensorCore.
            dimension_semantics=("arbitrary", "arbitrary"),
            vmem_limit_bytes=32 * 1024 * 1024,
        ),
    )(x, w0, b0, wh, bh, wo, bo)


@functools.partial(jax.jit, static_argnames=("tn",))
def neunet_forward(x, packed, *, tn=TN):
    B = x.shape[0]
    b_pad = max(8, ((B + 7) // 8) * 8)
    if b_pad != B:
        x = jnp.pad(x, ((0, b_pad - B), (0, 0)))
    out = neunet_pallas(x, packed, tn=tn)
    return out[:B]


def init_params(key, width=WIDTH, in_features=IN_FEATURES):
    """Deterministic synthetic params matching NeuNet layer shapes.

    Layers: (11->W), 5x (W->W), (W->1). Weights stored as (in, out) f32."""
    dims = [(in_features, width)] + [(width, width)] * NUM_HIDDEN + [(width, 1)]
    params = []
    for i, (din, dout) in enumerate(dims):
        kw, kb = jax.random.split(jax.random.fold_in(key, i))
        bound = 1.0 / jnp.sqrt(jnp.float32(din))  # PyTorch Linear default range
        w = jax.random.uniform(kw, (din, dout), jnp.float32, -bound, bound)
        b = jax.random.uniform(kb, (dout,), jnp.float32, -bound, bound)
        params.append((w, b))
    return params


def pack_params(params):
    """Pack params into the streaming layout used by the fused kernel.

    Layer 0 stays f32 (tiny, K=11); hidden & output weights -> bf16; biases f32."""
    w0, b0 = params[0]
    wh = jnp.stack([params[i][0] for i in range(1, 1 + NUM_HIDDEN)]).astype(jnp.bfloat16)
    bh = jnp.stack([params[i][1] for i in range(1, 1 + NUM_HIDDEN)])[:, None, :]
    wo, bo = params[-1]
    return dict(
        w0=w0, b0=b0.reshape(1, -1),
        wh=wh, bh=bh,
        wo=wo.astype(jnp.bfloat16), bo=bo.reshape(1, 1),
    )


def neunet_reference(x, params):
    """Pure-JAX reference mirroring the kernel's bf16 weight/activation quantization."""
    h = x
    n_layers = len(params)
    for i, (w, b) in enumerate(params):
        if i == 0:
            h = jnp.dot(h, w, preferred_element_type=jnp.float32) + b
        else:
            h = jnp.dot(h.astype(jnp.bfloat16), w.astype(jnp.bfloat16),
                        preferred_element_type=jnp.float32) + b
        if i < n_layers - 1:
            h = jnp.maximum(h, 0.0)
    return h


if __name__ == "__main__":
    key = jax.random.PRNGKey(0)
    kx, kp = jax.random.split(key)

    batch = 8
    x = jax.random.normal(kx, (batch, IN_FEATURES), jnp.float32)

    params = init_params(kp, width=WIDTH, in_features=IN_FEATURES)
    packed = pack_params(params)

    logits = neunet_forward(x, packed)
    logits = jax.block_until_ready(logits)
    assert logits.shape == (batch, 1), logits.shape

    ref = neunet_reference(x, params)
    if not jnp.allclose(logits, ref, rtol=1e-2, atol=1e-2):
        max_err = jnp.max(jnp.abs(logits - ref))
        raise AssertionError(f"Pallas output mismatch vs. reference (max|err|={max_err})")

    print("KERNEL_OK")
</pallas_src>

<mosaic_0001>
module attributes {stable_mosaic.version = 11 : i64} {
  func.func @_fused_mlp_kernel(%arg0: i32, %arg1: i32, %arg2: memref<8x11xf32, #tpu.memory_space<vmem>>, %arg3: memref<11x2048xf32, #tpu.memory_space<vmem>>, %arg4: memref<1x2048xf32, #tpu.memory_space<vmem>>, %arg5: memref<1x2048x1024xbf16, #tpu.memory_space<vmem>>, %arg6: memref<1x1x1024xf32, #tpu.memory_space<vmem>>, %arg7: memref<2048x1xbf16, #tpu.memory_space<vmem>>, %arg8: memref<1x1xf32, #tpu.memory_space<vmem>>, %arg9: memref<8x1xf32, #tpu.memory_space<vmem>>, %arg10: memref<2x8x2048xf32, #tpu.memory_space<vmem>>) attributes {dimension_semantics = [#tpu.dimension_semantics<arbitrary>, #tpu.dimension_semantics<arbitrary>], iteration_bounds = array<i64: 5, 2>, scalar_prefetch = 0 : i64, scratch_operands = 1 : i64, tpu.core_type = #tpu.core_type<tc>, window_params = [{pipeline_mode = #tpu.pipeline_mode<synchronous>, transform_indices = @transform_0, window_bounds = array<i64: 8, 11>}, {pipeline_mode = #tpu.pipeline_mode<synchronous>, transform_indices = @transform_1, window_bounds = array<i64: 11, 2048>}, {pipeline_mode = #tpu.pipeline_mode<synchronous>, transform_indices = @transform_2, window_bounds = array<i64: 1, 2048>}, {transform_indices = @transform_3, window_bounds = array<i64: 1, 2048, 1024>}, {transform_indices = @transform_4, window_bounds = array<i64: 1, 1, 1024>}, {pipeline_mode = #tpu.pipeline_mode<synchronous>, transform_indices = @transform_5, window_bounds = array<i64: 2048, 1>}, {pipeline_mode = #tpu.pipeline_mode<synchronous>, transform_indices = @transform_6, window_bounds = array<i64: 1, 1>}, {pipeline_mode = #tpu.pipeline_mode<synchronous>, transform_indices = @transform_7, window_bounds = array<i64: 8, 1>}]} {
    %c2_i32 = arith.constant 2 : i32
    %0 = arith.remsi %arg0, %c2_i32 : i32
    %c1_i32 = arith.constant 1 : i32
    %1 = arith.subi %c1_i32, %0 : i32
    %c0_i32 = arith.constant 0 : i32
    %2 = arith.cmpi eq, %arg0, %c0_i32 : i32
    %c0_i32_0 = arith.constant 0 : i32
    %3 = arith.cmpi eq, %arg1, %c0_i32_0 : i32
    %4 = arith.andi %2, %3 : i1
    %5 = arith.extui %4 : i1 to i32
    %c0_i32_1 = arith.constant 0 : i32
    %6 = arith.cmpi ne, %5, %c0_i32_1 : i32
    scf.if %6 {
      %c0_13 = arith.constant 0 : index
      %c0_14 = arith.constant 0 : index
      %32 = vector.load %arg2[%c0_13, %c0_14] : memref<8x11xf32, #tpu.memory_space<vmem>>, vector<8x11xf32>
      %c0_15 = arith.constant 0 : index
      %c0_16 = arith.constant 0 : index
      %33 = vector.load %arg3[%c0_15, %c0_16] : memref<11x2048xf32, #tpu.memory_space<vmem>>, vector<11x2048xf32>
      %cst_17 = arith.constant dense<0.000000e+00> : vector<8x2048xf32>
      %34 = tpu.matmul %32, %33, %cst_17 {dimension_numbers = #tpu.dot_dimension_numbers<[1], [0], [0], [1], [0, 0, 1, 1], [], []>} : vector<8x11xf32>, vector<11x2048xf32>, vector<8x2048xf32> -> vector<8x2048xf32>
      %c0_18 = arith.constant 0 : index
      %c0_19 = arith.constant 0 : index
      %35 = vector.load %arg4[%c0_18, %c0_19] : memref<1x2048xf32, #tpu.memory_space<vmem>>, vector<1x2048xf32>
      %36 = vector.broadcast %35 : vector<1x2048xf32> to vector<8x2048xf32>
      %37 = arith.addf %34, %36 : vector<8x2048xf32>
      %cst_20 = arith.constant 0.000000e+00 : f32
      %38 = vector.broadcast %cst_20 : f32 to vector<8x2048xf32>
      %39 = arith.maximumf %37, %38 : vector<8x2048xf32>
      %c1 = arith.constant 1 : index
      %c0_21 = arith.constant 0 : index
      %c0_22 = arith.constant 0 : index
      %40 = vector.load %arg10[%c1, %c0_21, %c0_22] : memref<2x8x2048xf32, #tpu.memory_space<vmem>>, vector<1x8x2048xf32>
      %41 = vector.shape_cast %40 : vector<1x8x2048xf32> to vector<8x2048xf32>
      %42 = vector.shape_cast %39 : vector<8x2048xf32> to vector<1x8x2048xf32>
      tpu.vector_store %arg10[%c1, %c0_21, %c0_22], %42 {strides = array<i32>} : memref<2x8x2048xf32, #tpu.memory_space<vmem>>, vector<1x8x2048xf32>,
    } else {
    }
    %7 = arith.index_cast %1 : i32 to index
    %c0 = arith.constant 0 : index
    %c0_2 = arith.constant 0 : index
    %8 = vector.load %arg10[%7, %c0, %c0_2] : memref<2x8x2048xf32, #tpu.memory_space<vmem>>, vector<1x8x2048xf32>
    %9 = vector.shape_cast %8 : vector<1x8x2048xf32> to vector<8x2048xf32>
    %10 = arith.truncf %9 : vector<8x2048xf32> to vector<8x2048xbf16>
    %c0_3 = arith.constant 0 : index
    %c0_4 = arith.constant 0 : index
    %c0_5 = arith.constant 0 : index
    %11 = vector.load %arg5[%c0_3, %c0_4, %c0_5] : memref<1x2048x1024xbf16, #tpu.memory_space<vmem>>, vector<1x2048x1024xbf16>
    %12 = vector.shape_cast %11 : vector<1x2048x1024xbf16> to vector<2048x1024xbf16>
    %cst = arith.constant dense<0.000000e+00> : vector<8x1024xf32>
    %13 = tpu.matmul %10, %12, %cst {dimension_numbers = #tpu.dot_dimension_numbers<[1], [0], [0], [1], [0, 0, 1, 1], [], []>} : vector<8x2048xbf16>, vector<2048x1024xbf16>, vector<8x1024xf32> -> vector<8x1024xf32>
    %c0_6 = arith.constant 0 : index
    %c0_7 = arith.constant 0 : index
    %c0_8 = arith.constant 0 : index
    %14 = vector.load %arg6[%c0_6, %c0_7, %c0_8] : memref<1x1x1024xf32, #tpu.memory_space<vmem>>, vector<1x1x1024xf32>
    %15 = vector.shape_cast %14 : vector<1x1x1024xf32> to vector<1x1024xf32>
    %16 = vector.broadcast %15 : vector<1x1024xf32> to vector<8x1024xf32>
    %17 = arith.addf %13, %16 : vector<8x1024xf32>
    %cst_9 = arith.constant 0.000000e+00 : f32
    %18 = vector.broadcast %cst_9 : f32 to vector<8x1024xf32>
    %19 = arith.maximumf %17, %18 : vector<8x1024xf32>
    %c1024_i32 = arith.constant 1024 : i32
    %20 = arith.muli %arg1, %c1024_i32 : i32
    %21 = tpu.assume_multiple %20, 1024 : i32
    %22 = arith.index_cast %0 : i32 to index
    %c0_10 = arith.constant 0 : index
    %23 = arith.index_cast %21 : i32 to index
    %24 = vector.load %arg10[%22, %c0_10, %23] : memref<2x8x2048xf32, #tpu.memory_space<vmem>>, vector<1x8x1024xf32>
    %25 = vector.shape_cast %24 : vector<1x8x1024xf32> to vector<8x1024xf32>
    %26 = vector.shape_cast %19 : vector<8x1024xf32> to vector<1x8x1024xf32>
    tpu.vector_store %arg10[%22, %c0_10, %23], %26 {strides = array<i32>} : memref<2x8x2048xf32, #tpu.memory_space<vmem>>, vector<1x8x1024xf32>,
    %c4_i32 = arith.constant 4 : i32
    %27 = arith.cmpi eq, %arg0, %c4_i32 : i32
    %c1_i32_11 = arith.constant 1 : i32
    %28 = arith.cmpi eq, %arg1, %c1_i32_11 : i32
    %29 = arith.andi %27, %28 : i1
    %30 = arith.extui %29 : i1 to i32
    %c0_i32_12 = arith.constant 0 : i32
    %31 = arith.cmpi ne, %30, %c0_i32_12 : i32
    scf.if %31 {
      %32 = arith.index_cast %0 : i32 to index
      %c0_13 = arith.constant 0 : index
      %c0_14 = arith.constant 0 : index
      %33 = vector.load %arg10[%32, %c0_13, %c0_14] : memref<2x8x2048xf32, #tpu.memory_space<vmem>>, vector<1x8x2048xf32>
      %34 = vector.shape_cast %33 : vector<1x8x2048xf32> to vector<8x2048xf32>
      %35 = arith.truncf %34 : vector<8x2048xf32> to vector<8x2048xbf16>
      %c0_15 = arith.constant 0 : index
      %c0_16 = arith.constant 0 : index
      %36 = vector.load %arg7[%c0_15, %c0_16] : memref<2048x1xbf16, #tpu.memory_space<vmem>>, vector<2048x1xbf16>
      %cst_17 = arith.constant dense<0.000000e+00> : vector<8x1xf32>
      %37 = tpu.matmul %35, %36, %cst_17 {dimension_numbers = #tpu.dot_dimension_numbers<[1], [0], [0], [1], [0, 0, 1, 1], [], []>} : vector<8x2048xbf16>, vector<2048x1xbf16>, vector<8x1xf32> -> vector<8x1xf32>
      %c0_18 = arith.constant 0 : index
      %c0_19 = arith.constant 0 : index
      %38 = vector.load %arg8[%c0_18, %c0_19] : memref<1x1xf32, #tpu.memory_space<vmem>>, vector<1x1xf32>
      %39 = vector.broadcast %38 : vector<1x1xf32> to vector<8x1xf32>
      %40 = arith.addf %37, %39 : vector<8x1xf32>
      %c0_20 = arith.constant 0 : index
      %c0_21 = arith.constant 0 : index
      %41 = vector.load %arg9[%c0_20, %c0_21] : memref<8x1xf32, #tpu.memory_space<vmem>>, vector<8x1xf32>
      tpu.vector_store %arg9[%c0_20, %c0_21], %40 {strides = array<i32>} : memref<8x1xf32, #tpu.memory_space<vmem>>, vector<8x1xf32>,
    } else {
    }
    return
  }
  func.func @transform_0(%arg0: i32, %arg1: i32) -> (i32, i32) {
    %c0_i32 = arith.constant 0 : i32
    %c0_i32_0 = arith.constant 0 : i32
    %c0_i32_1 = arith.constant 0 : i32
    return %c0_i32, %c0_i32_0 : i32, i32
  }
  func.func @transform_1(%arg0: i32, %arg1: i32) -> (i32, i32) {
    %c0_i32 = arith.constant 0 : i32
    %c0_i32_0 = arith.constant 0 : i32
    %c0_i32_1 = arith.constant 0 : i32
    return %c0_i32, %c0_i32_0 : i32, i32
  }
  func.func @transform_2(%arg0: i32, %arg1: i32) -> (i32, i32) {
    %c0_i32 = arith.constant 0 : i32
    %c0_i32_0 = arith.constant 0 : i32
    %c0_i32_1 = arith.constant 0 : i32
    return %c0_i32, %c0_i32_0 : i32, i32
  }
  func.func @transform_3(%arg0: i32, %arg1: i32) -> (i32, i32, i32) {
    %c0_i32 = arith.constant 0 : i32
    %c0_i32_0 = arith.constant 0 : i32
    return %arg0, %c0_i32, %arg1 : i32, i32, i32
  }
  func.func @transform_4(%arg0: i32, %arg1: i32) -> (i32, i32, i32) {
    %c0_i32 = arith.constant 0 : i32
    %c0_i32_0 = arith.constant 0 : i32
    return %arg0, %c0_i32, %arg1 : i32, i32, i32
  }
  func.func @transform_5(%arg0: i32, %arg1: i32) -> (i32, i32) {
    %c0_i32 = arith.constant 0 : i32
    %c0_i32_0 = arith.constant 0 : i32
    %c0_i32_1 = arith.constant 0 : i32
    return %c0_i32, %c0_i32_0 : i32, i32
  }
  func.func @transform_6(%arg0: i32, %arg1: i32) -> (i32, i32) {
    %c0_i32 = arith.constant 0 : i32
    %c0_i32_0 = arith.constant 0 : i32
    %c0_i32_1 = arith.constant 0 : i32
    return %c0_i32, %c0_i32_0 : i32, i32
  }
  func.func @transform_7(%arg0: i32, %arg1: i32) -> (i32, i32) {
    %c0_i32 = arith.constant 0 : i32
    %c0_i32_0 = arith.constant 0 : i32
    %c0_i32_1 = arith.constant 0 : i32
    return %c0_i32, %c0_i32_0 : i32, i32
  }
}

</mosaic_0001>

<llo_original>
// kernel: neunet_forward.1
$region0: #{neunet_forward.1}
  #allocation0 [shape = 'u32[]', space=smem, size = 0x4, offset = 0x4, fixed_abs, tag = 'smem constant byte address 0x4 - core index']
  #allocation1 [shape = 'u32[144,128]{1,0:T(1,128)}', space=vmem, size = 0x12000, scoped, tag = 'internal scratch']
  #allocation2 [shape = 'f32[2,8,2048]{2,1,0:T(8,128)}', space=vmem, size = 0x20000, scoped, tag = 'scratch operand']
  #allocation3 [shape = 'f32[1,1]{1,0:T(1,128)S(1)}', space=vmem, size = 0x200, scoped, tag = 'scoped memory for neunet_forward.1']
  %s0 = inlined_call_operand.hbm [shape: f32[8,11], index: 0, kind: input, shape index: {}]
  %s1 = inlined_call_operand.hbm [shape: f32[11,2048], index: 1, kind: input, shape index: {}]
  %s2 = inlined_call_operand.hbm [shape: f32[1,2048], index: 2, kind: input, shape index: {}]
  %s3 = inlined_call_operand.hbm [shape: bf16[5,2048,2048], index: 3, kind: input, shape index: {}]
  %s4 = inlined_call_operand.hbm [shape: f32[5,1,2048], index: 4, kind: input, shape index: {}]
  %s5 = inlined_call_operand.vmem [shape: bf16[2048,1], index: 5, kind: input, shape index: {}]
  %s6 = inlined_call_operand.<no memory space> [shape: f32[1,1], index: 6, kind: input, shape index: {}]
  %s7 = inlined_call_operand.vmem [shape: f32[8,1], index: 7, kind: output, shape index: {}]
  %s8 = sld [smem:[#allocation0]]
  $region89: #{neunet_forward.1} parent=0
    _
  %s10 = ssub.s32 1, %s8
  %s11 = scalar_select 0, %s10, %s8
  %v12 = vstv %s6
  %13 = vst [vmem:[#allocation3] sm:$0x1] %v12
  $region1: #{neunet_forward.1} parent=0
    #allocation4 [shape = 'u8[4096]{0}', space=vmem, size = 0x1000, scoped, tag = 'input window, operand 0, single buffered']
    #allocation5 [shape = 's32[2]{0}', space=sflag, size = 0x8, scoped, tag = 'scoped memory for neunet_forward.1']
    #allocation6 [shape = 'u8[131072]{0}', space=vmem, size = 0x20000, scoped, tag = 'input window, operand 1, single buffered']
    #allocation7 [shape = 's32[1]{0}', space=sflag, size = 0x4, scoped, tag = 'scoped memory for neunet_forward.1']
    #allocation8 [shape = 'u8[8192]{0}', space=vmem, size = 0x2000, scoped, tag = 'input window, operand 2, single buffered']
    #allocation9 [shape = 'u8[8388608]{0}', space=vmem, size = 0x800000, scoped, tag = 'input window, operand 3']
    #allocation10 [shape = 's32[2]{0}', space=sflag, size = 0x8, scoped, tag = 'scoped memory for neunet_forward.1']
    #allocation11 [shape = 'u8[8192]{0}', space=vmem, size = 0x2000, scoped, tag = 'input window, operand 4']
    %14 = vsyncpa [#allocation5], 0
    %15 = vsyncpa [#allocation7], 0
    %16 = vsyncpa [#allocation10], 0
    %s17 = scalar_lea.sflag [#allocation10], 1
    %18 = vsyncpa %s17, 0
    loop: start=0, step=1, limit=12
    $region2: #{neunet_forward.1} parent=1 // loop_pre_header
      _
    $region3: #{neunet_forward.1} parent=1 // loop_header
      %s20 = sphi 0, %s24
      %p21 = scmp.ge.s32.totalorder %s20, 12
      %s27 = sphi 0, %s39
      %s28 = sphi 0, %s35
      %s29 = sphi 0, %s27
      %s30 = sphi 0, %s28
      %s31 = sphi 0, %s29
      %s32 = sphi 0, %s30
      %s40 = sphi 0, %s40
      %s42 = sphi 0, %s40
      %s43 = sphi 0, %s42
      %s57 = sphi 0, %s43
      %s61 = sphi 0, %s61
      %s63 = sphi 0, %s61
      %s64 = sphi 0, %s63
      %s78 = sphi 0, %s64
      %s82 = sphi 0, %s82
      %s84 = sphi 0, %s82
      %s85 = sphi 0, %s84
      %s99 = sphi 0, %s85
      %s107 = sphi 0, %s109
      %s110 = sphi 0, %s107
      %s111 = sphi 0, %s110
      %s127 = sphi 0, %s111
      %s135 = sphi 0, %s137
      %s138 = sphi 0, %s135
      %s139 = sphi 0, %s138
      %s155 = sphi 0, %s139
      %s159 = sphi 0, %s159
      %s161 = sphi 0, %s159
      %s162 = sphi 0, %s161
      %s176 = sphi 0, %s162
      %s180 = sphi 0, %s180
      %s182 = sphi 0, %s180
      %s183 = sphi 0, %s182
      %s197 = sphi 0, %s183
      %s201 = sphi 0, %s201
      %s203 = sphi 0, %s201
      %s204 = sphi 0, %s203
      %s218 = sphi 0, %s204
    $region4: #{neunet_forward.1} parent=1 // loop_header_branch
      %23 = sbr.rel (%p21) target = $region8
    $region5: #{neunet_forward.1} parent=1 // loop_body
      %s25 = ssub.s32 %s20, 1
      %s26 = ssub.s32 %s20, 2
      %s33 = sadd.s32 1, %s28
      %p34 = scmp.ge.s32.totalorder %s33, 2
      %s35 = scalar_select %p34, 0, %s33
      %s36 = sadd.s32 1, %s27
      %s37 = scalar_select %p34, %s36, %s27
      %p38 = scmp.ge.s32.totalorder %s37, 5
      %s39 = scalar_select %p38, 0, %s37
      %s41 = sadd.s32 %s40, 1
      %p44 = scmp.eq.s32.totalorder %s20, 9
      %p45 = scmp.ne.s32.totalorder %s40, %s42
      %p46 = scmp.eq.s32.totalorder %s20, 0
      %p47 = por %p45, %p46
      %p48 = scmp.ne.s32.totalorder %s40, %s42
      %p49 = scmp.eq.s32.totalorder %s25, 9
      %p50 = por %p48, %p49
      %p51 = scmp.ne.s32.totalorder %s42, %s43
      %p52 = scmp.eq.s32.totalorder %s25, 0
      %p53 = por %p51, %p52
      %p54 = scmp.ne.s32.totalorder %s42, %s43
      %p55 = scmp.eq.s32.totalorder %s26, 9
      %p56 = por %p54, %p55
      %p58 = scmp.ne.s32.totalorder %s43, %s57
      %p59 = scmp.eq.s32.totalorder %s26, 0
      %p60 = por %p58, %p59
      %s62 = sadd.s32 %s61, 1
      %p65 = scmp.eq.s32.totalorder %s20, 9
      %p66 = scmp.ne.s32.totalorder %s61, %s63
      %p67 = scmp.eq.s32.totalorder %s20, 0
      %p68 = por %p66, %p67
      %p69 = scmp.ne.s32.totalorder %s61, %s63
      %p70 = scmp.eq.s32.totalorder %s25, 9
      %p71 = por %p69, %p70
      %p72 = scmp.ne.s32.totalorder %s63, %s64
      %p73 = scmp.eq.s32.totalorder %s25, 0
      %p74 = por %p72, %p73
      %p75 = scmp.ne.s32.totalorder %s63, %s64
      %p76 = scmp.eq.s32.totalorder %s26, 9
      %p77 = por %p75, %p76
      %p79 = scmp.ne.s32.totalorder %s64, %s78
      %p80 = scmp.eq.s32.totalorder %s26, 0
      %p81 = por %p79, %p80
      %s83 = sadd.s32 %s82, 1
      %p86 = scmp.eq.s32.totalorder %s20, 9
      %p87 = scmp.ne.s32.totalorder %s82, %s84
      %p88 = scmp.eq.s32.totalorder %s20, 0
      %p89 = por %p87, %p88
      %p90 = scmp.ne.s32.totalorder %s82, %s84
      %p91 = scmp.eq.s32.totalorder %s25, 9
      %p92 = por %p90, %p91
      %p93 = scmp.ne.s32.totalorder %s84, %s85
      %p94 = scmp.eq.s32.totalorder %s25, 0
      %p95 = por %p93, %p94
      %p96 = scmp.ne.s32.totalorder %s84, %s85
      %p97 = scmp.eq.s32.totalorder %s26, 9
      %p98 = por %p96, %p97
      %p100 = scmp.ne.s32.totalorder %s85, %s99
      %p101 = scmp.eq.s32.totalorder %s26, 0
      %p102 = por %p100, %p101
      %s103 = ssub.s32 %s27, %s39
      %s104 = ssub.s32 %s28, %s35
      %s105 = sor.u32 %s103, %s104
      %p106 = scmp.eq.s32.totalorder %s105, 0
      %s108 = sadd.s32 %s107, 1
      %s109 = scalar_select %p106, %s107, %s108
      %p112 = pneg %p106
      %p113 = scmp.eq.s32.totalorder %s20, 9
      %p114 = por %p112, %p113
      %p115 = scmp.ne.s32.totalorder %s107, %s110
      %p116 = scmp.eq.s32.totalorder %s20, 0
      %p117 = por %p115, %p116
      %p118 = scmp.ne.s32.totalorder %s107, %s110
      %p119 = scmp.eq.s32.totalorder %s25, 9
      %p120 = por %p118, %p119
      %p121 = scmp.ne.s32.totalorder %s110, %s111
      %p122 = scmp.eq.s32.totalorder %s25, 0
      %p123 = por %p121, %p122
      %p124 = scmp.ne.s32.totalorder %s110, %s111
      %p125 = scmp.eq.s32.totalorder %s26, 9
      %p126 = por %p124, %p125
      %p128 = scmp.ne.s32.totalorder %s111, %s127
      %p129 = scmp.eq.s32.totalorder %s26, 0
      %p130 = por %p128, %p129
      %s131 = ssub.s32 %s27, %s39
      %s132 = ssub.s32 %s28, %s35
      %s133 = sor.u32 %s131, %s132
      %p134 = scmp.eq.s32.totalorder %s133, 0
      %s136 = sadd.s32 %s135, 1
      %s137 = scalar_select %p134, %s135, %s136
      %p140 = pneg %p134
      %p141 = scmp.eq.s32.totalorder %s20, 9
      %p142 = por %p140, %p141
      %p143 = scmp.ne.s32.totalorder %s135, %s138
      %p144 = scmp.eq.s32.totalorder %s20, 0
      %p145 = por %p143, %p144
      %p146 = scmp.ne.s32.totalorder %s135, %s138
      %p147 = scmp.eq.s32.totalorder %s25, 9
      %p148 = por %p146, %p147
      %p149 = scmp.ne.s32.totalorder %s138, %s139
      %p150 = scmp.eq.s32.totalorder %s25, 0
      %p151 = por %p149, %p150
      %p152 = scmp.ne.s32.totalorder %s138, %s139
      %p153 = scmp.eq.s32.totalorder %s26, 9
      %p154 = por %p152, %p153
      %p156 = scmp.ne.s32.totalorder %s139, %s155
      %p157 = scmp.eq.s32.totalorder %s26, 0
      %p158 = por %p156, %p157
      %s160 = sadd.s32 %s159, 1
      %p163 = scmp.eq.s32.totalorder %s20, 9
      %p164 = scmp.ne.s32.totalorder %s159, %s161
      %p165 = scmp.eq.s32.totalorder %s20, 0
      %p166 = por %p164, %p165
      %p167 = scmp.ne.s32.totalorder %s159, %s161
      %p168 = scmp.eq.s32.totalorder %s25, 9
      %p169 = por %p167, %p168
      %p170 = scmp.ne.s32.totalorder %s161, %s162
      %p171 = scmp.eq.s32.totalorder %s25, 0
      %p172 = por %p170, %p171
      %p173 = scmp.ne.s32.totalorder %s161, %s162
      %p174 = scmp.eq.s32.totalorder %s26, 9
      %p175 = por %p173, %p174
      %p177 = scmp.ne.s32.totalorder %s162, %s176
      %p178 = scmp.eq.s32.totalorder %s26, 0
      %p179 = por %p177, %p178
      %s181 = sadd.s32 %s180, 1
      %p184 = scmp.eq.s32.totalorder %s20, 9
      %p185 = scmp.ne.s32.totalorder %s180, %s182
      %p186 = scmp.eq.s32.totalorder %s20, 0
      %p187 = por %p185, %p186
      %p188 = scmp.ne.s32.totalorder %s180, %s182
      %p189 = scmp.eq.s32.totalorder %s25, 9
      %p190 = por %p188, %p189
      %p191 = scmp.ne.s32.totalorder %s182, %s183
      %p192 = scmp.eq.s32.totalorder %s25, 0
      %p193 = por %p191, %p192
      %p194 = scmp.ne.s32.totalorder %s182, %s183
      %p195 = scmp.eq.s32.totalorder %s26, 9
      %p196 = por %p194, %p195
      %p198 = scmp.ne.s32.totalorder %s183, %s197
      %p199 = scmp.eq.s32.totalorder %s26, 0
      %p200 = por %p198, %p199
      %s202 = sadd.s32 %s201, 1
      %p205 = scmp.eq.s32.totalorder %s20, 9
      %p206 = scmp.ne.s32.totalorder %s201, %s203
      %p207 = scmp.eq.s32.totalorder %s20, 0
      %p208 = por %p206, %p207
      %p209 = scmp.ne.s32.totalorder %s201, %s203
      %p210 = scmp.eq.s32.totalorder %s25, 9
      %p211 = por %p209, %p210
      %p212 = scmp.ne.s32.totalorder %s203, %s204
      %p213 = scmp.eq.s32.totalorder %s25, 0
      %p214 = por %p212, %p213
      %p215 = scmp.ne.s32.totalorder %s203, %s204
      %p216 = scmp.eq.s32.totalorder %s26, 9
      %p217 = por %p215, %p216
      %p219 = scmp.ne.s32.totalorder %s204, %s218
      %p220 = scmp.eq.s32.totalorder %s26, 0
      %p221 = por %p219, %p220
      %p222 = scmp.le.s32.totalorder 1, %s20
      %p223 = scmp.lt.s32.totalorder %s20, 11
      %p224 = pnand %p222, %p223
      %p225 = pneg %p224
      // Predicated region
      $region9: #{neunet_forward.1} parent=5 // pred_check
        _
      $region10: #{neunet_forward.1} parent=5 // pred_check_branch
        %227 = sbr.rel (%p224) target = $region12
      $region11: #{neunet_forward.1} parent=5 // pred_region
        %s228 = ssub.s32 %s20, 1
        // Predicated region
        $region13: #{neunet_forward.1} parent=11 // pred_check
          %p229 = pneg %p53
        $region14: #{neunet_forward.1} parent=11 // pred_check_branch
          %231 = sbr.rel (%p229) target = $region16
        $region15: #{neunet_forward.1} parent=11 // pred_region
          %s233 = ssub.s32 128, 128
          %234 = vsyncadd [#allocation5], %s233
          %s236 = sshll.u32 [#allocation4], 4
          %s237 = int_to_ptr.vmem [resolvable:$true] %s236
          %239 = dma.hbm_to_vmem [thread:$0]  %s0, 128, %s237, [#allocation5]
        $region16: #{neunet_forward.1} parent=11 // pred_fallthru
          _
        // Predicated region
        $region17: #{neunet_forward.1} parent=11 // pred_check
          %p240 = pneg %p74
        $region18: #{neunet_forward.1} parent=11 // pred_check_branch
          %242 = sbr.rel (%p240) target = $region20
        $region19: #{neunet_forward.1} parent=11 // pred_region
          %s244 = ssub.s32 4096, 4096
          %245 = vsyncadd [#allocation7], %s244
          %s246 = sshll.u32 [#allocation6], 4
          %s247 = int_to_ptr.vmem [resolvable:$true] %s246
          %252 = dma.hbm_to_vmem [thread:$0]  %s1, 4096, %s247, [#allocation7], 2048, 2048, 128
        $region20: #{neunet_forward.1} parent=11 // pred_fallthru
          _
        // Predicated region
        $region21: #{neunet_forward.1} parent=11 // pred_check
          %p253 = pneg %p95
        $region22: #{neunet_forward.1} parent=11 // pred_check_branch
          %255 = sbr.rel (%p253) target = $region24
        $region23: #{neunet_forward.1} parent=11 // pred_region
          %s257 = ssub.s32 256, 256
          %258 = vsyncadd [#allocation7], %s257
          %s260 = sshll.u32 [#allocation8], 4
          %s261 = int_to_ptr.vmem [resolvable:$true] %s260
          %263 = dma.hbm_to_vmem [thread:$0]  %s2, 256, %s261, [#allocation7]
        $region24: #{neunet_forward.1} parent=11 // pred_fallthru
          _
        // Predicated region
        $region25: #{neunet_forward.1} parent=11 // pred_check
          %p264 = pneg %p172
        $region26: #{neunet_forward.1} parent=11 // pred_check_branch
          %266 = sbr.rel (%p264) target = $region28
        $region27: #{neunet_forward.1} parent=11 // pred_region
          _
        $region28: #{neunet_forward.1} parent=11 // pred_fallthru
          _
        // Predicated region
        $region29: #{neunet_forward.1} parent=11 // pred_check
          %p267 = pneg %p193
        $region30: #{neunet_forward.1} parent=11 // pred_check_branch
          %269 = sbr.rel (%p267) target = $region32
        $region31: #{neunet_forward.1} parent=11 // pred_region
          _
        $region32: #{neunet_forward.1} parent=11 // pred_fallthru
          _
      $region12: #{neunet_forward.1} parent=5 // pred_fallthru
        _
      %p270 = scmp.lt.s32.totalorder %s20, 10
      // Predicated region
      $region33: #{neunet_forward.1} parent=5 // pred_check
        %p271 = pneg %p270
      $region34: #{neunet_forward.1} parent=5 // pred_check_branch
        %273 = sbr.rel (%p271) target = $region36
      $region35: #{neunet_forward.1} parent=5 // pred_region
        // Predicated region
        $region37: #{neunet_forward.1} parent=35 // pred_check
          %p274 = pneg %p117
        $region38: #{neunet_forward.1} parent=35 // pred_check_branch
          %276 = sbr.rel (%p274) target = $region40
        $region39: #{neunet_forward.1} parent=35 // pred_region
          %s277 = sand.u32 %s20, 1
          %s278 = scalar_lea.sflag [#allocation10], %s277
          %s279 = sand.u32 %s107, 1
          %s280 = smul.addr %s279, 8192
          %s281 = scalar_lea.vmem [#allocation9], %s280
          %s282 = smul.u32 8, %s28
          %s284 = ssub.s32 131072, 131072
          %285 = vsyncadd %s278, %s284
          %s286 = smul.addr %s27, 4096
          %s287 = sadd.s32 %s282, %s286
          %s288 = smul.addr %s287, 64
          %s289 = scalar_lea.hbm %s3, %s288
          %s290 = sshll.u32 %s281, 4
          %s291 = int_to_ptr.vmem [resolvable:$true] %s290
          %296 = dma.hbm_to_vmem [thread:$0]  %s289, 131072, %s291, %s278, 1024, 512, 32
        $region40: #{neunet_forward.1} parent=35 // pred_fallthru
          _
        // Predicated region
        $region41: #{neunet_forward.1} parent=35 // pred_check
          %p297 = pneg %p145
        $region42: #{neunet_forward.1} parent=35 // pred_check_branch
          %299 = sbr.rel (%p297) target = $region44
        $region43: #{neunet_forward.1} parent=35 // pred_region
          %s300 = sand.u32 %s20, 1
          %s301 = scalar_lea.sflag [#allocation10], %s300
          %s302 = sand.u32 %s135, 1
          %s303 = smul.addr %s302, 8
          %s304 = scalar_lea.vmem [#allocation11], %s303
          %s305 = smul.u32 8, %s28
          %s307 = ssub.s32 128, 128
          %308 = vsyncadd %s301, %s307
          %s309 = smul.addr %s27, 16
          %s310 = sadd.s32 %s305, %s309
          %s311 = smul.addr %s310, 16
          %s312 = scalar_lea.hbm %s4, %s311
          %s314 = sshll.u32 %s304, 4
          %s315 = int_to_ptr.vmem [resolvable:$true] %s314
          %317 = dma.hbm_to_vmem [thread:$0]  %s312, 128, %s315, %s301
        $region44: #{neunet_forward.1} parent=35 // pred_fallthru
          _
      $region36: #{neunet_forward.1} parent=5 // pred_fallthru
        _
      %p318 = scmp.le.s32.totalorder 1, %s20
      %p319 = scmp.lt.s32.totalorder %s20, 11
      %p320 = pnand %p318, %p319
      %p321 = pneg %p320
      // Predicated region
      $region45: #{neunet_forward.1} parent=5 // pred_check
        _
      $region46: #{neunet_forward.1} parent=5 // pred_check_branch
        %323 = sbr.rel (%p320) target = $region48
      $region47: #{neunet_forward.1} parent=5 // pred_region
        %s324 = ssub.s32 %s20, 1
        // Predicated region
        $region49: #{neunet_forward.1} parent=47 // pred_check
          %p325 = pneg %p53
        $region50: #{neunet_forward.1} parent=47 // pred_check_branch
          %327 = sbr.rel (%p325) target = $region52
        $region51: #{neunet_forward.1} parent=47 // pred_region
          %328 = dma.done [#allocation5], 128
        $region52: #{neunet_forward.1} parent=47 // pred_fallthru
          _
        // Predicated region
        $region53: #{neunet_forward.1} parent=47 // pred_check
          %p329 = pneg %p74
        $region54: #{neunet_forward.1} parent=47 // pred_check_branch
          %331 = sbr.rel (%p329) target = $region56
        $region55: #{neunet_forward.1} parent=47 // pred_region
          %332 = dma.done [#allocation7], 4096
        $region56: #{neunet_forward.1} parent=47 // pred_fallthru
          _
        // Predicated region
        $region57: #{neunet_forward.1} parent=47 // pred_check
          %p333 = pneg %p95
        $region58: #{neunet_forward.1} parent=47 // pred_check_branch
          %335 = sbr.rel (%p333) target = $region60
        $region59: #{neunet_forward.1} parent=47 // pred_region
          %336 = dma.done [#allocation7], 256
        $region60: #{neunet_forward.1} parent=47 // pred_fallthru
          _
        %s337 = sand.u32 %s25, 1
        %s338 = scalar_lea.sflag [#allocation10], %s337
        %s339 = sand.u32 %s110, 1
        %s340 = smul.addr %s339, 8192
        %s341 = scalar_lea.vmem [#allocation9], %s340
        // Predicated region
        $region61: #{neunet_forward.1} parent=47 // pred_check
          %p342 = pneg %p123
        $region62: #{neunet_forward.1} parent=47 // pred_check_branch
          %344 = sbr.rel (%p342) target = $region64
        $region63: #{neunet_forward.1} parent=47 // pred_region
          %345 = dma.done %s338, 131072
        $region64: #{neunet_forward.1} parent=47 // pred_fallthru
          _
        %s346 = sand.u32 %s25, 1
        %s347 = scalar_lea.sflag [#allocation10], %s346
        %s348 = sand.u32 %s138, 1
        %s349 = smul.addr %s348, 8
        %s350 = scalar_lea.vmem [#allocation11], %s349
        // Predicated region
        $region65: #{neunet_forward.1} parent=47 // pred_check
          %p351 = pneg %p151
        $region66: #{neunet_forward.1} parent=47 // pred_check_branch
          %353 = sbr.rel (%p351) target = $region68
        $region67: #{neunet_forward.1} parent=47 // pred_region
          %354 = dma.done %s347, 128
        $region68: #{neunet_forward.1} parent=47 // pred_fallthru
          _
        %p355 = pneg %p53
        %p356 = pneg %p50
        %p357 = pneg %p74
        %p358 = pneg %p71
        %p359 = pneg %p95
        %p360 = pneg %p92
        %s361 = sand.u32 %s25, 1
        %s362 = scalar_lea.sflag [#allocation10], %s361
        %s363 = sand.u32 %s110, 1
        %s364 = smul.addr %s363, 8192
        %s365 = scalar_lea.vmem [#allocation9], %s364
        %p366 = pneg %p123
        %p367 = pneg %p120
        %s368 = sand.u32 %s25, 1
        %s369 = scalar_lea.sflag [#allocation10], %s368
        %s370 = sand.u32 %s138, 1
        %s371 = smul.addr %s370, 8
        %s372 = scalar_lea.vmem [#allocation11], %s371
        %p373 = pneg %p151
        %p374 = pneg %p148
        %p375 = pneg %p172
        %p376 = pneg %p169
        %p377 = pneg %p193
        %p378 = pneg %p190
        %p379 = pneg %p214
        %p380 = pneg %p211
        %s381 = smul.u32 8, %s30
        %s382 = smul.u32 8, %s30
        %p384 = scmp.lt.s32.totalorder %s29, 0
        %s385 = ssub.s32 0, %s29
        %s386 = scalar_select %p384, %s385, %s29
        %s387 = sand.u32 %s386, 1
        %s388 = ssub.s32 0, %s387
        %s389 = scalar_select %p384, %s388, %s387
        %s390 = ssub.s32 1, %s389
        %p391 = scmp.eq.s32.totalorder %s29, 0
        %p392 = scmp.eq.s32.totalorder %s30, 0
        %p393 = pnand %p391, %p392
        %p394 = pneg %p393
        // Predicated region
        $region69: #{neunet_forward.1} parent=47 // pred_check
          _
        $region70: #{neunet_forward.1} parent=47 // pred_check_branch
          %396 = sbr.rel (%p393) target = $region72
        $region71: #{neunet_forward.1} parent=47 // pred_region
          %v397 = vld [vmem:[#allocation4] sm:$0xff]
          %v398 = vld [vmem:[#allocation6] sm:$0xff]
          %v399 = vld [vmem:[#allocation6 + $0x8] sm:$0xff]
          %v400 = vld [vmem:[#allocation6 + $0x10] sm:$0xff]
          %v401 = vld [vmem:[#allocation6 + $0x18] sm:$0xff]
          %v402 = vld [vmem:[#allocation6 + $0x20] sm:$0xff]
          %v403 = vld [vmem:[#allocation6 + $0x28] sm:$0xff]
          %v404 = vld [vmem:[#allocation6 + $0x30] sm:$0xff]
          %v405 = vld [vmem:[#allocation6 + $0x38] sm:$0xff]
          %v406 = vld [vmem:[#allocation6 + $0x40] sm:$0xff]
          %v407 = vld [vmem:[#allocation6 + $0x48] sm:$0xff]
          %v408 = vld [vmem:[#allocation6 + $0x50] sm:$0xff]
          %v409 = vld [vmem:[#allocation6 + $0x58] sm:$0xff]
          %v410 = vld [vmem:[#allocation6 + $0x60] sm:$0xff]
          %v411 = vld [vmem:[#allocation6 + $0x68] sm:$0xff]
          %v412 = vld [vmem:[#allocation6 + $0x70] sm:$0xff]
          %v413 = vld [vmem:[#allocation6 + $0x78] sm:$0xff]
          %v414 = vld [vmem:[#allocation6 + $0x80] sm:$0x7]
          %v415 = vld [vmem:[#allocation6 + $0x88] sm:$0x7]
          %v416 = vld [vmem:[#allocation6 + $0x90] sm:$0x7]
          %v417 = vld [vmem:[#allocation6 + $0x98] sm:$0x7]
          %v418 = vld [vmem:[#allocation6 + $0xa0] sm:$0x7]
          %v419 = vld [vmem:[#allocation6 + $0xa8] sm:$0x7]
          %v420 = vld [vmem:[#allocation6 + $0xb0] sm:$0x7]
          %v421 = vld [vmem:[#allocation6 + $0xb8] sm:$0x7]
          %v422 = vld [vmem:[#allocation6 + $0xc0] sm:$0x7]
          %v423 = vld [vmem:[#allocation6 + $0xc8] sm:$0x7]
          %v424 = vld [vmem:[#allocation6 + $0xd0] sm:$0x7]
          %v425 = vld [vmem:[#allocation6 + $0xd8] sm:$0x7]
          %v426 = vld [vmem:[#allocation6 + $0xe0] sm:$0x7]
          %v427 = vld [vmem:[#allocation6 + $0xe8] sm:$0x7]
          %v428 = vld [vmem:[#allocation6 + $0xf0] sm:$0x7]
          %v429 = vld [vmem:[#allocation6 + $0xf8] sm:$0x7]
          %v430 = vld [vmem:[#allocation8] sm:$0xff]
          %v431 = vld [vmem:[#allocation8 + $0x8] sm:$0xff]
          %v434 = vlaneseq
          %v435 = vshrl.u32 %v434, 7
          %v436 = vsub.s32 0, %v435
          %v437 = vrot.slane %v430, %v436
          %v438 = vlaneseq
          %v439 = vshrl.u32 %v438, 7
          %v440 = vsub.s32 1, %v439
          %v441 = vrot.slane %v430, %v440
          %v442 = vlaneseq
          %v443 = vshrl.u32 %v442, 7
          %v444 = vsub.s32 2, %v443
          %v445 = vrot.slane %v430, %v444
          %v446 = vlaneseq
          %v447 = vshrl.u32 %v446, 7
          %v448 = vsub.s32 3, %v447
          %v449 = vrot.slane %v430, %v448
          %v450 = vlaneseq
          %v451 = vshrl.u32 %v450, 7
          %v452 = vsub.s32 4, %v451
          %v453 = vrot.slane %v430, %v452
          %v454 = vlaneseq
          %v455 = vshrl.u32 %v454, 7
          %v456 = vsub.s32 5, %v455
          %v457 = vrot.slane %v430, %v456
          %v458 = vlaneseq
          %v459 = vshrl.u32 %v458, 7
          %v460 = vsub.s32 6, %v459
          %v461 = vrot.slane %v430, %v460
          %v462 = vlaneseq
          %v463 = vshrl.u32 %v462, 7
          %v464 = vsub.s32 7, %v463
          %v465 = vrot.slane %v430, %v464
          %v466 = vlaneseq
          %v467 = vshrl.u32 %v466, 7
          %v468 = vsub.s32 0, %v467
          %v469 = vrot.slane %v431, %v468
          %v470 = vlaneseq
          %v471 = vshrl.u32 %v470, 7
          %v472 = vsub.s32 1, %v471
          %v473 = vrot.slane %v431, %v472
          %v474 = vlaneseq
          %v475 = vshrl.u32 %v474, 7
          %v476 = vsub.s32 2, %v475
          %v477 = vrot.slane %v431, %v476
          %v478 = vlaneseq
          %v479 = vshrl.u32 %v478, 7
          %v480 = vsub.s32 3, %v479
          %v481 = vrot.slane %v431, %v480
          %v482 = vlaneseq
          %v483 = vshrl.u32 %v482, 7
          %v484 = vsub.s32 4, %v483
          %v485 = vrot.slane %v431, %v484
          %v486 = vlaneseq
          %v487 = vshrl.u32 %v486, 7
          %v488 = vsub.s32 5, %v487
          %v489 = vrot.slane %v431, %v488
          %v490 = vlaneseq
          %v491 = vshrl.u32 %v490, 7
          %v492 = vsub.s32 6, %v491
          %v493 = vrot.slane %v431, %v492
          %v494 = vlaneseq
          %v495 = vshrl.u32 %v494, 7
          %v496 = vsub.s32 7, %v495
          %v497 = vrot.slane %v431, %v496
          %vm514 = vcmask 89088
          %v516 = vsel %vm514, %v397, 0
          %vm518 = vcmask 1042432
          %v520 = vsel %vm518, %v414, 0
          %v523 = vsel %vm518, %v415, 0
          %v526 = vsel %vm518, %v416, 0
          %v529 = vsel %vm518, %v417, 0
          %v532 = vsel %vm518, %v418, 0
          %v535 = vsel %vm518, %v419, 0
          %v538 = vsel %vm518, %v420, 0
          %v541 = vsel %vm518, %v421, 0
          %v544 = vsel %vm518, %v422, 0
          %v547 = vsel %vm518, %v423, 0
          %v550 = vsel %vm518, %v424, 0
          %v553 = vsel %vm518, %v425, 0
          %v556 = vsel %vm518, %v426, 0
          %v559 = vsel %vm518, %v427, 0
          %v562 = vsel %vm518, %v428, 0
          %v565 = vsel %vm518, %v429, 0
          %567 = vmatprep.subr.mxu0 %v399
          %568 = vmatpush1.msra.mxu0 %v398
          %569 = vmatprep.subr.mxu0 %v523
          %570 = vmatpush1.msra.mxu0 %v520
          %571 = vmatprep.subr.mxu0 0.0
          %572 = vmatpush1.msra.mxu0 0.0
          %573 = vmatprep.subr.mxu0 0.0
          %574 = vmatpush1.msra.mxu0 0.0
          %575 = vmatprep.subr.mxu0 0.0
          %576 = vmatpush1.msra.mxu0 0.0
          %577 = vmatprep.subr.mxu0 0.0
          %578 = vmatpush1.msra.mxu0 0.0
          %579 = vmatprep.subr.mxu0 0.0
          %580 = vmatpush1.msra.mxu0 0.0
          %581 = vmatprep.subr.mxu0 0.0
          %582 = vmatpush1.msra.mxu0 0.0
          %583 = vmatprep.subr.mxu0 0.0
          %584 = vmatpush1.msra.mxu0 0.0
          %585 = vmatprep.subr.mxu0 0.0
          %586 = vmatpush1.msra.mxu0 0.0
          %587 = vmatprep.subr.mxu0 0.0
          %588 = vmatpush1.msra.mxu0 0.0
          %589 = vmatprep.subr.mxu0 0.0
          %590 = vmatpush1.msra.mxu0 0.0
          %591 = vmatprep.subr.mxu0 0.0
          %592 = vmatpush1.msra.mxu0 0.0
          %593 = vmatprep.subr.mxu0 0.0
          %594 = vmatpush1.msra.mxu0 0.0
          %595 = vmatprep.subr.mxu0 0.0
          %596 = vmatpush1.msra.mxu0 0.0
          %597 = vmatprep.subr.mxu0 0.0
          %598 = vmatpush1.msra.mxu0 0.0
          %599 = vmatprep.subr.mxu0 0.0
          %600 = vmatpush1.msra.mxu0 0.0
          %601 = vmatprep.subr.mxu0 0.0
          %602 = vmatpush1.msra.mxu0 0.0
          %603 = vmatprep.subr.mxu0 0.0
          %604 = vmatpush1.msra.mxu0 0.0
          %605 = vmatprep.subr.mxu0 0.0
          %606 = vmatpush1.msra.mxu0 0.0
          %607 = vmatprep.subr.mxu0 0.0
          %608 = vmatpush1.msra.mxu0 0.0
          %609 = vmatprep.subr.mxu0 0.0
          %610 = vmatpush1.msra.mxu0 0.0
          %611 = vmatprep.subr.mxu0 0.0
          %612 = vmatpush1.msra.mxu0 0.0
          %613 = vmatprep.subr.mxu0 0.0
          %614 = vmatpush1.msra.mxu0 0.0
          %615 = vmatprep.subr.mxu0 0.0
          %616 = vmatpush1.msra.mxu0 0.0
          %617 = vmatprep.subr.mxu0 0.0
          %618 = vmatpush1.msra.mxu0 0.0
          %619 = vmatprep.subr.mxu0 0.0
          %620 = vmatpush1.msra.mxu0 0.0
          %621 = vmatprep.subr.mxu0 0.0
          %622 = vmatpush1.msra.mxu0 0.0
          %623 = vmatprep.subr.mxu0 0.0
          %624 = vmatpush1.msra.mxu0 0.0
          %625 = vmatprep.subr.mxu0 0.0
          %626 = vmatpush1.msra.mxu0 0.0
          %627 = vmatprep.subr.mxu0 0.0
          %628 = vmatpush1.msra.mxu0 0.0
          %629 = vmatprep.subr.mxu0 0.0
          %630 = vmatpush1.msra.mxu0 0.0
          %631 = vmatprep.mubr.f32.mxu0 0.0
          %632 = vmatmul.mubr.f32.gmra.mrb[0].mxu0 %v516
          %v633 = vpop.f32.mrb[0].mxu0
          %v634 = vadd.f32 %v437, %v633
          %v635 = vpop.f32.mrb[0].mxu0
          %v636 = vadd.f32 %v441, %v635
          %637 = vdwg.mxu0
          %638 = vmatprep.subr.mxu0 %v401
          %639 = vmatpush1.msra.mxu0 %v400
          %640 = vmatprep.subr.mxu0 %v529
          %641 = vmatpush1.msra.mxu0 %v526
          %642 = vmatprep.subr.mxu0 0.0
          %643 = vmatpush1.msra.mxu0 0.0
          %644 = vmatprep.subr.mxu0 0.0
          %645 = vmatpush1.msra.mxu0 0.0
          %646 = vmatprep.subr.mxu0 0.0
          %647 = vmatpush1.msra.mxu0 0.0
          %648 = vmatprep.subr.mxu0 0.0
          %649 = vmatpush1.msra.mxu0 0.0
          %650 = vmatprep.subr.mxu0 0.0
          %651 = vmatpush1.msra.mxu0 0.0
          %652 = vmatprep.subr.mxu0 0.0
          %653 = vmatpush1.msra.mxu0 0.0
          %654 = vmatprep.subr.mxu0 0.0
          %655 = vmatpush1.msra.mxu0 0.0
          %656 = vmatprep.subr.mxu0 0.0
          %657 = vmatpush1.msra.mxu0 0.0
          %658 = vmatprep.subr.mxu0 0.0
          %659 = vmatpush1.msra.mxu0 0.0
          %660 = vmatprep.subr.mxu0 0.0
          %661 = vmatpush1.msra.mxu0 0.0
          %662 = vmatprep.subr.mxu0 0.0
          %663 = vmatpush1.msra.mxu0 0.0
          %664 = vmatprep.subr.mxu0 0.0
          %665 = vmatpush1.msra.mxu0 0.0
          %666 = vmatprep.subr.mxu0 0.0
          %667 = vmatpush1.msra.mxu0 0.0
          %668 = vmatprep.subr.mxu0 0.0
          %669 = vmatpush1.msra.mxu0 0.0
          %670 = vmatprep.subr.mxu0 0.0
          %671 = vmatpush1.msra.mxu0 0.0
          %672 = vmatprep.subr.mxu0 0.0
          %673 = vmatpush1.msra.mxu0 0.0
          %674 = vmatprep.subr.mxu0 0.0
          %675 = vmatpush1.msra.mxu0 0.0
          %676 = vmatprep.subr.mxu0 0.0
          %677 = vmatpush1.msra.mxu0 0.0
          %678 = vmatprep.subr.mxu0 0.0
          %679 = vmatpush1.msra.mxu0 0.0
          %680 = vmatprep.subr.mxu0 0.0
          %681 = vmatpush1.msra.mxu0 0.0
          %682 = vmatprep.subr.mxu0 0.0
          %683 = vmatpush1.msra.mxu0 0.0
          %684 = vmatprep.subr.mxu0 0.0
          %685 = vmatpush1.msra.mxu0 0.0
          %686 = vmatprep.subr.mxu0 0.0
          %687 = vmatpush1.msra.mxu0 0.0
          %688 = vmatprep.subr.mxu0 0.0
          %689 = vmatpush1.msra.mxu0 0.0
          %690 = vmatprep.subr.mxu0 0.0
          %691 = vmatpush1.msra.mxu0 0.0
          %692 = vmatprep.subr.mxu0 0.0
          %693 = vmatpush1.msra.mxu0 0.0
          %694 = vmatprep.subr.mxu0 0.0
          %695 = vmatpush1.msra.mxu0 0.0
          %696 = vmatprep.subr.mxu0 0.0
          %697 = vmatpush1.msra.mxu0 0.0
          %698 = vmatprep.subr.mxu0 0.0
          %699 = vmatpush1.msra.mxu0 0.0
          %700 = vmatprep.subr.mxu0 0.0
          %701 = vmatpush1.msra.mxu0 0.0
          %702 = vmatprep.mubr.f32.mxu0 0.0
          %703 = vmatmul.mubr.f32.gmra.mrb[0].mxu0 %v516
          %v704 = vpop.f32.mrb[0].mxu0
          %v705 = vadd.f32 %v445, %v704
          %v706 = vpop.f32.mrb[0].mxu0
          %v707 = vadd.f32 %v449, %v706
          %708 = vdwg.mxu0
          %709 = vmatprep.subr.mxu0 %v403
          %710 = vmatpush1.msra.mxu0 %v402
          %711 = vmatprep.subr.mxu0 %v535
          %712 = vmatpush1.msra.mxu0 %v532
          %713 = vmatprep.subr.mxu0 0.0
          %714 = vmatpush1.msra.mxu0 0.0
          %715 = vmatprep.subr.mxu0 0.0
          %716 = vmatpush1.msra.mxu0 0.0
          %717 = vmatprep.subr.mxu0 0.0
          %718 = vmatpush1.msra.mxu0 0.0
          %719 = vmatprep.subr.mxu0 0.0
          %720 = vmatpush1.msra.mxu0 0.0
          %721 = vmatprep.subr.mxu0 0.0
          %722 = vmatpush1.msra.mxu0 0.0
          %723 = vmatprep.subr.mxu0 0.0
          %724 = vmatpush1.msra.mxu0 0.0
          %725 = vmatprep.subr.mxu0 0.0
          %726 = vmatpush1.msra.mxu0 0.0
          %727 = vmatprep.subr.mxu0 0.0
          %728 = vmatpush1.msra.mxu0 0.0
          %729 = vmatprep.subr.mxu0 0.0
          %730 = vmatpush1.msra.mxu0 0.0
          %731 = vmatprep.subr.mxu0 0.0
          %732 = vmatpush1.msra.mxu0 0.0
          %733 = vmatprep.subr.mxu0 0.0
          %734 = vmatpush1.msra.mxu0 0.0
          %735 = vmatprep.subr.mxu0 0.0
          %736 = vmatpush1.msra.mxu0 0.0
          %737 = vmatprep.subr.mxu0 0.0
          %738 = vmatpush1.msra.mxu0 0.0
          %739 = vmatprep.subr.mxu0 0.0
          %740 = vmatpush1.msra.mxu0 0.0
          %741 = vmatprep.subr.mxu0 0.0
          %742 = vmatpush1.msra.mxu0 0.0
          %743 = vmatprep.subr.mxu0 0.0
          %744 = vmatpush1.msra.mxu0 0.0
          %745 = vmatprep.subr.mxu0 0.0
          %746 = vmatpush1.msra.mxu0 0.0
          %747 = vmatprep.subr.mxu0 0.0
          %748 = vmatpush1.msra.mxu0 0.0
          %749 = vmatprep.subr.mxu0 0.0
          %750 = vmatpush1.msra.mxu0 0.0
          %751 = vmatprep.subr.mxu0 0.0
          %752 = vmatpush1.msra.mxu0 0.0
          %753 = vmatprep.subr.mxu0 0.0
          %754 = vmatpush1.msra.mxu0 0.0
          %755 = vmatprep.subr.mxu0 0.0
          %756 = vmatpush1.msra.mxu0 0.0
          %757 = vmatprep.subr.mxu0 0.0
          %758 = vmatpush1.msra.mxu0 0.0
          %759 = vmatprep.subr.mxu0 0.0
          %760 = vmatpush1.msra.mxu0 0.0
          %761 = vmatprep.subr.mxu0 0.0
          %762 = vmatpush1.msra.mxu0 0.0
          %763 = vmatprep.subr.mxu0 0.0
          %764 = vmatpush1.msra.mxu0 0.0
          %765 = vmatprep.subr.mxu0 0.0
          %766 = vmatpush1.msra.mxu0 0.0
          %767 = vmatprep.subr.mxu0 0.0
          %768 = vmatpush1.msra.mxu0 0.0
          %769 = vmatprep.subr.mxu0 0.0
          %770 = vmatpush1.msra.mxu0 0.0
          %771 = vmatprep.subr.mxu0 0.0
          %772 = vmatpush1.msra.mxu0 0.0
          %773 = vmatprep.mubr.f32.mxu0 0.0
          %774 = vmatmul.mubr.f32.gmra.mrb[0].mxu0 %v516
          %v775 = vpop.f32.mrb[0].mxu0
          %v776 = vadd.f32 %v453, %v775
          %v777 = vpop.f32.mrb[0].mxu0
          %v778 = vadd.f32 %v457, %v777
          %779 = vdwg.mxu0
          %780 = vmatprep.subr.mxu0 %v405
          %781 = vmatpush1.msra.mxu0 %v404
          %782 = vmatprep.subr.mxu0 %v541
          %783 = vmatpush1.msra.mxu0 %v538
          %784 = vmatprep.subr.mxu0 0.0
          %785 = vmatpush1.msra.mxu0 0.0
          %786 = vmatprep.subr.mxu0 0.0
          %787 = vmatpush1.msra.mxu0 0.0
          %788 = vmatprep.subr.mxu0 0.0
          %789 = vmatpush1.msra.mxu0 0.0
          %790 = vmatprep.subr.mxu0 0.0
          %791 = vmatpush1.msra.mxu0 0.0
          %792 = vmatprep.subr.mxu0 0.0
          %793 = vmatpush1.msra.mxu0 0.0
          %794 = vmatprep.subr.mxu0 0.0
          %795 = vmatpush1.msra.mxu0 0.0
          %796 = vmatprep.subr.mxu0 0.0
          %797 = vmatpush1.msra.mxu0 0.0
          %798 = vmatprep.subr.mxu0 0.0
          %799 = vmatpush1.msra.mxu0 0.0
          %800 = vmatprep.subr.mxu0 0.0
          %801 = vmatpush1.msra.mxu0 0.0
          %802 = vmatprep.subr.mxu0 0.0
          %803 = vmatpush1.msra.mxu0 0.0
          %804 = vmatprep.subr.mxu0 0.0
          %805 = vmatpush1.msra.mxu0 0.0
          %806 = vmatprep.subr.mxu0 0.0
          %807 = vmatpush1.msra.mxu0 0.0
          %808 = vmatprep.subr.mxu0 0.0
          %809 = vmatpush1.msra.mxu0 0.0
          %810 = vmatprep.subr.mxu0 0.0
          %811 = vmatpush1.msra.mxu0 0.0
          %812 = vmatprep.subr.mxu0 0.0
          %813 = vmatpush1.msra.mxu0 0.0
          %814 = vmatprep.subr.mxu0 0.0
          %815 = vmatpush1.msra.mxu0 0.0
          %816 = vmatprep.subr.mxu0 0.0
          %817 = vmatpush1.msra.mxu0 0.0
          %818 = vmatprep.subr.mxu0 0.0
          %819 = vmatpush1.msra.mxu0 0.0
          %820 = vmatprep.subr.mxu0 0.0
          %821 = vmatpush1.msra.mxu0 0.0
          %822 = vmatprep.subr.mxu0 0.0
          %823 = vmatpush1.msra.mxu0 0.0
          %824 = vmatprep.subr.mxu0 0.0
          %825 = vmatpush1.msra.mxu0 0.0
          %826 = vmatprep.subr.mxu0 0.0
          %827 = vmatpush1.msra.mxu0 0.0
          %828 = vmatprep.subr.mxu0 0.0
          %829 = vmatpush1.msra.mxu0 0.0
          %830 = vmatprep.subr.mxu0 0.0
          %831 = vmatpush1.msra.mxu0 0.0
          %832 = vmatprep.subr.mxu0 0.0
          %833 = vmatpush1.msra.mxu0 0.0
          %834 = vmatprep.subr.mxu0 0.0
          %835 = vmatpush1.msra.mxu0 0.0
          %836 = vmatprep.subr.mxu0 0.0
          %837 = vmatpush1.msra.mxu0 0.0
          %838 = vmatprep.subr.mxu0 0.0
          %839 = vmatpush1.msra.mxu0 0.0
          %840 = vmatprep.subr.mxu0 0.0
          %841 = vmatpush1.msra.mxu0 0.0
          %842 = vmatprep.subr.mxu0 0.0
          %843 = vmatpush1.msra.mxu0 0.0
          %844 = vmatprep.mubr.f32.mxu0 0.0
          %845 = vmatmul.mubr.f32.gmra.mrb[0].mxu0 %v516
          %v846 = vpop.f32.mrb[0].mxu0
          %v847 = vadd.f32 %v461, %v846
          %v848 = vpop.f32.mrb[0].mxu0
          %v849 = vadd.f32 %v465, %v848
          %850 = vdwg.mxu0
          %851 = vmatprep.subr.mxu0 %v407
          %852 = vmatpush1.msra.mxu0 %v406
          %853 = vmatprep.subr.mxu0 %v547
          %854 = vmatpush1.msra.mxu0 %v544
          %855 = vmatprep.subr.mxu0 0.0
          %856 = vmatpush1.msra.mxu0 0.0
          %857 = vmatprep.subr.mxu0 0.0
          %858 = vmatpush1.msra.mxu0 0.0
          %859 = vmatprep.subr.mxu0 0.0
          %860 = vmatpush1.msra.mxu0 0.0
          %861 = vmatprep.subr.mxu0 0.0
          %862 = vmatpush1.msra.mxu0 0.0
          %863 = vmatprep.subr.mxu0 0.0
          %864 = vmatpush1.msra.mxu0 0.0
          %865 = vmatprep.subr.mxu0 0.0
          %866 = vmatpush1.msra.mxu0 0.0
          %867 = vmatprep.subr.mxu0 0.0
          %868 = vmatpush1.msra.mxu0 0.0
          %869 = vmatprep.subr.mxu0 0.0
          %870 = vmatpush1.msra.mxu0 0.0
          %871 = vmatprep.subr.mxu0 0.0
          %872 = vmatpush1.msra.mxu0 0.0
          %873 = vmatprep.subr.mxu0 0.0
          %874 = vmatpush1.msra.mxu0 0.0
          %875 = vmatprep.subr.mxu0 0.0
          %876 = vmatpush1.msra.mxu0 0.0
          %877 = vmatprep.subr.mxu0 0.0
          %878 = vmatpush1.msra.mxu0 0.0
          %879 = vmatprep.subr.mxu0 0.0
          %880 = vmatpush1.msra.mxu0 0.0
          %881 = vmatprep.subr.mxu0 0.0
          %882 = vmatpush1.msra.mxu0 0.0
          %883 = vmatprep.subr.mxu0 0.0
          %884 = vmatpush1.msra.mxu0 0.0
          %885 = vmatprep.subr.mxu0 0.0
          %886 = vmatpush1.msra.mxu0 0.0
          %887 = vmatprep.subr.mxu0 0.0
          %888 = vmatpush1.msra.mxu0 0.0
          %889 = vmatprep.subr.mxu0 0.0
          %890 = vmatpush1.msra.mxu0 0.0
          %891 = vmatprep.subr.mxu0 0.0
          %892 = vmatpush1.msra.mxu0 0.0
          %893 = vmatprep.subr.mxu0 0.0
          %894 = vmatpush1.msra.mxu0 0.0
          %895 = vmatprep.subr.mxu0 0.0
          %896 = vmatpush1.msra.mxu0 0.0
          %897 = vmatprep.subr.mxu0 0.0
          %898 = vmatpush1.msra.mxu0 0.0
          %899 = vmatprep.subr.mxu0 0.0
          %900 = vmatpush1.msra.mxu0 0.0
          %901 = vmatprep.subr.mxu0 0.0
          %902 = vmatpush1.msra.mxu0 0.0
          %903 = vmatprep.subr.mxu0 0.0
          %904 = vmatpush1.msra.mxu0 0.0
          %905 = vmatprep.subr.mxu0 0.0
          %906 = vmatpush1.msra.mxu0 0.0
          %907 = vmatprep.subr.mxu0 0.0
          %908 = vmatpush1.msra.mxu0 0.0
          %909 = vmatprep.subr.mxu0 0.0
          %910 = vmatpush1.msra.mxu0 0.0
          %911 = vmatprep.subr.mxu0 0.0
          %912 = vmatpush1.msra.mxu0 0.0
          %913 = vmatprep.subr.mxu0 0.0
          %914 = vmatpush1.msra.mxu0 0.0
          %915 = vmatprep.mubr.f32.mxu0 0.0
          %916 = vmatmul.mubr.f32.gmra.mrb[0].mxu0 %v516
          %v917 = vpop.f32.mrb[0].mxu0
          %v918 = vadd.f32 %v469, %v917
          %v919 = vpop.f32.mrb[0].mxu0
          %v920 = vadd.f32 %v473, %v919
          %921 = vdwg.mxu0
          %922 = vmatprep.subr.mxu0 %v409
          %923 = vmatpush1.msra.mxu0 %v408
          %924 = vmatprep.subr.mxu0 %v553
          %925 = vmatpush1.msra.mxu0 %v550
          %926 = vmatprep.subr.mxu0 0.0
          %927 = vmatpush1.msra.mxu0 0.0
          %928 = vmatprep.subr.mxu0 0.0
          %929 = vmatpush1.msra.mxu0 0.0
          %930 = vmatprep.subr.mxu0 0.0
          %931 = vmatpush1.msra.mxu0 0.0
          %932 = vmatprep.subr.mxu0 0.0
          %933 = vmatpush1.msra.mxu0 0.0
          %934 = vmatprep.subr.mxu0 0.0
          %935 = vmatpush1.msra.mxu0 0.0
          %936 = vmatprep.subr.mxu0 0.0
          %937 = vmatpush1.msra.mxu0 0.0
          %938 = vmatprep.subr.mxu0 0.0
          %939 = vmatpush1.msra.mxu0 0.0
          %940 = vmatprep.subr.mxu0 0.0
          %941 = vmatpush1.msra.mxu0 0.0
          %942 = vmatprep.subr.mxu0 0.0
          %943 = vmatpush1.msra.mxu0 0.0
          %944 = vmatprep.subr.mxu0 0.0
          %945 = vmatpush1.msra.mxu0 0.0
          %946 = vmatprep.subr.mxu0 0.0
          %947 = vmatpush1.msra.mxu0 0.0
          %948 = vmatprep.subr.mxu0 0.0
          %949 = vmatpush1.msra.mxu0 0.0
          %950 = vmatprep.subr.mxu0 0.0
          %951 = vmatpush1.msra.mxu0 0.0
          %952 = vmatprep.subr.mxu0 0.0
          %953 = vmatpush1.msra.mxu0 0.0
          %954 = vmatprep.subr.mxu0 0.0
          %955 = vmatpush1.msra.mxu0 0.0
          %956 = vmatprep.subr.mxu0 0.0
          %957 = vmatpush1.msra.mxu0 0.0
          %958 = vmatprep.subr.mxu0 0.0
          %959 = vmatpush1.msra.mxu0 0.0
          %960 = vmatprep.subr.mxu0 0.0
          %961 = vmatpush1.msra.mxu0 0.0
          %962 = vmatprep.subr.mxu0 0.0
          %963 = vmatpush1.msra.mxu0 0.0
          %964 = vmatprep.subr.mxu0 0.0
          %965 = vmatpush1.msra.mxu0 0.0
          %966 = vmatprep.subr.mxu0 0.0
          %967 = vmatpush1.msra.mxu0 0.0
          %968 = vmatprep.subr.mxu0 0.0
          %969 = vmatpush1.msra.mxu0 0.0
          %970 = vmatprep.subr.mxu0 0.0
          %971 = vmatpush1.msra.mxu0 0.0
          %972 = vmatprep.subr.mxu0 0.0
          %973 = vmatpush1.msra.mxu0 0.0
          %974 = vmatprep.subr.mxu0 0.0
          %975 = vmatpush1.msra.mxu0 0.0
          %976 = vmatprep.subr.mxu0 0.0
          %977 = vmatpush1.msra.mxu0 0.0
          %978 = vmatprep.subr.mxu0 0.0
          %979 = vmatpush1.msra.mxu0 0.0
          %980 = vmatprep.subr.mxu0 0.0
          %981 = vmatpush1.msra.mxu0 0.0
          %982 = vmatprep.subr.mxu0 0.0
          %983 = vmatpush1.msra.mxu0 0.0
          %984 = vmatprep.subr.mxu0 0.0
          %985 = vmatpush1.msra.mxu0 0.0
          %986 = vmatprep.mubr.f32.mxu0 0.0
          %987 = vmatmul.mubr.f32.gmra.mrb[0].mxu0 %v516
          %v988 = vpop.f32.mrb[0].mxu0
          %v989 = vadd.f32 %v477, %v988
          %v990 = vpop.f32.mrb[0].mxu0
          %v991 = vadd.f32 %v481, %v990
          %992 = vdwg.mxu0
          %993 = vmatprep.subr.mxu0 %v411
          %994 = vmatpush1.msra.mxu0 %v410
          %995 = vmatprep.subr.mxu0 %v559
          %996 = vmatpush1.msra.mxu0 %v556
          %997 = vmatprep.subr.mxu0 0.0
          %998 = vmatpush1.msra.mxu0 0.0
          %999 = vmatprep.subr.mxu0 0.0
          %1000 = vmatpush1.msra.mxu0 0.0
          %1001 = vmatprep.subr.mxu0 0.0
          %1002 = vmatpush1.msra.mxu0 0.0
          %1003 = vmatprep.subr.mxu0 0.0
          %1004 = vmatpush1.msra.mxu0 0.0
          %1005 = vmatprep.subr.mxu0 0.0
          %1006 = vmatpush1.msra.mxu0 0.0
          %1007 = vmatprep.subr.mxu0 0.0
          %1008 = vmatpush1.msra.mxu0 0.0
          %1009 = vmatprep.subr.mxu0 0.0
          %1010 = vmatpush1.msra.mxu0 0.0
          %1011 = vmatprep.subr.mxu0 0.0
          %1012 = vmatpush1.msra.mxu0 0.0
          %1013 = vmatprep.subr.mxu0 0.0
          %1014 = vmatpush1.msra.mxu0 0.0
          %1015 = vmatprep.subr.mxu0 0.0
          %1016 = vmatpush1.msra.mxu0 0.0
          %1017 = vmatprep.subr.mxu0 0.0
          %1018 = vmatpush1.msra.mxu0 0.0
          %1019 = vmatprep.subr.mxu0 0.0
          %1020 = vmatpush1.msra.mxu0 0.0
          %1021 = vmatprep.subr.mxu0 0.0
          %1022 = vmatpush1.msra.mxu0 0.0
          %1023 = vmatprep.subr.mxu0 0.0
          %1024 = vmatpush1.msra.mxu0 0.0
          %1025 = vmatprep.subr.mxu0 0.0
          %1026 = vmatpush1.msra.mxu0 0.0
          %1027 = vmatprep.subr.mxu0 0.0
          %1028 = vmatpush1.msra.mxu0 0.0
          %1029 = vmatprep.subr.mxu0 0.0
          %1030 = vmatpush1.msra.mxu0 0.0
          %1031 = vmatprep.subr.mxu0 0.0
          %1032 = vmatpush1.msra.mxu0 0.0
          %1033 = vmatprep.subr.mxu0 0.0
          %1034 = vmatpush1.msra.mxu0 0.0
          %1035 = vmatprep.subr.mxu0 0.0
          %1036 = vmatpush1.msra.mxu0 0.0
          %1037 = vmatprep.subr.mxu0 0.0
          %1038 = vmatpush1.msra.mxu0 0.0
          %1039 = vmatprep.subr.mxu0 0.0
          %1040 = vmatpush1.msra.mxu0 0.0
          %1041 = vmatprep.subr.mxu0 0.0
          %1042 = vmatpush1.msra.mxu0 0.0
          %1043 = vmatprep.subr.mxu0 0.0
          %1044 = vmatpush1.msra.mxu0 0.0
          %1045 = vmatprep.subr.mxu0 0.0
          %1046 = vmatpush1.msra.mxu0 0.0
          %1047 = vmatprep.subr.mxu0 0.0
          %1048 = vmatpush1.msra.mxu0 0.0
          %1049 = vmatprep.subr.mxu0 0.0
          %1050 = vmatpush1.msra.mxu0 0.0
          %1051 = vmatprep.subr.mxu0 0.0
          %1052 = vmatpush1.msra.mxu0 0.0
          %1053 = vmatprep.subr.mxu0 0.0
          %1054 = vmatpush1.msra.mxu0 0.0
          %1055 = vmatprep.subr.mxu0 0.0
          %1056 = vmatpush1.msra.mxu0 0.0
          %1057 = vmatprep.mubr.f32.mxu0 0.0
          %1058 = vmatmul.mubr.f32.gmra.mrb[0].mxu0 %v516
          %v1059 = vpop.f32.mrb[0].mxu0
          %v1060 = vadd.f32 %v485, %v1059
          %v1061 = vpop.f32.mrb[0].mxu0
          %v1062 = vadd.f32 %v489, %v1061
          %1063 = vdwg.mxu0
          %1064 = vmatprep.subr.mxu0 %v413
          %1065 = vmatpush1.msra.mxu0 %v412
          %1066 = vmatprep.subr.mxu0 %v565
          %1067 = vmatpush1.msra.mxu0 %v562
          %1068 = vmatprep.subr.mxu0 0.0
          %1069 = vmatpush1.msra.mxu0 0.0
          %1070 = vmatprep.subr.mxu0 0.0
          %1071 = vmatpush1.msra.mxu0 0.0
          %1072 = vmatprep.subr.mxu0 0.0
          %1073 = vmatpush1.msra.mxu0 0.0
          %1074 = vmatprep.subr.mxu0 0.0
          %1075 = vmatpush1.msra.mxu0 0.0
          %1076 = vmatprep.subr.mxu0 0.0
          %1077 = vmatpush1.msra.mxu0 0.0
          %1078 = vmatprep.subr.mxu0 0.0
          %1079 = vmatpush1.msra.mxu0 0.0
          %1080 = vmatprep.subr.mxu0 0.0
          %1081 = vmatpush1.msra.mxu0 0.0
          %1082 = vmatprep.subr.mxu0 0.0
          %1083 = vmatpush1.msra.mxu0 0.0
          %1084 = vmatprep.subr.mxu0 0.0
          %1085 = vmatpush1.msra.mxu0 0.0
          %1086 = vmatprep.subr.mxu0 0.0
          %1087 = vmatpush1.msra.mxu0 0.0
          %1088 = vmatprep.subr.mxu0 0.0
          %1089 = vmatpush1.msra.mxu0 0.0
          %1090 = vmatprep.subr.mxu0 0.0
          %1091 = vmatpush1.msra.mxu0 0.0
          %1092 = vmatprep.subr.mxu0 0.0
          %1093 = vmatpush1.msra.mxu0 0.0
          %1094 = vmatprep.subr.mxu0 0.0
          %1095 = vmatpush1.msra.mxu0 0.0
          %1096 = vmatprep.subr.mxu0 0.0
          %1097 = vmatpush1.msra.mxu0 0.0
          %1098 = vmatprep.subr.mxu0 0.0
          %1099 = vmatpush1.msra.mxu0 0.0
          %1100 = vmatprep.subr.mxu0 0.0
          %1101 = vmatpush1.msra.mxu0 0.0
          %1102 = vmatprep.subr.mxu0 0.0
          %1103 = vmatpush1.msra.mxu0 0.0
          %1104 = vmatprep.subr.mxu0 0.0
          %1105 = vmatpush1.msra.mxu0 0.0
          %1106 = vmatprep.subr.mxu0 0.0
          %1107 = vmatpush1.msra.mxu0 0.0
          %1108 = vmatprep.subr.mxu0 0.0
          %1109 = vmatpush1.msra.mxu0 0.0
          %1110 = vmatprep.subr.mxu0 0.0
          %1111 = vmatpush1.msra.mxu0 0.0
          %1112 = vmatprep.subr.mxu0 0.0
          %1113 = vmatpush1.msra.mxu0 0.0
          %1114 = vmatprep.subr.mxu0 0.0
          %1115 = vmatpush1.msra.mxu0 0.0
          %1116 = vmatprep.subr.mxu0 0.0
          %1117 = vmatpush1.msra.mxu0 0.0
          %1118 = vmatprep.subr.mxu0 0.0
          %1119 = vmatpush1.msra.mxu0 0.0
          %1120 = vmatprep.subr.mxu0 0.0
          %1121 = vmatpush1.msra.mxu0 0.0
          %1122 = vmatprep.subr.mxu0 0.0
          %1123 = vmatpush1.msra.mxu0 0.0
          %1124 = vmatprep.subr.mxu0 0.0
          %1125 = vmatpush1.msra.mxu0 0.0
          %1126 = vmatprep.subr.mxu0 0.0
          %1127 = vmatpush1.msra.mxu0 0.0
          %1128 = vmatprep.mubr.f32.mxu0 0.0
          %1129 = vmatmul.mubr.f32.gmra.mrb[0].mxu0 %v516
          %v1130 = vpop.f32.mrb[0].mxu0
          %v1131 = vadd.f32 %v493, %v1130
          %v1132 = vpop.f32.mrb[0].mxu0
          %v1133 = vadd.f32 %v497, %v1132
          %1134 = vdwg.mxu0
          %v1135 = vmax.f32 %v634, 0.0
          %v1136 = vmax.f32 %v636, 0.0
          %v1137 = vmax.f32 %v705, 0.0
          %v1138 = vmax.f32 %v707, 0.0
          %v1139 = vmax.f32 %v776, 0.0
          %v1140 = vmax.f32 %v778, 0.0
          %v1141 = vmax.f32 %v847, 0.0
          %v1142 = vmax.f32 %v849, 0.0
          %v1143 = vmax.f32 %v918, 0.0
          %v1144 = vmax.f32 %v920, 0.0
          %v1145 = vmax.f32 %v989, 0.0
          %v1146 = vmax.f32 %v991, 0.0
          %v1147 = vmax.f32 %v1060, 0.0
          %v1148 = vmax.f32 %v1062, 0.0
          %v1149 = vmax.f32 %v1131, 0.0
          %v1150 = vmax.f32 %v1133, 0.0
          %s1151 = scalar_lea.vmem [#allocation2], 128
          %1152 = vst [vmem:[%s1151] sm:$0xff] %v1135
          %1153 = vst [vmem:[%s1151 + $0x8] sm:$0xff] %v1136
          %1154 = vst [vmem:[%s1151 + $0x10] sm:$0xff] %v1137
          %1155 = vst [vmem:[%s1151 + $0x18] sm:$0xff] %v1138
          %1156 = vst [vmem:[%s1151 + $0x20] sm:$0xff] %v1139
          %1157 = vst [vmem:[%s1151 + $0x28] sm:$0xff] %v1140
          %1158 = vst [vmem:[%s1151 + $0x30] sm:$0xff] %v1141
          %1159 = vst [vmem:[%s1151 + $0x38] sm:$0xff] %v1142
          %1160 = vst [vmem:[%s1151 + $0x40] sm:$0xff] %v1143
          %1161 = vst [vmem:[%s1151 + $0x48] sm:$0xff] %v1144
          %1162 = vst [vmem:[%s1151 + $0x50] sm:$0xff] %v1145
          %1163 = vst [vmem:[%s1151 + $0x58] sm:$0xff] %v1146
          %1164 = vst [vmem:[%s1151 + $0x60] sm:$0xff] %v1147
          %1165 = vst [vmem:[%s1151 + $0x68] sm:$0xff] %v1148
          %1166 = vst [vmem:[%s1151 + $0x70] sm:$0xff] %v1149
          %1167 = vst [vmem:[%s1151 + $0x78] sm:$0xff] %v1150
        $region72: #{neunet_forward.1} parent=47 // pred_fallthru
          _
        %s1168 = smul.u32 %s390, 16
        %s1169 = smul.addr %s1168, 8
        %s1170 = scalar_lea.vmem [#allocation2], %s1169
        %v1171 = vld [vmem:[%s1170] sm:$0xff]
        %v1172 = vld [vmem:[%s1170 + $0x8] sm:$0xff]
        %v1173 = vld [vmem:[%s1170 + $0x10] sm:$0xff]
        %v1174 = vld [vmem:[%s1170 + $0x18] sm:$0xff]
        %v1175 = vld [vmem:[%s1170 + $0x20] sm:$0xff]
        %v1176 = vld [vmem:[%s1170 + $0x28] sm:$0xff]
        %v1177 = vld [vmem:[%s1170 + $0x30] sm:$0xff]
        %v1178 = vld [vmem:[%s1170 + $0x38] sm:$0xff]
        %v1179 = vld [vmem:[%s1170 + $0x40] sm:$0xff]
        %v1180 = vld [vmem:[%s1170 + $0x48] sm:$0xff]
        %v1181 = vld [vmem:[%s1170 + $0x50] sm:$0xff]
        %v1182 = vld [vmem:[%s1170 + $0x58] sm:$0xff]
        %v1183 = vld [vmem:[%s1170 + $0x60] sm:$0xff]
        %v1184 = vld [vmem:[%s1170 + $0x68] sm:$0xff]
        %v1185 = vld [vmem:[%s1170 + $0x70] sm:$0xff]
        %v1186 = vld [vmem:[%s1170 + $0x78] sm:$0xff]
        %v1187 = vpack.c.bf16 %v1171, %v1171
        %v1188 = vpack.c.bf16 %v1172, %v1172
        %v1189 = vpack.c.bf16 %v1173, %v1173
        %v1190 = vpack.c.bf16 %v1174, %v1174
        %v1191 = vpack.c.bf16 %v1175, %v1175
        %v1192 = vpack.c.bf16 %v1176, %v1176
        %v1193 = vpack.c.bf16 %v1177, %v1177
        %v1194 = vpack.c.bf16 %v1178, %v1178
        %v1195 = vpack.c.bf16 %v1179, %v1179
        %v1196 = vpack.c.bf16 %v1180, %v1180
        %v1197 = vpack.c.bf16 %v1181, %v1181
        %v1198 = vpack.c.bf16 %v1182, %v1182
        %v1199 = vpack.c.bf16 %v1183, %v1183
        %v1200 = vpack.c.bf16 %v1184, %v1184
        %v1201 = vpack.c.bf16 %v1185, %v1185
        %v1202 = vpack.c.bf16 %v1186, %v1186
        %v1203 = vld [vmem:[%s341] sm:$0xff]
        %v1204 = vld [vmem:[%s341 + $0x8] sm:$0xff]
        %v1205 = vld [vmem:[%s341 + $0x10] sm:$0xff]
        %v1206 = vld [vmem:[%s341 + $0x18] sm:$0xff]
        %v1207 = vld [vmem:[%s341 + $0x20] sm:$0xff]
        %v1208 = vld [vmem:[%s341 + $0x28] sm:$0xff]
        %v1209 = vld [vmem:[%s341 + $0x30] sm:$0xff]
        %v1210 = vld [vmem:[%s341 + $0x38] sm:$0xff]
        %v1211 = vld [vmem:[%s341 + $0x40] sm:$0xff]
        %v1212 = vld [vmem:[%s341 + $0x48] sm:$0xff]
        %v1213 = vld [vmem:[%s341 + $0x50] sm:$0xff]
        %v1214 = vld [vmem:[%s341 + $0x58] sm:$0xff]
        %v1215 = vld [vmem:[%s341 + $0x60] sm:$0xff]
        %v1216 = vld [vmem:[%s341 + $0x68] sm:$0xff]
        %v1217 = vld [vmem:[%s341 + $0x70] sm:$0xff]
        %v1218 = vld [vmem:[%s341 + $0x78] sm:$0xff]
        %v1219 = vld [vmem:[%s341 + $0x80] sm:$0xff]
        %v1220 = vld [vmem:[%s341 + $0x88] sm:$0xff]
        %v1221 = vld [vmem:[%s341 + $0x90] sm:$0xff]
        %v1222 = vld [vmem:[%s341 + $0x98] sm:$0xff]
        %v1223 = vld [vmem:[%s341 + $0xa0] sm:$0xff]
        %v1224 = vld [vmem:[%s341 + $0xa8] sm:$0xff]
        %v1225 = vld [vmem:[%s341 + $0xb0] sm:$0xff]
        %v1226 = vld [vmem:[%s341 + $0xb8] sm:$0xff]
        %v1227 = vld [vmem:[%s341 + $0xc0] sm:$0xff]
        %v1228 = vld [vmem:[%s341 + $0xc8] sm:$0xff]
        %v1229 = vld [vmem:[%s341 + $0xd0] sm:$0xff]
        %v1230 = vld [vmem:[%s341 + $0xd8] sm:$0xff]
        %v1231 = vld [vmem:[%s341 + $0xe0] sm:$0xff]
        %v1232 = vld [vmem:[%s341 + $0xe8] sm:$0xff]
        %v1233 = vld [vmem:[%s341 + $0xf0] sm:$0xff]
        %v1234 = vld [vmem:[%s341 + $0xf8] sm:$0xff]
        %v1235 = vld [vmem:[%s341 + $0x100] sm:$0xff]
        %v1236 = vld [vmem:[%s341 + $0x108] sm:$0xff]
        %v1237 = vld [vmem:[%s341 + $0x110] sm:$0xff]
        %v1238 = vld [vmem:[%s341 + $0x118] sm:$0xff]
        %v1239 = vld [vmem:[%s341 + $0x120] sm:$0xff]
        %v1240 = vld [vmem:[%s341 + $0x128] sm:$0xff]
        %v1241 = vld [vmem:[%s341 + $0x130] sm:$0xff]
        %v1242 = vld [vmem:[%s341 + $0x138] sm:$0xff]
        %v1243 = vld [vmem:[%s341 + $0x140] sm:$0xff]
        %v1244 = vld [vmem:[%s341 + $0x148] sm:$0xff]
        %v1245 = vld [vmem:[%s341 + $0x150] sm:$0xff]
        %v1246 = vld [vmem:[%s341 + $0x158] sm:$0xff]
        %v1247 = vld [vmem:[%s341 + $0x160] sm:$0xff]
        %v1248 = vld [vmem:[%s341 + $0x168] sm:$0xff]
        %v1249 = vld [vmem:[%s341 + $0x170] sm:$0xff]
        %v1250 = vld [vmem:[%s341 + $0x178] sm:$0xff]
        %v1251 = vld [vmem:[%s341 + $0x180] sm:$0xff]
        %v1252 = vld [vmem:[%s341 + $0x188] sm:$0xff]
        %v1253 = vld [vmem:[%s341 + $0x190] sm:$0xff]
        %v1254 = vld [vmem:[%s341 + $0x198] sm:$0xff]
        %v1255 = vld [vmem:[%s341 + $0x1a0] sm:$0xff]
        %v1256 = vld [vmem:[%s341 + $0x1a8] sm:$0xff]
        %v1257 = vld [vmem:[%s341 + $0x1b0] sm:$0xff]
        %v1258 = vld [vmem:[%s341 + $0x1b8] sm:$0xff]
        %v1259 = vld [vmem:[%s341 + $0x1c0] sm:$0xff]
        %v1260 = vld [vmem:[%s341 + $0x1c8] sm:$0xff]
        %v1261 = vld [vmem:[%s341 + $0x1d0] sm:$0xff]
        %v1262 = vld [vmem:[%s341 + $0x1d8] sm:$0xff]
        %v1263 = vld [vmem:[%s341 + $0x1e0] sm:$0xff]
        %v1264 = vld [vmem:[%s341 + $0x1e8] sm:$0xff]
        %v1265 = vld [vmem:[%s341 + $0x1f0] sm:$0xff]
        %v1266 = vld [vmem:[%s341 + $0x1f8] sm:$0xff]
        %v1267 = vld [vmem:[%s341 + $0x200] sm:$0xff]
        %v1268 = vld [vmem:[%s341 + $0x208] sm:$0xff]
        %v1269 = vld [vmem:[%s341 + $0x210] sm:$0xff]
        %v1270 = vld [vmem:[%s341 + $0x218] sm:$0xff]
        %v1271 = vld [vmem:[%s341 + $0x220] sm:$0xff]
        %v1272 = vld [vmem:[%s341 + $0x228] sm:$0xff]
        %v1273 = vld [vmem:[%s341 + $0x230] sm:$0xff]
        %v1274 = vld [vmem:[%s341 + $0x238] sm:$0xff]
        %v1275 = vld [vmem:[%s341 + $0x240] sm:$0xff]
        %v1276 = vld [vmem:[%s341 + $0x248] sm:$0xff]
        %v1277 = vld [vmem:[%s341 + $0x250] sm:$0xff]
        %v1278 = vld [vmem:[%s341 + $0x258] sm:$0xff]
        %v1279 = vld [vmem:[%s341 + $0x260] sm:$0xff]
        %v1280 = vld [vmem:[%s341 + $0x268] sm:$0xff]
        %v1281 = vld [vmem:[%s341 + $0x270] sm:$0xff]
        %v1282 = vld [vmem:[%s341 + $0x278] sm:$0xff]
        %v1283 = vld [vmem:[%s341 + $0x280] sm:$0xff]
        %v1284 = vld [vmem:[%s341 + $0x288] sm:$0xff]
        %v1285 = vld [vmem:[%s341 + $0x290] sm:$0xff]
        %v1286 = vld [vmem:[%s341 + $0x298] sm:$0xff]
        %v1287 = vld [vmem:[%s341 + $0x2a0] sm:$0xff]
        %v1288 = vld [vmem:[%s341 + $0x2a8] sm:$0xff]
        %v1289 = vld [vmem:[%s341 + $0x2b0] sm:$0xff]
        %v1290 = vld [vmem:[%s341 + $0x2b8] sm:$0xff]
        %v1291 = vld [vmem:[%s341 + $0x2c0] sm:$0xff]
        %v1292 = vld [vmem:[%s341 + $0x2c8] sm:$0xff]
        %v1293 = vld [vmem:[%s341 + $0x2d0] sm:$0xff]
        %v1294 = vld [vmem:[%s341 + $0x2d8] sm:$0xff]
        %v1295 = vld [vmem:[%s341 + $0x2e0] sm:$0xff]
        %v1296 = vld [vmem:[%s341 + $0x2e8] sm:$0xff]
        %v1297 = vld [vmem:[%s341 + $0x2f0] sm:$0xff]
        %v1298 = vld [vmem:[%s341 + $0x2f8] sm:$0xff]
        %v1299 = vld [vmem:[%s341 + $0x300] sm:$0xff]
        %v1300 = vld [vmem:[%s341 + $0x308] sm:$0xff]
        %v1301 = vld [vmem:[%s341 + $0x310] sm:$0xff]
        %v1302 = vld [vmem:[%s341 + $0x318] sm:$0xff]
        %v1303 = vld [vmem:[%s341 + $0x320] sm:$0xff]
        %v1304 = vld [vmem:[%s341 + $0x328] sm:$0xff]
        %v1305 = vld [vmem:[%s341 + $0x330] sm:$0xff]
        %v1306 = vld [vmem:[%s341 + $0x338] sm:$0xff]
        %v1307 = vld [vmem:[%s341 + $0x340] sm:$0xff]
        %v1308 = vld [vmem:[%s341 + $0x348] sm:$0xff]
        %v1309 = vld [vmem:[%s341 + $0x350] sm:$0xff]
        %v1310 = vld [vmem:[%s341 + $0x358] sm:$0xff]
        %v1311 = vld [vmem:[%s341 + $0x360] sm:$0xff]
        %v1312 = vld [vmem:[%s341 + $0x368] sm:$0xff]
        %v1313 = vld [vmem:[%s341 + $0x370] sm:$0xff]
        %v1314 = vld [vmem:[%s341 + $0x378] sm:$0xff]
        %v1315 = vld [vmem:[%s341 + $0x380] sm:$0xff]
        %v1316 = vld [vmem:[%s341 + $0x388] sm:$0xff]
        %v1317 = vld [vmem:[%s341 + $0x390] sm:$0xff]
        %v1318 = vld [vmem:[%s341 + $0x398] sm:$0xff]
        %v1319 = vld [vmem:[%s341 + $0x3a0] sm:$0xff]
        %v1320 = vld [vmem:[%s341 + $0x3a8] sm:$0xff]
        %v1321 = vld [vmem:[%s341 + $0x3b0] sm:$0xff]
        %v1322 = vld [vmem:[%s341 + $0x3b8] sm:$0xff]
        %v1323 = vld [vmem:[%s341 + $0x3c0] sm:$0xff]
        %v1324 = vld [vmem:[%s341 + $0x3c8] sm:$0xff]
        %v1325 = vld [vmem:[%s341 + $0x3d0] sm:$0xff]
        %v1326 = vld [vmem:[%s341 + $0x3d8] sm:$0xff]
        %v1327 = vld [vmem:[%s341 + $0x3e0] sm:$0xff]
        %v1328 = vld [vmem:[%s341 + $0x3e8] sm:$0xff]
        %v1329 = vld [vmem:[%s341 + $0x3f0] sm:$0xff]
        %v1330 = vld [vmem:[%s341 + $0x3f8] sm:$0xff]
        %v1331 = vld [vmem:[%s341 + $0x400] sm:$0xff]
        %v1332 = vld [vmem:[%s341 + $0x408] sm:$0xff]
        %v1333 = vld [vmem:[%s341 + $0x410] sm:$0xff]
        %v1334 = vld [vmem:[%s341 + $0x418] sm:$0xff]
        %v1335 = vld [vmem:[%s341 + $0x420] sm:$0xff]
        %v1336 = vld [vmem:[%s341 + $0x428] sm:$0xff]
        %v1337 = vld [vmem:[%s341 + $0x430] sm:$0xff]
        %v1338 = vld [vmem:[%s341 + $0x438] sm:$0xff]
        %v1339 = vld [vmem:[%s341 + $0x440] sm:$0xff]
        %v1340 = vld [vmem:[%s341 + $0x448] sm:$0xff]
        %v1341 = vld [vmem:[%s341 + $0x450] sm:$0xff]
        %v1342 = vld [vmem:[%s341 + $0x458] sm:$0xff]
        %v1343 = vld [vmem:[%s341 + $0x460] sm:$0xff]
        %v1344 = vld [vmem:[%s341 + $0x468] sm:$0xff]
        %v1345 = vld [vmem:[%s341 + $0x470] sm:$0xff]
        %v1346 = vld [vmem:[%s341 + $0x478] sm:$0xff]
        %v1347 = vld [vmem:[%s341 + $0x480] sm:$0xff]
        %v1348 = vld [vmem:[%s341 + $0x488] sm:$0xff]
        %v1349 = vld [vmem:[%s341 + $0x490] sm:$0xff]
        %v1350 = vld [vmem:[%s341 + $0x498] sm:$0xff]
        %v1351 = vld [vmem:[%s341 + $0x4a0] sm:$0xff]
        %v1352 = vld [vmem:[%s341 + $0x4a8] sm:$0xff]
        %v1353 = vld [vmem:[%s341 + $0x4b0] sm:$0xff]
        %v1354 = vld [vmem:[%s341 + $0x4b8] sm:$0xff]
        %v1355 = vld [vmem:[%s341 + $0x4c0] sm:$0xff]
        %v1356 = vld [vmem:[%s341 + $0x4c8] sm:$0xff]
        %v1357 = vld [vmem:[%s341 + $0x4d0] sm:$0xff]
        %v1358 = vld [vmem:[%s341 + $0x4d8] sm:$0xff]
        %v1359 = vld [vmem:[%s341 + $0x4e0] sm:$0xff]
        %v1360 = vld [vmem:[%s341 + $0x4e8] sm:$0xff]
        %v1361 = vld [vmem:[%s341 + $0x4f0] sm:$0xff]
        %v1362 = vld [vmem:[%s341 + $0x4f8] sm:$0xff]
        %v1363 = vld [vmem:[%s341 + $0x500] sm:$0xff]
        %v1364 = vld [vmem:[%s341 + $0x508] sm:$0xff]
        %v1365 = vld [vmem:[%s341 + $0x510] sm:$0xff]
        %v1366 = vld [vmem:[%s341 + $0x518] sm:$0xff]
        %v1367 = vld [vmem:[%s341 + $0x520] sm:$0xff]
        %v1368 = vld [vmem:[%s341 + $0x528] sm:$0xff]
        %v1369 = vld [vmem:[%s341 + $0x530] sm:$0xff]
        %v1370 = vld [vmem:[%s341 + $0x538] sm:$0xff]
        %v1371 = vld [vmem:[%s341 + $0x540] sm:$0xff]
        %v1372 = vld [vmem:[%s341 + $0x548] sm:$0xff]
        %v1373 = vld [vmem:[%s341 + $0x550] sm:$0xff]
        %v1374 = vld [vmem:[%s341 + $0x558] sm:$0xff]
        %v1375 = vld [vmem:[%s341 + $0x560] sm:$0xff]
        %v1376 = vld [vmem:[%s341 + $0x568] sm:$0xff]
        %v1377 = vld [vmem:[%s341 + $0x570] sm:$0xff]
        %v1378 = vld [vmem:[%s341 + $0x578] sm:$0xff]
        %v1379 = vld [vmem:[%s341 + $0x580] sm:$0xff]
        %v1380 = vld [vmem:[%s341 + $0x588] sm:$0xff]
        %v1381 = vld [vmem:[%s341 + $0x590] sm:$0xff]
        %v1382 = vld [vmem:[%s341 + $0x598] sm:$0xff]
        %v1383 = vld [vmem:[%s341 + $0x5a0] sm:$0xff]
        %v1384 = vld [vmem:[%s341 + $0x5a8] sm:$0xff]
        %v1385 = vld [vmem:[%s341 + $0x5b0] sm:$0xff]
        %v1386 = vld [vmem:[%s341 + $0x5b8] sm:$0xff]
        %v1387 = vld [vmem:[%s341 + $0x5c0] sm:$0xff]
        %v1388 = vld [vmem:[%s341 + $0x5c8] sm:$0xff]
        %v1389 = vld [vmem:[%s341 + $0x5d0] sm:$0xff]
        %v1390 = vld [vmem:[%s341 + $0x5d8] sm:$0xff]
        %v1391 = vld [vmem:[%s341 + $0x5e0] sm:$0xff]
        %v1392 = vld [vmem:[%s341 + $0x5e8] sm:$0xff]
        %v1393 = vld [vmem:[%s341 + $0x5f0] sm:$0xff]
        %v1394 = vld [vmem:[%s341 + $0x5f8] sm:$0xff]
        %v1395 = vld [vmem:[%s341 + $0x600] sm:$0xff]
        %v1396 = vld [vmem:[%s341 + $0x608] sm:$0xff]
        %v1397 = vld [vmem:[%s341 + $0x610] sm:$0xff]
        %v1398 = vld [vmem:[%s341 + $0x618] sm:$0xff]
        %v1399 = vld [vmem:[%s341 + $0x620] sm:$0xff]
        %v1400 = vld [vmem:[%s341 + $0x628] sm:$0xff]
        %v1401 = vld [vmem:[%s341 + $0x630] sm:$0xff]
        %v1402 = vld [vmem:[%s341 + $0x638] sm:$0xff]
        %v1403 = vld [vmem:[%s341 + $0x640] sm:$0xff]
        %v1404 = vld [vmem:[%s341 + $0x648] sm:$0xff]
        %v1405 = vld [vmem:[%s341 + $0x650] sm:$0xff]
        %v1406 = vld [vmem:[%s341 + $0x658] sm:$0xff]
        %v1407 = vld [vmem:[%s341 + $0x660] sm:$0xff]
        %v1408 = vld [vmem:[%s341 + $0x668] sm:$0xff]
        %v1409 = vld [vmem:[%s341 + $0x670] sm:$0xff]
        %v1410 = vld [vmem:[%s341 + $0x678] sm:$0xff]
        %v1411 = vld [vmem:[%s341 + $0x680] sm:$0xff]
        %v1412 = vld [vmem:[%s341 + $0x688] sm:$0xff]
        %v1413 = vld [vmem:[%s341 + $0x690] sm:$0xff]
        %v1414 = vld [vmem:[%s341 + $0x698] sm:$0xff]
        %v1415 = vld [vmem:[%s341 + $0x6a0] sm:$0xff]
        %v1416 = vld [vmem:[%s341 + $0x6a8] sm:$0xff]
        %v1417 = vld [vmem:[%s341 + $0x6b0] sm:$0xff]
        %v1418 = vld [vmem:[%s341 + $0x6b8] sm:$0xff]
        %v1419 = vld [vmem:[%s341 + $0x6c0] sm:$0xff]
        %v1420 = vld [vmem:[%s341 + $0x6c8] sm:$0xff]
        %v1421 = vld [vmem:[%s341 + $0x6d0] sm:$0xff]
        %v1422 = vld [vmem:[%s341 + $0x6d8] sm:$0xff]
        %v1423 = vld [vmem:[%s341 + $0x6e0] sm:$0xff]
        %v1424 = vld [vmem:[%s341 + $0x6e8] sm:$0xff]
        %v1425 = vld [vmem:[%s341 + $0x6f0] sm:$0xff]
        %v1426 = vld [vmem:[%s341 + $0x6f8] sm:$0xff]
        %v1427 = vld [vmem:[%s341 + $0x700] sm:$0xff]
        %v1428 = vld [vmem:[%s341 + $0x708] sm:$0xff]
        %v1429 = vld [vmem:[%s341 + $0x710] sm:$0xff]
        %v1430 = vld [vmem:[%s341 + $0x718] sm:$0xff]
        %v1431 = vld [vmem:[%s341 + $0x720] sm:$0xff]
        %v1432 = vld [vmem:[%s341 + $0x728] sm:$0xff]
        %v1433 = vld [vmem:[%s341 + $0x730] sm:$0xff]
        %v1434 = vld [vmem:[%s341 + $0x738] sm:$0xff]
        %v1435 = vld [vmem:[%s341 + $0x740] sm:$0xff]
        %v1436 = vld [vmem:[%s341 + $0x748] sm:$0xff]
        %v1437 = vld [vmem:[%s341 + $0x750] sm:$0xff]
        %v1438 = vld [vmem:[%s341 + $0x758] sm:$0xff]
        %v1439 = vld [vmem:[%s341 + $0x760] sm:$0xff]
        %v1440 = vld [vmem:[%s341 + $0x768] sm:$0xff]
        %v1441 = vld [vmem:[%s341 + $0x770] sm:$0xff]
        %v1442 = vld [vmem:[%s341 + $0x778] sm:$0xff]
        %v1443 = vld [vmem:[%s341 + $0x780] sm:$0xff]
        %v1444 = vld [vmem:[%s341 + $0x788] sm:$0xff]
        %v1445 = vld [vmem:[%s341 + $0x790] sm:$0xff]
        %v1446 = vld [vmem:[%s341 + $0x798] sm:$0xff]
        %v1447 = vld [vmem:[%s341 + $0x7a0] sm:$0xff]
        %v1448 = vld [vmem:[%s341 + $0x7a8] sm:$0xff]
        %v1449 = vld [vmem:[%s341 + $0x7b0] sm:$0xff]
        %v1450 = vld [vmem:[%s341 + $0x7b8] sm:$0xff]
        %v1451 = vld [vmem:[%s341 + $0x7c0] sm:$0xff]
        %v1452 = vld [vmem:[%s341 + $0x7c8] sm:$0xff]
        %v1453 = vld [vmem:[%s341 + $0x7d0] sm:$0xff]
        %v1454 = vld [vmem:[%s341 + $0x7d8] sm:$0xff]
        %v1455 = vld [vmem:[%s341 + $0x7e0] sm:$0xff]
        %v1456 = vld [vmem:[%s341 + $0x7e8] sm:$0xff]
        %v1457 = vld [vmem:[%s341 + $0x7f0] sm:$0xff]
        %v1458 = vld [vmem:[%s341 + $0x7f8] sm:$0xff]
        %v1459 = vld [vmem:[%s341 + $0x800] sm:$0xff]
        %v1460 = vld [vmem:[%s341 + $0x808] sm:$0xff]
        %v1461 = vld [vmem:[%s341 + $0x810] sm:$0xff]
        %v1462 = vld [vmem:[%s341 + $0x818] sm:$0xff]
        %v1463 = vld [vmem:[%s341 + $0x820] sm:$0xff]
        %v1464 = vld [vmem:[%s341 + $0x828] sm:$0xff]
        %v1465 = vld [vmem:[%s341 + $0x830] sm:$0xff]
        %v1466 = vld [vmem:[%s341 + $0x838] sm:$0xff]
        %v1467 = vld [vmem:[%s341 + $0x840] sm:$0xff]
        %v1468 = vld [vmem:[%s341 + $0x848] sm:$0xff]
        %v1469 = vld [vmem:[%s341 + $0x850] sm:$0xff]
        %v1470 = vld [vmem:[%s341 + $0x858] sm:$0xff]
        %v1471 = vld [vmem:[%s341 + $0x860] sm:$0xff]
        %v1472 = vld [vmem:[%s341 + $0x868] sm:$0xff]
        %v1473 = vld [vmem:[%s341 + $0x870] sm:$0xff]
        %v1474 = vld [vmem:[%s341 + $0x878] sm:$0xff]
        %v1475 = vld [vmem:[%s341 + $0x880] sm:$0xff]
        %v1476 = vld [vmem:[%s341 + $0x888] sm:$0xff]
        %v1477 = vld [vmem:[%s341 + $0x890] sm:$0xff]
        %v1478 = vld [vmem:[%s341 + $0x898] sm:$0xff]
        %v1479 = vld [vmem:[%s341 + $0x8a0] sm:$0xff]
        %v1480 = vld [vmem:[%s341 + $0x8a8] sm:$0xff]
        %v1481 = vld [vmem:[%s341 + $0x8b0] sm:$0xff]
        %v1482 = vld [vmem:[%s341 + $0x8b8] sm:$0xff]
        %v1483 = vld [vmem:[%s341 + $0x8c0] sm:$0xff]
        %v1484 = vld [vmem:[%s341 + $0x8c8] sm:$0xff]
        %v1485 = vld [vmem:[%s341 + $0x8d0] sm:$0xff]
        %v1486 = vld [vmem:[%s341 + $0x8d8] sm:$0xff]
        %v1487 = vld [vmem:[%s341 + $0x8e0] sm:$0xff]
        %v1488 = vld [vmem:[%s341 + $0x8e8] sm:$0xff]
        %v1489 = vld [vmem:[%s341 + $0x8f0] sm:$0xff]
        %v1490 = vld [vmem:[%s341 + $0x8f8] sm:$0xff]
        %v1491 = vld [vmem:[%s341 + $0x900] sm:$0xff]
        %v1492 = vld [vmem:[%s341 + $0x908] sm:$0xff]
        %v1493 = vld [vmem:[%s341 + $0x910] sm:$0xff]
        %v1494 = vld [vmem:[%s341 + $0x918] sm:$0xff]
        %v1495 = vld [vmem:[%s341 + $0x920] sm:$0xff]
        %v1496 = vld [vmem:[%s341 + $0x928] sm:$0xff]
        %v1497 = vld [vmem:[%s341 + $0x930] sm:$0xff]
        %v1498 = vld [vmem:[%s341 + $0x938] sm:$0xff]
        %v1499 = vld [vmem:[%s341 + $0x940] sm:$0xff]
        %v1500 = vld [vmem:[%s341 + $0x948] sm:$0xff]
        %v1501 = vld [vmem:[%s341 + $0x950] sm:$0xff]
        %v1502 = vld [vmem:[%s341 + $0x958] sm:$0xff]
        %v1503 = vld [vmem:[%s341 + $0x960] sm:$0xff]
        %v1504 = vld [vmem:[%s341 + $0x968] sm:$0xff]
        %v1505 = vld [vmem:[%s341 + $0x970] sm:$0xff]
        %v1506 = vld [vmem:[%s341 + $0x978] sm:$0xff]
        %v1507 = vld [vmem:[%s341 + $0x980] sm:$0xff]
        %v1508 = vld [vmem:[%s341 + $0x988] sm:$0xff]
        %v1509 = vld [vmem:[%s341 + $0x990] sm:$0xff]
        %v1510 = vld [vmem:[%s341 + $0x998] sm:$0xff]
        %v1511 = vld [vmem:[%s341 + $0x9a0] sm:$0xff]
        %v1512 = vld [vmem:[%s341 + $0x9a8] sm:$0xff]
        %v1513 = vld [vmem:[%s341 + $0x9b0] sm:$0xff]
        %v1514 = vld [vmem:[%s341 + $0x9b8] sm:$0xff]
        %v1515 = vld [vmem:[%s341 + $0x9c0] sm:$0xff]
        %v1516 = vld [vmem:[%s341 + $0x9c8] sm:$0xff]
        %v1517 = vld [vmem:[%s341 + $0x9d0] sm:$0xff]
        %v1518 = vld [vmem:[%s341 + $0x9d8] sm:$0xff]
        %v1519 = vld [vmem:[%s341 + $0x9e0] sm:$0xff]
        %v1520 = vld [vmem:[%s341 + $0x9e8] sm:$0xff]
        %v1521 = vld [vmem:[%s341 + $0x9f0] sm:$0xff]
        %v1522 = vld [vmem:[%s341 + $0x9f8] sm:$0xff]
        %v1523 = vld [vmem:[%s341 + $0xa00] sm:$0xff]
        %v1524 = vld [vmem:[%s341 + $0xa08] sm:$0xff]
        %v1525 = vld [vmem:[%s341 + $0xa10] sm:$0xff]
        %v1526 = vld [vmem:[%s341 + $0xa18] sm:$0xff]
        %v1527 = vld [vmem:[%s341 + $0xa20] sm:$0xff]
        %v1528 = vld [vmem:[%s341 + $0xa28] sm:$0xff]
        %v1529 = vld [vmem:[%s341 + $0xa30] sm:$0xff]
        %v1530 = vld [vmem:[%s341 + $0xa38] sm:$0xff]
        %v1531 = vld [vmem:[%s341 + $0xa40] sm:$0xff]
        %v1532 = vld [vmem:[%s341 + $0xa48] sm:$0xff]
        %v1533 = vld [vmem:[%s341 + $0xa50] sm:$0xff]
        %v1534 = vld [vmem:[%s341 + $0xa58] sm:$0xff]
        %v1535 = vld [vmem:[%s341 + $0xa60] sm:$0xff]
        %v1536 = vld [vmem:[%s341 + $0xa68] sm:$0xff]
        %v1537 = vld [vmem:[%s341 + $0xa70] sm:$0xff]
        %v1538 = vld [vmem:[%s341 + $0xa78] sm:$0xff]
        %v1539 = vld [vmem:[%s341 + $0xa80] sm:$0xff]
        %v1540 = vld [vmem:[%s341 + $0xa88] sm:$0xff]
        %v1541 = vld [vmem:[%s341 + $0xa90] sm:$0xff]
        %v1542 = vld [vmem:[%s341 + $0xa98] sm:$0xff]
        %v1543 = vld [vmem:[%s341 + $0xaa0] sm:$0xff]
        %v1544 = vld [vmem:[%s341 + $0xaa8] sm:$0xff]
        %v1545 = vld [vmem:[%s341 + $0xab0] sm:$0xff]
        %v1546 = vld [vmem:[%s341 + $0xab8] sm:$0xff]
        %v1547 = vld [vmem:[%s341 + $0xac0] sm:$0xff]
        %v1548 = vld [vmem:[%s341 + $0xac8] sm:$0xff]
        %v1549 = vld [vmem:[%s341 + $0xad0] sm:$0xff]
        %v1550 = vld [vmem:[%s341 + $0xad8] sm:$0xff]
        %v1551 = vld [vmem:[%s341 + $0xae0] sm:$0xff]
        %v1552 = vld [vmem:[%s341 + $0xae8] sm:$0xff]
        %v1553 = vld [vmem:[%s341 + $0xaf0] sm:$0xff]
        %v1554 = vld [vmem:[%s341 + $0xaf8] sm:$0xff]
        %v1555 = vld [vmem:[%s341 + $0xb00] sm:$0xff]
        %v1556 = vld [vmem:[%s341 + $0xb08] sm:$0xff]
        %v1557 = vld [vmem:[%s341 + $0xb10] sm:$0xff]
        %v1558 = vld [vmem:[%s341 + $0xb18] sm:$0xff]
        %v1559 = vld [vmem:[%s341 + $0xb20] sm:$0xff]
        %v1560 = vld [vmem:[%s341 + $0xb28] sm:$0xff]
        %v1561 = vld [vmem:[%s341 + $0xb30] sm:$0xff]
        %v1562 = vld [vmem:[%s341 + $0xb38] sm:$0xff]
        %v1563 = vld [vmem:[%s341 + $0xb40] sm:$0xff]
        %v1564 = vld [vmem:[%s341 + $0xb48] sm:$0xff]
        %v1565 = vld [vmem:[%s341 + $0xb50] sm:$0xff]
        %v1566 = vld [vmem:[%s341 + $0xb58] sm:$0xff]
        %v1567 = vld [vmem:[%s341 + $0xb60] sm:$0xff]
        %v1568 = vld [vmem:[%s341 + $0xb68] sm:$0xff]
        %v1569 = vld [vmem:[%s341 + $0xb70] sm:$0xff]
        %v1570 = vld [vmem:[%s341 + $0xb78] sm:$0xff]
        %v1571 = vld [vmem:[%s341 + $0xb80] sm:$0xff]
        %v1572 = vld [vmem:[%s341 + $0xb88] sm:$0xff]
        %v1573 = vld [vmem:[%s341 + $0xb90] sm:$0xff]
        %v1574 = vld [vmem:[%s341 + $0xb98] sm:$0xff]
        %v1575 = vld [vmem:[%s341 + $0xba0] sm:$0xff]
        %v1576 = vld [vmem:[%s341 + $0xba8] sm:$0xff]
        %v1577 = vld [vmem:[%s341 + $0xbb0] sm:$0xff]
        %v1578 = vld [vmem:[%s341 + $0xbb8] sm:$0xff]
        %v1579 = vld [vmem:[%s341 + $0xbc0] sm:$0xff]
        %v1580 = vld [vmem:[%s341 + $0xbc8] sm:$0xff]
        %v1581 = vld [vmem:[%s341 + $0xbd0] sm:$0xff]
        %v1582 = vld [vmem:[%s341 + $0xbd8] sm:$0xff]
        %v1583 = vld [vmem:[%s341 + $0xbe0] sm:$0xff]
        %v1584 = vld [vmem:[%s341 + $0xbe8] sm:$0xff]
        %v1585 = vld [vmem:[%s341 + $0xbf0] sm:$0xff]
        %v1586 = vld [vmem:[%s341 + $0xbf8] sm:$0xff]
        %v1587 = vld [vmem:[%s341 + $0xc00] sm:$0xff]
        %v1588 = vld [vmem:[%s341 + $0xc08] sm:$0xff]
        %v1589 = vld [vmem:[%s341 + $0xc10] sm:$0xff]
        %v1590 = vld [vmem:[%s341 + $0xc18] sm:$0xff]
        %v1591 = vld [vmem:[%s341 + $0xc20] sm:$0xff]
        %v1592 = vld [vmem:[%s341 + $0xc28] sm:$0xff]
        %v1593 = vld [vmem:[%s341 + $0xc30] sm:$0xff]
        %v1594 = vld [vmem:[%s341 + $0xc38] sm:$0xff]
        %v1595 = vld [vmem:[%s341 + $0xc40] sm:$0xff]
        %v1596 = vld [vmem:[%s341 + $0xc48] sm:$0xff]
        %v1597 = vld [vmem:[%s341 + $0xc50] sm:$0xff]
        %v1598 = vld [vmem:[%s341 + $0xc58] sm:$0xff]
        %v1599 = vld [vmem:[%s341 + $0xc60] sm:$0xff]
        %v1600 = vld [vmem:[%s341 + $0xc68] sm:$0xff]
        %v1601 = vld [vmem:[%s341 + $0xc70] sm:$0xff]
        %v1602 = vld [vmem:[%s341 + $0xc78] sm:$0xff]
        %v1603 = vld [vmem:[%s341 + $0xc80] sm:$0xff]
        %v1604 = vld [vmem:[%s341 + $0xc88] sm:$0xff]
        %v1605 = vld [vmem:[%s341 + $0xc90] sm:$0xff]
        %v1606 = vld [vmem:[%s341 + $0xc98] sm:$0xff]
        %v1607 = vld [vmem:[%s341 + $0xca0] sm:$0xff]
        %v1608 = vld [vmem:[%s341 + $0xca8] sm:$0xff]
        %v1609 = vld [vmem:[%s341 + $0xcb0] sm:$0xff]
        %v1610 = vld [vmem:[%s341 + $0xcb8] sm:$0xff]
        %v1611 = vld [vmem:[%s341 + $0xcc0] sm:$0xff]
        %v1612 = vld [vmem:[%s341 + $0xcc8] sm:$0xff]
        %v1613 = vld [vmem:[%s341 + $0xcd0] sm:$0xff]
        %v1614 = vld [vmem:[%s341 + $0xcd8] sm:$0xff]
        %v1615 = vld [vmem:[%s341 + $0xce0] sm:$0xff]
        %v1616 = vld [vmem:[%s341 + $0xce8] sm:$0xff]
        %v1617 = vld [vmem:[%s341 + $0xcf0] sm:$0xff]
        %v1618 = vld [vmem:[%s341 + $0xcf8] sm:$0xff]
        %v1619 = vld [vmem:[%s341 + $0xd00] sm:$0xff]
        %v1620 = vld [vmem:[%s341 + $0xd08] sm:$0xff]
        %v1621 = vld [vmem:[%s341 + $0xd10] sm:$0xff]
        %v1622 = vld [vmem:[%s341 + $0xd18] sm:$0xff]
        %v1623 = vld [vmem:[%s341 + $0xd20] sm:$0xff]
        %v1624 = vld [vmem:[%s341 + $0xd28] sm:$0xff]
        %v1625 = vld [vmem:[%s341 + $0xd30] sm:$0xff]
        %v1626 = vld [vmem:[%s341 + $0xd38] sm:$0xff]
        %v1627 = vld [vmem:[%s341 + $0xd40] sm:$0xff]
        %v1628 = vld [vmem:[%s341 + $0xd48] sm:$0xff]
        %v1629 = vld [vmem:[%s341 + $0xd50] sm:$0xff]
        %v1630 = vld [vmem:[%s341 + $0xd58] sm:$0xff]
        %v1631 = vld [vmem:[%s341 + $0xd60] sm:$0xff]
        %v1632 = vld [vmem:[%s341 + $0xd68] sm:$0xff]
        %v1633 = vld [vmem:[%s341 + $0xd70] sm:$0xff]
        %v1634 = vld [vmem:[%s341 + $0xd78] sm:$0xff]
        %v1635 = vld [vmem:[%s341 + $0xd80] sm:$0xff]
        %v1636 = vld [vmem:[%s341 + $0xd88] sm:$0xff]
        %v1637 = vld [vmem:[%s341 + $0xd90] sm:$0xff]
        %v1638 = vld [vmem:[%s341 + $0xd98] sm:$0xff]
        %v1639 = vld [vmem:[%s341 + $0xda0] sm:$0xff]
        %v1640 = vld [vmem:[%s341 + $0xda8] sm:$0xff]
        %v1641 = vld [vmem:[%s341 + $0xdb0] sm:$0xff]
        %v1642 = vld [vmem:[%s341 + $0xdb8] sm:$0xff]
        %v1643 = vld [vmem:[%s341 + $0xdc0] sm:$0xff]
        %v1644 = vld [vmem:[%s341 + $0xdc8] sm:$0xff]
        %v1645 = vld [vmem:[%s341 + $0xdd0] sm:$0xff]
        %v1646 = vld [vmem:[%s341 + $0xdd8] sm:$0xff]
        %v1647 = vld [vmem:[%s341 + $0xde0] sm:$0xff]
        %v1648 = vld [vmem:[%s341 + $0xde8] sm:$0xff]
        %v1649 = vld [vmem:[%s341 + $0xdf0] sm:$0xff]
        %v1650 = vld [vmem:[%s341 + $0xdf8] sm:$0xff]
        %v1651 = vld [vmem:[%s341 + $0xe00] sm:$0xff]
        %v1652 = vld [vmem:[%s341 + $0xe08] sm:$0xff]
        %v1653 = vld [vmem:[%s341 + $0xe10] sm:$0xff]
        %v1654 = vld [vmem:[%s341 + $0xe18] sm:$0xff]
        %v1655 = vld [vmem:[%s341 + $0xe20] sm:$0xff]
        %v1656 = vld [vmem:[%s341 + $0xe28] sm:$0xff]
        %v1657 = vld [vmem:[%s341 + $0xe30] sm:$0xff]
        %v1658 = vld [vmem:[%s341 + $0xe38] sm:$0xff]
        %v1659 = vld [vmem:[%s341 + $0xe40] sm:$0xff]
        %v1660 = vld [vmem:[%s341 + $0xe48] sm:$0xff]
        %v1661 = vld [vmem:[%s341 + $0xe50] sm:$0xff]
        %v1662 = vld [vmem:[%s341 + $0xe58] sm:$0xff]
        %v1663 = vld [vmem:[%s341 + $0xe60] sm:$0xff]
        %v1664 = vld [vmem:[%s341 + $0xe68] sm:$0xff]
        %v1665 = vld [vmem:[%s341 + $0xe70] sm:$0xff]
        %v1666 = vld [vmem:[%s341 + $0xe78] sm:$0xff]
        %v1667 = vld [vmem:[%s341 + $0xe80] sm:$0xff]
        %v1668 = vld [vmem:[%s341 + $0xe88] sm:$0xff]
        %v1669 = vld [vmem:[%s341 + $0xe90] sm:$0xff]
        %v1670 = vld [vmem:[%s341 + $0xe98] sm:$0xff]
        %v1671 = vld [vmem:[%s341 + $0xea0] sm:$0xff]
        %v1672 = vld [vmem:[%s341 + $0xea8] sm:$0xff]
        %v1673 = vld [vmem:[%s341 + $0xeb0] sm:$0xff]
        %v1674 = vld [vmem:[%s341 + $0xeb8] sm:$0xff]
        %v1675 = vld [vmem:[%s341 + $0xec0] sm:$0xff]
        %v1676 = vld [vmem:[%s341 + $0xec8] sm:$0xff]
        %v1677 = vld [vmem:[%s341 + $0xed0] sm:$0xff]
        %v1678 = vld [vmem:[%s341 + $0xed8] sm:$0xff]
        %v1679 = vld [vmem:[%s341 + $0xee0] sm:$0xff]
        %v1680 = vld [vmem:[%s341 + $0xee8] sm:$0xff]
        %v1681 = vld [vmem:[%s341 + $0xef0] sm:$0xff]
        %v1682 = vld [vmem:[%s341 + $0xef8] sm:$0xff]
        %v1683 = vld [vmem:[%s341 + $0xf00] sm:$0xff]
        %v1684 = vld [vmem:[%s341 + $0xf08] sm:$0xff]
        %v1685 = vld [vmem:[%s341 + $0xf10] sm:$0xff]
        %v1686 = vld [vmem:[%s341 + $0xf18] sm:$0xff]
        %v1687 = vld [vmem:[%s341 + $0xf20] sm:$0xff]
        %v1688 = vld [vmem:[%s341 + $0xf28] sm:$0xff]
        %v1689 = vld [vmem:[%s341 + $0xf30] sm:$0xff]
        %v1690 = vld [vmem:[%s341 + $0xf38] sm:$0xff]
        %v1691 = vld [vmem:[%s341 + $0xf40] sm:$0xff]
        %v1692 = vld [vmem:[%s341 + $0xf48] sm:$0xff]
        %v1693 = vld [vmem:[%s341 + $0xf50] sm:$0xff]
        %v1694 = vld [vmem:[%s341 + $0xf58] sm:$0xff]
        %v1695 = vld [vmem:[%s341 + $0xf60] sm:$0xff]
        %v1696 = vld [vmem:[%s341 + $0xf68] sm:$0xff]
        %v1697 = vld [vmem:[%s341 + $0xf70] sm:$0xff]
        %v1698 = vld [vmem:[%s341 + $0xf78] sm:$0xff]
        %v1699 = vld [vmem:[%s341 + $0xf80] sm:$0xff]
        %v1700 = vld [vmem:[%s341 + $0xf88] sm:$0xff]
        %v1701 = vld [vmem:[%s341 + $0xf90] sm:$0xff]
        %v1702 = vld [vmem:[%s341 + $0xf98] sm:$0xff]
        %v1703 = vld [vmem:[%s341 + $0xfa0] sm:$0xff]
        %v1704 = vld [vmem:[%s341 + $0xfa8] sm:$0xff]
        %v1705 = vld [vmem:[%s341 + $0xfb0] sm:$0xff]
        %v1706 = vld [vmem:[%s341 + $0xfb8] sm:$0xff]
        %v1707 = vld [vmem:[%s341 + $0xfc0] sm:$0xff]
        %v1708 = vld [vmem:[%s341 + $0xfc8] sm:$0xff]
        %v1709 = vld [vmem:[%s341 + $0xfd0] sm:$0xff]
        %v1710 = vld [vmem:[%s341 + $0xfd8] sm:$0xff]
        %v1711 = vld [vmem:[%s341 + $0xfe0] sm:$0xff]
        %v1712 = vld [vmem:[%s341 + $0xfe8] sm:$0xff]
        %v1713 = vld [vmem:[%s341 + $0xff0] sm:$0xff]
        %v1714 = vld [vmem:[%s341 + $0xff8] sm:$0xff]
        %v1715 = vld [vmem:[%s341 + $0x1000] sm:$0xff]
        %v1716 = vld [vmem:[%s341 + $0x1008] sm:$0xff]
        %v1717 = vld [vmem:[%s341 + $0x1010] sm:$0xff]
        %v1718 = vld [vmem:[%s341 + $0x1018] sm:$0xff]
        %v1719 = vld [vmem:[%s341 + $0x1020] sm:$0xff]
        %v1720 = vld [vmem:[%s341 + $0x1028] sm:$0xff]
        %v1721 = vld [vmem:[%s341 + $0x1030] sm:$0xff]
        %v1722 = vld [vmem:[%s341 + $0x1038] sm:$0xff]
        %v1723 = vld [vmem:[%s341 + $0x1040] sm:$0xff]
        %v1724 = vld [vmem:[%s341 + $0x1048] sm:$0xff]
        %v1725 = vld [vmem:[%s341 + $0x1050] sm:$0xff]
        %v1726 = vld [vmem:[%s341 + $0x1058] sm:$0xff]
        %v1727 = vld [vmem:[%s341 + $0x1060] sm:$0xff]
        %v1728 = vld [vmem:[%s341 + $0x1068] sm:$0xff]
        %v1729 = vld [vmem:[%s341 + $0x1070] sm:$0xff]
        %v1730 = vld [vmem:[%s341 + $0x1078] sm:$0xff]
        %v1731 = vld [vmem:[%s341 + $0x1080] sm:$0xff]
        %v1732 = vld [vmem:[%s341 + $0x1088] sm:$0xff]
        %v1733 = vld [vmem:[%s341 + $0x1090] sm:$0xff]
        %v1734 = vld [vmem:[%s341 + $0x1098] sm:$0xff]
        %v1735 = vld [vmem:[%s341 + $0x10a0] sm:$0xff]
        %v1736 = vld [vmem:[%s341 + $0x10a8] sm:$0xff]
        %v1737 = vld [vmem:[%s341 + $0x10b0] sm:$0xff]
        %v1738 = vld [vmem:[%s341 + $0x10b8] sm:$0xff]
        %v1739 = vld [vmem:[%s341 + $0x10c0] sm:$0xff]
        %v1740 = vld [vmem:[%s341 + $0x10c8] sm:$0xff]
        %v1741 = vld [vmem:[%s341 + $0x10d0] sm:$0xff]
        %v1742 = vld [vmem:[%s341 + $0x10d8] sm:$0xff]
        %v1743 = vld [vmem:[%s341 + $0x10e0] sm:$0xff]
        %v1744 = vld [vmem:[%s341 + $0x10e8] sm:$0xff]
        %v1745 = vld [vmem:[%s341 + $0x10f0] sm:$0xff]
        %v1746 = vld [vmem:[%s341 + $0x10f8] sm:$0xff]
        %v1747 = vld [vmem:[%s341 + $0x1100] sm:$0xff]
        %v1748 = vld [vmem:[%s341 + $0x1108] sm:$0xff]
        %v1749 = vld [vmem:[%s341 + $0x1110] sm:$0xff]
        %v1750 = vld [vmem:[%s341 + $0x1118] sm:$0xff]
        %v1751 = vld [vmem:[%s341 + $0x1120] sm:$0xff]
        %v1752 = vld [vmem:[%s341 + $0x1128] sm:$0xff]
        %v1753 = vld [vmem:[%s341 + $0x1130] sm:$0xff]
        %v1754 = vld [vmem:[%s341 + $0x1138] sm:$0xff]
        %v1755 = vld [vmem:[%s341 + $0x1140] sm:$0xff]
        %v1756 = vld [vmem:[%s341 + $0x1148] sm:$0xff]
        %v1757 = vld [vmem:[%s341 + $0x1150] sm:$0xff]
        %v1758 = vld [vmem:[%s341 + $0x1158] sm:$0xff]
        %v1759 = vld [vmem:[%s341 + $0x1160] sm:$0xff]
        %v1760 = vld [vmem:[%s341 + $0x1168] sm:$0xff]
        %v1761 = vld [vmem:[%s341 + $0x1170] sm:$0xff]
        %v1762 = vld [vmem:[%s341 + $0x1178] sm:$0xff]
        %v1763 = vld [vmem:[%s341 + $0x1180] sm:$0xff]
        %v1764 = vld [vmem:[%s341 + $0x1188] sm:$0xff]
        %v1765 = vld [vmem:[%s341 + $0x1190] sm:$0xff]
        %v1766 = vld [vmem:[%s341 + $0x1198] sm:$0xff]
        %v1767 = vld [vmem:[%s341 + $0x11a0] sm:$0xff]
        %v1768 = vld [vmem:[%s341 + $0x11a8] sm:$0xff]
        %v1769 = vld [vmem:[%s341 + $0x11b0] sm:$0xff]
        %v1770 = vld [vmem:[%s341 + $0x11b8] sm:$0xff]
        %v1771 = vld [vmem:[%s341 + $0x11c0] sm:$0xff]
        %v1772 = vld [vmem:[%s341 + $0x11c8] sm:$0xff]
        %v1773 = vld [vmem:[%s341 + $0x11d0] sm:$0xff]
        %v1774 = vld [vmem:[%s341 + $0x11d8] sm:$0xff]
        %v1775 = vld [vmem:[%s341 + $0x11e0] sm:$0xff]
        %v1776 = vld [vmem:[%s341 + $0x11e8] sm:$0xff]
        %v1777 = vld [vmem:[%s341 + $0x11f0] sm:$0xff]
        %v1778 = vld [vmem:[%s341 + $0x11f8] sm:$0xff]
        %v1779 = vld [vmem:[%s341 + $0x1200] sm:$0xff]
        %v1780 = vld [vmem:[%s341 + $0x1208] sm:$0xff]
        %v1781 = vld [vmem:[%s341 + $0x1210] sm:$0xff]
        %v1782 = vld [vmem:[%s341 + $0x1218] sm:$0xff]
        %v1783 = vld [vmem:[%s341 + $0x1220] sm:$0xff]
        %v1784 = vld [vmem:[%s341 + $0x1228] sm:$0xff]
        %v1785 = vld [vmem:[%s341 + $0x1230] sm:$0xff]
        %v1786 = vld [vmem:[%s341 + $0x1238] sm:$0xff]
        %v1787 = vld [vmem:[%s341 + $0x1240] sm:$0xff]
        %v1788 = vld [vmem:[%s341 + $0x1248] sm:$0xff]
        %v1789 = vld [vmem:[%s341 + $0x1250] sm:$0xff]
        %v1790 = vld [vmem:[%s341 + $0x1258] sm:$0xff]
        %v1791 = vld [vmem:[%s341 + $0x1260] sm:$0xff]
        %v1792 = vld [vmem:[%s341 + $0x1268] sm:$0xff]
        %v1793 = vld [vmem:[%s341 + $0x1270] sm:$0xff]
        %v1794 = vld [vmem:[%s341 + $0x1278] sm:$0xff]
        %v1795 = vld [vmem:[%s341 + $0x1280] sm:$0xff]
        %v1796 = vld [vmem:[%s341 + $0x1288] sm:$0xff]
        %v1797 = vld [vmem:[%s341 + $0x1290] sm:$0xff]
        %v1798 = vld [vmem:[%s341 + $0x1298] sm:$0xff]
        %v1799 = vld [vmem:[%s341 + $0x12a0] sm:$0xff]
        %v1800 = vld [vmem:[%s341 + $0x12a8] sm:$0xff]
        %v1801 = vld [vmem:[%s341 + $0x12b0] sm:$0xff]
        %v1802 = vld [vmem:[%s341 + $0x12b8] sm:$0xff]
        %v1803 = vld [vmem:[%s341 + $0x12c0] sm:$0xff]
        %v1804 = vld [vmem:[%s341 + $0x12c8] sm:$0xff]
        %v1805 = vld [vmem:[%s341 + $0x12d0] sm:$0xff]
        %v1806 = vld [vmem:[%s341 + $0x12d8] sm:$0xff]
        %v1807 = vld [vmem:[%s341 + $0x12e0] sm:$0xff]
        %v1808 = vld [vmem:[%s341 + $0x12e8] sm:$0xff]
        %v1809 = vld [vmem:[%s341 + $0x12f0] sm:$0xff]
        %v1810 = vld [vmem:[%s341 + $0x12f8] sm:$0xff]
        %v1811 = vld [vmem:[%s341 + $0x1300] sm:$0xff]
        %v1812 = vld [vmem:[%s341 + $0x1308] sm:$0xff]
        %v1813 = vld [vmem:[%s341 + $0x1310] sm:$0xff]
        %v1814 = vld [vmem:[%s341 + $0x1318] sm:$0xff]
        %v1815 = vld [vmem:[%s341 + $0x1320] sm:$0xff]
        %v1816 = vld [vmem:[%s341 + $0x1328] sm:$0xff]
        %v1817 = vld [vmem:[%s341 + $0x1330] sm:$0xff]
        %v1818 = vld [vmem:[%s341 + $0x1338] sm:$0xff]
        %v1819 = vld [vmem:[%s341 + $0x1340] sm:$0xff]
        %v1820 = vld [vmem:[%s341 + $0x1348] sm:$0xff]
        %v1821 = vld [vmem:[%s341 + $0x1350] sm:$0xff]
        %v1822 = vld [vmem:[%s341 + $0x1358] sm:$0xff]
        %v1823 = vld [vmem:[%s341 + $0x1360] sm:$0xff]
        %v1824 = vld [vmem:[%s341 + $0x1368] sm:$0xff]
        %v1825 = vld [vmem:[%s341 + $0x1370] sm:$0xff]
        %v1826 = vld [vmem:[%s341 + $0x1378] sm:$0xff]
        %v1827 = vld [vmem:[%s341 + $0x1380] sm:$0xff]
        %v1828 = vld [vmem:[%s341 + $0x1388] sm:$0xff]
        %v1829 = vld [vmem:[%s341 + $0x1390] sm:$0xff]
        %v1830 = vld [vmem:[%s341 + $0x1398] sm:$0xff]
        %v1831 = vld [vmem:[%s341 + $0x13a0] sm:$0xff]
        %v1832 = vld [vmem:[%s341 + $0x13a8] sm:$0xff]
        %v1833 = vld [vmem:[%s341 + $0x13b0] sm:$0xff]
        %v1834 = vld [vmem:[%s341 + $0x13b8] sm:$0xff]
        %v1835 = vld [vmem:[%s341 + $0x13c0] sm:$0xff]
        %v1836 = vld [vmem:[%s341 + $0x13c8] sm:$0xff]
        %v1837 = vld [vmem:[%s341 + $0x13d0] sm:$0xff]
        %v1838 = vld [vmem:[%s341 + $0x13d8] sm:$0xff]
        %v1839 = vld [vmem:[%s341 + $0x13e0] sm:$0xff]
        %v1840 = vld [vmem:[%s341 + $0x13e8] sm:$0xff]
        %v1841 = vld [vmem:[%s341 + $0x13f0] sm:$0xff]
        %v1842 = vld [vmem:[%s341 + $0x13f8] sm:$0xff]
        %v1843 = vld [vmem:[%s341 + $0x1400] sm:$0xff]
        %v1844 = vld [vmem:[%s341 + $0x1408] sm:$0xff]
        %v1845 = vld [vmem:[%s341 + $0x1410] sm:$0xff]
        %v1846 = vld [vmem:[%s341 + $0x1418] sm:$0xff]
        %v1847 = vld [vmem:[%s341 + $0x1420] sm:$0xff]
        %v1848 = vld [vmem:[%s341 + $0x1428] sm:$0xff]
        %v1849 = vld [vmem:[%s341 + $0x1430] sm:$0xff]
        %v1850 = vld [vmem:[%s341 + $0x1438] sm:$0xff]
        %v1851 = vld [vmem:[%s341 + $0x1440] sm:$0xff]
        %v1852 = vld [vmem:[%s341 + $0x1448] sm:$0xff]
        %v1853 = vld [vmem:[%s341 + $0x1450] sm:$0xff]
        %v1854 = vld [vmem:[%s341 + $0x1458] sm:$0xff]
        %v1855 = vld [vmem:[%s341 + $0x1460] sm:$0xff]
        %v1856 = vld [vmem:[%s341 + $0x1468] sm:$0xff]
        %v1857 = vld [vmem:[%s341 + $0x1470] sm:$0xff]
        %v1858 = vld [vmem:[%s341 + $0x1478] sm:$0xff]
        %v1859 = vld [vmem:[%s341 + $0x1480] sm:$0xff]
        %v1860 = vld [vmem:[%s341 + $0x1488] sm:$0xff]
        %v1861 = vld [vmem:[%s341 + $0x1490] sm:$0xff]
        %v1862 = vld [vmem:[%s341 + $0x1498] sm:$0xff]
        %v1863 = vld [vmem:[%s341 + $0x14a0] sm:$0xff]
        %v1864 = vld [vmem:[%s341 + $0x14a8] sm:$0xff]
        %v1865 = vld [vmem:[%s341 + $0x14b0] sm:$0xff]
        %v1866 = vld [vmem:[%s341 + $0x14b8] sm:$0xff]
        %v1867 = vld [vmem:[%s341 + $0x14c0] sm:$0xff]
        %v1868 = vld [vmem:[%s341 + $0x14c8] sm:$0xff]
        %v1869 = vld [vmem:[%s341 + $0x14d0] sm:$0xff]
        %v1870 = vld [vmem:[%s341 + $0x14d8] sm:$0xff]
        %v1871 = vld [vmem:[%s341 + $0x14e0] sm:$0xff]
        %v1872 = vld [vmem:[%s341 + $0x14e8] sm:$0xff]
        %v1873 = vld [vmem:[%s341 + $0x14f0] sm:$0xff]
        %v1874 = vld [vmem:[%s341 + $0x14f8] sm:$0xff]
        %v1875 = vld [vmem:[%s341 + $0x1500] sm:$0xff]
        %v1876 = vld [vmem:[%s341 + $0x1508] sm:$0xff]
        %v1877 = vld [vmem:[%s341 + $0x1510] sm:$0xff]
        %v1878 = vld [vmem:[%s341 + $0x1518] sm:$0xff]
        %v1879 = vld [vmem:[%s341 + $0x1520] sm:$0xff]
        %v1880 = vld [vmem:[%s341 + $0x1528] sm:$0xff]
        %v1881 = vld [vmem:[%s341 + $0x1530] sm:$0xff]
        %v1882 = vld [vmem:[%s341 + $0x1538] sm:$0xff]
        %v1883 = vld [vmem:[%s341 + $0x1540] sm:$0xff]
        %v1884 = vld [vmem:[%s341 + $0x1548] sm:$0xff]
        %v1885 = vld [vmem:[%s341 + $0x1550] sm:$0xff]
        %v1886 = vld [vmem:[%s341 + $0x1558] sm:$0xff]
        %v1887 = vld [vmem:[%s341 + $0x1560] sm:$0xff]
        %v1888 = vld [vmem:[%s341 + $0x1568] sm:$0xff]
        %v1889 = vld [vmem:[%s341 + $0x1570] sm:$0xff]
        %v1890 = vld [vmem:[%s341 + $0x1578] sm:$0xff]
        %v1891 = vld [vmem:[%s341 + $0x1580] sm:$0xff]
        %v1892 = vld [vmem:[%s341 + $0x1588] sm:$0xff]
        %v1893 = vld [vmem:[%s341 + $0x1590] sm:$0xff]
        %v1894 = vld [vmem:[%s341 + $0x1598] sm:$0xff]
        %v1895 = vld [vmem:[%s341 + $0x15a0] sm:$0xff]
        %v1896 = vld [vmem:[%s341 + $0x15a8] sm:$0xff]
        %v1897 = vld [vmem:[%s341 + $0x15b0] sm:$0xff]
        %v1898 = vld [vmem:[%s341 + $0x15b8] sm:$0xff]
        %v1899 = vld [vmem:[%s341 + $0x15c0] sm:$0xff]
        %v1900 = vld [vmem:[%s341 + $0x15c8] sm:$0xff]
        %v1901 = vld [vmem:[%s341 + $0x15d0] sm:$0xff]
        %v1902 = vld [vmem:[%s341 + $0x15d8] sm:$0xff]
        %v1903 = vld [vmem:[%s341 + $0x15e0] sm:$0xff]
        %v1904 = vld [vmem:[%s341 + $0x15e8] sm:$0xff]
        %v1905 = vld [vmem:[%s341 + $0x15f0] sm:$0xff]
        %v1906 = vld [vmem:[%s341 + $0x15f8] sm:$0xff]
        %v1907 = vld [vmem:[%s341 + $0x1600] sm:$0xff]
        %v1908 = vld [vmem:[%s341 + $0x1608] sm:$0xff]
        %v1909 = vld [vmem:[%s341 + $0x1610] sm:$0xff]
        %v1910 = vld [vmem:[%s341 + $0x1618] sm:$0xff]
        %v1911 = vld [vmem:[%s341 + $0x1620] sm:$0xff]
        %v1912 = vld [vmem:[%s341 + $0x1628] sm:$0xff]
        %v1913 = vld [vmem:[%s341 + $0x1630] sm:$0xff]
        %v1914 = vld [vmem:[%s341 + $0x1638] sm:$0xff]
        %v1915 = vld [vmem:[%s341 + $0x1640] sm:$0xff]
        %v1916 = vld [vmem:[%s341 + $0x1648] sm:$0xff]
        %v1917 = vld [vmem:[%s341 + $0x1650] sm:$0xff]
        %v1918 = vld [vmem:[%s341 + $0x1658] sm:$0xff]
        %v1919 = vld [vmem:[%s341 + $0x1660] sm:$0xff]
        %v1920 = vld [vmem:[%s341 + $0x1668] sm:$0xff]
        %v1921 = vld [vmem:[%s341 + $0x1670] sm:$0xff]
        %v1922 = vld [vmem:[%s341 + $0x1678] sm:$0xff]
        %v1923 = vld [vmem:[%s341 + $0x1680] sm:$0xff]
        %v1924 = vld [vmem:[%s341 + $0x1688] sm:$0xff]
        %v1925 = vld [vmem:[%s341 + $0x1690] sm:$0xff]
        %v1926 = vld [vmem:[%s341 + $0x1698] sm:$0xff]
        %v1927 = vld [vmem:[%s341 + $0x16a0] sm:$0xff]
        %v1928 = vld [vmem:[%s341 + $0x16a8] sm:$0xff]
        %v1929 = vld [vmem:[%s341 + $0x16b0] sm:$0xff]
        %v1930 = vld [vmem:[%s341 + $0x16b8] sm:$0xff]
        %v1931 = vld [vmem:[%s341 + $0x16c0] sm:$0xff]
        %v1932 = vld [vmem:[%s341 + $0x16c8] sm:$0xff]
        %v1933 = vld [vmem:[%s341 + $0x16d0] sm:$0xff]
        %v1934 = vld [vmem:[%s341 + $0x16d8] sm:$0xff]
        %v1935 = vld [vmem:[%s341 + $0x16e0] sm:$0xff]
        %v1936 = vld [vmem:[%s341 + $0x16e8] sm:$0xff]
        %v1937 = vld [vmem:[%s341 + $0x16f0] sm:$0xff]
        %v1938 = vld [vmem:[%s341 + $0x16f8] sm:$0xff]
        %v1939 = vld [vmem:[%s341 + $0x1700] sm:$0xff]
        %v1940 = vld [vmem:[%s341 + $0x1708] sm:$0xff]
        %v1941 = vld [vmem:[%s341 + $0x1710] sm:$0xff]
        %v1942 = vld [vmem:[%s341 + $0x1718] sm:$0xff]
        %v1943 = vld [vmem:[%s341 + $0x1720] sm:$0xff]
        %v1944 = vld [vmem:[%s341 + $0x1728] sm:$0xff]
        %v1945 = vld [vmem:[%s341 + $0x1730] sm:$0xff]
        %v1946 = vld [vmem:[%s341 + $0x1738] sm:$0xff]
        %v1947 = vld [vmem:[%s341 + $0x1740] sm:$0xff]
        %v1948 = vld [vmem:[%s341 + $0x1748] sm:$0xff]
        %v1949 = vld [vmem:[%s341 + $0x1750] sm:$0xff]
        %v1950 = vld [vmem:[%s341 + $0x1758] sm:$0xff]
        %v1951 = vld [vmem:[%s341 + $0x1760] sm:$0xff]
        %v1952 = vld [vmem:[%s341 + $0x1768] sm:$0xff]
        %v1953 = vld [vmem:[%s341 + $0x1770] sm:$0xff]
        %v1954 = vld [vmem:[%s341 + $0x1778] sm:$0xff]
        %v1955 = vld [vmem:[%s341 + $0x1780] sm:$0xff]
        %v1956 = vld [vmem:[%s341 + $0x1788] sm:$0xff]
        %v1957 = vld [vmem:[%s341 + $0x1790] sm:$0xff]
        %v1958 = vld [vmem:[%s341 + $0x1798] sm:$0xff]
        %v1959 = vld [vmem:[%s341 + $0x17a0] sm:$0xff]
        %v1960 = vld [vmem:[%s341 + $0x17a8] sm:$0xff]
        %v1961 = vld [vmem:[%s341 + $0x17b0] sm:$0xff]
        %v1962 = vld [vmem:[%s341 + $0x17b8] sm:$0xff]
        %v1963 = vld [vmem:[%s341 + $0x17c0] sm:$0xff]
        %v1964 = vld [vmem:[%s341 + $0x17c8] sm:$0xff]
        %v1965 = vld [vmem:[%s341 + $0x17d0] sm:$0xff]
        %v1966 = vld [vmem:[%s341 + $0x17d8] sm:$0xff]
        %v1967 = vld [vmem:[%s341 + $0x17e0] sm:$0xff]
        %v1968 = vld [vmem:[%s341 + $0x17e8] sm:$0xff]
        %v1969 = vld [vmem:[%s341 + $0x17f0] sm:$0xff]
        %v1970 = vld [vmem:[%s341 + $0x17f8] sm:$0xff]
        %v1971 = vld [vmem:[%s341 + $0x1800] sm:$0xff]
        %v1972 = vld [vmem:[%s341 + $0x1808] sm:$0xff]
        %v1973 = vld [vmem:[%s341 + $0x1810] sm:$0xff]
        %v1974 = vld [vmem:[%s341 + $0x1818] sm:$0xff]
        %v1975 = vld [vmem:[%s341 + $0x1820] sm:$0xff]
        %v1976 = vld [vmem:[%s341 + $0x1828] sm:$0xff]
        %v1977 = vld [vmem:[%s341 + $0x1830] sm:$0xff]
        %v1978 = vld [vmem:[%s341 + $0x1838] sm:$0xff]
        %v1979 = vld [vmem:[%s341 + $0x1840] sm:$0xff]
        %v1980 = vld [vmem:[%s341 + $0x1848] sm:$0xff]
        %v1981 = vld [vmem:[%s341 + $0x1850] sm:$0xff]
        %v1982 = vld [vmem:[%s341 + $0x1858] sm:$0xff]
        %v1983 = vld [vmem:[%s341 + $0x1860] sm:$0xff]
        %v1984 = vld [vmem:[%s341 + $0x1868] sm:$0xff]
        %v1985 = vld [vmem:[%s341 + $0x1870] sm:$0xff]
        %v1986 = vld [vmem:[%s341 + $0x1878] sm:$0xff]
        %v1987 = vld [vmem:[%s341 + $0x1880] sm:$0xff]
        %v1988 = vld [vmem:[%s341 + $0x1888] sm:$0xff]
        %v1989 = vld [vmem:[%s341 + $0x1890] sm:$0xff]
        %v1990 = vld [vmem:[%s341 + $0x1898] sm:$0xff]
        %v1991 = vld [vmem:[%s341 + $0x18a0] sm:$0xff]
        %v1992 = vld [vmem:[%s341 + $0x18a8] sm:$0xff]
        %v1993 = vld [vmem:[%s341 + $0x18b0] sm:$0xff]
        %v1994 = vld [vmem:[%s341 + $0x18b8] sm:$0xff]
        %v1995 = vld [vmem:[%s341 + $0x18c0] sm:$0xff]
        %v1996 = vld [vmem:[%s341 + $0x18c8] sm:$0xff]
        %v1997 = vld [vmem:[%s341 + $0x18d0] sm:$0xff]
        %v1998 = vld [vmem:[%s341 + $0x18d8] sm:$0xff]
        %v1999 = vld [vmem:[%s341 + $0x18e0] sm:$0xff]
        %v2000 = vld [vmem:[%s341 + $0x18e8] sm:$0xff]
        %v2001 = vld [vmem:[%s341 + $0x18f0] sm:$0xff]
        %v2002 = vld [vmem:[%s341 + $0x18f8] sm:$0xff]
        %v2003 = vld [vmem:[%s341 + $0x1900] sm:$0xff]
        %v2004 = vld [vmem:[%s341 + $0x1908] sm:$0xff]
        %v2005 = vld [vmem:[%s341 + $0x1910] sm:$0xff]
        %v2006 = vld [vmem:[%s341 + $0x1918] sm:$0xff]
        %v2007 = vld [vmem:[%s341 + $0x1920] sm:$0xff]
        %v2008 = vld [vmem:[%s341 + $0x1928] sm:$0xff]
        %v2009 = vld [vmem:[%s341 + $0x1930] sm:$0xff]
        %v2010 = vld [vmem:[%s341 + $0x1938] sm:$0xff]
        %v2011 = vld [vmem:[%s341 + $0x1940] sm:$0xff]
        %v2012 = vld [vmem:[%s341 + $0x1948] sm:$0xff]
        %v2013 = vld [vmem:[%s341 + $0x1950] sm:$0xff]
        %v2014 = vld [vmem:[%s341 + $0x1958] sm:$0xff]
        %v2015 = vld [vmem:[%s341 + $0x1960] sm:$0xff]
        %v2016 = vld [vmem:[%s341 + $0x1968] sm:$0xff]
        %v2017 = vld [vmem:[%s341 + $0x1970] sm:$0xff]
        %v2018 = vld [vmem:[%s341 + $0x1978] sm:$0xff]
        %v2019 = vld [vmem:[%s341 + $0x1980] sm:$0xff]
        %v2020 = vld [vmem:[%s341 + $0x1988] sm:$0xff]
        %v2021 = vld [vmem:[%s341 + $0x1990] sm:$0xff]
        %v2022 = vld [vmem:[%s341 + $0x1998] sm:$0xff]
        %v2023 = vld [vmem:[%s341 + $0x19a0] sm:$0xff]
        %v2024 = vld [vmem:[%s341 + $0x19a8] sm:$0xff]
        %v2025 = vld [vmem:[%s341 + $0x19b0] sm:$0xff]
        %v2026 = vld [vmem:[%s341 + $0x19b8] sm:$0xff]
        %v2027 = vld [vmem:[%s341 + $0x19c0] sm:$0xff]
        %v2028 = vld [vmem:[%s341 + $0x19c8] sm:$0xff]
        %v2029 = vld [vmem:[%s341 + $0x19d0] sm:$0xff]
        %v2030 = vld [vmem:[%s341 + $0x19d8] sm:$0xff]
        %v2031 = vld [vmem:[%s341 + $0x19e0] sm:$0xff]
        %v2032 = vld [vmem:[%s341 + $0x19e8] sm:$0xff]
        %v2033 = vld [vmem:[%s341 + $0x19f0] sm:$0xff]
        %v2034 = vld [vmem:[%s341 + $0x19f8] sm:$0xff]
        %v2035 = vld [vmem:[%s341 + $0x1a00] sm:$0xff]
        %v2036 = vld [vmem:[%s341 + $0x1a08] sm:$0xff]
        %v2037 = vld [vmem:[%s341 + $0x1a10] sm:$0xff]
        %v2038 = vld [vmem:[%s341 + $0x1a18] sm:$0xff]
        %v2039 = vld [vmem:[%s341 + $0x1a20] sm:$0xff]
        %v2040 = vld [vmem:[%s341 + $0x1a28] sm:$0xff]
        %v2041 = vld [vmem:[%s341 + $0x1a30] sm:$0xff]
        %v2042 = vld [vmem:[%s341 + $0x1a38] sm:$0xff]
        %v2043 = vld [vmem:[%s341 + $0x1a40] sm:$0xff]
        %v2044 = vld [vmem:[%s341 + $0x1a48] sm:$0xff]
        %v2045 = vld [vmem:[%s341 + $0x1a50] sm:$0xff]
        %v2046 = vld [vmem:[%s341 + $0x1a58] sm:$0xff]
        %v2047 = vld [vmem:[%s341 + $0x1a60] sm:$0xff]
        %v2048 = vld [vmem:[%s341 + $0x1a68] sm:$0xff]
        %v2049 = vld [vmem:[%s341 + $0x1a70] sm:$0xff]
        %v2050 = vld [vmem:[%s341 + $0x1a78] sm:$0xff]
        %v2051 = vld [vmem:[%s341 + $0x1a80] sm:$0xff]
        %v2052 = vld [vmem:[%s341 + $0x1a88] sm:$0xff]
        %v2053 = vld [vmem:[%s341 + $0x1a90] sm:$0xff]
        %v2054 = vld [vmem:[%s341 + $0x1a98] sm:$0xff]
        %v2055 = vld [vmem:[%s341 + $0x1aa0] sm:$0xff]
        %v2056 = vld [vmem:[%s341 + $0x1aa8] sm:$0xff]
        %v2057 = vld [vmem:[%s341 + $0x1ab0] sm:$0xff]
        %v2058 = vld [vmem:[%s341 + $0x1ab8] sm:$0xff]
        %v2059 = vld [vmem:[%s341 + $0x1ac0] sm:$0xff]
        %v2060 = vld [vmem:[%s341 + $0x1ac8] sm:$0xff]
        %v2061 = vld [vmem:[%s341 + $0x1ad0] sm:$0xff]
        %v2062 = vld [vmem:[%s341 + $0x1ad8] sm:$0xff]
        %v2063 = vld [vmem:[%s341 + $0x1ae0] sm:$0xff]
        %v2064 = vld [vmem:[%s341 + $0x1ae8] sm:$0xff]
        %v2065 = vld [vmem:[%s341 + $0x1af0] sm:$0xff]
        %v2066 = vld [vmem:[%s341 + $0x1af8] sm:$0xff]
        %v2067 = vld [vmem:[%s341 + $0x1b00] sm:$0xff]
        %v2068 = vld [vmem:[%s341 + $0x1b08] sm:$0xff]
        %v2069 = vld [vmem:[%s341 + $0x1b10] sm:$0xff]
        %v2070 = vld [vmem:[%s341 + $0x1b18] sm:$0xff]
        %v2071 = vld [vmem:[%s341 + $0x1b20] sm:$0xff]
        %v2072 = vld [vmem:[%s341 + $0x1b28] sm:$0xff]
        %v2073 = vld [vmem:[%s341 + $0x1b30] sm:$0xff]
        %v2074 = vld [vmem:[%s341 + $0x1b38] sm:$0xff]
        %v2075 = vld [vmem:[%s341 + $0x1b40] sm:$0xff]
        %v2076 = vld [vmem:[%s341 + $0x1b48] sm:$0xff]
        %v2077 = vld [vmem:[%s341 + $0x1b50] sm:$0xff]
        %v2078 = vld [vmem:[%s341 + $0x1b58] sm:$0xff]
        %v2079 = vld [vmem:[%s341 + $0x1b60] sm:$0xff]
        %v2080 = vld [vmem:[%s341 + $0x1b68] sm:$0xff]
        %v2081 = vld [vmem:[%s341 + $0x1b70] sm:$0xff]
        %v2082 = vld [vmem:[%s341 + $0x1b78] sm:$0xff]
        %v2083 = vld [vmem:[%s341 + $0x1b80] sm:$0xff]
        %v2084 = vld [vmem:[%s341 + $0x1b88] sm:$0xff]
        %v2085 = vld [vmem:[%s341 + $0x1b90] sm:$0xff]
        %v2086 = vld [vmem:[%s341 + $0x1b98] sm:$0xff]
        %v2087 = vld [vmem:[%s341 + $0x1ba0] sm:$0xff]
        %v2088 = vld [vmem:[%s341 + $0x1ba8] sm:$0xff]
        %v2089 = vld [vmem:[%s341 + $0x1bb0] sm:$0xff]
        %v2090 = vld [vmem:[%s341 + $0x1bb8] sm:$0xff]
        %v2091 = vld [vmem:[%s341 + $0x1bc0] sm:$0xff]
        %v2092 = vld [vmem:[%s341 + $0x1bc8] sm:$0xff]
        %v2093 = vld [vmem:[%s341 + $0x1bd0] sm:$0xff]
        %v2094 = vld [vmem:[%s341 + $0x1bd8] sm:$0xff]
        %v2095 = vld [vmem:[%s341 + $0x1be0] sm:$0xff]
        %v2096 = vld [vmem:[%s341 + $0x1be8] sm:$0xff]
        %v2097 = vld [vmem:[%s341 + $0x1bf0] sm:$0xff]
        %v2098 = vld [vmem:[%s341 + $0x1bf8] sm:$0xff]
        %v2099 = vld [vmem:[%s341 + $0x1c00] sm:$0xff]
        %v2100 = vld [vmem:[%s341 + $0x1c08] sm:$0xff]
        %v2101 = vld [vmem:[%s341 + $0x1c10] sm:$0xff]
        %v2102 = vld [vmem:[%s341 + $0x1c18] sm:$0xff]
        %v2103 = vld [vmem:[%s341 + $0x1c20] sm:$0xff]
        %v2104 = vld [vmem:[%s341 + $0x1c28] sm:$0xff]
        %v2105 = vld [vmem:[%s341 + $0x1c30] sm:$0xff]
        %v2106 = vld [vmem:[%s341 + $0x1c38] sm:$0xff]
        %v2107 = vld [vmem:[%s341 + $0x1c40] sm:$0xff]
        %v2108 = vld [vmem:[%s341 + $0x1c48] sm:$0xff]
        %v2109 = vld [vmem:[%s341 + $0x1c50] sm:$0xff]
        %v2110 = vld [vmem:[%s341 + $0x1c58] sm:$0xff]
        %v2111 = vld [vmem:[%s341 + $0x1c60] sm:$0xff]
        %v2112 = vld [vmem:[%s341 + $0x1c68] sm:$0xff]
        %v2113 = vld [vmem:[%s341 + $0x1c70] sm:$0xff]
        %v2114 = vld [vmem:[%s341 + $0x1c78] sm:$0xff]
        %v2115 = vld [vmem:[%s341 + $0x1c80] sm:$0xff]
        %v2116 = vld [vmem:[%s341 + $0x1c88] sm:$0xff]
        %v2117 = vld [vmem:[%s341 + $0x1c90] sm:$0xff]
        %v2118 = vld [vmem:[%s341 + $0x1c98] sm:$0xff]
        %v2119 = vld [vmem:[%s341 + $0x1ca0] sm:$0xff]
        %v2120 = vld [vmem:[%s341 + $0x1ca8] sm:$0xff]
        %v2121 = vld [vmem:[%s341 + $0x1cb0] sm:$0xff]
        %v2122 = vld [vmem:[%s341 + $0x1cb8] sm:$0xff]
        %v2123 = vld [vmem:[%s341 + $0x1cc0] sm:$0xff]
        %v2124 = vld [vmem:[%s341 + $0x1cc8] sm:$0xff]
        %v2125 = vld [vmem:[%s341 + $0x1cd0] sm:$0xff]
        %v2126 = vld [vmem:[%s341 + $0x1cd8] sm:$0xff]
        %v2127 = vld [vmem:[%s341 + $0x1ce0] sm:$0xff]
        %v2128 = vld [vmem:[%s341 + $0x1ce8] sm:$0xff]
        %v2129 = vld [vmem:[%s341 + $0x1cf0] sm:$0xff]
        %v2130 = vld [vmem:[%s341 + $0x1cf8] sm:$0xff]
        %v2131 = vld [vmem:[%s341 + $0x1d00] sm:$0xff]
        %v2132 = vld [vmem:[%s341 + $0x1d08] sm:$0xff]
        %v2133 = vld [vmem:[%s341 + $0x1d10] sm:$0xff]
        %v2134 = vld [vmem:[%s341 + $0x1d18] sm:$0xff]
        %v2135 = vld [vmem:[%s341 + $0x1d20] sm:$0xff]
        %v2136 = vld [vmem:[%s341 + $0x1d28] sm:$0xff]
        %v2137 = vld [vmem:[%s341 + $0x1d30] sm:$0xff]
        %v2138 = vld [vmem:[%s341 + $0x1d38] sm:$0xff]
        %v2139 = vld [vmem:[%s341 + $0x1d40] sm:$0xff]
        %v2140 = vld [vmem:[%s341 + $0x1d48] sm:$0xff]
        %v2141 = vld [vmem:[%s341 + $0x1d50] sm:$0xff]
        %v2142 = vld [vmem:[%s341 + $0x1d58] sm:$0xff]
        %v2143 = vld [vmem:[%s341 + $0x1d60] sm:$0xff]
        %v2144 = vld [vmem:[%s341 + $0x1d68] sm:$0xff]
        %v2145 = vld [vmem:[%s341 + $0x1d70] sm:$0xff]
        %v2146 = vld [vmem:[%s341 + $0x1d78] sm:$0xff]
        %v2147 = vld [vmem:[%s341 + $0x1d80] sm:$0xff]
        %v2148 = vld [vmem:[%s341 + $0x1d88] sm:$0xff]
        %v2149 = vld [vmem:[%s341 + $0x1d90] sm:$0xff]
        %v2150 = vld [vmem:[%s341 + $0x1d98] sm:$0xff]
        %v2151 = vld [vmem:[%s341 + $0x1da0] sm:$0xff]
        %v2152 = vld [vmem:[%s341 + $0x1da8] sm:$0xff]
        %v2153 = vld [vmem:[%s341 + $0x1db0] sm:$0xff]
        %v2154 = vld [vmem:[%s341 + $0x1db8] sm:$0xff]
        %v2155 = vld [vmem:[%s341 + $0x1dc0] sm:$0xff]
        %v2156 = vld [vmem:[%s341 + $0x1dc8] sm:$0xff]
        %v2157 = vld [vmem:[%s341 + $0x1dd0] sm:$0xff]
        %v2158 = vld [vmem:[%s341 + $0x1dd8] sm:$0xff]
        %v2159 = vld [vmem:[%s341 + $0x1de0] sm:$0xff]
        %v2160 = vld [vmem:[%s341 + $0x1de8] sm:$0xff]
        %v2161 = vld [vmem:[%s341 + $0x1df0] sm:$0xff]
        %v2162 = vld [vmem:[%s341 + $0x1df8] sm:$0xff]
        %v2163 = vld [vmem:[%s341 + $0x1e00] sm:$0xff]
        %v2164 = vld [vmem:[%s341 + $0x1e08] sm:$0xff]
        %v2165 = vld [vmem:[%s341 + $0x1e10] sm:$0xff]
        %v2166 = vld [vmem:[%s341 + $0x1e18] sm:$0xff]
        %v2167 = vld [vmem:[%s341 + $0x1e20] sm:$0xff]
        %v2168 = vld [vmem:[%s341 + $0x1e28] sm:$0xff]
        %v2169 = vld [vmem:[%s341 + $0x1e30] sm:$0xff]
        %v2170 = vld [vmem:[%s341 + $0x1e38] sm:$0xff]
        %v2171 = vld [vmem:[%s341 + $0x1e40] sm:$0xff]
        %v2172 = vld [vmem:[%s341 + $0x1e48] sm:$0xff]
        %v2173 = vld [vmem:[%s341 + $0x1e50] sm:$0xff]
        %v2174 = vld [vmem:[%s341 + $0x1e58] sm:$0xff]
        %v2175 = vld [vmem:[%s341 + $0x1e60] sm:$0xff]
        %v2176 = vld [vmem:[%s341 + $0x1e68] sm:$0xff]
        %v2177 = vld [vmem:[%s341 + $0x1e70] sm:$0xff]
        %v2178 = vld [vmem:[%s341 + $0x1e78] sm:$0xff]
        %v2179 = vld [vmem:[%s341 + $0x1e80] sm:$0xff]
        %v2180 = vld [vmem:[%s341 + $0x1e88] sm:$0xff]
        %v2181 = vld [vmem:[%s341 + $0x1e90] sm:$0xff]
        %v2182 = vld [vmem:[%s341 + $0x1e98] sm:$0xff]
        %v2183 = vld [vmem:[%s341 + $0x1ea0] sm:$0xff]
        %v2184 = vld [vmem:[%s341 + $0x1ea8] sm:$0xff]
        %v2185 = vld [vmem:[%s341 + $0x1eb0] sm:$0xff]
        %v2186 = vld [vmem:[%s341 + $0x1eb8] sm:$0xff]
        %v2187 = vld [vmem:[%s341 + $0x1ec0] sm:$0xff]
        %v2188 = vld [vmem:[%s341 + $0x1ec8] sm:$0xff]
        %v2189 = vld [vmem:[%s341 + $0x1ed0] sm:$0xff]
        %v2190 = vld [vmem:[%s341 + $0x1ed8] sm:$0xff]
        %v2191 = vld [vmem:[%s341 + $0x1ee0] sm:$0xff]
        %v2192 = vld [vmem:[%s341 + $0x1ee8] sm:$0xff]
        %v2193 = vld [vmem:[%s341 + $0x1ef0] sm:$0xff]
        %v2194 = vld [vmem:[%s341 + $0x1ef8] sm:$0xff]
        %v2195 = vld [vmem:[%s341 + $0x1f00] sm:$0xff]
        %v2196 = vld [vmem:[%s341 + $0x1f08] sm:$0xff]
        %v2197 = vld [vmem:[%s341 + $0x1f10] sm:$0xff]
        %v2198 = vld [vmem:[%s341 + $0x1f18] sm:$0xff]
        %v2199 = vld [vmem:[%s341 + $0x1f20] sm:$0xff]
        %v2200 = vld [vmem:[%s341 + $0x1f28] sm:$0xff]
        %v2201 = vld [vmem:[%s341 + $0x1f30] sm:$0xff]
        %v2202 = vld [vmem:[%s341 + $0x1f38] sm:$0xff]
        %v2203 = vld [vmem:[%s341 + $0x1f40] sm:$0xff]
        %v2204 = vld [vmem:[%s341 + $0x1f48] sm:$0xff]
        %v2205 = vld [vmem:[%s341 + $0x1f50] sm:$0xff]
        %v2206 = vld [vmem:[%s341 + $0x1f58] sm:$0xff]
        %v2207 = vld [vmem:[%s341 + $0x1f60] sm:$0xff]
        %v2208 = vld [vmem:[%s341 + $0x1f68] sm:$0xff]
        %v2209 = vld [vmem:[%s341 + $0x1f70] sm:$0xff]
        %v2210 = vld [vmem:[%s341 + $0x1f78] sm:$0xff]
        %v2211 = vld [vmem:[%s341 + $0x1f80] sm:$0xff]
        %v2212 = vld [vmem:[%s341 + $0x1f88] sm:$0xff]
        %v2213 = vld [vmem:[%s341 + $0x1f90] sm:$0xff]
        %v2214 = vld [vmem:[%s341 + $0x1f98] sm:$0xff]
        %v2215 = vld [vmem:[%s341 + $0x1fa0] sm:$0xff]
        %v2216 = vld [vmem:[%s341 + $0x1fa8] sm:$0xff]
        %v2217 = vld [vmem:[%s341 + $0x1fb0] sm:$0xff]
        %v2218 = vld [vmem:[%s341 + $0x1fb8] sm:$0xff]
        %v2219 = vld [vmem:[%s341 + $0x1fc0] sm:$0xff]
        %v2220 = vld [vmem:[%s341 + $0x1fc8] sm:$0xff]
        %v2221 = vld [vmem:[%s341 + $0x1fd0] sm:$0xff]
        %v2222 = vld [vmem:[%s341 + $0x1fd8] sm:$0xff]
        %v2223 = vld [vmem:[%s341 + $0x1fe0] sm:$0xff]
        %v2224 = vld [vmem:[%s341 + $0x1fe8] sm:$0xff]
        %v2225 = vld [vmem:[%s341 + $0x1ff0] sm:$0xff]
        %v2226 = vld [vmem:[%s341 + $0x1ff8] sm:$0xff]
        %v2227 = vld [vmem:[%s350] sm:$0xff]
        %v2229 = vlaneseq
        %v2230 = vshrl.u32 %v2229, 7
        %v2231 = vsub.s32 0, %v2230
        %v2232 = vrot.slane %v2227, %v2231
        %v2233 = vlaneseq
        %v2234 = vshrl.u32 %v2233, 7
        %v2235 = vsub.s32 1, %v2234
        %v2236 = vrot.slane %v2227, %v2235
        %v2237 = vlaneseq
        %v2238 = vshrl.u32 %v2237, 7
        %v2239 = vsub.s32 2, %v2238
        %v2240 = vrot.slane %v2227, %v2239
        %v2241 = vlaneseq
        %v2242 = vshrl.u32 %v2241, 7
        %v2243 = vsub.s32 3, %v2242
        %v2244 = vrot.slane %v2227, %v2243
        %v2245 = vlaneseq
        %v2246 = vshrl.u32 %v2245, 7
        %v2247 = vsub.s32 4, %v2246
        %v2248 = vrot.slane %v2227, %v2247
        %v2249 = vlaneseq
        %v2250 = vshrl.u32 %v2249, 7
        %v2251 = vsub.s32 5, %v2250
        %v2252 = vrot.slane %v2227, %v2251
        %v2253 = vlaneseq
        %v2254 = vshrl.u32 %v2253, 7
        %v2255 = vsub.s32 6, %v2254
        %v2256 = vrot.slane %v2227, %v2255
        %v2257 = vlaneseq
        %v2258 = vshrl.u32 %v2257, 7
        %v2259 = vsub.s32 7, %v2258
        %v2260 = vrot.slane %v2227, %v2259
        %v3293 = vunpack.c.l.b16 %v1203
        %v3294 = vunpack.c.h.b16 %v1203
        %v3295 = vunpack.c.l.b16 %v1204
        %v3296 = vunpack.c.h.b16 %v1204
        %v3297 = vunpack.c.l.b16 %v1205
        %v3298 = vunpack.c.h.b16 %v1205
        %v3299 = vunpack.c.l.b16 %v1206
        %v3300 = vunpack.c.h.b16 %v1206
        %v3301 = vunpack.c.l.b16 %v1207
        %v3302 = vunpack.c.h.b16 %v1207
        %v3303 = vunpack.c.l.b16 %v1208
        %v3304 = vunpack.c.h.b16 %v1208
        %v3305 = vunpack.c.l.b16 %v1209
        %v3306 = vunpack.c.h.b16 %v1209
        %v3307 = vunpack.c.l.b16 %v1210
        %v3308 = vunpack.c.h.b16 %v1210
        %v3309 = vunpack.c.l.b16 %v1211
        %v3310 = vunpack.c.h.b16 %v1211
        %v3311 = vunpack.c.l.b16 %v1212
        %v3312 = vunpack.c.h.b16 %v1212
        %v3313 = vunpack.c.l.b16 %v1213
        %v3314 = vunpack.c.h.b16 %v1213
        %v3315 = vunpack.c.l.b16 %v1214
        %v3316 = vunpack.c.h.b16 %v1214
        %v3317 = vunpack.c.l.b16 %v1215
        %v3318 = vunpack.c.h.b16 %v1215
        %v3319 = vunpack.c.l.b16 %v1216
        %v3320 = vunpack.c.h.b16 %v1216
        %v3321 = vunpack.c.l.b16 %v1217
        %v3322 = vunpack.c.h.b16 %v1217
        %v3323 = vunpack.c.l.b16 %v1218
        %v3324 = vunpack.c.h.b16 %v1218
        %v3325 = vunpack.c.l.b16 %v1219
        %v3326 = vunpack.c.h.b16 %v1219
        %v3327 = vunpack.c.l.b16 %v1220
        %v3328 = vunpack.c.h.b16 %v1220
        %v3329 = vunpack.c.l.b16 %v1221
        %v3330 = vunpack.c.h.b16 %v1221
        %v3331 = vunpack.c.l.b16 %v1222
        %v3332 = vunpack.c.h.b16 %v1222
        %v3333 = vunpack.c.l.b16 %v1223
        %v3334 = vunpack.c.h.b16 %v1223
        %v3335 = vunpack.c.l.b16 %v1224
        %v3336 = vunpack.c.h.b16 %v1224
        %v3337 = vunpack.c.l.b16 %v1225
        %v3338 = vunpack.c.h.b16 %v1225
        %v3339 = vunpack.c.l.b16 %v1226
        %v3340 = vunpack.c.h.b16 %v1226
        %v3341 = vunpack.c.l.b16 %v1227
        %v3342 = vunpack.c.h.b16 %v1227
        %v3343 = vunpack.c.l.b16 %v1228
        %v3344 = vunpack.c.h.b16 %v1228
        %v3345 = vunpack.c.l.b16 %v1229
        %v3346 = vunpack.c.h.b16 %v1229
        %v3347 = vunpack.c.l.b16 %v1230
        %v3348 = vunpack.c.h.b16 %v1230
        %v3349 = vunpack.c.l.b16 %v1231
        %v3350 = vunpack.c.h.b16 %v1231
        %v3351 = vunpack.c.l.b16 %v1232
        %v3352 = vunpack.c.h.b16 %v1232
        %v3353 = vunpack.c.l.b16 %v1233
        %v3354 = vunpack.c.h.b16 %v1233
        %v3355 = vunpack.c.l.b16 %v1234
        %v3356 = vunpack.c.h.b16 %v1234
        %v3357 = vunpack.c.l.b16 %v1235
        %v3358 = vunpack.c.h.b16 %v1235
        %v3359 = vunpack.c.l.b16 %v1236
        %v3360 = vunpack.c.h.b16 %v1236
        %v3361 = vunpack.c.l.b16 %v1237
        %v3362 = vunpack.c.h.b16 %v1237
        %v3363 = vunpack.c.l.b16 %v1238
        %v3364 = vunpack.c.h.b16 %v1238
        %v3365 = vunpack.c.l.b16 %v1239
        %v3366 = vunpack.c.h.b16 %v1239
        %v3367 = vunpack.c.l.b16 %v1240
        %v3368 = vunpack.c.h.b16 %v1240
        %v3369 = vunpack.c.l.b16 %v1241
        %v3370 = vunpack.c.h.b16 %v1241
        %v3371 = vunpack.c.l.b16 %v1242
        %v3372 = vunpack.c.h.b16 %v1242
        %v3373 = vunpack.c.l.b16 %v1243
        %v3374 = vunpack.c.h.b16 %v1243
        %v3375 = vunpack.c.l.b16 %v1244
        %v3376 = vunpack.c.h.b16 %v1244
        %v3377 = vunpack.c.l.b16 %v1245
        %v3378 = vunpack.c.h.b16 %v1245
        %v3379 = vunpack.c.l.b16 %v1246
        %v3380 = vunpack.c.h.b16 %v1246
        %v3381 = vunpack.c.l.b16 %v1247
        %v3382 = vunpack.c.h.b16 %v1247
        %v3383 = vunpack.c.l.b16 %v1248
        %v3384 = vunpack.c.h.b16 %v1248
        %v3385 = vunpack.c.l.b16 %v1249
        %v3386 = vunpack.c.h.b16 %v1249
        %v3387 = vunpack.c.l.b16 %v1250
        %v3388 = vunpack.c.h.b16 %v1250
        %v3389 = vunpack.c.l.b16 %v1251
        %v3390 = vunpack.c.h.b16 %v1251
        %v3391 = vunpack.c.l.b16 %v1252
        %v3392 = vunpack.c.h.b16 %v1252
        %v3393 = vunpack.c.l.b16 %v1253
        %v3394 = vunpack.c.h.b16 %v1253
        %v3395 = vunpack.c.l.b16 %v1254
        %v3396 = vunpack.c.h.b16 %v1254
        %v3397 = vunpack.c.l.b16 %v1255
        %v3398 = vunpack.c.h.b16 %v1255
        %v3399 = vunpack.c.l.b16 %v1256
        %v3400 = vunpack.c.h.b16 %v1256
        %v3401 = vunpack.c.l.b16 %v1257
        %v3402 = vunpack.c.h.b16 %v1257
        %v3403 = vunpack.c.l.b16 %v1258
        %v3404 = vunpack.c.h.b16 %v1258
        %v3405 = vunpack.c.l.b16 %v1259
        %v3406 = vunpack.c.h.b16 %v1259
        %v3407 = vunpack.c.l.b16 %v1260
        %v3408 = vunpack.c.h.b16 %v1260
        %v3409 = vunpack.c.l.b16 %v1261
        %v3410 = vunpack.c.h.b16 %v1261
        %v3411 = vunpack.c.l.b16 %v1262
        %v3412 = vunpack.c.h.b16 %v1262
        %v3413 = vunpack.c.l.b16 %v1263
        %v3414 = vunpack.c.h.b16 %v1263
        %v3415 = vunpack.c.l.b16 %v1264
        %v3416 = vunpack.c.h.b16 %v1264
        %v3417 = vunpack.c.l.b16 %v1265
        %v3418 = vunpack.c.h.b16 %v1265
        %v3419 = vunpack.c.l.b16 %v1266
        %v3420 = vunpack.c.h.b16 %v1266
        %v3421 = vunpack.c.l.b16 %v1267
        %v3422 = vunpack.c.h.b16 %v1267
        %v3423 = vunpack.c.l.b16 %v1268
        %v3424 = vunpack.c.h.b16 %v1268
        %v3425 = vunpack.c.l.b16 %v1269
        %v3426 = vunpack.c.h.b16 %v1269
        %v3427 = vunpack.c.l.b16 %v1270
        %v3428 = vunpack.c.h.b16 %v1270
        %v3429 = vunpack.c.l.b16 %v1271
        %v3430 = vunpack.c.h.b16 %v1271
        %v3431 = vunpack.c.l.b16 %v1272
        %v3432 = vunpack.c.h.b16 %v1272
        %v3433 = vunpack.c.l.b16 %v1273
        %v3434 = vunpack.c.h.b16 %v1273
        %v3435 = vunpack.c.l.b16 %v1274
        %v3436 = vunpack.c.h.b16 %v1274
        %v3437 = vunpack.c.l.b16 %v1275
        %v3438 = vunpack.c.h.b16 %v1275
        %v3439 = vunpack.c.l.b16 %v1276
        %v3440 = vunpack.c.h.b16 %v1276
        %v3441 = vunpack.c.l.b16 %v1277
        %v3442 = vunpack.c.h.b16 %v1277
        %v3443 = vunpack.c.l.b16 %v1278
        %v3444 = vunpack.c.h.b16 %v1278
        %v3445 = vunpack.c.l.b16 %v1279
        %v3446 = vunpack.c.h.b16 %v1279
        %v3447 = vunpack.c.l.b16 %v1280
        %v3448 = vunpack.c.h.b16 %v1280
        %v3449 = vunpack.c.l.b16 %v1281
        %v3450 = vunpack.c.h.b16 %v1281
        %v3451 = vunpack.c.l.b16 %v1282
        %v3452 = vunpack.c.h.b16 %v1282
        %v3453 = vunpack.c.l.b16 %v1283
        %v3454 = vunpack.c.h.b16 %v1283
        %v3455 = vunpack.c.l.b16 %v1284
        %v3456 = vunpack.c.h.b16 %v1284
        %v3457 = vunpack.c.l.b16 %v1285
        %v3458 = vunpack.c.h.b16 %v1285
        %v3459 = vunpack.c.l.b16 %v1286
        %v3460 = vunpack.c.h.b16 %v1286
        %v3461 = vunpack.c.l.b16 %v1287
        %v3462 = vunpack.c.h.b16 %v1287
        %v3463 = vunpack.c.l.b16 %v1288
        %v3464 = vunpack.c.h.b16 %v1288
        %v3465 = vunpack.c.l.b16 %v1289
        %v3466 = vunpack.c.h.b16 %v1289
        %v3467 = vunpack.c.l.b16 %v1290
        %v3468 = vunpack.c.h.b16 %v1290
        %v3469 = vunpack.c.l.b16 %v1291
        %v3470 = vunpack.c.h.b16 %v1291
        %v3471 = vunpack.c.l.b16 %v1292
        %v3472 = vunpack.c.h.b16 %v1292
        %v3473 = vunpack.c.l.b16 %v1293
        %v3474 = vunpack.c.h.b16 %v1293
        %v3475 = vunpack.c.l.b16 %v1294
        %v3476 = vunpack.c.h.b16 %v1294
        %v3477 = vunpack.c.l.b16 %v1295
        %v3478 = vunpack.c.h.b16 %v1295
        %v3479 = vunpack.c.l.b16 %v1296
        %v3480 = vunpack.c.h.b16 %v1296
        %v3481 = vunpack.c.l.b16 %v1297
        %v3482 = vunpack.c.h.b16 %v1297
        %v3483 = vunpack.c.l.b16 %v1298
        %v3484 = vunpack.c.h.b16 %v1298
        %v3485 = vunpack.c.l.b16 %v1299
        %v3486 = vunpack.c.h.b16 %v1299
        %v3487 = vunpack.c.l.b16 %v1300
        %v3488 = vunpack.c.h.b16 %v1300
        %v3489 = vunpack.c.l.b16 %v1301
        %v3490 = vunpack.c.h.b16 %v1301
        %v3491 = vunpack.c.l.b16 %v1302
        %v3492 = vunpack.c.h.b16 %v1302
        %v3493 = vunpack.c.l.b16 %v1303
        %v3494 = vunpack.c.h.b16 %v1303
        %v3495 = vunpack.c.l.b16 %v1304
        %v3496 = vunpack.c.h.b16 %v1304
        %v3497 = vunpack.c.l.b16 %v1305
        %v3498 = vunpack.c.h.b16 %v1305
        %v3499 = vunpack.c.l.b16 %v1306
        %v3500 = vunpack.c.h.b16 %v1306
        %v3501 = vunpack.c.l.b16 %v1307
        %v3502 = vunpack.c.h.b16 %v1307
        %v3503 = vunpack.c.l.b16 %v1308
        %v3504 = vunpack.c.h.b16 %v1308
        %v3505 = vunpack.c.l.b16 %v1309
        %v3506 = vunpack.c.h.b16 %v1309
        %v3507 = vunpack.c.l.b16 %v1310
        %v3508 = vunpack.c.h.b16 %v1310
        %v3509 = vunpack.c.l.b16 %v1311
        %v3510 = vunpack.c.h.b16 %v1311
        %v3511 = vunpack.c.l.b16 %v1312
        %v3512 = vunpack.c.h.b16 %v1312
        %v3513 = vunpack.c.l.b16 %v1313
        %v3514 = vunpack.c.h.b16 %v1313
        %v3515 = vunpack.c.l.b16 %v1314
        %v3516 = vunpack.c.h.b16 %v1314
        %v3517 = vunpack.c.l.b16 %v1315
        %v3518 = vunpack.c.h.b16 %v1315
        %v3519 = vunpack.c.l.b16 %v1316
        %v3520 = vunpack.c.h.b16 %v1316
        %v3521 = vunpack.c.l.b16 %v1317
        %v3522 = vunpack.c.h.b16 %v1317
        %v3523 = vunpack.c.l.b16 %v1318
        %v3524 = vunpack.c.h.b16 %v1318
        %v3525 = vunpack.c.l.b16 %v1319
        %v3526 = vunpack.c.h.b16 %v1319
        %v3527 = vunpack.c.l.b16 %v1320
        %v3528 = vunpack.c.h.b16 %v1320
        %v3529 = vunpack.c.l.b16 %v1321
        %v3530 = vunpack.c.h.b16 %v1321
        %v3531 = vunpack.c.l.b16 %v1322
        %v3532 = vunpack.c.h.b16 %v1322
        %v3533 = vunpack.c.l.b16 %v1323
        %v3534 = vunpack.c.h.b16 %v1323
        %v3535 = vunpack.c.l.b16 %v1324
        %v3536 = vunpack.c.h.b16 %v1324
        %v3537 = vunpack.c.l.b16 %v1325
        %v3538 = vunpack.c.h.b16 %v1325
        %v3539 = vunpack.c.l.b16 %v1326
        %v3540 = vunpack.c.h.b16 %v1326
        %v3541 = vunpack.c.l.b16 %v1327
        %v3542 = vunpack.c.h.b16 %v1327
        %v3543 = vunpack.c.l.b16 %v1328
        %v3544 = vunpack.c.h.b16 %v1328
        %v3545 = vunpack.c.l.b16 %v1329
        %v3546 = vunpack.c.h.b16 %v1329
        %v3547 = vunpack.c.l.b16 %v1330
        %v3548 = vunpack.c.h.b16 %v1330
        %v3549 = vunpack.c.l.b16 %v1331
        %v3550 = vunpack.c.h.b16 %v1331
        %v3551 = vunpack.c.l.b16 %v1332
        %v3552 = vunpack.c.h.b16 %v1332
        %v3553 = vunpack.c.l.b16 %v1333
        %v3554 = vunpack.c.h.b16 %v1333
        %v3555 = vunpack.c.l.b16 %v1334
        %v3556 = vunpack.c.h.b16 %v1334
        %v3557 = vunpack.c.l.b16 %v1335
        %v3558 = vunpack.c.h.b16 %v1335
        %v3559 = vunpack.c.l.b16 %v1336
        %v3560 = vunpack.c.h.b16 %v1336
        %v3561 = vunpack.c.l.b16 %v1337
        %v3562 = vunpack.c.h.b16 %v1337
        %v3563 = vunpack.c.l.b16 %v1338
        %v3564 = vunpack.c.h.b16 %v1338
        %v3565 = vunpack.c.l.b16 %v1339
        %v3566 = vunpack.c.h.b16 %v1339
        %v3567 = vunpack.c.l.b16 %v1340
        %v3568 = vunpack.c.h.b16 %v1340
        %v3569 = vunpack.c.l.b16 %v1341
        %v3570 = vunpack.c.h.b16 %v1341
        %v3571 = vunpack.c.l.b16 %v1342
        %v3572 = vunpack.c.h.b16 %v1342
        %v3573 = vunpack.c.l.b16 %v1343
        %v3574 = vunpack.c.h.b16 %v1343
        %v3575 = vunpack.c.l.b16 %v1344
        %v3576 = vunpack.c.h.b16 %v1344
        %v3577 = vunpack.c.l.b16 %v1345
        %v3578 = vunpack.c.h.b16 %v1345
        %v3579 = vunpack.c.l.b16 %v1346
        %v3580 = vunpack.c.h.b16 %v1346
        %v3581 = vunpack.c.l.b16 %v1347
        %v3582 = vunpack.c.h.b16 %v1347
        %v3583 = vunpack.c.l.b16 %v1348
        %v3584 = vunpack.c.h.b16 %v1348
        %v3585 = vunpack.c.l.b16 %v1349
        %v3586 = vunpack.c.h.b16 %v1349
        %v3587 = vunpack.c.l.b16 %v1350
        %v3588 = vunpack.c.h.b16 %v1350
        %v3589 = vunpack.c.l.b16 %v1351
        %v3590 = vunpack.c.h.b16 %v1351
        %v3591 = vunpack.c.l.b16 %v1352
        %v3592 = vunpack.c.h.b16 %v1352
        %v3593 = vunpack.c.l.b16 %v1353
        %v3594 = vunpack.c.h.b16 %v1353
        %v3595 = vunpack.c.l.b16 %v1354
        %v3596 = vunpack.c.h.b16 %v1354
        %v3597 = vunpack.c.l.b16 %v1355
        %v3598 = vunpack.c.h.b16 %v1355
        %v3599 = vunpack.c.l.b16 %v1356
        %v3600 = vunpack.c.h.b16 %v1356
        %v3601 = vunpack.c.l.b16 %v1357
        %v3602 = vunpack.c.h.b16 %v1357
        %v3603 = vunpack.c.l.b16 %v1358
        %v3604 = vunpack.c.h.b16 %v1358
        %v3605 = vunpack.c.l.b16 %v1359
        %v3606 = vunpack.c.h.b16 %v1359
        %v3607 = vunpack.c.l.b16 %v1360
        %v3608 = vunpack.c.h.b16 %v1360
        %v3609 = vunpack.c.l.b16 %v1361
        %v3610 = vunpack.c.h.b16 %v1361
        %v3611 = vunpack.c.l.b16 %v1362
        %v3612 = vunpack.c.h.b16 %v1362
        %v3613 = vunpack.c.l.b16 %v1363
        %v3614 = vunpack.c.h.b16 %v1363
        %v3615 = vunpack.c.l.b16 %v1364
        %v3616 = vunpack.c.h.b16 %v1364
        %v3617 = vunpack.c.l.b16 %v1365
        %v3618 = vunpack.c.h.b16 %v1365
        %v3619 = vunpack.c.l.b16 %v1366
        %v3620 = vunpack.c.h.b16 %v1366
        %v3621 = vunpack.c.l.b16 %v1367
        %v3622 = vunpack.c.h.b16 %v1367
        %v3623 = vunpack.c.l.b16 %v1368
        %v3624 = vunpack.c.h.b16 %v1368
        %v3625 = vunpack.c.l.b16 %v1369
        %v3626 = vunpack.c.h.b16 %v1369
        %v3627 = vunpack.c.l.b16 %v1370
        %v3628 = vunpack.c.h.b16 %v1370
        %v3629 = vunpack.c.l.b16 %v1371
        %v3630 = vunpack.c.h.b16 %v1371
        %v3631 = vunpack.c.l.b16 %v1372
        %v3632 = vunpack.c.h.b16 %v1372
        %v3633 = vunpack.c.l.b16 %v1373
        %v3634 = vunpack.c.h.b16 %v1373
        %v3635 = vunpack.c.l.b16 %v1374
        %v3636 = vunpack.c.h.b16 %v1374
        %v3637 = vunpack.c.l.b16 %v1375
        %v3638 = vunpack.c.h.b16 %v1375
        %v3639 = vunpack.c.l.b16 %v1376
        %v3640 = vunpack.c.h.b16 %v1376
        %v3641 = vunpack.c.l.b16 %v1377
        %v3642 = vunpack.c.h.b16 %v1377
        %v3643 = vunpack.c.l.b16 %v1378
        %v3644 = vunpack.c.h.b16 %v1378
        %v3645 = vunpack.c.l.b16 %v1379
        %v3646 = vunpack.c.h.b16 %v1379
        %v3647 = vunpack.c.l.b16 %v1380
        %v3648 = vunpack.c.h.b16 %v1380
        %v3649 = vunpack.c.l.b16 %v1381
        %v3650 = vunpack.c.h.b16 %v1381
        %v3651 = vunpack.c.l.b16 %v1382
        %v3652 = vunpack.c.h.b16 %v1382
        %v3653 = vunpack.c.l.b16 %v1383
        %v3654 = vunpack.c.h.b16 %v1383
        %v3655 = vunpack.c.l.b16 %v1384
        %v3656 = vunpack.c.h.b16 %v1384
        %v3657 = vunpack.c.l.b16 %v1385
        %v3658 = vunpack.c.h.b16 %v1385
        %v3659 = vunpack.c.l.b16 %v1386
        %v3660 = vunpack.c.h.b16 %v1386
        %v3661 = vunpack.c.l.b16 %v1387
        %v3662 = vunpack.c.h.b16 %v1387
        %v3663 = vunpack.c.l.b16 %v1388
        %v3664 = vunpack.c.h.b16 %v1388
        %v3665 = vunpack.c.l.b16 %v1389
        %v3666 = vunpack.c.h.b16 %v1389
        %v3667 = vunpack.c.l.b16 %v1390
        %v3668 = vunpack.c.h.b16 %v1390
        %v3669 = vunpack.c.l.b16 %v1391
        %v3670 = vunpack.c.h.b16 %v1391
        %v3671 = vunpack.c.l.b16 %v1392
        %v3672 = vunpack.c.h.b16 %v1392
        %v3673 = vunpack.c.l.b16 %v1393
        %v3674 = vunpack.c.h.b16 %v1393
        %v3675 = vunpack.c.l.b16 %v1394
        %v3676 = vunpack.c.h.b16 %v1394
        %v3677 = vunpack.c.l.b16 %v1395
        %v3678 = vunpack.c.h.b16 %v1395
        %v3679 = vunpack.c.l.b16 %v1396
        %v3680 = vunpack.c.h.b16 %v1396
        %v3681 = vunpack.c.l.b16 %v1397
        %v3682 = vunpack.c.h.b16 %v1397
        %v3683 = vunpack.c.l.b16 %v1398
        %v3684 = vunpack.c.h.b16 %v1398
        %v3685 = vunpack.c.l.b16 %v1399
        %v3686 = vunpack.c.h.b16 %v1399
        %v3687 = vunpack.c.l.b16 %v1400
        %v3688 = vunpack.c.h.b16 %v1400
        %v3689 = vunpack.c.l.b16 %v1401
        %v3690 = vunpack.c.h.b16 %v1401
        %v3691 = vunpack.c.l.b16 %v1402
        %v3692 = vunpack.c.h.b16 %v1402
        %v3693 = vunpack.c.l.b16 %v1403
        %v3694 = vunpack.c.h.b16 %v1403
        %v3695 = vunpack.c.l.b16 %v1404
        %v3696 = vunpack.c.h.b16 %v1404
        %v3697 = vunpack.c.l.b16 %v1405
        %v3698 = vunpack.c.h.b16 %v1405
        %v3699 = vunpack.c.l.b16 %v1406
        %v3700 = vunpack.c.h.b16 %v1406
        %v3701 = vunpack.c.l.b16 %v1407
        %v3702 = vunpack.c.h.b16 %v1407
        %v3703 = vunpack.c.l.b16 %v1408
        %v3704 = vunpack.c.h.b16 %v1408
        %v3705 = vunpack.c.l.b16 %v1409
        %v3706 = vunpack.c.h.b16 %v1409
        %v3707 = vunpack.c.l.b16 %v1410
        %v3708 = vunpack.c.h.b16 %v1410
        %v3709 = vunpack.c.l.b16 %v1411
        %v3710 = vunpack.c.h.b16 %v1411
        %v3711 = vunpack.c.l.b16 %v1412
        %v3712 = vunpack.c.h.b16 %v1412
        %v3713 = vunpack.c.l.b16 %v1413
        %v3714 = vunpack.c.h.b16 %v1413
        %v3715 = vunpack.c.l.b16 %v1414
        %v3716 = vunpack.c.h.b16 %v1414
        %v3717 = vunpack.c.l.b16 %v1415
        %v3718 = vunpack.c.h.b16 %v1415
        %v3719 = vunpack.c.l.b16 %v1416
        %v3720 = vunpack.c.h.b16 %v1416
        %v3721 = vunpack.c.l.b16 %v1417
        %v3722 = vunpack.c.h.b16 %v1417
        %v3723 = vunpack.c.l.b16 %v1418
        %v3724 = vunpack.c.h.b16 %v1418
        %v3725 = vunpack.c.l.b16 %v1419
        %v3726 = vunpack.c.h.b16 %v1419
        %v3727 = vunpack.c.l.b16 %v1420
        %v3728 = vunpack.c.h.b16 %v1420
        %v3729 = vunpack.c.l.b16 %v1421
        %v3730 = vunpack.c.h.b16 %v1421
        %v3731 = vunpack.c.l.b16 %v1422
        %v3732 = vunpack.c.h.b16 %v1422
        %v3733 = vunpack.c.l.b16 %v1423
        %v3734 = vunpack.c.h.b16 %v1423
        %v3735 = vunpack.c.l.b16 %v1424
        %v3736 = vunpack.c.h.b16 %v1424
        %v3737 = vunpack.c.l.b16 %v1425
        %v3738 = vunpack.c.h.b16 %v1425
        %v3739 = vunpack.c.l.b16 %v1426
        %v3740 = vunpack.c.h.b16 %v1426
        %v3741 = vunpack.c.l.b16 %v1427
        %v3742 = vunpack.c.h.b16 %v1427
        %v3743 = vunpack.c.l.b16 %v1428
        %v3744 = vunpack.c.h.b16 %v1428
        %v3745 = vunpack.c.l.b16 %v1429
        %v3746 = vunpack.c.h.b16 %v1429
        %v3747 = vunpack.c.l.b16 %v1430
        %v3748 = vunpack.c.h.b16 %v1430
        %v3749 = vunpack.c.l.b16 %v1431
        %v3750 = vunpack.c.h.b16 %v1431
        %v3751 = vunpack.c.l.b16 %v1432
        %v3752 = vunpack.c.h.b16 %v1432
        %v3753 = vunpack.c.l.b16 %v1433
        %v3754 = vunpack.c.h.b16 %v1433
        %v3755 = vunpack.c.l.b16 %v1434
        %v3756 = vunpack.c.h.b16 %v1434
        %v3757 = vunpack.c.l.b16 %v1435
        %v3758 = vunpack.c.h.b16 %v1435
        %v3759 = vunpack.c.l.b16 %v1436
        %v3760 = vunpack.c.h.b16 %v1436
        %v3761 = vunpack.c.l.b16 %v1437
        %v3762 = vunpack.c.h.b16 %v1437
        %v3763 = vunpack.c.l.b16 %v1438
        %v3764 = vunpack.c.h.b16 %v1438
        %v3765 = vunpack.c.l.b16 %v1439
        %v3766 = vunpack.c.h.b16 %v1439
        %v3767 = vunpack.c.l.b16 %v1440
        %v3768 = vunpack.c.h.b16 %v1440
        %v3769 = vunpack.c.l.b16 %v1441
        %v3770 = vunpack.c.h.b16 %v1441
        %v3771 = vunpack.c.l.b16 %v1442
        %v3772 = vunpack.c.h.b16 %v1442
        %v3773 = vunpack.c.l.b16 %v1443
        %v3774 = vunpack.c.h.b16 %v1443
        %v3775 = vunpack.c.l.b16 %v1444
        %v3776 = vunpack.c.h.b16 %v1444
        %v3777 = vunpack.c.l.b16 %v1445
        %v3778 = vunpack.c.h.b16 %v1445
        %v3779 = vunpack.c.l.b16 %v1446
        %v3780 = vunpack.c.h.b16 %v1446
        %v3781 = vunpack.c.l.b16 %v1447
        %v3782 = vunpack.c.h.b16 %v1447
        %v3783 = vunpack.c.l.b16 %v1448
        %v3784 = vunpack.c.h.b16 %v1448
        %v3785 = vunpack.c.l.b16 %v1449
        %v3786 = vunpack.c.h.b16 %v1449
        %v3787 = vunpack.c.l.b16 %v1450
        %v3788 = vunpack.c.h.b16 %v1450
        %v3789 = vunpack.c.l.b16 %v1451
        %v3790 = vunpack.c.h.b16 %v1451
        %v3791 = vunpack.c.l.b16 %v1452
        %v3792 = vunpack.c.h.b16 %v1452
        %v3793 = vunpack.c.l.b16 %v1453
        %v3794 = vunpack.c.h.b16 %v1453
        %v3795 = vunpack.c.l.b16 %v1454
        %v3796 = vunpack.c.h.b16 %v1454
        %v3797 = vunpack.c.l.b16 %v1455
        %v3798 = vunpack.c.h.b16 %v1455
        %v3799 = vunpack.c.l.b16 %v1456
        %v3800 = vunpack.c.h.b16 %v1456
        %v3801 = vunpack.c.l.b16 %v1457
        %v3802 = vunpack.c.h.b16 %v1457
        %v3803 = vunpack.c.l.b16 %v1458
        %v3804 = vunpack.c.h.b16 %v1458
        %v3805 = vunpack.c.l.b16 %v1459
        %v3806 = vunpack.c.h.b16 %v1459
        %v3807 = vunpack.c.l.b16 %v1460
        %v3808 = vunpack.c.h.b16 %v1460
        %v3809 = vunpack.c.l.b16 %v1461
        %v3810 = vunpack.c.h.b16 %v1461
        %v3811 = vunpack.c.l.b16 %v1462
        %v3812 = vunpack.c.h.b16 %v1462
        %v3813 = vunpack.c.l.b16 %v1463
        %v3814 = vunpack.c.h.b16 %v1463
        %v3815 = vunpack.c.l.b16 %v1464
        %v3816 = vunpack.c.h.b16 %v1464
        %v3817 = vunpack.c.l.b16 %v1465
        %v3818 = vunpack.c.h.b16 %v1465
        %v3819 = vunpack.c.l.b16 %v1466
        %v3820 = vunpack.c.h.b16 %v1466
        %v3821 = vunpack.c.l.b16 %v1467
        %v3822 = vunpack.c.h.b16 %v1467
        %v3823 = vunpack.c.l.b16 %v1468
        %v3824 = vunpack.c.h.b16 %v1468
        %v3825 = vunpack.c.l.b16 %v1469
        %v3826 = vunpack.c.h.b16 %v1469
        %v3827 = vunpack.c.l.b16 %v1470
        %v3828 = vunpack.c.h.b16 %v1470
        %v3829 = vunpack.c.l.b16 %v1471
        %v3830 = vunpack.c.h.b16 %v1471
        %v3831 = vunpack.c.l.b16 %v1472
        %v3832 = vunpack.c.h.b16 %v1472
        %v3833 = vunpack.c.l.b16 %v1473
        %v3834 = vunpack.c.h.b16 %v1473
        %v3835 = vunpack.c.l.b16 %v1474
        %v3836 = vunpack.c.h.b16 %v1474
        %v3837 = vunpack.c.l.b16 %v1475
        %v3838 = vunpack.c.h.b16 %v1475
        %v3839 = vunpack.c.l.b16 %v1476
        %v3840 = vunpack.c.h.b16 %v1476
        %v3841 = vunpack.c.l.b16 %v1477
        %v3842 = vunpack.c.h.b16 %v1477
        %v3843 = vunpack.c.l.b16 %v1478
        %v3844 = vunpack.c.h.b16 %v1478
        %v3845 = vunpack.c.l.b16 %v1479
        %v3846 = vunpack.c.h.b16 %v1479
        %v3847 = vunpack.c.l.b16 %v1480
        %v3848 = vunpack.c.h.b16 %v1480
        %v3849 = vunpack.c.l.b16 %v1481
        %v3850 = vunpack.c.h.b16 %v1481
        %v3851 = vunpack.c.l.b16 %v1482
        %v3852 = vunpack.c.h.b16 %v1482
        %v3853 = vunpack.c.l.b16 %v1483
        %v3854 = vunpack.c.h.b16 %v1483
        %v3855 = vunpack.c.l.b16 %v1484
        %v3856 = vunpack.c.h.b16 %v1484
        %v3857 = vunpack.c.l.b16 %v1485
        %v3858 = vunpack.c.h.b16 %v1485
        %v3859 = vunpack.c.l.b16 %v1486
        %v3860 = vunpack.c.h.b16 %v1486
        %v3861 = vunpack.c.l.b16 %v1487
        %v3862 = vunpack.c.h.b16 %v1487
        %v3863 = vunpack.c.l.b16 %v1488
        %v3864 = vunpack.c.h.b16 %v1488
        %v3865 = vunpack.c.l.b16 %v1489
        %v3866 = vunpack.c.h.b16 %v1489
        %v3867 = vunpack.c.l.b16 %v1490
        %v3868 = vunpack.c.h.b16 %v1490
        %v3869 = vunpack.c.l.b16 %v1491
        %v3870 = vunpack.c.h.b16 %v1491
        %v3871 = vunpack.c.l.b16 %v1492
        %v3872 = vunpack.c.h.b16 %v1492
        %v3873 = vunpack.c.l.b16 %v1493
        %v3874 = vunpack.c.h.b16 %v1493
        %v3875 = vunpack.c.l.b16 %v1494
        %v3876 = vunpack.c.h.b16 %v1494
        %v3877 = vunpack.c.l.b16 %v1495
        %v3878 = vunpack.c.h.b16 %v1495
        %v3879 = vunpack.c.l.b16 %v1496
        %v3880 = vunpack.c.h.b16 %v1496
        %v3881 = vunpack.c.l.b16 %v1497
        %v3882 = vunpack.c.h.b16 %v1497
        %v3883 = vunpack.c.l.b16 %v1498
        %v3884 = vunpack.c.h.b16 %v1498
        %v3885 = vunpack.c.l.b16 %v1499
        %v3886 = vunpack.c.h.b16 %v1499
        %v3887 = vunpack.c.l.b16 %v1500
        %v3888 = vunpack.c.h.b16 %v1500
        %v3889 = vunpack.c.l.b16 %v1501
        %v3890 = vunpack.c.h.b16 %v1501
        %v3891 = vunpack.c.l.b16 %v1502
        %v3892 = vunpack.c.h.b16 %v1502
        %v3893 = vunpack.c.l.b16 %v1503
        %v3894 = vunpack.c.h.b16 %v1503
        %v3895 = vunpack.c.l.b16 %v1504
        %v3896 = vunpack.c.h.b16 %v1504
        %v3897 = vunpack.c.l.b16 %v1505
        %v3898 = vunpack.c.h.b16 %v1505
        %v3899 = vunpack.c.l.b16 %v1506
        %v3900 = vunpack.c.h.b16 %v1506
        %v3901 = vunpack.c.l.b16 %v1507
        %v3902 = vunpack.c.h.b16 %v1507
        %v3903 = vunpack.c.l.b16 %v1508
        %v3904 = vunpack.c.h.b16 %v1508
        %v3905 = vunpack.c.l.b16 %v1509
        %v3906 = vunpack.c.h.b16 %v1509
        %v3907 = vunpack.c.l.b16 %v1510
        %v3908 = vunpack.c.h.b16 %v1510
        %v3909 = vunpack.c.l.b16 %v1511
        %v3910 = vunpack.c.h.b16 %v1511
        %v3911 = vunpack.c.l.b16 %v1512
        %v3912 = vunpack.c.h.b16 %v1512
        %v3913 = vunpack.c.l.b16 %v1513
        %v3914 = vunpack.c.h.b16 %v1513
        %v3915 = vunpack.c.l.b16 %v1514
        %v3916 = vunpack.c.h.b16 %v1514
        %v3917 = vunpack.c.l.b16 %v1515
        %v3918 = vunpack.c.h.b16 %v1515
        %v3919 = vunpack.c.l.b16 %v1516
        %v3920 = vunpack.c.h.b16 %v1516
        %v3921 = vunpack.c.l.b16 %v1517
        %v3922 = vunpack.c.h.b16 %v1517
        %v3923 = vunpack.c.l.b16 %v1518
        %v3924 = vunpack.c.h.b16 %v1518
        %v3925 = vunpack.c.l.b16 %v1519
        %v3926 = vunpack.c.h.b16 %v1519
        %v3927 = vunpack.c.l.b16 %v1520
        %v3928 = vunpack.c.h.b16 %v1520
        %v3929 = vunpack.c.l.b16 %v1521
        %v3930 = vunpack.c.h.b16 %v1521
        %v3931 = vunpack.c.l.b16 %v1522
        %v3932 = vunpack.c.h.b16 %v1522
        %v3933 = vunpack.c.l.b16 %v1523
        %v3934 = vunpack.c.h.b16 %v1523
        %v3935 = vunpack.c.l.b16 %v1524
        %v3936 = vunpack.c.h.b16 %v1524
        %v3937 = vunpack.c.l.b16 %v1525
        %v3938 = vunpack.c.h.b16 %v1525
        %v3939 = vunpack.c.l.b16 %v1526
        %v3940 = vunpack.c.h.b16 %v1526
        %v3941 = vunpack.c.l.b16 %v1527
        %v3942 = vunpack.c.h.b16 %v1527
        %v3943 = vunpack.c.l.b16 %v1528
        %v3944 = vunpack.c.h.b16 %v1528
        %v3945 = vunpack.c.l.b16 %v1529
        %v3946 = vunpack.c.h.b16 %v1529
        %v3947 = vunpack.c.l.b16 %v1530
        %v3948 = vunpack.c.h.b16 %v1530
        %v3949 = vunpack.c.l.b16 %v1531
        %v3950 = vunpack.c.h.b16 %v1531
        %v3951 = vunpack.c.l.b16 %v1532
        %v3952 = vunpack.c.h.b16 %v1532
        %v3953 = vunpack.c.l.b16 %v1533
        %v3954 = vunpack.c.h.b16 %v1533
        %v3955 = vunpack.c.l.b16 %v1534
        %v3956 = vunpack.c.h.b16 %v1534
        %v3957 = vunpack.c.l.b16 %v1535
        %v3958 = vunpack.c.h.b16 %v1535
        %v3959 = vunpack.c.l.b16 %v1536
        %v3960 = vunpack.c.h.b16 %v1536
        %v3961 = vunpack.c.l.b16 %v1537
        %v3962 = vunpack.c.h.b16 %v1537
        %v3963 = vunpack.c.l.b16 %v1538
        %v3964 = vunpack.c.h.b16 %v1538
        %v3965 = vunpack.c.l.b16 %v1539
        %v3966 = vunpack.c.h.b16 %v1539
        %v3967 = vunpack.c.l.b16 %v1540
        %v3968 = vunpack.c.h.b16 %v1540
        %v3969 = vunpack.c.l.b16 %v1541
        %v3970 = vunpack.c.h.b16 %v1541
        %v3971 = vunpack.c.l.b16 %v1542
        %v3972 = vunpack.c.h.b16 %v1542
        %v3973 = vunpack.c.l.b16 %v1543
        %v3974 = vunpack.c.h.b16 %v1543
        %v3975 = vunpack.c.l.b16 %v1544
        %v3976 = vunpack.c.h.b16 %v1544
        %v3977 = vunpack.c.l.b16 %v1545
        %v3978 = vunpack.c.h.b16 %v1545
        %v3979 = vunpack.c.l.b16 %v1546
        %v3980 = vunpack.c.h.b16 %v1546
        %v3981 = vunpack.c.l.b16 %v1547
        %v3982 = vunpack.c.h.b16 %v1547
        %v3983 = vunpack.c.l.b16 %v1548
        %v3984 = vunpack.c.h.b16 %v1548
        %v3985 = vunpack.c.l.b16 %v1549
        %v3986 = vunpack.c.h.b16 %v1549
        %v3987 = vunpack.c.l.b16 %v1550
        %v3988 = vunpack.c.h.b16 %v1550
        %v3989 = vunpack.c.l.b16 %v1551
        %v3990 = vunpack.c.h.b16 %v1551
        %v3991 = vunpack.c.l.b16 %v1552
        %v3992 = vunpack.c.h.b16 %v1552
        %v3993 = vunpack.c.l.b16 %v1553
        %v3994 = vunpack.c.h.b16 %v1553
        %v3995 = vunpack.c.l.b16 %v1554
        %v3996 = vunpack.c.h.b16 %v1554
        %v3997 = vunpack.c.l.b16 %v1555
        %v3998 = vunpack.c.h.b16 %v1555
        %v3999 = vunpack.c.l.b16 %v1556
        %v4000 = vunpack.c.h.b16 %v1556
        %v4001 = vunpack.c.l.b16 %v1557
        %v4002 = vunpack.c.h.b16 %v1557
        %v4003 = vunpack.c.l.b16 %v1558
        %v4004 = vunpack.c.h.b16 %v1558
        %v4005 = vunpack.c.l.b16 %v1559
        %v4006 = vunpack.c.h.b16 %v1559
        %v4007 = vunpack.c.l.b16 %v1560
        %v4008 = vunpack.c.h.b16 %v1560
        %v4009 = vunpack.c.l.b16 %v1561
        %v4010 = vunpack.c.h.b16 %v1561
        %v4011 = vunpack.c.l.b16 %v1562
        %v4012 = vunpack.c.h.b16 %v1562
        %v4013 = vunpack.c.l.b16 %v1563
        %v4014 = vunpack.c.h.b16 %v1563
        %v4015 = vunpack.c.l.b16 %v1564
        %v4016 = vunpack.c.h.b16 %v1564
        %v4017 = vunpack.c.l.b16 %v1565
        %v4018 = vunpack.c.h.b16 %v1565
        %v4019 = vunpack.c.l.b16 %v1566
        %v4020 = vunpack.c.h.b16 %v1566
        %v4021 = vunpack.c.l.b16 %v1567
        %v4022 = vunpack.c.h.b16 %v1567
        %v4023 = vunpack.c.l.b16 %v1568
        %v4024 = vunpack.c.h.b16 %v1568
        %v4025 = vunpack.c.l.b16 %v1569
        %v4026 = vunpack.c.h.b16 %v1569
        %v4027 = vunpack.c.l.b16 %v1570
        %v4028 = vunpack.c.h.b16 %v1570
        %v4029 = vunpack.c.l.b16 %v1571
        %v4030 = vunpack.c.h.b16 %v1571
        %v4031 = vunpack.c.l.b16 %v1572
        %v4032 = vunpack.c.h.b16 %v1572
        %v4033 = vunpack.c.l.b16 %v1573
        %v4034 = vunpack.c.h.b16 %v1573
        %v4035 = vunpack.c.l.b16 %v1574
        %v4036 = vunpack.c.h.b16 %v1574
        %v4037 = vunpack.c.l.b16 %v1575
        %v4038 = vunpack.c.h.b16 %v1575
        %v4039 = vunpack.c.l.b16 %v1576
        %v4040 = vunpack.c.h.b16 %v1576
        %v4041 = vunpack.c.l.b16 %v1577
        %v4042 = vunpack.c.h.b16 %v1577
        %v4043 = vunpack.c.l.b16 %v1578
        %v4044 = vunpack.c.h.b16 %v1578
        %v4045 = vunpack.c.l.b16 %v1579
        %v4046 = vunpack.c.h.b16 %v1579
        %v4047 = vunpack.c.l.b16 %v1580
        %v4048 = vunpack.c.h.b16 %v1580
        %v4049 = vunpack.c.l.b16 %v1581
        %v4050 = vunpack.c.h.b16 %v1581
        %v4051 = vunpack.c.l.b16 %v1582
        %v4052 = vunpack.c.h.b16 %v1582
        %v4053 = vunpack.c.l.b16 %v1583
        %v4054 = vunpack.c.h.b16 %v1583
        %v4055 = vunpack.c.l.b16 %v1584
        %v4056 = vunpack.c.h.b16 %v1584
        %v4057 = vunpack.c.l.b16 %v1585
        %v4058 = vunpack.c.h.b16 %v1585
        %v4059 = vunpack.c.l.b16 %v1586
        %v4060 = vunpack.c.h.b16 %v1586
        %v4061 = vunpack.c.l.b16 %v1587
        %v4062 = vunpack.c.h.b16 %v1587
        %v4063 = vunpack.c.l.b16 %v1588
        %v4064 = vunpack.c.h.b16 %v1588
        %v4065 = vunpack.c.l.b16 %v1589
        %v4066 = vunpack.c.h.b16 %v1589
        %v4067 = vunpack.c.l.b16 %v1590
        %v4068 = vunpack.c.h.b16 %v1590
        %v4069 = vunpack.c.l.b16 %v1591
        %v4070 = vunpack.c.h.b16 %v1591
        %v4071 = vunpack.c.l.b16 %v1592
        %v4072 = vunpack.c.h.b16 %v1592
        %v4073 = vunpack.c.l.b16 %v1593
        %v4074 = vunpack.c.h.b16 %v1593
        %v4075 = vunpack.c.l.b16 %v1594
        %v4076 = vunpack.c.h.b16 %v1594
        %v4077 = vunpack.c.l.b16 %v1595
        %v4078 = vunpack.c.h.b16 %v1595
        %v4079 = vunpack.c.l.b16 %v1596
        %v4080 = vunpack.c.h.b16 %v1596
        %v4081 = vunpack.c.l.b16 %v1597
        %v4082 = vunpack.c.h.b16 %v1597
        %v4083 = vunpack.c.l.b16 %v1598
        %v4084 = vunpack.c.h.b16 %v1598
        %v4085 = vunpack.c.l.b16 %v1599
        %v4086 = vunpack.c.h.b16 %v1599
        %v4087 = vunpack.c.l.b16 %v1600
        %v4088 = vunpack.c.h.b16 %v1600
        %v4089 = vunpack.c.l.b16 %v1601
        %v4090 = vunpack.c.h.b16 %v1601
        %v4091 = vunpack.c.l.b16 %v1602
        %v4092 = vunpack.c.h.b16 %v1602
        %v4093 = vunpack.c.l.b16 %v1603
        %v4094 = vunpack.c.h.b16 %v1603
        %v4095 = vunpack.c.l.b16 %v1604
        %v4096 = vunpack.c.h.b16 %v1604
        %v4097 = vunpack.c.l.b16 %v1605
        %v4098 = vunpack.c.h.b16 %v1605
        %v4099 = vunpack.c.l.b16 %v1606
        %v4100 = vunpack.c.h.b16 %v1606
        %v4101 = vunpack.c.l.b16 %v1607
        %v4102 = vunpack.c.h.b16 %v1607
        %v4103 = vunpack.c.l.b16 %v1608
        %v4104 = vunpack.c.h.b16 %v1608
        %v4105 = vunpack.c.l.b16 %v1609
        %v4106 = vunpack.c.h.b16 %v1609
        %v4107 = vunpack.c.l.b16 %v1610
        %v4108 = vunpack.c.h.b16 %v1610
        %v4109 = vunpack.c.l.b16 %v1611
        %v4110 = vunpack.c.h.b16 %v1611
        %v4111 = vunpack.c.l.b16 %v1612
        %v4112 = vunpack.c.h.b16 %v1612
        %v4113 = vunpack.c.l.b16 %v1613
        %v4114 = vunpack.c.h.b16 %v1613
        %v4115 = vunpack.c.l.b16 %v1614
        %v4116 = vunpack.c.h.b16 %v1614
        %v4117 = vunpack.c.l.b16 %v1615
        %v4118 = vunpack.c.h.b16 %v1615
        %v4119 = vunpack.c.l.b16 %v1616
        %v4120 = vunpack.c.h.b16 %v1616
        %v4121 = vunpack.c.l.b16 %v1617
        %v4122 = vunpack.c.h.b16 %v1617
        %v4123 = vunpack.c.l.b16 %v1618
        %v4124 = vunpack.c.h.b16 %v1618
        %v4125 = vunpack.c.l.b16 %v1619
        %v4126 = vunpack.c.h.b16 %v1619
        %v4127 = vunpack.c.l.b16 %v1620
        %v4128 = vunpack.c.h.b16 %v1620
        %v4129 = vunpack.c.l.b16 %v1621
        %v4130 = vunpack.c.h.b16 %v1621
        %v4131 = vunpack.c.l.b16 %v1622
        %v4132 = vunpack.c.h.b16 %v1622
        %v4133 = vunpack.c.l.b16 %v1623
        %v4134 = vunpack.c.h.b16 %v1623
        %v4135 = vunpack.c.l.b16 %v1624
        %v4136 = vunpack.c.h.b16 %v1624
        %v4137 = vunpack.c.l.b16 %v1625
        %v4138 = vunpack.c.h.b16 %v1625
        %v4139 = vunpack.c.l.b16 %v1626
        %v4140 = vunpack.c.h.b16 %v1626
        %v4141 = vunpack.c.l.b16 %v1627
        %v4142 = vunpack.c.h.b16 %v1627
        %v4143 = vunpack.c.l.b16 %v1628
        %v4144 = vunpack.c.h.b16 %v1628
        %v4145 = vunpack.c.l.b16 %v1629
        %v4146 = vunpack.c.h.b16 %v1629
        %v4147 = vunpack.c.l.b16 %v1630
        %v4148 = vunpack.c.h.b16 %v1630
        %v4149 = vunpack.c.l.b16 %v1631
        %v4150 = vunpack.c.h.b16 %v1631
        %v4151 = vunpack.c.l.b16 %v1632
        %v4152 = vunpack.c.h.b16 %v1632
        %v4153 = vunpack.c.l.b16 %v1633
        %v4154 = vunpack.c.h.b16 %v1633
        %v4155 = vunpack.c.l.b16 %v1634
        %v4156 = vunpack.c.h.b16 %v1634
        %v4157 = vunpack.c.l.b16 %v1635
        %v4158 = vunpack.c.h.b16 %v1635
        %v4159 = vunpack.c.l.b16 %v1636
        %v4160 = vunpack.c.h.b16 %v1636
        %v4161 = vunpack.c.l.b16 %v1637
        %v4162 = vunpack.c.h.b16 %v1637
        %v4163 = vunpack.c.l.b16 %v1638
        %v4164 = vunpack.c.h.b16 %v1638
        %v4165 = vunpack.c.l.b16 %v1639
        %v4166 = vunpack.c.h.b16 %v1639
        %v4167 = vunpack.c.l.b16 %v1640
        %v4168 = vunpack.c.h.b16 %v1640
        %v4169 = vunpack.c.l.b16 %v1641
        %v4170 = vunpack.c.h.b16 %v1641
        %v4171 = vunpack.c.l.b16 %v1642
        %v4172 = vunpack.c.h.b16 %v1642
        %v4173 = vunpack.c.l.b16 %v1643
        %v4174 = vunpack.c.h.b16 %v1643
        %v4175 = vunpack.c.l.b16 %v1644
        %v4176 = vunpack.c.h.b16 %v1644
        %v4177 = vunpack.c.l.b16 %v1645
        %v4178 = vunpack.c.h.b16 %v1645
        %v4179 = vunpack.c.l.b16 %v1646
        %v4180 = vunpack.c.h.b16 %v1646
        %v4181 = vunpack.c.l.b16 %v1647
        %v4182 = vunpack.c.h.b16 %v1647
        %v4183 = vunpack.c.l.b16 %v1648
        %v4184 = vunpack.c.h.b16 %v1648
        %v4185 = vunpack.c.l.b16 %v1649
        %v4186 = vunpack.c.h.b16 %v1649
        %v4187 = vunpack.c.l.b16 %v1650
        %v4188 = vunpack.c.h.b16 %v1650
        %v4189 = vunpack.c.l.b16 %v1651
        %v4190 = vunpack.c.h.b16 %v1651
        %v4191 = vunpack.c.l.b16 %v1652
        %v4192 = vunpack.c.h.b16 %v1652
        %v4193 = vunpack.c.l.b16 %v1653
        %v4194 = vunpack.c.h.b16 %v1653
        %v4195 = vunpack.c.l.b16 %v1654
        %v4196 = vunpack.c.h.b16 %v1654
        %v4197 = vunpack.c.l.b16 %v1655
        %v4198 = vunpack.c.h.b16 %v1655
        %v4199 = vunpack.c.l.b16 %v1656
        %v4200 = vunpack.c.h.b16 %v1656
        %v4201 = vunpack.c.l.b16 %v1657
        %v4202 = vunpack.c.h.b16 %v1657
        %v4203 = vunpack.c.l.b16 %v1658
        %v4204 = vunpack.c.h.b16 %v1658
        %v4205 = vunpack.c.l.b16 %v1659
        %v4206 = vunpack.c.h.b16 %v1659
        %v4207 = vunpack.c.l.b16 %v1660
        %v4208 = vunpack.c.h.b16 %v1660
        %v4209 = vunpack.c.l.b16 %v1661
        %v4210 = vunpack.c.h.b16 %v1661
        %v4211 = vunpack.c.l.b16 %v1662
        %v4212 = vunpack.c.h.b16 %v1662
        %v4213 = vunpack.c.l.b16 %v1663
        %v4214 = vunpack.c.h.b16 %v1663
        %v4215 = vunpack.c.l.b16 %v1664
        %v4216 = vunpack.c.h.b16 %v1664
        %v4217 = vunpack.c.l.b16 %v1665
        %v4218 = vunpack.c.h.b16 %v1665
        %v4219 = vunpack.c.l.b16 %v1666
        %v4220 = vunpack.c.h.b16 %v1666
        %v4221 = vunpack.c.l.b16 %v1667
        %v4222 = vunpack.c.h.b16 %v1667
        %v4223 = vunpack.c.l.b16 %v1668
        %v4224 = vunpack.c.h.b16 %v1668
        %v4225 = vunpack.c.l.b16 %v1669
        %v4226 = vunpack.c.h.b16 %v1669
        %v4227 = vunpack.c.l.b16 %v1670
        %v4228 = vunpack.c.h.b16 %v1670
        %v4229 = vunpack.c.l.b16 %v1671
        %v4230 = vunpack.c.h.b16 %v1671
        %v4231 = vunpack.c.l.b16 %v1672
        %v4232 = vunpack.c.h.b16 %v1672
        %v4233 = vunpack.c.l.b16 %v1673
        %v4234 = vunpack.c.h.b16 %v1673
        %v4235 = vunpack.c.l.b16 %v1674
        %v4236 = vunpack.c.h.b16 %v1674
        %v4237 = vunpack.c.l.b16 %v1675
        %v4238 = vunpack.c.h.b16 %v1675
        %v4239 = vunpack.c.l.b16 %v1676
        %v4240 = vunpack.c.h.b16 %v1676
        %v4241 = vunpack.c.l.b16 %v1677
        %v4242 = vunpack.c.h.b16 %v1677
        %v4243 = vunpack.c.l.b16 %v1678
        %v4244 = vunpack.c.h.b16 %v1678
        %v4245 = vunpack.c.l.b16 %v1679
        %v4246 = vunpack.c.h.b16 %v1679
        %v4247 = vunpack.c.l.b16 %v1680
        %v4248 = vunpack.c.h.b16 %v1680
        %v4249 = vunpack.c.l.b16 %v1681
        %v4250 = vunpack.c.h.b16 %v1681
        %v4251 = vunpack.c.l.b16 %v1682
        %v4252 = vunpack.c.h.b16 %v1682
        %v4253 = vunpack.c.l.b16 %v1683
        %v4254 = vunpack.c.h.b16 %v1683
        %v4255 = vunpack.c.l.b16 %v1684
        %v4256 = vunpack.c.h.b16 %v1684
        %v4257 = vunpack.c.l.b16 %v1685
        %v4258 = vunpack.c.h.b16 %v1685
        %v4259 = vunpack.c.l.b16 %v1686
        %v4260 = vunpack.c.h.b16 %v1686
        %v4261 = vunpack.c.l.b16 %v1687
        %v4262 = vunpack.c.h.b16 %v1687
        %v4263 = vunpack.c.l.b16 %v1688
        %v4264 = vunpack.c.h.b16 %v1688
        %v4265 = vunpack.c.l.b16 %v1689
        %v4266 = vunpack.c.h.b16 %v1689
        %v4267 = vunpack.c.l.b16 %v1690
        %v4268 = vunpack.c.h.b16 %v1690
        %v4269 = vunpack.c.l.b16 %v1691
        %v4270 = vunpack.c.h.b16 %v1691
        %v4271 = vunpack.c.l.b16 %v1692
        %v4272 = vunpack.c.h.b16 %v1692
        %v4273 = vunpack.c.l.b16 %v1693
        %v4274 = vunpack.c.h.b16 %v1693
        %v4275 = vunpack.c.l.b16 %v1694
        %v4276 = vunpack.c.h.b16 %v1694
        %v4277 = vunpack.c.l.b16 %v1695
        %v4278 = vunpack.c.h.b16 %v1695
        %v4279 = vunpack.c.l.b16 %v1696
        %v4280 = vunpack.c.h.b16 %v1696
        %v4281 = vunpack.c.l.b16 %v1697
        %v4282 = vunpack.c.h.b16 %v1697
        %v4283 = vunpack.c.l.b16 %v1698
        %v4284 = vunpack.c.h.b16 %v1698
        %v4285 = vunpack.c.l.b16 %v1699
        %v4286 = vunpack.c.h.b16 %v1699
        %v4287 = vunpack.c.l.b16 %v1700
        %v4288 = vunpack.c.h.b16 %v1700
        %v4289 = vunpack.c.l.b16 %v1701
        %v4290 = vunpack.c.h.b16 %v1701
        %v4291 = vunpack.c.l.b16 %v1702
        %v4292 = vunpack.c.h.b16 %v1702
        %v4293 = vunpack.c.l.b16 %v1703
        %v4294 = vunpack.c.h.b16 %v1703
        %v4295 = vunpack.c.l.b16 %v1704
        %v4296 = vunpack.c.h.b16 %v1704
        %v4297 = vunpack.c.l.b16 %v1705
        %v4298 = vunpack.c.h.b16 %v1705
        %v4299 = vunpack.c.l.b16 %v1706
        %v4300 = vunpack.c.h.b16 %v1706
        %v4301 = vunpack.c.l.b16 %v1707
        %v4302 = vunpack.c.h.b16 %v1707
        %v4303 = vunpack.c.l.b16 %v1708
        %v4304 = vunpack.c.h.b16 %v1708
        %v4305 = vunpack.c.l.b16 %v1709
        %v4306 = vunpack.c.h.b16 %v1709
        %v4307 = vunpack.c.l.b16 %v1710
        %v4308 = vunpack.c.h.b16 %v1710
        %v4309 = vunpack.c.l.b16 %v1711
        %v4310 = vunpack.c.h.b16 %v1711
        %v4311 = vunpack.c.l.b16 %v1712
        %v4312 = vunpack.c.h.b16 %v1712
        %v4313 = vunpack.c.l.b16 %v1713
        %v4314 = vunpack.c.h.b16 %v1713
        %v4315 = vunpack.c.l.b16 %v1714
        %v4316 = vunpack.c.h.b16 %v1714
        %v4317 = vunpack.c.l.b16 %v1715
        %v4318 = vunpack.c.h.b16 %v1715
        %v4319 = vunpack.c.l.b16 %v1716
        %v4320 = vunpack.c.h.b16 %v1716
        %v4321 = vunpack.c.l.b16 %v1717
        %v4322 = vunpack.c.h.b16 %v1717
        %v4323 = vunpack.c.l.b16 %v1718
        %v4324 = vunpack.c.h.b16 %v1718
        %v4325 = vunpack.c.l.b16 %v1719
        %v4326 = vunpack.c.h.b16 %v1719
        %v4327 = vunpack.c.l.b16 %v1720
        %v4328 = vunpack.c.h.b16 %v1720
        %v4329 = vunpack.c.l.b16 %v1721
        %v4330 = vunpack.c.h.b16 %v1721
        %v4331 = vunpack.c.l.b16 %v1722
        %v4332 = vunpack.c.h.b16 %v1722
        %v4333 = vunpack.c.l.b16 %v1723
        %v4334 = vunpack.c.h.b16 %v1723
        %v4335 = vunpack.c.l.b16 %v1724
        %v4336 = vunpack.c.h.b16 %v1724
        %v4337 = vunpack.c.l.b16 %v1725
        %v4338 = vunpack.c.h.b16 %v1725
        %v4339 = vunpack.c.l.b16 %v1726
        %v4340 = vunpack.c.h.b16 %v1726
        %v4341 = vunpack.c.l.b16 %v1727
        %v4342 = vunpack.c.h.b16 %v1727
        %v4343 = vunpack.c.l.b16 %v1728
        %v4344 = vunpack.c.h.b16 %v1728
        %v4345 = vunpack.c.l.b16 %v1729
        %v4346 = vunpack.c.h.b16 %v1729
        %v4347 = vunpack.c.l.b16 %v1730
        %v4348 = vunpack.c.h.b16 %v1730
        %v4349 = vunpack.c.l.b16 %v1731
        %v4350 = vunpack.c.h.b16 %v1731
        %v4351 = vunpack.c.l.b16 %v1732
        %v4352 = vunpack.c.h.b16 %v1732
        %v4353 = vunpack.c.l.b16 %v1733
        %v4354 = vunpack.c.h.b16 %v1733
        %v4355 = vunpack.c.l.b16 %v1734
        %v4356 = vunpack.c.h.b16 %v1734
        %v4357 = vunpack.c.l.b16 %v1735
        %v4358 = vunpack.c.h.b16 %v1735
        %v4359 = vunpack.c.l.b16 %v1736
        %v4360 = vunpack.c.h.b16 %v1736
        %v4361 = vunpack.c.l.b16 %v1737
        %v4362 = vunpack.c.h.b16 %v1737
        %v4363 = vunpack.c.l.b16 %v1738
        %v4364 = vunpack.c.h.b16 %v1738
        %v4365 = vunpack.c.l.b16 %v1739
        %v4366 = vunpack.c.h.b16 %v1739
        %v4367 = vunpack.c.l.b16 %v1740
        %v4368 = vunpack.c.h.b16 %v1740
        %v4369 = vunpack.c.l.b16 %v1741
        %v4370 = vunpack.c.h.b16 %v1741
        %v4371 = vunpack.c.l.b16 %v1742
        %v4372 = vunpack.c.h.b16 %v1742
        %v4373 = vunpack.c.l.b16 %v1743
        %v4374 = vunpack.c.h.b16 %v1743
        %v4375 = vunpack.c.l.b16 %v1744
        %v4376 = vunpack.c.h.b16 %v1744
        %v4377 = vunpack.c.l.b16 %v1745
        %v4378 = vunpack.c.h.b16 %v1745
        %v4379 = vunpack.c.l.b16 %v1746
        %v4380 = vunpack.c.h.b16 %v1746
        %v4381 = vunpack.c.l.b16 %v1747
        %v4382 = vunpack.c.h.b16 %v1747
        %v4383 = vunpack.c.l.b16 %v1748
        %v4384 = vunpack.c.h.b16 %v1748
        %v4385 = vunpack.c.l.b16 %v1749
        %v4386 = vunpack.c.h.b16 %v1749
        %v4387 = vunpack.c.l.b16 %v1750
        %v4388 = vunpack.c.h.b16 %v1750
        %v4389 = vunpack.c.l.b16 %v1751
        %v4390 = vunpack.c.h.b16 %v1751
        %v4391 = vunpack.c.l.b16 %v1752
        %v4392 = vunpack.c.h.b16 %v1752
        %v4393 = vunpack.c.l.b16 %v1753
        %v4394 = vunpack.c.h.b16 %v1753
        %v4395 = vunpack.c.l.b16 %v1754
        %v4396 = vunpack.c.h.b16 %v1754
        %v4397 = vunpack.c.l.b16 %v1755
        %v4398 = vunpack.c.h.b16 %v1755
        %v4399 = vunpack.c.l.b16 %v1756
        %v4400 = vunpack.c.h.b16 %v1756
        %v4401 = vunpack.c.l.b16 %v1757
        %v4402 = vunpack.c.h.b16 %v1757
        %v4403 = vunpack.c.l.b16 %v1758
        %v4404 = vunpack.c.h.b16 %v1758
        %v4405 = vunpack.c.l.b16 %v1759
        %v4406 = vunpack.c.h.b16 %v1759
        %v4407 = vunpack.c.l.b16 %v1760
        %v4408 = vunpack.c.h.b16 %v1760
        %v4409 = vunpack.c.l.b16 %v1761
        %v4410 = vunpack.c.h.b16 %v1761
        %v4411 = vunpack.c.l.b16 %v1762
        %v4412 = vunpack.c.h.b16 %v1762
        %v4413 = vunpack.c.l.b16 %v1763
        %v4414 = vunpack.c.h.b16 %v1763
        %v4415 = vunpack.c.l.b16 %v1764
        %v4416 = vunpack.c.h.b16 %v1764
        %v4417 = vunpack.c.l.b16 %v1765
        %v4418 = vunpack.c.h.b16 %v1765
        %v4419 = vunpack.c.l.b16 %v1766
        %v4420 = vunpack.c.h.b16 %v1766
        %v4421 = vunpack.c.l.b16 %v1767
        %v4422 = vunpack.c.h.b16 %v1767
        %v4423 = vunpack.c.l.b16 %v1768
        %v4424 = vunpack.c.h.b16 %v1768
        %v4425 = vunpack.c.l.b16 %v1769
        %v4426 = vunpack.c.h.b16 %v1769
        %v4427 = vunpack.c.l.b16 %v1770
        %v4428 = vunpack.c.h.b16 %v1770
        %v4429 = vunpack.c.l.b16 %v1771
        %v4430 = vunpack.c.h.b16 %v1771
        %v4431 = vunpack.c.l.b16 %v1772
        %v4432 = vunpack.c.h.b16 %v1772
        %v4433 = vunpack.c.l.b16 %v1773
        %v4434 = vunpack.c.h.b16 %v1773
        %v4435 = vunpack.c.l.b16 %v1774
        %v4436 = vunpack.c.h.b16 %v1774
        %v4437 = vunpack.c.l.b16 %v1775
        %v4438 = vunpack.c.h.b16 %v1775
        %v4439 = vunpack.c.l.b16 %v1776
        %v4440 = vunpack.c.h.b16 %v1776
        %v4441 = vunpack.c.l.b16 %v1777
        %v4442 = vunpack.c.h.b16 %v1777
        %v4443 = vunpack.c.l.b16 %v1778
        %v4444 = vunpack.c.h.b16 %v1778
        %v4445 = vunpack.c.l.b16 %v1779
        %v4446 = vunpack.c.h.b16 %v1779
        %v4447 = vunpack.c.l.b16 %v1780
        %v4448 = vunpack.c.h.b16 %v1780
        %v4449 = vunpack.c.l.b16 %v1781
        %v4450 = vunpack.c.h.b16 %v1781
        %v4451 = vunpack.c.l.b16 %v1782
        %v4452 = vunpack.c.h.b16 %v1782
        %v4453 = vunpack.c.l.b16 %v1783
        %v4454 = vunpack.c.h.b16 %v1783
        %v4455 = vunpack.c.l.b16 %v1784
        %v4456 = vunpack.c.h.b16 %v1784
        %v4457 = vunpack.c.l.b16 %v1785
        %v4458 = vunpack.c.h.b16 %v1785
        %v4459 = vunpack.c.l.b16 %v1786
        %v4460 = vunpack.c.h.b16 %v1786
        %v4461 = vunpack.c.l.b16 %v1787
        %v4462 = vunpack.c.h.b16 %v1787
        %v4463 = vunpack.c.l.b16 %v1788
        %v4464 = vunpack.c.h.b16 %v1788
        %v4465 = vunpack.c.l.b16 %v1789
        %v4466 = vunpack.c.h.b16 %v1789
        %v4467 = vunpack.c.l.b16 %v1790
        %v4468 = vunpack.c.h.b16 %v1790
        %v4469 = vunpack.c.l.b16 %v1791
        %v4470 = vunpack.c.h.b16 %v1791
        %v4471 = vunpack.c.l.b16 %v1792
        %v4472 = vunpack.c.h.b16 %v1792
        %v4473 = vunpack.c.l.b16 %v1793
        %v4474 = vunpack.c.h.b16 %v1793
        %v4475 = vunpack.c.l.b16 %v1794
        %v4476 = vunpack.c.h.b16 %v1794
        %v4477 = vunpack.c.l.b16 %v1795
        %v4478 = vunpack.c.h.b16 %v1795
        %v4479 = vunpack.c.l.b16 %v1796
        %v4480 = vunpack.c.h.b16 %v1796
        %v4481 = vunpack.c.l.b16 %v1797
        %v4482 = vunpack.c.h.b16 %v1797
        %v4483 = vunpack.c.l.b16 %v1798
        %v4484 = vunpack.c.h.b16 %v1798
        %v4485 = vunpack.c.l.b16 %v1799
        %v4486 = vunpack.c.h.b16 %v1799
        %v4487 = vunpack.c.l.b16 %v1800
        %v4488 = vunpack.c.h.b16 %v1800
        %v4489 = vunpack.c.l.b16 %v1801
        %v4490 = vunpack.c.h.b16 %v1801
        %v4491 = vunpack.c.l.b16 %v1802
        %v4492 = vunpack.c.h.b16 %v1802
        %v4493 = vunpack.c.l.b16 %v1803
        %v4494 = vunpack.c.h.b16 %v1803
        %v4495 = vunpack.c.l.b16 %v1804
        %v4496 = vunpack.c.h.b16 %v1804
        %v4497 = vunpack.c.l.b16 %v1805
        %v4498 = vunpack.c.h.b16 %v1805
        %v4499 = vunpack.c.l.b16 %v1806
        %v4500 = vunpack.c.h.b16 %v1806
        %v4501 = vunpack.c.l.b16 %v1807
        %v4502 = vunpack.c.h.b16 %v1807
        %v4503 = vunpack.c.l.b16 %v1808
        %v4504 = vunpack.c.h.b16 %v1808
        %v4505 = vunpack.c.l.b16 %v1809
        %v4506 = vunpack.c.h.b16 %v1809
        %v4507 = vunpack.c.l.b16 %v1810
        %v4508 = vunpack.c.h.b16 %v1810
        %v4509 = vunpack.c.l.b16 %v1811
        %v4510 = vunpack.c.h.b16 %v1811
        %v4511 = vunpack.c.l.b16 %v1812
        %v4512 = vunpack.c.h.b16 %v1812
        %v4513 = vunpack.c.l.b16 %v1813
        %v4514 = vunpack.c.h.b16 %v1813
        %v4515 = vunpack.c.l.b16 %v1814
        %v4516 = vunpack.c.h.b16 %v1814
        %v4517 = vunpack.c.l.b16 %v1815
        %v4518 = vunpack.c.h.b16 %v1815
        %v4519 = vunpack.c.l.b16 %v1816
        %v4520 = vunpack.c.h.b16 %v1816
        %v4521 = vunpack.c.l.b16 %v1817
        %v4522 = vunpack.c.h.b16 %v1817
        %v4523 = vunpack.c.l.b16 %v1818
        %v4524 = vunpack.c.h.b16 %v1818
        %v4525 = vunpack.c.l.b16 %v1819
        %v4526 = vunpack.c.h.b16 %v1819
        %v4527 = vunpack.c.l.b16 %v1820
        %v4528 = vunpack.c.h.b16 %v1820
        %v4529 = vunpack.c.l.b16 %v1821
        %v4530 = vunpack.c.h.b16 %v1821
        %v4531 = vunpack.c.l.b16 %v1822
        %v4532 = vunpack.c.h.b16 %v1822
        %v4533 = vunpack.c.l.b16 %v1823
        %v4534 = vunpack.c.h.b16 %v1823
        %v4535 = vunpack.c.l.b16 %v1824
        %v4536 = vunpack.c.h.b16 %v1824
        %v4537 = vunpack.c.l.b16 %v1825
        %v4538 = vunpack.c.h.b16 %v1825
        %v4539 = vunpack.c.l.b16 %v1826
        %v4540 = vunpack.c.h.b16 %v1826
        %v4541 = vunpack.c.l.b16 %v1827
        %v4542 = vunpack.c.h.b16 %v1827
        %v4543 = vunpack.c.l.b16 %v1828
        %v4544 = vunpack.c.h.b16 %v1828
        %v4545 = vunpack.c.l.b16 %v1829
        %v4546 = vunpack.c.h.b16 %v1829
        %v4547 = vunpack.c.l.b16 %v1830
        %v4548 = vunpack.c.h.b16 %v1830
        %v4549 = vunpack.c.l.b16 %v1831
        %v4550 = vunpack.c.h.b16 %v1831
        %v4551 = vunpack.c.l.b16 %v1832
        %v4552 = vunpack.c.h.b16 %v1832
        %v4553 = vunpack.c.l.b16 %v1833
        %v4554 = vunpack.c.h.b16 %v1833
        %v4555 = vunpack.c.l.b16 %v1834
        %v4556 = vunpack.c.h.b16 %v1834
        %v4557 = vunpack.c.l.b16 %v1835
        %v4558 = vunpack.c.h.b16 %v1835
        %v4559 = vunpack.c.l.b16 %v1836
        %v4560 = vunpack.c.h.b16 %v1836
        %v4561 = vunpack.c.l.b16 %v1837
        %v4562 = vunpack.c.h.b16 %v1837
        %v4563 = vunpack.c.l.b16 %v1838
        %v4564 = vunpack.c.h.b16 %v1838
        %v4565 = vunpack.c.l.b16 %v1839
        %v4566 = vunpack.c.h.b16 %v1839
        %v4567 = vunpack.c.l.b16 %v1840
        %v4568 = vunpack.c.h.b16 %v1840
        %v4569 = vunpack.c.l.b16 %v1841
        %v4570 = vunpack.c.h.b16 %v1841
        %v4571 = vunpack.c.l.b16 %v1842
        %v4572 = vunpack.c.h.b16 %v1842
        %v4573 = vunpack.c.l.b16 %v1843
        %v4574 = vunpack.c.h.b16 %v1843
        %v4575 = vunpack.c.l.b16 %v1844
        %v4576 = vunpack.c.h.b16 %v1844
        %v4577 = vunpack.c.l.b16 %v1845
        %v4578 = vunpack.c.h.b16 %v1845
        %v4579 = vunpack.c.l.b16 %v1846
        %v4580 = vunpack.c.h.b16 %v1846
        %v4581 = vunpack.c.l.b16 %v1847
        %v4582 = vunpack.c.h.b16 %v1847
        %v4583 = vunpack.c.l.b16 %v1848
        %v4584 = vunpack.c.h.b16 %v1848
        %v4585 = vunpack.c.l.b16 %v1849
        %v4586 = vunpack.c.h.b16 %v1849
        %v4587 = vunpack.c.l.b16 %v1850
        %v4588 = vunpack.c.h.b16 %v1850
        %v4589 = vunpack.c.l.b16 %v1851
        %v4590 = vunpack.c.h.b16 %v1851
        %v4591 = vunpack.c.l.b16 %v1852
        %v4592 = vunpack.c.h.b16 %v1852
        %v4593 = vunpack.c.l.b16 %v1853
        %v4594 = vunpack.c.h.b16 %v1853
        %v4595 = vunpack.c.l.b16 %v1854
        %v4596 = vunpack.c.h.b16 %v1854
        %v4597 = vunpack.c.l.b16 %v1855
        %v4598 = vunpack.c.h.b16 %v1855
        %v4599 = vunpack.c.l.b16 %v1856
        %v4600 = vunpack.c.h.b16 %v1856
        %v4601 = vunpack.c.l.b16 %v1857
        %v4602 = vunpack.c.h.b16 %v1857
        %v4603 = vunpack.c.l.b16 %v1858
        %v4604 = vunpack.c.h.b16 %v1858
        %v4605 = vunpack.c.l.b16 %v1859
        %v4606 = vunpack.c.h.b16 %v1859
        %v4607 = vunpack.c.l.b16 %v1860
        %v4608 = vunpack.c.h.b16 %v1860
        %v4609 = vunpack.c.l.b16 %v1861
        %v4610 = vunpack.c.h.b16 %v1861
        %v4611 = vunpack.c.l.b16 %v1862
        %v4612 = vunpack.c.h.b16 %v1862
        %v4613 = vunpack.c.l.b16 %v1863
        %v4614 = vunpack.c.h.b16 %v1863
        %v4615 = vunpack.c.l.b16 %v1864
        %v4616 = vunpack.c.h.b16 %v1864
        %v4617 = vunpack.c.l.b16 %v1865
        %v4618 = vunpack.c.h.b16 %v1865
        %v4619 = vunpack.c.l.b16 %v1866
        %v4620 = vunpack.c.h.b16 %v1866
        %v4621 = vunpack.c.l.b16 %v1867
        %v4622 = vunpack.c.h.b16 %v1867
        %v4623 = vunpack.c.l.b16 %v1868
        %v4624 = vunpack.c.h.b16 %v1868
        %v4625 = vunpack.c.l.b16 %v1869
        %v4626 = vunpack.c.h.b16 %v1869
        %v4627 = vunpack.c.l.b16 %v1870
        %v4628 = vunpack.c.h.b16 %v1870
        %v4629 = vunpack.c.l.b16 %v1871
        %v4630 = vunpack.c.h.b16 %v1871
        %v4631 = vunpack.c.l.b16 %v1872
        %v4632 = vunpack.c.h.b16 %v1872
        %v4633 = vunpack.c.l.b16 %v1873
        %v4634 = vunpack.c.h.b16 %v1873
        %v4635 = vunpack.c.l.b16 %v1874
        %v4636 = vunpack.c.h.b16 %v1874
        %v4637 = vunpack.c.l.b16 %v1875
        %v4638 = vunpack.c.h.b16 %v1875
        %v4639 = vunpack.c.l.b16 %v1876
        %v4640 = vunpack.c.h.b16 %v1876
        %v4641 = vunpack.c.l.b16 %v1877
        %v4642 = vunpack.c.h.b16 %v1877
        %v4643 = vunpack.c.l.b16 %v1878
        %v4644 = vunpack.c.h.b16 %v1878
        %v4645 = vunpack.c.l.b16 %v1879
        %v4646 = vunpack.c.h.b16 %v1879
        %v4647 = vunpack.c.l.b16 %v1880
        %v4648 = vunpack.c.h.b16 %v1880
        %v4649 = vunpack.c.l.b16 %v1881
        %v4650 = vunpack.c.h.b16 %v1881
        %v4651 = vunpack.c.l.b16 %v1882
        %v4652 = vunpack.c.h.b16 %v1882
        %v4653 = vunpack.c.l.b16 %v1883
        %v4654 = vunpack.c.h.b16 %v1883
        %v4655 = vunpack.c.l.b16 %v1884
        %v4656 = vunpack.c.h.b16 %v1884
        %v4657 = vunpack.c.l.b16 %v1885
        %v4658 = vunpack.c.h.b16 %v1885
        %v4659 = vunpack.c.l.b16 %v1886
        %v4660 = vunpack.c.h.b16 %v1886
        %v4661 = vunpack.c.l.b16 %v1887
        %v4662 = vunpack.c.h.b16 %v1887
        %v4663 = vunpack.c.l.b16 %v1888
        %v4664 = vunpack.c.h.b16 %v1888
        %v4665 = vunpack.c.l.b16 %v1889
        %v4666 = vunpack.c.h.b16 %v1889
        %v4667 = vunpack.c.l.b16 %v1890
        %v4668 = vunpack.c.h.b16 %v1890
        %v4669 = vunpack.c.l.b16 %v1891
        %v4670 = vunpack.c.h.b16 %v1891
        %v4671 = vunpack.c.l.b16 %v1892
        %v4672 = vunpack.c.h.b16 %v1892
        %v4673 = vunpack.c.l.b16 %v1893
        %v4674 = vunpack.c.h.b16 %v1893
        %v4675 = vunpack.c.l.b16 %v1894
        %v4676 = vunpack.c.h.b16 %v1894
        %v4677 = vunpack.c.l.b16 %v1895
        %v4678 = vunpack.c.h.b16 %v1895
        %v4679 = vunpack.c.l.b16 %v1896
        %v4680 = vunpack.c.h.b16 %v1896
        %v4681 = vunpack.c.l.b16 %v1897
        %v4682 = vunpack.c.h.b16 %v1897
        %v4683 = vunpack.c.l.b16 %v1898
        %v4684 = vunpack.c.h.b16 %v1898
        %v4685 = vunpack.c.l.b16 %v1899
        %v4686 = vunpack.c.h.b16 %v1899
        %v4687 = vunpack.c.l.b16 %v1900
        %v4688 = vunpack.c.h.b16 %v1900
        %v4689 = vunpack.c.l.b16 %v1901
        %v4690 = vunpack.c.h.b16 %v1901
        %v4691 = vunpack.c.l.b16 %v1902
        %v4692 = vunpack.c.h.b16 %v1902
        %v4693 = vunpack.c.l.b16 %v1903
        %v4694 = vunpack.c.h.b16 %v1903
        %v4695 = vunpack.c.l.b16 %v1904
        %v4696 = vunpack.c.h.b16 %v1904
        %v4697 = vunpack.c.l.b16 %v1905
        %v4698 = vunpack.c.h.b16 %v1905
        %v4699 = vunpack.c.l.b16 %v1906
        %v4700 = vunpack.c.h.b16 %v1906
        %v4701 = vunpack.c.l.b16 %v1907
        %v4702 = vunpack.c.h.b16 %v1907
        %v4703 = vunpack.c.l.b16 %v1908
        %v4704 = vunpack.c.h.b16 %v1908
        %v4705 = vunpack.c.l.b16 %v1909
        %v4706 = vunpack.c.h.b16 %v1909
        %v4707 = vunpack.c.l.b16 %v1910
        %v4708 = vunpack.c.h.b16 %v1910
        %v4709 = vunpack.c.l.b16 %v1911
        %v4710 = vunpack.c.h.b16 %v1911
        %v4711 = vunpack.c.l.b16 %v1912
        %v4712 = vunpack.c.h.b16 %v1912
        %v4713 = vunpack.c.l.b16 %v1913
        %v4714 = vunpack.c.h.b16 %v1913
        %v4715 = vunpack.c.l.b16 %v1914
        %v4716 = vunpack.c.h.b16 %v1914
        %v4717 = vunpack.c.l.b16 %v1915
        %v4718 = vunpack.c.h.b16 %v1915
        %v4719 = vunpack.c.l.b16 %v1916
        %v4720 = vunpack.c.h.b16 %v1916
        %v4721 = vunpack.c.l.b16 %v1917
        %v4722 = vunpack.c.h.b16 %v1917
        %v4723 = vunpack.c.l.b16 %v1918
        %v4724 = vunpack.c.h.b16 %v1918
        %v4725 = vunpack.c.l.b16 %v1919
        %v4726 = vunpack.c.h.b16 %v1919
        %v4727 = vunpack.c.l.b16 %v1920
        %v4728 = vunpack.c.h.b16 %v1920
        %v4729 = vunpack.c.l.b16 %v1921
        %v4730 = vunpack.c.h.b16 %v1921
        %v4731 = vunpack.c.l.b16 %v1922
        %v4732 = vunpack.c.h.b16 %v1922
        %v4733 = vunpack.c.l.b16 %v1923
        %v4734 = vunpack.c.h.b16 %v1923
        %v4735 = vunpack.c.l.b16 %v1924
        %v4736 = vunpack.c.h.b16 %v1924
        %v4737 = vunpack.c.l.b16 %v1925
        %v4738 = vunpack.c.h.b16 %v1925
        %v4739 = vunpack.c.l.b16 %v1926
        %v4740 = vunpack.c.h.b16 %v1926
        %v4741 = vunpack.c.l.b16 %v1927
        %v4742 = vunpack.c.h.b16 %v1927
        %v4743 = vunpack.c.l.b16 %v1928
        %v4744 = vunpack.c.h.b16 %v1928
        %v4745 = vunpack.c.l.b16 %v1929
        %v4746 = vunpack.c.h.b16 %v1929
        %v4747 = vunpack.c.l.b16 %v1930
        %v4748 = vunpack.c.h.b16 %v1930
        %v4749 = vunpack.c.l.b16 %v1931
        %v4750 = vunpack.c.h.b16 %v1931
        %v4751 = vunpack.c.l.b16 %v1932
        %v4752 = vunpack.c.h.b16 %v1932
        %v4753 = vunpack.c.l.b16 %v1933
        %v4754 = vunpack.c.h.b16 %v1933
        %v4755 = vunpack.c.l.b16 %v1934
        %v4756 = vunpack.c.h.b16 %v1934
        %v4757 = vunpack.c.l.b16 %v1935
        %v4758 = vunpack.c.h.b16 %v1935
        %v4759 = vunpack.c.l.b16 %v1936
        %v4760 = vunpack.c.h.b16 %v1936
        %v4761 = vunpack.c.l.b16 %v1937
        %v4762 = vunpack.c.h.b16 %v1937
        %v4763 = vunpack.c.l.b16 %v1938
        %v4764 = vunpack.c.h.b16 %v1938
        %v4765 = vunpack.c.l.b16 %v1939
        %v4766 = vunpack.c.h.b16 %v1939
        %v4767 = vunpack.c.l.b16 %v1940
        %v4768 = vunpack.c.h.b16 %v1940
        %v4769 = vunpack.c.l.b16 %v1941
        %v4770 = vunpack.c.h.b16 %v1941
        %v4771 = vunpack.c.l.b16 %v1942
        %v4772 = vunpack.c.h.b16 %v1942
        %v4773 = vunpack.c.l.b16 %v1943
        %v4774 = vunpack.c.h.b16 %v1943
        %v4775 = vunpack.c.l.b16 %v1944
        %v4776 = vunpack.c.h.b16 %v1944
        %v4777 = vunpack.c.l.b16 %v1945
        %v4778 = vunpack.c.h.b16 %v1945
        %v4779 = vunpack.c.l.b16 %v1946
        %v4780 = vunpack.c.h.b16 %v1946
        %v4781 = vunpack.c.l.b16 %v1947
        %v4782 = vunpack.c.h.b16 %v1947
        %v4783 = vunpack.c.l.b16 %v1948
        %v4784 = vunpack.c.h.b16 %v1948
        %v4785 = vunpack.c.l.b16 %v1949
        %v4786 = vunpack.c.h.b16 %v1949
        %v4787 = vunpack.c.l.b16 %v1950
        %v4788 = vunpack.c.h.b16 %v1950
        %v4789 = vunpack.c.l.b16 %v1951
        %v4790 = vunpack.c.h.b16 %v1951
        %v4791 = vunpack.c.l.b16 %v1952
        %v4792 = vunpack.c.h.b16 %v1952
        %v4793 = vunpack.c.l.b16 %v1953
        %v4794 = vunpack.c.h.b16 %v1953
        %v4795 = vunpack.c.l.b16 %v1954
        %v4796 = vunpack.c.h.b16 %v1954
        %v4797 = vunpack.c.l.b16 %v1955
        %v4798 = vunpack.c.h.b16 %v1955
        %v4799 = vunpack.c.l.b16 %v1956
        %v4800 = vunpack.c.h.b16 %v1956
        %v4801 = vunpack.c.l.b16 %v1957
        %v4802 = vunpack.c.h.b16 %v1957
        %v4803 = vunpack.c.l.b16 %v1958
        %v4804 = vunpack.c.h.b16 %v1958
        %v4805 = vunpack.c.l.b16 %v1959
        %v4806 = vunpack.c.h.b16 %v1959
        %v4807 = vunpack.c.l.b16 %v1960
        %v4808 = vunpack.c.h.b16 %v1960
        %v4809 = vunpack.c.l.b16 %v1961
        %v4810 = vunpack.c.h.b16 %v1961
        %v4811 = vunpack.c.l.b16 %v1962
        %v4812 = vunpack.c.h.b16 %v1962
        %v4813 = vunpack.c.l.b16 %v1963
        %v4814 = vunpack.c.h.b16 %v1963
        %v4815 = vunpack.c.l.b16 %v1964
        %v4816 = vunpack.c.h.b16 %v1964
        %v4817 = vunpack.c.l.b16 %v1965
        %v4818 = vunpack.c.h.b16 %v1965
        %v4819 = vunpack.c.l.b16 %v1966
        %v4820 = vunpack.c.h.b16 %v1966
        %v4821 = vunpack.c.l.b16 %v1967
        %v4822 = vunpack.c.h.b16 %v1967
        %v4823 = vunpack.c.l.b16 %v1968
        %v4824 = vunpack.c.h.b16 %v1968
        %v4825 = vunpack.c.l.b16 %v1969
        %v4826 = vunpack.c.h.b16 %v1969
        %v4827 = vunpack.c.l.b16 %v1970
        %v4828 = vunpack.c.h.b16 %v1970
        %v4829 = vunpack.c.l.b16 %v1971
        %v4830 = vunpack.c.h.b16 %v1971
        %v4831 = vunpack.c.l.b16 %v1972
        %v4832 = vunpack.c.h.b16 %v1972
        %v4833 = vunpack.c.l.b16 %v1973
        %v4834 = vunpack.c.h.b16 %v1973
        %v4835 = vunpack.c.l.b16 %v1974
        %v4836 = vunpack.c.h.b16 %v1974
        %v4837 = vunpack.c.l.b16 %v1975
        %v4838 = vunpack.c.h.b16 %v1975
        %v4839 = vunpack.c.l.b16 %v1976
        %v4840 = vunpack.c.h.b16 %v1976
        %v4841 = vunpack.c.l.b16 %v1977
        %v4842 = vunpack.c.h.b16 %v1977
        %v4843 = vunpack.c.l.b16 %v1978
        %v4844 = vunpack.c.h.b16 %v1978
        %v4845 = vunpack.c.l.b16 %v1979
        %v4846 = vunpack.c.h.b16 %v1979
        %v4847 = vunpack.c.l.b16 %v1980
        %v4848 = vunpack.c.h.b16 %v1980
        %v4849 = vunpack.c.l.b16 %v1981
        %v4850 = vunpack.c.h.b16 %v1981
        %v4851 = vunpack.c.l.b16 %v1982
        %v4852 = vunpack.c.h.b16 %v1982
        %v4853 = vunpack.c.l.b16 %v1983
        %v4854 = vunpack.c.h.b16 %v1983
        %v4855 = vunpack.c.l.b16 %v1984
        %v4856 = vunpack.c.h.b16 %v1984
        %v4857 = vunpack.c.l.b16 %v1985
        %v4858 = vunpack.c.h.b16 %v1985
        %v4859 = vunpack.c.l.b16 %v1986
        %v4860 = vunpack.c.h.b16 %v1986
        %v4861 = vunpack.c.l.b16 %v1987
        %v4862 = vunpack.c.h.b16 %v1987
        %v4863 = vunpack.c.l.b16 %v1988
        %v4864 = vunpack.c.h.b16 %v1988
        %v4865 = vunpack.c.l.b16 %v1989
        %v4866 = vunpack.c.h.b16 %v1989
        %v4867 = vunpack.c.l.b16 %v1990
        %v4868 = vunpack.c.h.b16 %v1990
        %v4869 = vunpack.c.l.b16 %v1991
        %v4870 = vunpack.c.h.b16 %v1991
        %v4871 = vunpack.c.l.b16 %v1992
        %v4872 = vunpack.c.h.b16 %v1992
        %v4873 = vunpack.c.l.b16 %v1993
        %v4874 = vunpack.c.h.b16 %v1993
        %v4875 = vunpack.c.l.b16 %v1994
        %v4876 = vunpack.c.h.b16 %v1994
        %v4877 = vunpack.c.l.b16 %v1995
        %v4878 = vunpack.c.h.b16 %v1995
        %v4879 = vunpack.c.l.b16 %v1996
        %v4880 = vunpack.c.h.b16 %v1996
        %v4881 = vunpack.c.l.b16 %v1997
        %v4882 = vunpack.c.h.b16 %v1997
        %v4883 = vunpack.c.l.b16 %v1998
        %v4884 = vunpack.c.h.b16 %v1998
        %v4885 = vunpack.c.l.b16 %v1999
        %v4886 = vunpack.c.h.b16 %v1999
        %v4887 = vunpack.c.l.b16 %v2000
        %v4888 = vunpack.c.h.b16 %v2000
        %v4889 = vunpack.c.l.b16 %v2001
        %v4890 = vunpack.c.h.b16 %v2001
        %v4891 = vunpack.c.l.b16 %v2002
        %v4892 = vunpack.c.h.b16 %v2002
        %v4893 = vunpack.c.l.b16 %v2003
        %v4894 = vunpack.c.h.b16 %v2003
        %v4895 = vunpack.c.l.b16 %v2004
        %v4896 = vunpack.c.h.b16 %v2004
        %v4897 = vunpack.c.l.b16 %v2005
        %v4898 = vunpack.c.h.b16 %v2005
        %v4899 = vunpack.c.l.b16 %v2006
        %v4900 = vunpack.c.h.b16 %v2006
        %v4901 = vunpack.c.l.b16 %v2007
        %v4902 = vunpack.c.h.b16 %v2007
        %v4903 = vunpack.c.l.b16 %v2008
        %v4904 = vunpack.c.h.b16 %v2008
        %v4905 = vunpack.c.l.b16 %v2009
        %v4906 = vunpack.c.h.b16 %v2009
        %v4907 = vunpack.c.l.b16 %v2010
        %v4908 = vunpack.c.h.b16 %v2010
        %v4909 = vunpack.c.l.b16 %v2011
        %v4910 = vunpack.c.h.b16 %v2011
        %v4911 = vunpack.c.l.b16 %v2012
        %v4912 = vunpack.c.h.b16 %v2012
        %v4913 = vunpack.c.l.b16 %v2013
        %v4914 = vunpack.c.h.b16 %v2013
        %v4915 = vunpack.c.l.b16 %v2014
        %v4916 = vunpack.c.h.b16 %v2014
        %v4917 = vunpack.c.l.b16 %v2015
        %v4918 = vunpack.c.h.b16 %v2015
        %v4919 = vunpack.c.l.b16 %v2016
        %v4920 = vunpack.c.h.b16 %v2016
        %v4921 = vunpack.c.l.b16 %v2017
        %v4922 = vunpack.c.h.b16 %v2017
        %v4923 = vunpack.c.l.b16 %v2018
        %v4924 = vunpack.c.h.b16 %v2018
        %v4925 = vunpack.c.l.b16 %v2019
        %v4926 = vunpack.c.h.b16 %v2019
        %v4927 = vunpack.c.l.b16 %v2020
        %v4928 = vunpack.c.h.b16 %v2020
        %v4929 = vunpack.c.l.b16 %v2021
        %v4930 = vunpack.c.h.b16 %v2021
        %v4931 = vunpack.c.l.b16 %v2022
        %v4932 = vunpack.c.h.b16 %v2022
        %v4933 = vunpack.c.l.b16 %v2023
        %v4934 = vunpack.c.h.b16 %v2023
        %v4935 = vunpack.c.l.b16 %v2024
        %v4936 = vunpack.c.h.b16 %v2024
        %v4937 = vunpack.c.l.b16 %v2025
        %v4938 = vunpack.c.h.b16 %v2025
        %v4939 = vunpack.c.l.b16 %v2026
        %v4940 = vunpack.c.h.b16 %v2026
        %v4941 = vunpack.c.l.b16 %v2027
        %v4942 = vunpack.c.h.b16 %v2027
        %v4943 = vunpack.c.l.b16 %v2028
        %v4944 = vunpack.c.h.b16 %v2028
        %v4945 = vunpack.c.l.b16 %v2029
        %v4946 = vunpack.c.h.b16 %v2029
        %v4947 = vunpack.c.l.b16 %v2030
        %v4948 = vunpack.c.h.b16 %v2030
        %v4949 = vunpack.c.l.b16 %v2031
        %v4950 = vunpack.c.h.b16 %v2031
        %v4951 = vunpack.c.l.b16 %v2032
        %v4952 = vunpack.c.h.b16 %v2032
        %v4953 = vunpack.c.l.b16 %v2033
        %v4954 = vunpack.c.h.b16 %v2033
        %v4955 = vunpack.c.l.b16 %v2034
        %v4956 = vunpack.c.h.b16 %v2034
        %v4957 = vunpack.c.l.b16 %v2035
        %v4958 = vunpack.c.h.b16 %v2035
        %v4959 = vunpack.c.l.b16 %v2036
        %v4960 = vunpack.c.h.b16 %v2036
        %v4961 = vunpack.c.l.b16 %v2037
        %v4962 = vunpack.c.h.b16 %v2037
        %v4963 = vunpack.c.l.b16 %v2038
        %v4964 = vunpack.c.h.b16 %v2038
        %v4965 = vunpack.c.l.b16 %v2039
        %v4966 = vunpack.c.h.b16 %v2039
        %v4967 = vunpack.c.l.b16 %v2040
        %v4968 = vunpack.c.h.b16 %v2040
        %v4969 = vunpack.c.l.b16 %v2041
        %v4970 = vunpack.c.h.b16 %v2041
        %v4971 = vunpack.c.l.b16 %v2042
        %v4972 = vunpack.c.h.b16 %v2042
        %v4973 = vunpack.c.l.b16 %v2043
        %v4974 = vunpack.c.h.b16 %v2043
        %v4975 = vunpack.c.l.b16 %v2044
        %v4976 = vunpack.c.h.b16 %v2044
        %v4977 = vunpack.c.l.b16 %v2045
        %v4978 = vunpack.c.h.b16 %v2045
        %v4979 = vunpack.c.l.b16 %v2046
        %v4980 = vunpack.c.h.b16 %v2046
        %v4981 = vunpack.c.l.b16 %v2047
        %v4982 = vunpack.c.h.b16 %v2047
        %v4983 = vunpack.c.l.b16 %v2048
        %v4984 = vunpack.c.h.b16 %v2048
        %v4985 = vunpack.c.l.b16 %v2049
        %v4986 = vunpack.c.h.b16 %v2049
        %v4987 = vunpack.c.l.b16 %v2050
        %v4988 = vunpack.c.h.b16 %v2050
        %v4989 = vunpack.c.l.b16 %v2051
        %v4990 = vunpack.c.h.b16 %v2051
        %v4991 = vunpack.c.l.b16 %v2052
        %v4992 = vunpack.c.h.b16 %v2052
        %v4993 = vunpack.c.l.b16 %v2053
        %v4994 = vunpack.c.h.b16 %v2053
        %v4995 = vunpack.c.l.b16 %v2054
        %v4996 = vunpack.c.h.b16 %v2054
        %v4997 = vunpack.c.l.b16 %v2055
        %v4998 = vunpack.c.h.b16 %v2055
        %v4999 = vunpack.c.l.b16 %v2056
        %v5000 = vunpack.c.h.b16 %v2056
        %v5001 = vunpack.c.l.b16 %v2057
        %v5002 = vunpack.c.h.b16 %v2057
        %v5003 = vunpack.c.l.b16 %v2058
        %v5004 = vunpack.c.h.b16 %v2058
        %v5005 = vunpack.c.l.b16 %v2059
        %v5006 = vunpack.c.h.b16 %v2059
        %v5007 = vunpack.c.l.b16 %v2060
        %v5008 = vunpack.c.h.b16 %v2060
        %v5009 = vunpack.c.l.b16 %v2061
        %v5010 = vunpack.c.h.b16 %v2061
        %v5011 = vunpack.c.l.b16 %v2062
        %v5012 = vunpack.c.h.b16 %v2062
        %v5013 = vunpack.c.l.b16 %v2063
        %v5014 = vunpack.c.h.b16 %v2063
        %v5015 = vunpack.c.l.b16 %v2064
        %v5016 = vunpack.c.h.b16 %v2064
        %v5017 = vunpack.c.l.b16 %v2065
        %v5018 = vunpack.c.h.b16 %v2065
        %v5019 = vunpack.c.l.b16 %v2066
        %v5020 = vunpack.c.h.b16 %v2066
        %v5021 = vunpack.c.l.b16 %v2067
        %v5022 = vunpack.c.h.b16 %v2067
        %v5023 = vunpack.c.l.b16 %v2068
        %v5024 = vunpack.c.h.b16 %v2068
        %v5025 = vunpack.c.l.b16 %v2069
        %v5026 = vunpack.c.h.b16 %v2069
        %v5027 = vunpack.c.l.b16 %v2070
        %v5028 = vunpack.c.h.b16 %v2070
        %v5029 = vunpack.c.l.b16 %v2071
        %v5030 = vunpack.c.h.b16 %v2071
        %v5031 = vunpack.c.l.b16 %v2072
        %v5032 = vunpack.c.h.b16 %v2072
        %v5033 = vunpack.c.l.b16 %v2073
        %v5034 = vunpack.c.h.b16 %v2073
        %v5035 = vunpack.c.l.b16 %v2074
        %v5036 = vunpack.c.h.b16 %v2074
        %v5037 = vunpack.c.l.b16 %v2075
        %v5038 = vunpack.c.h.b16 %v2075
        %v5039 = vunpack.c.l.b16 %v2076
        %v5040 = vunpack.c.h.b16 %v2076
        %v5041 = vunpack.c.l.b16 %v2077
        %v5042 = vunpack.c.h.b16 %v2077
        %v5043 = vunpack.c.l.b16 %v2078
        %v5044 = vunpack.c.h.b16 %v2078
        %v5045 = vunpack.c.l.b16 %v2079
        %v5046 = vunpack.c.h.b16 %v2079
        %v5047 = vunpack.c.l.b16 %v2080
        %v5048 = vunpack.c.h.b16 %v2080
        %v5049 = vunpack.c.l.b16 %v2081
        %v5050 = vunpack.c.h.b16 %v2081
        %v5051 = vunpack.c.l.b16 %v2082
        %v5052 = vunpack.c.h.b16 %v2082
        %v5053 = vunpack.c.l.b16 %v2083
        %v5054 = vunpack.c.h.b16 %v2083
        %v5055 = vunpack.c.l.b16 %v2084
        %v5056 = vunpack.c.h.b16 %v2084
        %v5057 = vunpack.c.l.b16 %v2085
        %v5058 = vunpack.c.h.b16 %v2085
        %v5059 = vunpack.c.l.b16 %v2086
        %v5060 = vunpack.c.h.b16 %v2086
        %v5061 = vunpack.c.l.b16 %v2087
        %v5062 = vunpack.c.h.b16 %v2087
        %v5063 = vunpack.c.l.b16 %v2088
        %v5064 = vunpack.c.h.b16 %v2088
        %v5065 = vunpack.c.l.b16 %v2089
        %v5066 = vunpack.c.h.b16 %v2089
        %v5067 = vunpack.c.l.b16 %v2090
        %v5068 = vunpack.c.h.b16 %v2090
        %v5069 = vunpack.c.l.b16 %v2091
        %v5070 = vunpack.c.h.b16 %v2091
        %v5071 = vunpack.c.l.b16 %v2092
        %v5072 = vunpack.c.h.b16 %v2092
        %v5073 = vunpack.c.l.b16 %v2093
        %v5074 = vunpack.c.h.b16 %v2093
        %v5075 = vunpack.c.l.b16 %v2094
        %v5076 = vunpack.c.h.b16 %v2094
        %v5077 = vunpack.c.l.b16 %v2095
        %v5078 = vunpack.c.h.b16 %v2095
        %v5079 = vunpack.c.l.b16 %v2096
        %v5080 = vunpack.c.h.b16 %v2096
        %v5081 = vunpack.c.l.b16 %v2097
        %v5082 = vunpack.c.h.b16 %v2097
        %v5083 = vunpack.c.l.b16 %v2098
        %v5084 = vunpack.c.h.b16 %v2098
        %v5085 = vunpack.c.l.b16 %v2099
        %v5086 = vunpack.c.h.b16 %v2099
        %v5087 = vunpack.c.l.b16 %v2100
        %v5088 = vunpack.c.h.b16 %v2100
        %v5089 = vunpack.c.l.b16 %v2101
        %v5090 = vunpack.c.h.b16 %v2101
        %v5091 = vunpack.c.l.b16 %v2102
        %v5092 = vunpack.c.h.b16 %v2102
        %v5093 = vunpack.c.l.b16 %v2103
        %v5094 = vunpack.c.h.b16 %v2103
        %v5095 = vunpack.c.l.b16 %v2104
        %v5096 = vunpack.c.h.b16 %v2104
        %v5097 = vunpack.c.l.b16 %v2105
        %v5098 = vunpack.c.h.b16 %v2105
        %v5099 = vunpack.c.l.b16 %v2106
        %v5100 = vunpack.c.h.b16 %v2106
        %v5101 = vunpack.c.l.b16 %v2107
        %v5102 = vunpack.c.h.b16 %v2107
        %v5103 = vunpack.c.l.b16 %v2108
        %v5104 = vunpack.c.h.b16 %v2108
        %v5105 = vunpack.c.l.b16 %v2109
        %v5106 = vunpack.c.h.b16 %v2109
        %v5107 = vunpack.c.l.b16 %v2110
        %v5108 = vunpack.c.h.b16 %v2110
        %v5109 = vunpack.c.l.b16 %v2111
        %v5110 = vunpack.c.h.b16 %v2111
        %v5111 = vunpack.c.l.b16 %v2112
        %v5112 = vunpack.c.h.b16 %v2112
        %v5113 = vunpack.c.l.b16 %v2113
        %v5114 = vunpack.c.h.b16 %v2113
        %v5115 = vunpack.c.l.b16 %v2114
        %v5116 = vunpack.c.h.b16 %v2114
        %v5117 = vunpack.c.l.b16 %v2115
        %v5118 = vunpack.c.h.b16 %v2115
        %v5119 = vunpack.c.l.b16 %v2116
        %v5120 = vunpack.c.h.b16 %v2116
        %v5121 = vunpack.c.l.b16 %v2117
        %v5122 = vunpack.c.h.b16 %v2117
        %v5123 = vunpack.c.l.b16 %v2118
        %v5124 = vunpack.c.h.b16 %v2118
        %v5125 = vunpack.c.l.b16 %v2119
        %v5126 = vunpack.c.h.b16 %v2119
        %v5127 = vunpack.c.l.b16 %v2120
        %v5128 = vunpack.c.h.b16 %v2120
        %v5129 = vunpack.c.l.b16 %v2121
        %v5130 = vunpack.c.h.b16 %v2121
        %v5131 = vunpack.c.l.b16 %v2122
        %v5132 = vunpack.c.h.b16 %v2122
        %v5133 = vunpack.c.l.b16 %v2123
        %v5134 = vunpack.c.h.b16 %v2123
        %v5135 = vunpack.c.l.b16 %v2124
        %v5136 = vunpack.c.h.b16 %v2124
        %v5137 = vunpack.c.l.b16 %v2125
        %v5138 = vunpack.c.h.b16 %v2125
        %v5139 = vunpack.c.l.b16 %v2126
        %v5140 = vunpack.c.h.b16 %v2126
        %v5141 = vunpack.c.l.b16 %v2127
        %v5142 = vunpack.c.h.b16 %v2127
        %v5143 = vunpack.c.l.b16 %v2128
        %v5144 = vunpack.c.h.b16 %v2128
        %v5145 = vunpack.c.l.b16 %v2129
        %v5146 = vunpack.c.h.b16 %v2129
        %v5147 = vunpack.c.l.b16 %v2130
        %v5148 = vunpack.c.h.b16 %v2130
        %v5149 = vunpack.c.l.b16 %v2131
        %v5150 = vunpack.c.h.b16 %v2131
        %v5151 = vunpack.c.l.b16 %v2132
        %v5152 = vunpack.c.h.b16 %v2132
        %v5153 = vunpack.c.l.b16 %v2133
        %v5154 = vunpack.c.h.b16 %v2133
        %v5155 = vunpack.c.l.b16 %v2134
        %v5156 = vunpack.c.h.b16 %v2134
        %v5157 = vunpack.c.l.b16 %v2135
        %v5158 = vunpack.c.h.b16 %v2135
        %v5159 = vunpack.c.l.b16 %v2136
        %v5160 = vunpack.c.h.b16 %v2136
        %v5161 = vunpack.c.l.b16 %v2137
        %v5162 = vunpack.c.h.b16 %v2137
        %v5163 = vunpack.c.l.b16 %v2138
        %v5164 = vunpack.c.h.b16 %v2138
        %v5165 = vunpack.c.l.b16 %v2139
        %v5166 = vunpack.c.h.b16 %v2139
        %v5167 = vunpack.c.l.b16 %v2140
        %v5168 = vunpack.c.h.b16 %v2140
        %v5169 = vunpack.c.l.b16 %v2141
        %v5170 = vunpack.c.h.b16 %v2141
        %v5171 = vunpack.c.l.b16 %v2142
        %v5172 = vunpack.c.h.b16 %v2142
        %v5173 = vunpack.c.l.b16 %v2143
        %v5174 = vunpack.c.h.b16 %v2143
        %v5175 = vunpack.c.l.b16 %v2144
        %v5176 = vunpack.c.h.b16 %v2144
        %v5177 = vunpack.c.l.b16 %v2145
        %v5178 = vunpack.c.h.b16 %v2145
        %v5179 = vunpack.c.l.b16 %v2146
        %v5180 = vunpack.c.h.b16 %v2146
        %v5181 = vunpack.c.l.b16 %v2147
        %v5182 = vunpack.c.h.b16 %v2147
        %v5183 = vunpack.c.l.b16 %v2148
        %v5184 = vunpack.c.h.b16 %v2148
        %v5185 = vunpack.c.l.b16 %v2149
        %v5186 = vunpack.c.h.b16 %v2149
        %v5187 = vunpack.c.l.b16 %v2150
        %v5188 = vunpack.c.h.b16 %v2150
        %v5189 = vunpack.c.l.b16 %v2151
        %v5190 = vunpack.c.h.b16 %v2151
        %v5191 = vunpack.c.l.b16 %v2152
        %v5192 = vunpack.c.h.b16 %v2152
        %v5193 = vunpack.c.l.b16 %v2153
        %v5194 = vunpack.c.h.b16 %v2153
        %v5195 = vunpack.c.l.b16 %v2154
        %v5196 = vunpack.c.h.b16 %v2154
        %v5197 = vunpack.c.l.b16 %v2155
        %v5198 = vunpack.c.h.b16 %v2155
        %v5199 = vunpack.c.l.b16 %v2156
        %v5200 = vunpack.c.h.b16 %v2156
        %v5201 = vunpack.c.l.b16 %v2157
        %v5202 = vunpack.c.h.b16 %v2157
        %v5203 = vunpack.c.l.b16 %v2158
        %v5204 = vunpack.c.h.b16 %v2158
        %v5205 = vunpack.c.l.b16 %v2159
        %v5206 = vunpack.c.h.b16 %v2159
        %v5207 = vunpack.c.l.b16 %v2160
        %v5208 = vunpack.c.h.b16 %v2160
        %v5209 = vunpack.c.l.b16 %v2161
        %v5210 = vunpack.c.h.b16 %v2161
        %v5211 = vunpack.c.l.b16 %v2162
        %v5212 = vunpack.c.h.b16 %v2162
        %v5213 = vunpack.c.l.b16 %v2163
        %v5214 = vunpack.c.h.b16 %v2163
        %v5215 = vunpack.c.l.b16 %v2164
        %v5216 = vunpack.c.h.b16 %v2164
        %v5217 = vunpack.c.l.b16 %v2165
        %v5218 = vunpack.c.h.b16 %v2165
        %v5219 = vunpack.c.l.b16 %v2166
        %v5220 = vunpack.c.h.b16 %v2166
        %v5221 = vunpack.c.l.b16 %v2167
        %v5222 = vunpack.c.h.b16 %v2167
        %v5223 = vunpack.c.l.b16 %v2168
        %v5224 = vunpack.c.h.b16 %v2168
        %v5225 = vunpack.c.l.b16 %v2169
        %v5226 = vunpack.c.h.b16 %v2169
        %v5227 = vunpack.c.l.b16 %v2170
        %v5228 = vunpack.c.h.b16 %v2170
        %v5229 = vunpack.c.l.b16 %v2171
        %v5230 = vunpack.c.h.b16 %v2171
        %v5231 = vunpack.c.l.b16 %v2172
        %v5232 = vunpack.c.h.b16 %v2172
        %v5233 = vunpack.c.l.b16 %v2173
        %v5234 = vunpack.c.h.b16 %v2173
        %v5235 = vunpack.c.l.b16 %v2174
        %v5236 = vunpack.c.h.b16 %v2174
        %v5237 = vunpack.c.l.b16 %v2175
        %v5238 = vunpack.c.h.b16 %v2175
        %v5239 = vunpack.c.l.b16 %v2176
        %v5240 = vunpack.c.h.b16 %v2176
        %v5241 = vunpack.c.l.b16 %v2177
        %v5242 = vunpack.c.h.b16 %v2177
        %v5243 = vunpack.c.l.b16 %v2178
        %v5244 = vunpack.c.h.b16 %v2178
        %v5245 = vunpack.c.l.b16 %v2179
        %v5246 = vunpack.c.h.b16 %v2179
        %v5247 = vunpack.c.l.b16 %v2180
        %v5248 = vunpack.c.h.b16 %v2180
        %v5249 = vunpack.c.l.b16 %v2181
        %v5250 = vunpack.c.h.b16 %v2181
        %v5251 = vunpack.c.l.b16 %v2182
        %v5252 = vunpack.c.h.b16 %v2182
        %v5253 = vunpack.c.l.b16 %v2183
        %v5254 = vunpack.c.h.b16 %v2183
        %v5255 = vunpack.c.l.b16 %v2184
        %v5256 = vunpack.c.h.b16 %v2184
        %v5257 = vunpack.c.l.b16 %v2185
        %v5258 = vunpack.c.h.b16 %v2185
        %v5259 = vunpack.c.l.b16 %v2186
        %v5260 = vunpack.c.h.b16 %v2186
        %v5261 = vunpack.c.l.b16 %v2187
        %v5262 = vunpack.c.h.b16 %v2187
        %v5263 = vunpack.c.l.b16 %v2188
        %v5264 = vunpack.c.h.b16 %v2188
        %v5265 = vunpack.c.l.b16 %v2189
        %v5266 = vunpack.c.h.b16 %v2189
        %v5267 = vunpack.c.l.b16 %v2190
        %v5268 = vunpack.c.h.b16 %v2190
        %v5269 = vunpack.c.l.b16 %v2191
        %v5270 = vunpack.c.h.b16 %v2191
        %v5271 = vunpack.c.l.b16 %v2192
        %v5272 = vunpack.c.h.b16 %v2192
        %v5273 = vunpack.c.l.b16 %v2193
        %v5274 = vunpack.c.h.b16 %v2193
        %v5275 = vunpack.c.l.b16 %v2194
        %v5276 = vunpack.c.h.b16 %v2194
        %v5277 = vunpack.c.l.b16 %v2195
        %v5278 = vunpack.c.h.b16 %v2195
        %v5279 = vunpack.c.l.b16 %v2196
        %v5280 = vunpack.c.h.b16 %v2196
        %v5281 = vunpack.c.l.b16 %v2197
        %v5282 = vunpack.c.h.b16 %v2197
        %v5283 = vunpack.c.l.b16 %v2198
        %v5284 = vunpack.c.h.b16 %v2198
        %v5285 = vunpack.c.l.b16 %v2199
        %v5286 = vunpack.c.h.b16 %v2199
        %v5287 = vunpack.c.l.b16 %v2200
        %v5288 = vunpack.c.h.b16 %v2200
        %v5289 = vunpack.c.l.b16 %v2201
        %v5290 = vunpack.c.h.b16 %v2201
        %v5291 = vunpack.c.l.b16 %v2202
        %v5292 = vunpack.c.h.b16 %v2202
        %v5293 = vunpack.c.l.b16 %v2203
        %v5294 = vunpack.c.h.b16 %v2203
        %v5295 = vunpack.c.l.b16 %v2204
        %v5296 = vunpack.c.h.b16 %v2204
        %v5297 = vunpack.c.l.b16 %v2205
        %v5298 = vunpack.c.h.b16 %v2205
        %v5299 = vunpack.c.l.b16 %v2206
        %v5300 = vunpack.c.h.b16 %v2206
        %v5301 = vunpack.c.l.b16 %v2207
        %v5302 = vunpack.c.h.b16 %v2207
        %v5303 = vunpack.c.l.b16 %v2208
        %v5304 = vunpack.c.h.b16 %v2208
        %v5305 = vunpack.c.l.b16 %v2209
        %v5306 = vunpack.c.h.b16 %v2209
        %v5307 = vunpack.c.l.b16 %v2210
        %v5308 = vunpack.c.h.b16 %v2210
        %v5309 = vunpack.c.l.b16 %v2211
        %v5310 = vunpack.c.h.b16 %v2211
        %v5311 = vunpack.c.l.b16 %v2212
        %v5312 = vunpack.c.h.b16 %v2212
        %v5313 = vunpack.c.l.b16 %v2213
        %v5314 = vunpack.c.h.b16 %v2213
        %v5315 = vunpack.c.l.b16 %v2214
        %v5316 = vunpack.c.h.b16 %v2214
        %v5317 = vunpack.c.l.b16 %v2215
        %v5318 = vunpack.c.h.b16 %v2215
        %v5319 = vunpack.c.l.b16 %v2216
        %v5320 = vunpack.c.h.b16 %v2216
        %v5321 = vunpack.c.l.b16 %v2217
        %v5322 = vunpack.c.h.b16 %v2217
        %v5323 = vunpack.c.l.b16 %v2218
        %v5324 = vunpack.c.h.b16 %v2218
        %v5325 = vunpack.c.l.b16 %v2219
        %v5326 = vunpack.c.h.b16 %v2219
        %v5327 = vunpack.c.l.b16 %v2220
        %v5328 = vunpack.c.h.b16 %v2220
        %v5329 = vunpack.c.l.b16 %v2221
        %v5330 = vunpack.c.h.b16 %v2221
        %v5331 = vunpack.c.l.b16 %v2222
        %v5332 = vunpack.c.h.b16 %v2222
        %v5333 = vunpack.c.l.b16 %v2223
        %v5334 = vunpack.c.h.b16 %v2223
        %v5335 = vunpack.c.l.b16 %v2224
        %v5336 = vunpack.c.h.b16 %v2224
        %v5337 = vunpack.c.l.b16 %v2225
        %v5338 = vunpack.c.h.b16 %v2225
        %v5339 = vunpack.c.l.b16 %v2226
        %v5340 = vunpack.c.h.b16 %v2226
        %v5341 = vpack.c.b16 %v3301, %v3293
        %v5342 = vpack.c.b16 %v3302, %v3294
        %v5343 = vpack.c.b16 %v3303, %v3295
        %v5344 = vpack.c.b16 %v3304, %v3296
        %v5345 = vpack.c.b16 %v3305, %v3297
        %v5346 = vpack.c.b16 %v3306, %v3298
        %v5347 = vpack.c.b16 %v3307, %v3299
        %v5348 = vpack.c.b16 %v3308, %v3300
        %v5349 = vpack.c.b16 %v3317, %v3309
        %v5350 = vpack.c.b16 %v3318, %v3310
        %v5351 = vpack.c.b16 %v3319, %v3311
        %v5352 = vpack.c.b16 %v3320, %v3312
        %v5353 = vpack.c.b16 %v3321, %v3313
        %v5354 = vpack.c.b16 %v3322, %v3314
        %v5355 = vpack.c.b16 %v3323, %v3315
        %v5356 = vpack.c.b16 %v3324, %v3316
        %v5357 = vpack.c.b16 %v3333, %v3325
        %v5358 = vpack.c.b16 %v3334, %v3326
        %v5359 = vpack.c.b16 %v3335, %v3327
        %v5360 = vpack.c.b16 %v3336, %v3328
        %v5361 = vpack.c.b16 %v3337, %v3329
        %v5362 = vpack.c.b16 %v3338, %v3330
        %v5363 = vpack.c.b16 %v3339, %v3331
        %v5364 = vpack.c.b16 %v3340, %v3332
        %v5365 = vpack.c.b16 %v3349, %v3341
        %v5366 = vpack.c.b16 %v3350, %v3342
        %v5367 = vpack.c.b16 %v3351, %v3343
        %v5368 = vpack.c.b16 %v3352, %v3344
        %v5369 = vpack.c.b16 %v3353, %v3345
        %v5370 = vpack.c.b16 %v3354, %v3346
        %v5371 = vpack.c.b16 %v3355, %v3347
        %v5372 = vpack.c.b16 %v3356, %v3348
        %v5373 = vpack.c.b16 %v3365, %v3357
        %v5374 = vpack.c.b16 %v3366, %v3358
        %v5375 = vpack.c.b16 %v3367, %v3359
        %v5376 = vpack.c.b16 %v3368, %v3360
        %v5377 = vpack.c.b16 %v3369, %v3361
        %v5378 = vpack.c.b16 %v3370, %v3362
        %v5379 = vpack.c.b16 %v3371, %v3363
        %v5380 = vpack.c.b16 %v3372, %v3364
        %v5381 = vpack.c.b16 %v3381, %v3373
        %v5382 = vpack.c.b16 %v3382, %v3374
        %v5383 = vpack.c.b16 %v3383, %v3375
        %v5384 = vpack.c.b16 %v3384, %v3376
        %v5385 = vpack.c.b16 %v3385, %v3377
        %v5386 = vpack.c.b16 %v3386, %v3378
        %v5387 = vpack.c.b16 %v3387, %v3379
        %v5388 = vpack.c.b16 %v3388, %v3380
        %v5389 = vpack.c.b16 %v3397, %v3389
        %v5390 = vpack.c.b16 %v3398, %v3390
        %v5391 = vpack.c.b16 %v3399, %v3391
        %v5392 = vpack.c.b16 %v3400, %v3392
        %v5393 = vpack.c.b16 %v3401, %v3393
        %v5394 = vpack.c.b16 %v3402, %v3394
        %v5395 = vpack.c.b16 %v3403, %v3395
        %v5396 = vpack.c.b16 %v3404, %v3396
        %v5397 = vpack.c.b16 %v3413, %v3405
        %v5398 = vpack.c.b16 %v3414, %v3406
        %v5399 = vpack.c.b16 %v3415, %v3407
        %v5400 = vpack.c.b16 %v3416, %v3408
        %v5401 = vpack.c.b16 %v3417, %v3409
        %v5402 = vpack.c.b16 %v3418, %v3410
        %v5403 = vpack.c.b16 %v3419, %v3411
        %v5404 = vpack.c.b16 %v3420, %v3412
        %v5405 = vpack.c.b16 %v3429, %v3421
        %v5406 = vpack.c.b16 %v3430, %v3422
        %v5407 = vpack.c.b16 %v3431, %v3423
        %v5408 = vpack.c.b16 %v3432, %v3424
        %v5409 = vpack.c.b16 %v3433, %v3425
        %v5410 = vpack.c.b16 %v3434, %v3426
        %v5411 = vpack.c.b16 %v3435, %v3427
        %v5412 = vpack.c.b16 %v3436, %v3428
        %v5413 = vpack.c.b16 %v3445, %v3437
        %v5414 = vpack.c.b16 %v3446, %v3438
        %v5415 = vpack.c.b16 %v3447, %v3439
        %v5416 = vpack.c.b16 %v3448, %v3440
        %v5417 = vpack.c.b16 %v3449, %v3441
        %v5418 = vpack.c.b16 %v3450, %v3442
        %v5419 = vpack.c.b16 %v3451, %v3443
        %v5420 = vpack.c.b16 %v3452, %v3444
        %v5421 = vpack.c.b16 %v3461, %v3453
        %v5422 = vpack.c.b16 %v3462, %v3454
        %v5423 = vpack.c.b16 %v3463, %v3455
        %v5424 = vpack.c.b16 %v3464, %v3456
        %v5425 = vpack.c.b16 %v3465, %v3457
        %v5426 = vpack.c.b16 %v3466, %v3458
        %v5427 = vpack.c.b16 %v3467, %v3459
        %v5428 = vpack.c.b16 %v3468, %v3460
        %v5429 = vpack.c.b16 %v3477, %v3469
        %v5430 = vpack.c.b16 %v3478, %v3470
        %v5431 = vpack.c.b16 %v3479, %v3471
        %v5432 = vpack.c.b16 %v3480, %v3472
        %v5433 = vpack.c.b16 %v3481, %v3473
        %v5434 = vpack.c.b16 %v3482, %v3474
        %v5435 = vpack.c.b16 %v3483, %v3475
        %v5436 = vpack.c.b16 %v3484, %v3476
        %v5437 = vpack.c.b16 %v3493, %v3485
        %v5438 = vpack.c.b16 %v3494, %v3486
        %v5439 = vpack.c.b16 %v3495, %v3487
        %v5440 = vpack.c.b16 %v3496, %v3488
        %v5441 = vpack.c.b16 %v3497, %v3489
        %v5442 = vpack.c.b16 %v3498, %v3490
        %v5443 = vpack.c.b16 %v3499, %v3491
        %v5444 = vpack.c.b16 %v3500, %v3492
        %v5445 = vpack.c.b16 %v3509, %v3501
        %v5446 = vpack.c.b16 %v3510, %v3502
        %v5447 = vpack.c.b16 %v3511, %v3503
        %v5448 = vpack.c.b16 %v3512, %v3504
        %v5449 = vpack.c.b16 %v3513, %v3505
        %v5450 = vpack.c.b16 %v3514, %v3506
        %v5451 = vpack.c.b16 %v3515, %v3507
        %v5452 = vpack.c.b16 %v3516, %v3508
        %v5453 = vpack.c.b16 %v3525, %v3517
        %v5454 = vpack.c.b16 %v3526, %v3518
        %v5455 = vpack.c.b16 %v3527, %v3519
        %v5456 = vpack.c.b16 %v3528, %v3520
        %v5457 = vpack.c.b16 %v3529, %v3521
        %v5458 = vpack.c.b16 %v3530, %v3522
        %v5459 = vpack.c.b16 %v3531, %v3523
        %v5460 = vpack.c.b16 %v3532, %v3524
        %v5461 = vpack.c.b16 %v3541, %v3533
        %v5462 = vpack.c.b16 %v3542, %v3534
        %v5463 = vpack.c.b16 %v3543, %v3535
        %v5464 = vpack.c.b16 %v3544, %v3536
        %v5465 = vpack.c.b16 %v3545, %v3537
        %v5466 = vpack.c.b16 %v3546, %v3538
        %v5467 = vpack.c.b16 %v3547, %v3539
        %v5468 = vpack.c.b16 %v3548, %v3540
        %v5469 = vpack.c.b16 %v3557, %v3549
        %v5470 = vpack.c.b16 %v3558, %v3550
        %v5471 = vpack.c.b16 %v3559, %v3551
        %v5472 = vpack.c.b16 %v3560, %v3552
        %v5473 = vpack.c.b16 %v3561, %v3553
        %v5474 = vpack.c.b16 %v3562, %v3554
        %v5475 = vpack.c.b16 %v3563, %v3555
        %v5476 = vpack.c.b16 %v3564, %v3556
        %v5477 = vpack.c.b16 %v3573, %v3565
        %v5478 = vpack.c.b16 %v3574, %v3566
        %v5479 = vpack.c.b16 %v3575, %v3567
        %v5480 = vpack.c.b16 %v3576, %v3568
        %v5481 = vpack.c.b16 %v3577, %v3569
        %v5482 = vpack.c.b16 %v3578, %v3570
        %v5483 = vpack.c.b16 %v3579, %v3571
        %v5484 = vpack.c.b16 %v3580, %v3572
        %v5485 = vpack.c.b16 %v3589, %v3581
        %v5486 = vpack.c.b16 %v3590, %v3582
        %v5487 = vpack.c.b16 %v3591, %v3583
        %v5488 = vpack.c.b16 %v3592, %v3584
        %v5489 = vpack.c.b16 %v3593, %v3585
        %v5490 = vpack.c.b16 %v3594, %v3586
        %v5491 = vpack.c.b16 %v3595, %v3587
        %v5492 = vpack.c.b16 %v3596, %v3588
        %v5493 = vpack.c.b16 %v3605, %v3597
        %v5494 = vpack.c.b16 %v3606, %v3598
        %v5495 = vpack.c.b16 %v3607, %v3599
        %v5496 = vpack.c.b16 %v3608, %v3600
        %v5497 = vpack.c.b16 %v3609, %v3601
        %v5498 = vpack.c.b16 %v3610, %v3602
        %v5499 = vpack.c.b16 %v3611, %v3603
        %v5500 = vpack.c.b16 %v3612, %v3604
        %v5501 = vpack.c.b16 %v3621, %v3613
        %v5502 = vpack.c.b16 %v3622, %v3614
        %v5503 = vpack.c.b16 %v3623, %v3615
        %v5504 = vpack.c.b16 %v3624, %v3616
        %v5505 = vpack.c.b16 %v3625, %v3617
        %v5506 = vpack.c.b16 %v3626, %v3618
        %v5507 = vpack.c.b16 %v3627, %v3619
        %v5508 = vpack.c.b16 %v3628, %v3620
        %v5509 = vpack.c.b16 %v3637, %v3629
        %v5510 = vpack.c.b16 %v3638, %v3630
        %v5511 = vpack.c.b16 %v3639, %v3631
        %v5512 = vpack.c.b16 %v3640, %v3632
        %v5513 = vpack.c.b16 %v3641, %v3633
        %v5514 = vpack.c.b16 %v3642, %v3634
        %v5515 = vpack.c.b16 %v3643, %v3635
        %v5516 = vpack.c.b16 %v3644, %v3636
        %v5517 = vpack.c.b16 %v3653, %v3645
        %v5518 = vpack.c.b16 %v3654, %v3646
        %v5519 = vpack.c.b16 %v3655, %v3647
        %v5520 = vpack.c.b16 %v3656, %v3648
        %v5521 = vpack.c.b16 %v3657, %v3649
        %v5522 = vpack.c.b16 %v3658, %v3650
        %v5523 = vpack.c.b16 %v3659, %v3651
        %v5524 = vpack.c.b16 %v3660, %v3652
        %v5525 = vpack.c.b16 %v3669, %v3661
        %v5526 = vpack.c.b16 %v3670, %v3662
        %v5527 = vpack.c.b16 %v3671, %v3663
        %v5528 = vpack.c.b16 %v3672, %v3664
        %v5529 = vpack.c.b16 %v3673, %v3665
        %v5530 = vpack.c.b16 %v3674, %v3666
        %v5531 = vpack.c.b16 %v3675, %v3667
        %v5532 = vpack.c.b16 %v3676, %v3668
        %v5533 = vpack.c.b16 %v3685, %v3677
        %v5534 = vpack.c.b16 %v3686, %v3678
        %v5535 = vpack.c.b16 %v3687, %v3679
        %v5536 = vpack.c.b16 %v3688, %v3680
        %v5537 = vpack.c.b16 %v3689, %v3681
        %v5538 = vpack.c.b16 %v3690, %v3682
        %v5539 = vpack.c.b16 %v3691, %v3683
        %v5540 = vpack.c.b16 %v3692, %v3684
        %v5541 = vpack.c.b16 %v3701, %v3693
        %v5542 = vpack.c.b16 %v3702, %v3694
        %v5543 = vpack.c.b16 %v3703, %v3695
        %v5544 = vpack.c.b16 %v3704, %v3696
        %v5545 = vpack.c.b16 %v3705, %v3697
        %v5546 = vpack.c.b16 %v3706, %v3698
        %v5547 = vpack.c.b16 %v3707, %v3699
        %v5548 = vpack.c.b16 %v3708, %v3700
        %v5549 = vpack.c.b16 %v3717, %v3709
        %v5550 = vpack.c.b16 %v3718, %v3710
        %v5551 = vpack.c.b16 %v3719, %v3711
        %v5552 = vpack.c.b16 %v3720, %v3712
        %v5553 = vpack.c.b16 %v3721, %v3713
        %v5554 = vpack.c.b16 %v3722, %v3714
        %v5555 = vpack.c.b16 %v3723, %v3715
        %v5556 = vpack.c.b16 %v3724, %v3716
        %v5557 = vpack.c.b16 %v3733, %v3725
        %v5558 = vpack.c.b16 %v3734, %v3726
        %v5559 = vpack.c.b16 %v3735, %v3727
        %v5560 = vpack.c.b16 %v3736, %v3728
        %v5561 = vpack.c.b16 %v3737, %v3729
        %v5562 = vpack.c.b16 %v3738, %v3730
        %v5563 = vpack.c.b16 %v3739, %v3731
        %v5564 = vpack.c.b16 %v3740, %v3732
        %v5565 = vpack.c.b16 %v3749, %v3741
        %v5566 = vpack.c.b16 %v3750, %v3742
        %v5567 = vpack.c.b16 %v3751, %v3743
        %v5568 = vpack.c.b16 %v3752, %v3744
        %v5569 = vpack.c.b16 %v3753, %v3745
        %v5570 = vpack.c.b16 %v3754, %v3746
        %v5571 = vpack.c.b16 %v3755, %v3747
        %v5572 = vpack.c.b16 %v3756, %v3748
        %v5573 = vpack.c.b16 %v3765, %v3757
        %v5574 = vpack.c.b16 %v3766, %v3758
        %v5575 = vpack.c.b16 %v3767, %v3759
        %v5576 = vpack.c.b16 %v3768, %v3760
        %v5577 = vpack.c.b16 %v3769, %v3761
        %v5578 = vpack.c.b16 %v3770, %v3762
        %v5579 = vpack.c.b16 %v3771, %v3763
        %v5580 = vpack.c.b16 %v3772, %v3764
        %v5581 = vpack.c.b16 %v3781, %v3773
        %v5582 = vpack.c.b16 %v3782, %v3774
        %v5583 = vpack.c.b16 %v3783, %v3775
        %v5584 = vpack.c.b16 %v3784, %v3776
        %v5585 = vpack.c.b16 %v3785, %v3777
        %v5586 = vpack.c.b16 %v3786, %v3778
        %v5587 = vpack.c.b16 %v3787, %v3779
        %v5588 = vpack.c.b16 %v3788, %v3780
        %v5589 = vpack.c.b16 %v3797, %v3789
        %v5590 = vpack.c.b16 %v3798, %v3790
        %v5591 = vpack.c.b16 %v3799, %v3791
        %v5592 = vpack.c.b16 %v3800, %v3792
        %v5593 = vpack.c.b16 %v3801, %v3793
        %v5594 = vpack.c.b16 %v3802, %v3794
        %v5595 = vpack.c.b16 %v3803, %v3795
        %v5596 = vpack.c.b16 %v3804, %v3796
        %v5597 = vpack.c.b16 %v3813, %v3805
        %v5598 = vpack.c.b16 %v3814, %v3806
        %v5599 = vpack.c.b16 %v3815, %v3807
        %v5600 = vpack.c.b16 %v3816, %v3808
        %v5601 = vpack.c.b16 %v3817, %v3809
        %v5602 = vpack.c.b16 %v3818, %v3810
        %v5603 = vpack.c.b16 %v3819, %v3811
        %v5604 = vpack.c.b16 %v3820, %v3812
        %v5605 = vpack.c.b16 %v3829, %v3821
        %v5606 = vpack.c.b16 %v3830, %v3822
        %v5607 = vpack.c.b16 %v3831, %v3823
        %v5608 = vpack.c.b16 %v3832, %v3824
        %v5609 = vpack.c.b16 %v3833, %v3825
        %v5610 = vpack.c.b16 %v3834, %v3826
        %v5611 = vpack.c.b16 %v3835, %v3827
        %v5612 = vpack.c.b16 %v3836, %v3828
        %v5613 = vpack.c.b16 %v3845, %v3837
        %v5614 = vpack.c.b16 %v3846, %v3838
        %v5615 = vpack.c.b16 %v3847, %v3839
        %v5616 = vpack.c.b16 %v3848, %v3840
        %v5617 = vpack.c.b16 %v3849, %v3841
        %v5618 = vpack.c.b16 %v3850, %v3842
        %v5619 = vpack.c.b16 %v3851, %v3843
        %v5620 = vpack.c.b16 %v3852, %v3844
        %v5621 = vpack.c.b16 %v3861, %v3853
        %v5622 = vpack.c.b16 %v3862, %v3854
        %v5623 = vpack.c.b16 %v3863, %v3855
        %v5624 = vpack.c.b16 %v3864, %v3856
        %v5625 = vpack.c.b16 %v3865, %v3857
        %v5626 = vpack.c.b16 %v3866, %v3858
        %v5627 = vpack.c.b16 %v3867, %v3859
        %v5628 = vpack.c.b16 %v3868, %v3860
        %v5629 = vpack.c.b16 %v3877, %v3869
        %v5630 = vpack.c.b16 %v3878, %v3870
        %v5631 = vpack.c.b16 %v3879, %v3871
        %v5632 = vpack.c.b16 %v3880, %v3872
        %v5633 = vpack.c.b16 %v3881, %v3873
        %v5634 = vpack.c.b16 %v3882, %v3874
        %v5635 = vpack.c.b16 %v3883, %v3875
        %v5636 = vpack.c.b16 %v3884, %v3876
        %v5637 = vpack.c.b16 %v3893, %v3885
        %v5638 = vpack.c.b16 %v3894, %v3886
        %v5639 = vpack.c.b16 %v3895, %v3887
        %v5640 = vpack.c.b16 %v3896, %v3888
        %v5641 = vpack.c.b16 %v3897, %v3889
        %v5642 = vpack.c.b16 %v3898, %v3890
        %v5643 = vpack.c.b16 %v3899, %v3891
        %v5644 = vpack.c.b16 %v3900, %v3892
        %v5645 = vpack.c.b16 %v3909, %v3901
        %v5646 = vpack.c.b16 %v3910, %v3902
        %v5647 = vpack.c.b16 %v3911, %v3903
        %v5648 = vpack.c.b16 %v3912, %v3904
        %v5649 = vpack.c.b16 %v3913, %v3905
        %v5650 = vpack.c.b16 %v3914, %v3906
        %v5651 = vpack.c.b16 %v3915, %v3907
        %v5652 = vpack.c.b16 %v3916, %v3908
        %v5653 = vpack.c.b16 %v3925, %v3917
        %v5654 = vpack.c.b16 %v3926, %v3918
        %v5655 = vpack.c.b16 %v3927, %v3919
        %v5656 = vpack.c.b16 %v3928, %v3920
        %v5657 = vpack.c.b16 %v3929, %v3921
        %v5658 = vpack.c.b16 %v3930, %v3922
        %v5659 = vpack.c.b16 %v3931, %v3923
        %v5660 = vpack.c.b16 %v3932, %v3924
        %v5661 = vpack.c.b16 %v3941, %v3933
        %v5662 = vpack.c.b16 %v3942, %v3934
        %v5663 = vpack.c.b16 %v3943, %v3935
        %v5664 = vpack.c.b16 %v3944, %v3936
        %v5665 = vpack.c.b16 %v3945, %v3937
        %v5666 = vpack.c.b16 %v3946, %v3938
        %v5667 = vpack.c.b16 %v3947, %v3939
        %v5668 = vpack.c.b16 %v3948, %v3940
        %v5669 = vpack.c.b16 %v3957, %v3949
        %v5670 = vpack.c.b16 %v3958, %v3950
        %v5671 = vpack.c.b16 %v3959, %v3951
        %v5672 = vpack.c.b16 %v3960, %v3952
        %v5673 = vpack.c.b16 %v3961, %v3953
        %v5674 = vpack.c.b16 %v3962, %v3954
        %v5675 = vpack.c.b16 %v3963, %v3955
        %v5676 = vpack.c.b16 %v3964, %v3956
        %v5677 = vpack.c.b16 %v3973, %v3965
        %v5678 = vpack.c.b16 %v3974, %v3966
        %v5679 = vpack.c.b16 %v3975, %v3967
        %v5680 = vpack.c.b16 %v3976, %v3968
        %v5681 = vpack.c.b16 %v3977, %v3969
        %v5682 = vpack.c.b16 %v3978, %v3970
        %v5683 = vpack.c.b16 %v3979, %v3971
        %v5684 = vpack.c.b16 %v3980, %v3972
        %v5685 = vpack.c.b16 %v3989, %v3981
        %v5686 = vpack.c.b16 %v3990, %v3982
        %v5687 = vpack.c.b16 %v3991, %v3983
        %v5688 = vpack.c.b16 %v3992, %v3984
        %v5689 = vpack.c.b16 %v3993, %v3985
        %v5690 = vpack.c.b16 %v3994, %v3986
        %v5691 = vpack.c.b16 %v3995, %v3987
        %v5692 = vpack.c.b16 %v3996, %v3988
        %v5693 = vpack.c.b16 %v4005, %v3997
        %v5694 = vpack.c.b16 %v4006, %v3998
        %v5695 = vpack.c.b16 %v4007, %v3999
        %v5696 = vpack.c.b16 %v4008, %v4000
        %v5697 = vpack.c.b16 %v4009, %v4001
        %v5698 = vpack.c.b16 %v4010, %v4002
        %v5699 = vpack.c.b16 %v4011, %v4003
        %v5700 = vpack.c.b16 %v4012, %v4004
        %v5701 = vpack.c.b16 %v4021, %v4013
        %v5702 = vpack.c.b16 %v4022, %v4014
        %v5703 = vpack.c.b16 %v4023, %v4015
        %v5704 = vpack.c.b16 %v4024, %v4016
        %v5705 = vpack.c.b16 %v4025, %v4017
        %v5706 = vpack.c.b16 %v4026, %v4018
        %v5707 = vpack.c.b16 %v4027, %v4019
        %v5708 = vpack.c.b16 %v4028, %v4020
        %v5709 = vpack.c.b16 %v4037, %v4029
        %v5710 = vpack.c.b16 %v4038, %v4030
        %v5711 = vpack.c.b16 %v4039, %v4031
        %v5712 = vpack.c.b16 %v4040, %v4032
        %v5713 = vpack.c.b16 %v4041, %v4033
        %v5714 = vpack.c.b16 %v4042, %v4034
        %v5715 = vpack.c.b16 %v4043, %v4035
        %v5716 = vpack.c.b16 %v4044, %v4036
        %v5717 = vpack.c.b16 %v4053, %v4045
        %v5718 = vpack.c.b16 %v4054, %v4046
        %v5719 = vpack.c.b16 %v4055, %v4047
        %v5720 = vpack.c.b16 %v4056, %v4048
        %v5721 = vpack.c.b16 %v4057, %v4049
        %v5722 = vpack.c.b16 %v4058, %v4050
        %v5723 = vpack.c.b16 %v4059, %v4051
        %v5724 = vpack.c.b16 %v4060, %v4052
        %v5725 = vpack.c.b16 %v4069, %v4061
        %v5726 = vpack.c.b16 %v4070, %v4062
        %v5727 = vpack.c.b16 %v4071, %v4063
        %v5728 = vpack.c.b16 %v4072, %v4064
        %v5729 = vpack.c.b16 %v4073, %v4065
        %v5730 = vpack.c.b16 %v4074, %v4066
        %v5731 = vpack.c.b16 %v4075, %v4067
        %v5732 = vpack.c.b16 %v4076, %v4068
        %v5733 = vpack.c.b16 %v4085, %v4077
        %v5734 = vpack.c.b16 %v4086, %v4078
        %v5735 = vpack.c.b16 %v4087, %v4079
        %v5736 = vpack.c.b16 %v4088, %v4080
        %v5737 = vpack.c.b16 %v4089, %v4081
        %v5738 = vpack.c.b16 %v4090, %v4082
        %v5739 = vpack.c.b16 %v4091, %v4083
        %v5740 = vpack.c.b16 %v4092, %v4084
        %v5741 = vpack.c.b16 %v4101, %v4093
        %v5742 = vpack.c.b16 %v4102, %v4094
        %v5743 = vpack.c.b16 %v4103, %v4095
        %v5744 = vpack.c.b16 %v4104, %v4096
        %v5745 = vpack.c.b16 %v4105, %v4097
        %v5746 = vpack.c.b16 %v4106, %v4098
        %v5747 = vpack.c.b16 %v4107, %v4099
        %v5748 = vpack.c.b16 %v4108, %v4100
        %v5749 = vpack.c.b16 %v4117, %v4109
        %v5750 = vpack.c.b16 %v4118, %v4110
        %v5751 = vpack.c.b16 %v4119, %v4111
        %v5752 = vpack.c.b16 %v4120, %v4112
        %v5753 = vpack.c.b16 %v4121, %v4113
        %v5754 = vpack.c.b16 %v4122, %v4114
        %v5755 = vpack.c.b16 %v4123, %v4115
        %v5756 = vpack.c.b16 %v4124, %v4116
        %v5757 = vpack.c.b16 %v4133, %v4125
        %v5758 = vpack.c.b16 %v4134, %v4126
        %v5759 = vpack.c.b16 %v4135, %v4127
        %v5760 = vpack.c.b16 %v4136, %v4128
        %v5761 = vpack.c.b16 %v4137, %v4129
        %v5762 = vpack.c.b16 %v4138, %v4130
        %v5763 = vpack.c.b16 %v4139, %v4131
        %v5764 = vpack.c.b16 %v4140, %v4132
        %v5765 = vpack.c.b16 %v4149, %v4141
        %v5766 = vpack.c.b16 %v4150, %v4142
        %v5767 = vpack.c.b16 %v4151, %v4143
        %v5768 = vpack.c.b16 %v4152, %v4144
        %v5769 = vpack.c.b16 %v4153, %v4145
        %v5770 = vpack.c.b16 %v4154, %v4146
        %v5771 = vpack.c.b16 %v4155, %v4147
        %v5772 = vpack.c.b16 %v4156, %v4148
        %v5773 = vpack.c.b16 %v4165, %v4157
        %v5774 = vpack.c.b16 %v4166, %v4158
        %v5775 = vpack.c.b16 %v4167, %v4159
        %v5776 = vpack.c.b16 %v4168, %v4160
        %v5777 = vpack.c.b16 %v4169, %v4161
        %v5778 = vpack.c.b16 %v4170, %v4162
        %v5779 = vpack.c.b16 %v4171, %v4163
        %v5780 = vpack.c.b16 %v4172, %v4164
        %v5781 = vpack.c.b16 %v4181, %v4173
        %v5782 = vpack.c.b16 %v4182, %v4174
        %v5783 = vpack.c.b16 %v4183, %v4175
        %v5784 = vpack.c.b16 %v4184, %v4176
        %v5785 = vpack.c.b16 %v4185, %v4177
        %v5786 = vpack.c.b16 %v4186, %v4178
        %v5787 = vpack.c.b16 %v4187, %v4179
        %v5788 = vpack.c.b16 %v4188, %v4180
        %v5789 = vpack.c.b16 %v4197, %v4189
        %v5790 = vpack.c.b16 %v4198, %v4190
        %v5791 = vpack.c.b16 %v4199, %v4191
        %v5792 = vpack.c.b16 %v4200, %v4192
        %v5793 = vpack.c.b16 %v4201, %v4193
        %v5794 = vpack.c.b16 %v4202, %v4194
        %v5795 = vpack.c.b16 %v4203, %v4195
        %v5796 = vpack.c.b16 %v4204, %v4196
        %v5797 = vpack.c.b16 %v4213, %v4205
        %v5798 = vpack.c.b16 %v4214, %v4206
        %v5799 = vpack.c.b16 %v4215, %v4207
        %v5800 = vpack.c.b16 %v4216, %v4208
        %v5801 = vpack.c.b16 %v4217, %v4209
        %v5802 = vpack.c.b16 %v4218, %v4210
        %v5803 = vpack.c.b16 %v4219, %v4211
        %v5804 = vpack.c.b16 %v4220, %v4212
        %v5805 = vpack.c.b16 %v4229, %v4221
        %v5806 = vpack.c.b16 %v4230, %v4222
        %v5807 = vpack.c.b16 %v4231, %v4223
        %v5808 = vpack.c.b16 %v4232, %v4224
        %v5809 = vpack.c.b16 %v4233, %v4225
        %v5810 = vpack.c.b16 %v4234, %v4226
        %v5811 = vpack.c.b16 %v4235, %v4227
        %v5812 = vpack.c.b16 %v4236, %v4228
        %v5813 = vpack.c.b16 %v4245, %v4237
        %v5814 = vpack.c.b16 %v4246, %v4238
        %v5815 = vpack.c.b16 %v4247, %v4239
        %v5816 = vpack.c.b16 %v4248, %v4240
        %v5817 = vpack.c.b16 %v4249, %v4241
        %v5818 = vpack.c.b16 %v4250, %v4242
        %v5819 = vpack.c.b16 %v4251, %v4243
        %v5820 = vpack.c.b16 %v4252, %v4244
        %v5821 = vpack.c.b16 %v4261, %v4253
        %v5822 = vpack.c.b16 %v4262, %v4254
        %v5823 = vpack.c.b16 %v4263, %v4255
        %v5824 = vpack.c.b16 %v4264, %v4256
        %v5825 = vpack.c.b16 %v4265, %v4257
        %v5826 = vpack.c.b16 %v4266, %v4258
        %v5827 = vpack.c.b16 %v4267, %v4259
        %v5828 = vpack.c.b16 %v4268, %v4260
        %v5829 = vpack.c.b16 %v4277, %v4269
        %v5830 = vpack.c.b16 %v4278, %v4270
        %v5831 = vpack.c.b16 %v4279, %v4271
        %v5832 = vpack.c.b16 %v4280, %v4272
        %v5833 = vpack.c.b16 %v4281, %v4273
        %v5834 = vpack.c.b16 %v4282, %v4274
        %v5835 = vpack.c.b16 %v4283, %v4275
        %v5836 = vpack.c.b16 %v4284, %v4276
        %v5837 = vpack.c.b16 %v4293, %v4285
        %v5838 = vpack.c.b16 %v4294, %v4286
        %v5839 = vpack.c.b16 %v4295, %v4287
        %v5840 = vpack.c.b16 %v4296, %v4288
        %v5841 = vpack.c.b16 %v4297, %v4289
        %v5842 = vpack.c.b16 %v4298, %v4290
        %v5843 = vpack.c.b16 %v4299, %v4291
        %v5844 = vpack.c.b16 %v4300, %v4292
        %v5845 = vpack.c.b16 %v4309, %v4301
        %v5846 = vpack.c.b16 %v4310, %v4302
        %v5847 = vpack.c.b16 %v4311, %v4303
        %v5848 = vpack.c.b16 %v4312, %v4304
        %v5849 = vpack.c.b16 %v4313, %v4305
        %v5850 = vpack.c.b16 %v4314, %v4306
        %v5851 = vpack.c.b16 %v4315, %v4307
        %v5852 = vpack.c.b16 %v4316, %v4308
        %v5853 = vpack.c.b16 %v4325, %v4317
        %v5854 = vpack.c.b16 %v4326, %v4318
        %v5855 = vpack.c.b16 %v4327, %v4319
        %v5856 = vpack.c.b16 %v4328, %v4320
        %v5857 = vpack.c.b16 %v4329, %v4321
        %v5858 = vpack.c.b16 %v4330, %v4322
        %v5859 = vpack.c.b16 %v4331, %v4323
        %v5860 = vpack.c.b16 %v4332, %v4324
        %v5861 = vpack.c.b16 %v4341, %v4333
        %v5862 = vpack.c.b16 %v4342, %v4334
        %v5863 = vpack.c.b16 %v4343, %v4335
        %v5864 = vpack.c.b16 %v4344, %v4336
        %v5865 = vpack.c.b16 %v4345, %v4337
        %v5866 = vpack.c.b16 %v4346, %v4338
        %v5867 = vpack.c.b16 %v4347, %v4339
        %v5868 = vpack.c.b16 %v4348, %v4340
        %v5869 = vpack.c.b16 %v4357, %v4349
        %v5870 = vpack.c.b16 %v4358, %v4350
        %v5871 = vpack.c.b16 %v4359, %v4351
        %v5872 = vpack.c.b16 %v4360, %v4352
        %v5873 = vpack.c.b16 %v4361, %v4353
        %v5874 = vpack.c.b16 %v4362, %v4354
        %v5875 = vpack.c.b16 %v4363, %v4355
        %v5876 = vpack.c.b16 %v4364, %v4356
        %v5877 = vpack.c.b16 %v4373, %v4365
        %v5878 = vpack.c.b16 %v4374, %v4366
        %v5879 = vpack.c.b16 %v4375, %v4367
        %v5880 = vpack.c.b16 %v4376, %v4368
        %v5881 = vpack.c.b16 %v4377, %v4369
        %v5882 = vpack.c.b16 %v4378, %v4370
        %v5883 = vpack.c.b16 %v4379, %v4371
        %v5884 = vpack.c.b16 %v4380, %v4372
        %v5885 = vpack.c.b16 %v4389, %v4381
        %v5886 = vpack.c.b16 %v4390, %v4382
        %v5887 = vpack.c.b16 %v4391, %v4383
        %v5888 = vpack.c.b16 %v4392, %v4384
        %v5889 = vpack.c.b16 %v4393, %v4385
        %v5890 = vpack.c.b16 %v4394, %v4386
        %v5891 = vpack.c.b16 %v4395, %v4387
        %v5892 = vpack.c.b16 %v4396, %v4388
        %v5893 = vpack.c.b16 %v4405, %v4397
        %v5894 = vpack.c.b16 %v4406, %v4398
        %v5895 = vpack.c.b16 %v4407, %v4399
        %v5896 = vpack.c.b16 %v4408, %v4400
        %v5897 = vpack.c.b16 %v4409, %v4401
        %v5898 = vpack.c.b16 %v4410, %v4402
        %v5899 = vpack.c.b16 %v4411, %v4403
        %v5900 = vpack.c.b16 %v4412, %v4404
        %v5901 = vpack.c.b16 %v4421, %v4413
        %v5902 = vpack.c.b16 %v4422, %v4414
        %v5903 = vpack.c.b16 %v4423, %v4415
        %v5904 = vpack.c.b16 %v4424, %v4416
        %v5905 = vpack.c.b16 %v4425, %v4417
        %v5906 = vpack.c.b16 %v4426, %v4418
        %v5907 = vpack.c.b16 %v4427, %v4419
        %v5908 = vpack.c.b16 %v4428, %v4420
        %v5909 = vpack.c.b16 %v4437, %v4429
        %v5910 = vpack.c.b16 %v4438, %v4430
        %v5911 = vpack.c.b16 %v4439, %v4431
        %v5912 = vpack.c.b16 %v4440, %v4432
        %v5913 = vpack.c.b16 %v4441, %v4433
        %v5914 = vpack.c.b16 %v4442, %v4434
        %v5915 = vpack.c.b16 %v4443, %v4435
        %v5916 = vpack.c.b16 %v4444, %v4436
        %v5917 = vpack.c.b16 %v4453, %v4445
        %v5918 = vpack.c.b16 %v4454, %v4446
        %v5919 = vpack.c.b16 %v4455, %v4447
        %v5920 = vpack.c.b16 %v4456, %v4448
        %v5921 = vpack.c.b16 %v4457, %v4449
        %v5922 = vpack.c.b16 %v4458, %v4450
        %v5923 = vpack.c.b16 %v4459, %v4451
        %v5924 = vpack.c.b16 %v4460, %v4452
        %v5925 = vpack.c.b16 %v4469, %v4461
        %v5926 = vpack.c.b16 %v4470, %v4462
        %v5927 = vpack.c.b16 %v4471, %v4463
        %v5928 = vpack.c.b16 %v4472, %v4464
        %v5929 = vpack.c.b16 %v4473, %v4465
        %v5930 = vpack.c.b16 %v4474, %v4466
        %v5931 = vpack.c.b16 %v4475, %v4467
        %v5932 = vpack.c.b16 %v4476, %v4468
        %v5933 = vpack.c.b16 %v4485, %v4477
        %v5934 = vpack.c.b16 %v4486, %v4478
        %v5935 = vpack.c.b16 %v4487, %v4479
        %v5936 = vpack.c.b16 %v4488, %v4480
        %v5937 = vpack.c.b16 %v4489, %v4481
        %v5938 = vpack.c.b16 %v4490, %v4482
        %v5939 = vpack.c.b16 %v4491, %v4483
        %v5940 = vpack.c.b16 %v4492, %v4484
        %v5941 = vpack.c.b16 %v4501, %v4493
        %v5942 = vpack.c.b16 %v4502, %v4494
        %v5943 = vpack.c.b16 %v4503, %v4495
        %v5944 = vpack.c.b16 %v4504, %v4496
        %v5945 = vpack.c.b16 %v4505, %v4497
        %v5946 = vpack.c.b16 %v4506, %v4498
        %v5947 = vpack.c.b16 %v4507, %v4499
        %v5948 = vpack.c.b16 %v4508, %v4500
        %v5949 = vpack.c.b16 %v4517, %v4509
        %v5950 = vpack.c.b16 %v4518, %v4510
        %v5951 = vpack.c.b16 %v4519, %v4511
        %v5952 = vpack.c.b16 %v4520, %v4512
        %v5953 = vpack.c.b16 %v4521, %v4513
        %v5954 = vpack.c.b16 %v4522, %v4514
        %v5955 = vpack.c.b16 %v4523, %v4515
        %v5956 = vpack.c.b16 %v4524, %v4516
        %v5957 = vpack.c.b16 %v4533, %v4525
        %v5958 = vpack.c.b16 %v4534, %v4526
        %v5959 = vpack.c.b16 %v4535, %v4527
        %v5960 = vpack.c.b16 %v4536, %v4528
        %v5961 = vpack.c.b16 %v4537, %v4529
        %v5962 = vpack.c.b16 %v4538, %v4530
        %v5963 = vpack.c.b16 %v4539, %v4531
        %v5964 = vpack.c.b16 %v4540, %v4532
        %v5965 = vpack.c.b16 %v4549, %v4541
        %v5966 = vpack.c.b16 %v4550, %v4542
        %v5967 = vpack.c.b16 %v4551, %v4543
        %v5968 = vpack.c.b16 %v4552, %v4544
        %v5969 = vpack.c.b16 %v4553, %v4545
        %v5970 = vpack.c.b16 %v4554, %v4546
        %v5971 = vpack.c.b16 %v4555, %v4547
        %v5972 = vpack.c.b16 %v4556, %v4548
        %v5973 = vpack.c.b16 %v4565, %v4557
        %v5974 = vpack.c.b16 %v4566, %v4558
        %v5975 = vpack.c.b16 %v4567, %v4559
        %v5976 = vpack.c.b16 %v4568, %v4560
        %v5977 = vpack.c.b16 %v4569, %v4561
        %v5978 = vpack.c.b16 %v4570, %v4562
        %v5979 = vpack.c.b16 %v4571, %v4563
        %v5980 = vpack.c.b16 %v4572, %v4564
        %v5981 = vpack.c.b16 %v4581, %v4573
        %v5982 = vpack.c.b16 %v4582, %v4574
        %v5983 = vpack.c.b16 %v4583, %v4575
        %v5984 = vpack.c.b16 %v4584, %v4576
        %v5985 = vpack.c.b16 %v4585, %v4577
        %v5986 = vpack.c.b16 %v4586, %v4578
        %v5987 = vpack.c.b16 %v4587, %v4579
        %v5988 = vpack.c.b16 %v4588, %v4580
        %v5989 = vpack.c.b16 %v4597, %v4589
        %v5990 = vpack.c.b16 %v4598, %v4590
        %v5991 = vpack.c.b16 %v4599, %v4591
        %v5992 = vpack.c.b16 %v4600, %v4592
        %v5993 = vpack.c.b16 %v4601, %v4593
        %v5994 = vpack.c.b16 %v4602, %v4594
        %v5995 = vpack.c.b16 %v4603, %v4595
        %v5996 = vpack.c.b16 %v4604, %v4596
        %v5997 = vpack.c.b16 %v4613, %v4605
        %v5998 = vpack.c.b16 %v4614, %v4606
        %v5999 = vpack.c.b16 %v4615, %v4607
        %v6000 = vpack.c.b16 %v4616, %v4608
        %v6001 = vpack.c.b16 %v4617, %v4609
        %v6002 = vpack.c.b16 %v4618, %v4610
        %v6003 = vpack.c.b16 %v4619, %v4611
        %v6004 = vpack.c.b16 %v4620, %v4612
        %v6005 = vpack.c.b16 %v4629, %v4621
        %v6006 = vpack.c.b16 %v4630, %v4622
        %v6007 = vpack.c.b16 %v4631, %v4623
        %v6008 = vpack.c.b16 %v4632, %v4624
        %v6009 = vpack.c.b16 %v4633, %v4625
        %v6010 = vpack.c.b16 %v4634, %v4626
        %v6011 = vpack.c.b16 %v4635, %v4627
        %v6012 = vpack.c.b16 %v4636, %v4628
        %v6013 = vpack.c.b16 %v4645, %v4637
        %v6014 = vpack.c.b16 %v4646, %v4638
        %v6015 = vpack.c.b16 %v4647, %v4639
        %v6016 = vpack.c.b16 %v4648, %v4640
        %v6017 = vpack.c.b16 %v4649, %v4641
        %v6018 = vpack.c.b16 %v4650, %v4642
        %v6019 = vpack.c.b16 %v4651, %v4643
        %v6020 = vpack.c.b16 %v4652, %v4644
        %v6021 = vpack.c.b16 %v4661, %v4653
        %v6022 = vpack.c.b16 %v4662, %v4654
        %v6023 = vpack.c.b16 %v4663, %v4655
        %v6024 = vpack.c.b16 %v4664, %v4656
        %v6025 = vpack.c.b16 %v4665, %v4657
        %v6026 = vpack.c.b16 %v4666, %v4658
        %v6027 = vpack.c.b16 %v4667, %v4659
        %v6028 = vpack.c.b16 %v4668, %v4660
        %v6029 = vpack.c.b16 %v4677, %v4669
        %v6030 = vpack.c.b16 %v4678, %v4670
        %v6031 = vpack.c.b16 %v4679, %v4671
        %v6032 = vpack.c.b16 %v4680, %v4672
        %v6033 = vpack.c.b16 %v4681, %v4673
        %v6034 = vpack.c.b16 %v4682, %v4674
        %v6035 = vpack.c.b16 %v4683, %v4675
        %v6036 = vpack.c.b16 %v4684, %v4676
        %v6037 = vpack.c.b16 %v4693, %v4685
        %v6038 = vpack.c.b16 %v4694, %v4686
        %v6039 = vpack.c.b16 %v4695, %v4687
        %v6040 = vpack.c.b16 %v4696, %v4688
        %v6041 = vpack.c.b16 %v4697, %v4689
        %v6042 = vpack.c.b16 %v4698, %v4690
        %v6043 = vpack.c.b16 %v4699, %v4691
        %v6044 = vpack.c.b16 %v4700, %v4692
        %v6045 = vpack.c.b16 %v4709, %v4701
        %v6046 = vpack.c.b16 %v4710, %v4702
        %v6047 = vpack.c.b16 %v4711, %v4703
        %v6048 = vpack.c.b16 %v4712, %v4704
        %v6049 = vpack.c.b16 %v4713, %v4705
        %v6050 = vpack.c.b16 %v4714, %v4706
        %v6051 = vpack.c.b16 %v4715, %v4707
        %v6052 = vpack.c.b16 %v4716, %v4708
        %v6053 = vpack.c.b16 %v4725, %v4717
        %v6054 = vpack.c.b16 %v4726, %v4718
        %v6055 = vpack.c.b16 %v4727, %v4719
        %v6056 = vpack.c.b16 %v4728, %v4720
        %v6057 = vpack.c.b16 %v4729, %v4721
        %v6058 = vpack.c.b16 %v4730, %v4722
        %v6059 = vpack.c.b16 %v4731, %v4723
        %v6060 = vpack.c.b16 %v4732, %v4724
        %v6061 = vpack.c.b16 %v4741, %v4733
        %v6062 = vpack.c.b16 %v4742, %v4734
        %v6063 = vpack.c.b16 %v4743, %v4735
        %v6064 = vpack.c.b16 %v4744, %v4736
        %v6065 = vpack.c.b16 %v4745, %v4737
        %v6066 = vpack.c.b16 %v4746, %v4738
        %v6067 = vpack.c.b16 %v4747, %v4739
        %v6068 = vpack.c.b16 %v4748, %v4740
        %v6069 = vpack.c.b16 %v4757, %v4749
        %v6070 = vpack.c.b16 %v4758, %v4750
        %v6071 = vpack.c.b16 %v4759, %v4751
        %v6072 = vpack.c.b16 %v4760, %v4752
        %v6073 = vpack.c.b16 %v4761, %v4753
        %v6074 = vpack.c.b16 %v4762, %v4754
        %v6075 = vpack.c.b16 %v4763, %v4755
        %v6076 = vpack.c.b16 %v4764, %v4756
        %v6077 = vpack.c.b16 %v4773, %v4765
        %v6078 = vpack.c.b16 %v4774, %v4766
        %v6079 = vpack.c.b16 %v4775, %v4767
        %v6080 = vpack.c.b16 %v4776, %v4768
        %v6081 = vpack.c.b16 %v4777, %v4769
        %v6082 = vpack.c.b16 %v4778, %v4770
        %v6083 = vpack.c.b16 %v4779, %v4771
        %v6084 = vpack.c.b16 %v4780, %v4772
        %v6085 = vpack.c.b16 %v4789, %v4781
        %v6086 = vpack.c.b16 %v4790, %v4782
        %v6087 = vpack.c.b16 %v4791, %v4783
        %v6088 = vpack.c.b16 %v4792, %v4784
        %v6089 = vpack.c.b16 %v4793, %v4785
        %v6090 = vpack.c.b16 %v4794, %v4786
        %v6091 = vpack.c.b16 %v4795, %v4787
        %v6092 = vpack.c.b16 %v4796, %v4788
        %v6093 = vpack.c.b16 %v4805, %v4797
        %v6094 = vpack.c.b16 %v4806, %v4798
        %v6095 = vpack.c.b16 %v4807, %v4799
        %v6096 = vpack.c.b16 %v4808, %v4800
        %v6097 = vpack.c.b16 %v4809, %v4801
        %v6098 = vpack.c.b16 %v4810, %v4802
        %v6099 = vpack.c.b16 %v4811, %v4803
        %v6100 = vpack.c.b16 %v4812, %v4804
        %v6101 = vpack.c.b16 %v4821, %v4813
        %v6102 = vpack.c.b16 %v4822, %v4814
        %v6103 = vpack.c.b16 %v4823, %v4815
        %v6104 = vpack.c.b16 %v4824, %v4816
        %v6105 = vpack.c.b16 %v4825, %v4817
        %v6106 = vpack.c.b16 %v4826, %v4818
        %v6107 = vpack.c.b16 %v4827, %v4819
        %v6108 = vpack.c.b16 %v4828, %v4820
        %v6109 = vpack.c.b16 %v4837, %v4829
        %v6110 = vpack.c.b16 %v4838, %v4830
        %v6111 = vpack.c.b16 %v4839, %v4831
        %v6112 = vpack.c.b16 %v4840, %v4832
        %v6113 = vpack.c.b16 %v4841, %v4833
        %v6114 = vpack.c.b16 %v4842, %v4834
        %v6115 = vpack.c.b16 %v4843, %v4835
        %v6116 = vpack.c.b16 %v4844, %v4836
        %v6117 = vpack.c.b16 %v4853, %v4845
        %v6118 = vpack.c.b16 %v4854, %v4846
        %v6119 = vpack.c.b16 %v4855, %v4847
        %v6120 = vpack.c.b16 %v4856, %v4848
        %v6121 = vpack.c.b16 %v4857, %v4849
        %v6122 = vpack.c.b16 %v4858, %v4850
        %v6123 = vpack.c.b16 %v4859, %v4851
        %v6124 = vpack.c.b16 %v4860, %v4852
        %v6125 = vpack.c.b16 %v4869, %v4861
        %v6126 = vpack.c.b16 %v4870, %v4862
        %v6127 = vpack.c.b16 %v4871, %v4863
        %v6128 = vpack.c.b16 %v4872, %v4864
        %v6129 = vpack.c.b16 %v4873, %v4865
        %v6130 = vpack.c.b16 %v4874, %v4866
        %v6131 = vpack.c.b16 %v4875, %v4867
        %v6132 = vpack.c.b16 %v4876, %v4868
        %v6133 = vpack.c.b16 %v4885, %v4877
        %v6134 = vpack.c.b16 %v4886, %v4878
        %v6135 = vpack.c.b16 %v4887, %v4879
        %v6136 = vpack.c.b16 %v4888, %v4880
        %v6137 = vpack.c.b16 %v4889, %v4881
        %v6138 = vpack.c.b16 %v4890, %v4882
        %v6139 = vpack.c.b16 %v4891, %v4883
        %v6140 = vpack.c.b16 %v4892, %v4884
        %v6141 = vpack.c.b16 %v4901, %v4893
        %v6142 = vpack.c.b16 %v4902, %v4894
        %v6143 = vpack.c.b16 %v4903, %v4895
        %v6144 = vpack.c.b16 %v4904, %v4896
        %v6145 = vpack.c.b16 %v4905, %v4897
        %v6146 = vpack.c.b16 %v4906, %v4898
        %v6147 = vpack.c.b16 %v4907, %v4899
        %v6148 = vpack.c.b16 %v4908, %v4900
        %v6149 = vpack.c.b16 %v4917, %v4909
        %v6150 = vpack.c.b16 %v4918, %v4910
        %v6151 = vpack.c.b16 %v4919, %v4911
        %v6152 = vpack.c.b16 %v4920, %v4912
        %v6153 = vpack.c.b16 %v4921, %v4913
        %v6154 = vpack.c.b16 %v4922, %v4914
        %v6155 = vpack.c.b16 %v4923, %v4915
        %v6156 = vpack.c.b16 %v4924, %v4916
        %v6157 = vpack.c.b16 %v4933, %v4925
        %v6158 = vpack.c.b16 %v4934, %v4926
        %v6159 = vpack.c.b16 %v4935, %v4927
        %v6160 = vpack.c.b16 %v4936, %v4928
        %v6161 = vpack.c.b16 %v4937, %v4929
        %v6162 = vpack.c.b16 %v4938, %v4930
        %v6163 = vpack.c.b16 %v4939, %v4931
        %v6164 = vpack.c.b16 %v4940, %v4932
        %v6165 = vpack.c.b16 %v4949, %v4941
        %v6166 = vpack.c.b16 %v4950, %v4942
        %v6167 = vpack.c.b16 %v4951, %v4943
        %v6168 = vpack.c.b16 %v4952, %v4944
        %v6169 = vpack.c.b16 %v4953, %v4945
        %v6170 = vpack.c.b16 %v4954, %v4946
        %v6171 = vpack.c.b16 %v4955, %v4947
        %v6172 = vpack.c.b16 %v4956, %v4948
        %v6173 = vpack.c.b16 %v4965, %v4957
        %v6174 = vpack.c.b16 %v4966, %v4958
        %v6175 = vpack.c.b16 %v4967, %v4959
        %v6176 = vpack.c.b16 %v4968, %v4960
        %v6177 = vpack.c.b16 %v4969, %v4961
        %v6178 = vpack.c.b16 %v4970, %v4962
        %v6179 = vpack.c.b16 %v4971, %v4963
        %v6180 = vpack.c.b16 %v4972, %v4964
        %v6181 = vpack.c.b16 %v4981, %v4973
        %v6182 = vpack.c.b16 %v4982, %v4974
        %v6183 = vpack.c.b16 %v4983, %v4975
        %v6184 = vpack.c.b16 %v4984, %v4976
        %v6185 = vpack.c.b16 %v4985, %v4977
        %v6186 = vpack.c.b16 %v4986, %v4978
        %v6187 = vpack.c.b16 %v4987, %v4979
        %v6188 = vpack.c.b16 %v4988, %v4980
        %v6189 = vpack.c.b16 %v4997, %v4989
        %v6190 = vpack.c.b16 %v4998, %v4990
        %v6191 = vpack.c.b16 %v4999, %v4991
        %v6192 = vpack.c.b16 %v5000, %v4992
        %v6193 = vpack.c.b16 %v5001, %v4993
        %v6194 = vpack.c.b16 %v5002, %v4994
        %v6195 = vpack.c.b16 %v5003, %v4995
        %v6196 = vpack.c.b16 %v5004, %v4996
        %v6197 = vpack.c.b16 %v5013, %v5005
        %v6198 = vpack.c.b16 %v5014, %v5006
        %v6199 = vpack.c.b16 %v5015, %v5007
        %v6200 = vpack.c.b16 %v5016, %v5008
        %v6201 = vpack.c.b16 %v5017, %v5009
        %v6202 = vpack.c.b16 %v5018, %v5010
        %v6203 = vpack.c.b16 %v5019, %v5011
        %v6204 = vpack.c.b16 %v5020, %v5012
        %v6205 = vpack.c.b16 %v5029, %v5021
        %v6206 = vpack.c.b16 %v5030, %v5022
        %v6207 = vpack.c.b16 %v5031, %v5023
        %v6208 = vpack.c.b16 %v5032, %v5024
        %v6209 = vpack.c.b16 %v5033, %v5025
        %v6210 = vpack.c.b16 %v5034, %v5026
        %v6211 = vpack.c.b16 %v5035, %v5027
        %v6212 = vpack.c.b16 %v5036, %v5028
        %v6213 = vpack.c.b16 %v5045, %v5037
        %v6214 = vpack.c.b16 %v5046, %v5038
        %v6215 = vpack.c.b16 %v5047, %v5039
        %v6216 = vpack.c.b16 %v5048, %v5040
        %v6217 = vpack.c.b16 %v5049, %v5041
        %v6218 = vpack.c.b16 %v5050, %v5042
        %v6219 = vpack.c.b16 %v5051, %v5043
        %v6220 = vpack.c.b16 %v5052, %v5044
        %v6221 = vpack.c.b16 %v5061, %v5053
        %v6222 = vpack.c.b16 %v5062, %v5054
        %v6223 = vpack.c.b16 %v5063, %v5055
        %v6224 = vpack.c.b16 %v5064, %v5056
        %v6225 = vpack.c.b16 %v5065, %v5057
        %v6226 = vpack.c.b16 %v5066, %v5058
        %v6227 = vpack.c.b16 %v5067, %v5059
        %v6228 = vpack.c.b16 %v5068, %v5060
        %v6229 = vpack.c.b16 %v5077, %v5069
        %v6230 = vpack.c.b16 %v5078, %v5070
        %v6231 = vpack.c.b16 %v5079, %v5071
        %v6232 = vpack.c.b16 %v5080, %v5072
        %v6233 = vpack.c.b16 %v5081, %v5073
        %v6234 = vpack.c.b16 %v5082, %v5074
        %v6235 = vpack.c.b16 %v5083, %v5075
        %v6236 = vpack.c.b16 %v5084, %v5076
        %v6237 = vpack.c.b16 %v5093, %v5085
        %v6238 = vpack.c.b16 %v5094, %v5086
        %v6239 = vpack.c.b16 %v5095, %v5087
        %v6240 = vpack.c.b16 %v5096, %v5088
        %v6241 = vpack.c.b16 %v5097, %v5089
        %v6242 = vpack.c.b16 %v5098, %v5090
        %v6243 = vpack.c.b16 %v5099, %v5091
        %v6244 = vpack.c.b16 %v5100, %v5092
        %v6245 = vpack.c.b16 %v5109, %v5101
        %v6246 = vpack.c.b16 %v5110, %v5102
        %v6247 = vpack.c.b16 %v5111, %v5103
        %v6248 = vpack.c.b16 %v5112, %v5104
        %v6249 = vpack.c.b16 %v5113, %v5105
        %v6250 = vpack.c.b16 %v5114, %v5106
        %v6251 = vpack.c.b16 %v5115, %v5107
        %v6252 = vpack.c.b16 %v5116, %v5108
        %v6253 = vpack.c.b16 %v5125, %v5117
        %v6254 = vpack.c.b16 %v5126, %v5118
        %v6255 = vpack.c.b16 %v5127, %v5119
        %v6256 = vpack.c.b16 %v5128, %v5120
        %v6257 = vpack.c.b16 %v5129, %v5121
        %v6258 = vpack.c.b16 %v5130, %v5122
        %v6259 = vpack.c.b16 %v5131, %v5123
        %v6260 = vpack.c.b16 %v5132, %v5124
        %v6261 = vpack.c.b16 %v5141, %v5133
        %v6262 = vpack.c.b16 %v5142, %v5134
        %v6263 = vpack.c.b16 %v5143, %v5135
        %v6264 = vpack.c.b16 %v5144, %v5136
        %v6265 = vpack.c.b16 %v5145, %v5137
        %v6266 = vpack.c.b16 %v5146, %v5138
        %v6267 = vpack.c.b16 %v5147, %v5139
        %v6268 = vpack.c.b16 %v5148, %v5140
        %v6269 = vpack.c.b16 %v5157, %v5149
        %v6270 = vpack.c.b16 %v5158, %v5150
        %v6271 = vpack.c.b16 %v5159, %v5151
        %v6272 = vpack.c.b16 %v5160, %v5152
        %v6273 = vpack.c.b16 %v5161, %v5153
        %v6274 = vpack.c.b16 %v5162, %v5154
        %v6275 = vpack.c.b16 %v5163, %v5155
        %v6276 = vpack.c.b16 %v5164, %v5156
        %v6277 = vpack.c.b16 %v5173, %v5165
        %v6278 = vpack.c.b16 %v5174, %v5166
        %v6279 = vpack.c.b16 %v5175, %v5167
        %v6280 = vpack.c.b16 %v5176, %v5168
        %v6281 = vpack.c.b16 %v5177, %v5169
        %v6282 = vpack.c.b16 %v5178, %v5170
        %v6283 = vpack.c.b16 %v5179, %v5171
        %v6284 = vpack.c.b16 %v5180, %v5172
        %v6285 = vpack.c.b16 %v5189, %v5181
        %v6286 = vpack.c.b16 %v5190, %v5182
        %v6287 = vpack.c.b16 %v5191, %v5183
        %v6288 = vpack.c.b16 %v5192, %v5184
        %v6289 = vpack.c.b16 %v5193, %v5185
        %v6290 = vpack.c.b16 %v5194, %v5186
        %v6291 = vpack.c.b16 %v5195, %v5187
        %v6292 = vpack.c.b16 %v5196, %v5188
        %v6293 = vpack.c.b16 %v5205, %v5197
        %v6294 = vpack.c.b16 %v5206, %v5198
        %v6295 = vpack.c.b16 %v5207, %v5199
        %v6296 = vpack.c.b16 %v5208, %v5200
        %v6297 = vpack.c.b16 %v5209, %v5201
        %v6298 = vpack.c.b16 %v5210, %v5202
        %v6299 = vpack.c.b16 %v5211, %v5203
        %v6300 = vpack.c.b16 %v5212, %v5204
        %v6301 = vpack.c.b16 %v5221, %v5213
        %v6302 = vpack.c.b16 %v5222, %v5214
        %v6303 = vpack.c.b16 %v5223, %v5215
        %v6304 = vpack.c.b16 %v5224, %v5216
        %v6305 = vpack.c.b16 %v5225, %v5217
        %v6306 = vpack.c.b16 %v5226, %v5218
        %v6307 = vpack.c.b16 %v5227, %v5219
        %v6308 = vpack.c.b16 %v5228, %v5220
        %v6309 = vpack.c.b16 %v5237, %v5229
        %v6310 = vpack.c.b16 %v5238, %v5230
        %v6311 = vpack.c.b16 %v5239, %v5231
        %v6312 = vpack.c.b16 %v5240, %v5232
        %v6313 = vpack.c.b16 %v5241, %v5233
        %v6314 = vpack.c.b16 %v5242, %v5234
        %v6315 = vpack.c.b16 %v5243, %v5235
        %v6316 = vpack.c.b16 %v5244, %v5236
        %v6317 = vpack.c.b16 %v5253, %v5245
        %v6318 = vpack.c.b16 %v5254, %v5246
        %v6319 = vpack.c.b16 %v5255, %v5247
        %v6320 = vpack.c.b16 %v5256, %v5248
        %v6321 = vpack.c.b16 %v5257, %v5249
        %v6322 = vpack.c.b16 %v5258, %v5250
        %v6323 = vpack.c.b16 %v5259, %v5251
        %v6324 = vpack.c.b16 %v5260, %v5252
        %v6325 = vpack.c.b16 %v5269, %v5261
        %v6326 = vpack.c.b16 %v5270, %v5262
        %v6327 = vpack.c.b16 %v5271, %v5263
        %v6328 = vpack.c.b16 %v5272, %v5264
        %v6329 = vpack.c.b16 %v5273, %v5265
        %v6330 = vpack.c.b16 %v5274, %v5266
        %v6331 = vpack.c.b16 %v5275, %v5267
        %v6332 = vpack.c.b16 %v5276, %v5268
        %v6333 = vpack.c.b16 %v5285, %v5277
        %v6334 = vpack.c.b16 %v5286, %v5278
        %v6335 = vpack.c.b16 %v5287, %v5279
        %v6336 = vpack.c.b16 %v5288, %v5280
        %v6337 = vpack.c.b16 %v5289, %v5281
        %v6338 = vpack.c.b16 %v5290, %v5282
        %v6339 = vpack.c.b16 %v5291, %v5283
        %v6340 = vpack.c.b16 %v5292, %v5284
        %v6341 = vpack.c.b16 %v5301, %v5293
        %v6342 = vpack.c.b16 %v5302, %v5294
        %v6343 = vpack.c.b16 %v5303, %v5295
        %v6344 = vpack.c.b16 %v5304, %v5296
        %v6345 = vpack.c.b16 %v5305, %v5297
        %v6346 = vpack.c.b16 %v5306, %v5298
        %v6347 = vpack.c.b16 %v5307, %v5299
        %v6348 = vpack.c.b16 %v5308, %v5300
        %v6349 = vpack.c.b16 %v5317, %v5309
        %v6350 = vpack.c.b16 %v5318, %v5310
        %v6351 = vpack.c.b16 %v5319, %v5311
        %v6352 = vpack.c.b16 %v5320, %v5312
        %v6353 = vpack.c.b16 %v5321, %v5313
        %v6354 = vpack.c.b16 %v5322, %v5314
        %v6355 = vpack.c.b16 %v5323, %v5315
        %v6356 = vpack.c.b16 %v5324, %v5316
        %v6357 = vpack.c.b16 %v5333, %v5325
        %v6358 = vpack.c.b16 %v5334, %v5326
        %v6359 = vpack.c.b16 %v5335, %v5327
        %v6360 = vpack.c.b16 %v5336, %v5328
        %v6361 = vpack.c.b16 %v5337, %v5329
        %v6362 = vpack.c.b16 %v5338, %v5330
        %v6363 = vpack.c.b16 %v5339, %v5331
        %v6364 = vpack.c.b16 %v5340, %v5332
        %7389 = vmatprep.subr.bf16.mxu0 %v5342
        %7390 = vmatpush1.bf16.msra.mxu0 %v5341
        %7391 = vmatprep.subr.bf16.mxu0 %v5350
        %7392 = vmatpush1.bf16.msra.mxu0 %v5349
        %7393 = vmatprep.subr.bf16.mxu0 %v5358
        %7394 = vmatpush1.bf16.msra.mxu0 %v5357
        %7395 = vmatprep.subr.bf16.mxu0 %v5366
        %7396 = vmatpush1.bf16.msra.mxu0 %v5365
        %7397 = vmatprep.subr.bf16.mxu0 %v5374
        %7398 = vmatpush1.bf16.msra.mxu0 %v5373
        %7399 = vmatprep.subr.bf16.mxu0 %v5382
        %7400 = vmatpush1.bf16.msra.mxu0 %v5381
        %7401 = vmatprep.subr.bf16.mxu0 %v5390
        %7402 = vmatpush1.bf16.msra.mxu0 %v5389
        %7403 = vmatprep.subr.bf16.mxu0 %v5398
        %7404 = vmatpush1.bf16.msra.mxu0 %v5397
        %7405 = vmatprep.subr.bf16.mxu0 %v5406
        %7406 = vmatpush1.bf16.msra.mxu0 %v5405
        %7407 = vmatprep.subr.bf16.mxu0 %v5414
        %7408 = vmatpush1.bf16.msra.mxu0 %v5413
        %7409 = vmatprep.subr.bf16.mxu0 %v5422
        %7410 = vmatpush1.bf16.msra.mxu0 %v5421
        %7411 = vmatprep.subr.bf16.mxu0 %v5430
        %7412 = vmatpush1.bf16.msra.mxu0 %v5429
        %7413 = vmatprep.subr.bf16.mxu0 %v5438
        %7414 = vmatpush1.bf16.msra.mxu0 %v5437
        %7415 = vmatprep.subr.bf16.mxu0 %v5446
        %7416 = vmatpush1.bf16.msra.mxu0 %v5445
        %7417 = vmatprep.subr.bf16.mxu0 %v5454
        %7418 = vmatpush1.bf16.msra.mxu0 %v5453
        %7419 = vmatprep.subr.bf16.mxu0 %v5462
        %7420 = vmatpush1.bf16.msra.mxu0 %v5461
        %7421 = vmatprep.mubr.bf16.mxu0 %v1188
        %7422 = vmatmul.mubr.bf16.gmra.mrb[0].mxu0 %v1187
        %v7423 = vpop.f32.mrb[0].mxu0
        %v7424 = vadd.f32 %v2232, %v7423
        %v7425 = vpop.f32.mrb[0].mxu0
        %v7426 = vadd.f32 %v2236, %v7425
        %v7427 = vpop.f32.mrb[0].mxu0
        %v7428 = vpop.f32.mrb[0].mxu0
        %7429 = vdwg.mxu0
        %7430 = vmatprep.subr.bf16.mxu0 %v5470
        %7431 = vmatpush1.bf16.msra.mxu0 %v5469
        %7432 = vmatprep.subr.bf16.mxu0 %v5478
        %7433 = vmatpush1.bf16.msra.mxu0 %v5477
        %7434 = vmatprep.subr.bf16.mxu0 %v5486
        %7435 = vmatpush1.bf16.msra.mxu0 %v5485
        %7436 = vmatprep.subr.bf16.mxu0 %v5494
        %7437 = vmatpush1.bf16.msra.mxu0 %v5493
        %7438 = vmatprep.subr.bf16.mxu0 %v5502
        %7439 = vmatpush1.bf16.msra.mxu0 %v5501
        %7440 = vmatprep.subr.bf16.mxu0 %v5510
        %7441 = vmatpush1.bf16.msra.mxu0 %v5509
        %7442 = vmatprep.subr.bf16.mxu0 %v5518
        %7443 = vmatpush1.bf16.msra.mxu0 %v5517
        %7444 = vmatprep.subr.bf16.mxu0 %v5526
        %7445 = vmatpush1.bf16.msra.mxu0 %v5525
        %7446 = vmatprep.subr.bf16.mxu0 %v5534
        %7447 = vmatpush1.bf16.msra.mxu0 %v5533
        %7448 = vmatprep.subr.bf16.mxu0 %v5542
        %7449 = vmatpush1.bf16.msra.mxu0 %v5541
        %7450 = vmatprep.subr.bf16.mxu0 %v5550
        %7451 = vmatpush1.bf16.msra.mxu0 %v5549
        %7452 = vmatprep.subr.bf16.mxu0 %v5558
        %7453 = vmatpush1.bf16.msra.mxu0 %v5557
        %7454 = vmatprep.subr.bf16.mxu0 %v5566
        %7455 = vmatpush1.bf16.msra.mxu0 %v5565
        %7456 = vmatprep.subr.bf16.mxu0 %v5574
        %7457 = vmatpush1.bf16.msra.mxu0 %v5573
        %7458 = vmatprep.subr.bf16.mxu0 %v5582
        %7459 = vmatpush1.bf16.msra.mxu0 %v5581
        %7460 = vmatprep.subr.bf16.mxu0 %v5590
        %7461 = vmatpush1.bf16.msra.mxu0 %v5589
        %7462 = vmatprep.mubr.bf16.mxu0 %v1190
        %7463 = vmatmul.mubr.bf16.gmra.mrb[0].mxu0 %v1189
        %v7464 = vpop.f32.mrb[0].mxu0
        %v7465 = vadd.f32 %v7424, %v7464
        %v7466 = vpop.f32.mrb[0].mxu0
        %v7467 = vadd.f32 %v7426, %v7466
        %v7468 = vpop.f32.mrb[0].mxu0
        %v7469 = vpop.f32.mrb[0].mxu0
        %7470 = vdwg.mxu0
        %7471 = vmatprep.subr.bf16.mxu0 %v5598
        %7472 = vmatpush1.bf16.msra.mxu0 %v5597
        %7473 = vmatprep.subr.bf16.mxu0 %v5606
        %7474 = vmatpush1.bf16.msra.mxu0 %v5605
        %7475 = vmatprep.subr.bf16.mxu0 %v5614
        %7476 = vmatpush1.bf16.msra.mxu0 %v5613
        %7477 = vmatprep.subr.bf16.mxu0 %v5622
        %7478 = vmatpush1.bf16.msra.mxu0 %v5621
        %7479 = vmatprep.subr.bf16.mxu0 %v5630
        %7480 = vmatpush1.bf16.msra.mxu0 %v5629
        %7481 = vmatprep.subr.bf16.mxu0 %v5638
        %7482 = vmatpush1.bf16.msra.mxu0 %v5637
        %7483 = vmatprep.subr.bf16.mxu0 %v5646
        %7484 = vmatpush1.bf16.msra.mxu0 %v5645
        %7485 = vmatprep.subr.bf16.mxu0 %v5654
        %7486 = vmatpush1.bf16.msra.mxu0 %v5653
        %7487 = vmatprep.subr.bf16.mxu0 %v5662
        %7488 = vmatpush1.bf16.msra.mxu0 %v5661
        %7489 = vmatprep.subr.bf16.mxu0 %v5670
        %7490 = vmatpush1.bf16.msra.mxu0 %v5669
        %7491 = vmatprep.subr.bf16.mxu0 %v5678
        %7492 = vmatpush1.bf16.msra.mxu0 %v5677
        %7493 = vmatprep.subr.bf16.mxu0 %v5686
        %7494 = vmatpush1.bf16.msra.mxu0 %v5685
        %7495 = vmatprep.subr.bf16.mxu0 %v5694
        %7496 = vmatpush1.bf16.msra.mxu0 %v5693
        %7497 = vmatprep.subr.bf16.mxu0 %v5702
        %7498 = vmatpush1.bf16.msra.mxu0 %v5701
        %7499 = vmatprep.subr.bf16.mxu0 %v5710
        %7500 = vmatpush1.bf16.msra.mxu0 %v5709
        %7501 = vmatprep.subr.bf16.mxu0 %v5718
        %7502 = vmatpush1.bf16.msra.mxu0 %v5717
        %7503 = vmatprep.mubr.bf16.mxu0 %v1192
        %7504 = vmatmul.mubr.bf16.gmra.mrb[0].mxu0 %v1191
        %v7505 = vpop.f32.mrb[0].mxu0
        %v7506 = vadd.f32 %v7465, %v7505
        %v7507 = vpop.f32.mrb[0].mxu0
        %v7508 = vadd.f32 %v7467, %v7507
        %v7509 = vpop.f32.mrb[0].mxu0
        %v7510 = vpop.f32.mrb[0].mxu0
        %7511 = vdwg.mxu0
        %7512 = vmatprep.subr.bf16.mxu0 %v5726
        %7513 = vmatpush1.bf16.msra.mxu0 %v5725
        %7514 = vmatprep.subr.bf16.mxu0 %v5734
        %7515 = vmatpush1.bf16.msra.mxu0 %v5733
        %7516 = vmatprep.subr.bf16.mxu0 %v5742
        %7517 = vmatpush1.bf16.msra.mxu0 %v5741
        %7518 = vmatprep.subr.bf16.mxu0 %v5750
        %7519 = vmatpush1.bf16.msra.mxu0 %v5749
        %7520 = vmatprep.subr.bf16.mxu0 %v5758
        %7521 = vmatpush1.bf16.msra.mxu0 %v5757
        %7522 = vmatprep.subr.bf16.mxu0 %v5766
        %7523 = vmatpush1.bf16.msra.mxu0 %v5765
        %7524 = vmatprep.subr.bf16.mxu0 %v5774
        %7525 = vmatpush1.bf16.msra.mxu0 %v5773
        %7526 = vmatprep.subr.bf16.mxu0 %v5782
        %7527 = vmatpush1.bf16.msra.mxu0 %v5781
        %7528 = vmatprep.subr.bf16.mxu0 %v5790
        %7529 = vmatpush1.bf16.msra.mxu0 %v5789
        %7530 = vmatprep.subr.bf16.mxu0 %v5798
        %7531 = vmatpush1.bf16.msra.mxu0 %v5797
        %7532 = vmatprep.subr.bf16.mxu0 %v5806
        %7533 = vmatpush1.bf16.msra.mxu0 %v5805
        %7534 = vmatprep.subr.bf16.mxu0 %v5814
        %7535 = vmatpush1.bf16.msra.mxu0 %v5813
        %7536 = vmatprep.subr.bf16.mxu0 %v5822
        %7537 = vmatpush1.bf16.msra.mxu0 %v5821
        %7538 = vmatprep.subr.bf16.mxu0 %v5830
        %7539 = vmatpush1.bf16.msra.mxu0 %v5829
        %7540 = vmatprep.subr.bf16.mxu0 %v5838
        %7541 = vmatpush1.bf16.msra.mxu0 %v5837
        %7542 = vmatprep.subr.bf16.mxu0 %v5846
        %7543 = vmatpush1.bf16.msra.mxu0 %v5845
        %7544 = vmatprep.mubr.bf16.mxu0 %v1194
        %7545 = vmatmul.mubr.bf16.gmra.mrb[0].mxu0 %v1193
        %v7546 = vpop.f32.mrb[0].mxu0
        %v7547 = vadd.f32 %v7506, %v7546
        %v7548 = vpop.f32.mrb[0].mxu0
        %v7549 = vadd.f32 %v7508, %v7548
        %v7550 = vpop.f32.mrb[0].mxu0
        %v7551 = vpop.f32.mrb[0].mxu0
        %7552 = vdwg.mxu0
        %7553 = vmatprep.subr.bf16.mxu0 %v5854
        %7554 = vmatpush1.bf16.msra.mxu0 %v5853
        %7555 = vmatprep.subr.bf16.mxu0 %v5862
        %7556 = vmatpush1.bf16.msra.mxu0 %v5861
        %7557 = vmatprep.subr.bf16.mxu0 %v5870
        %7558 = vmatpush1.bf16.msra.mxu0 %v5869
        %7559 = vmatprep.subr.bf16.mxu0 %v5878
        %7560 = vmatpush1.bf16.msra.mxu0 %v5877
        %7561 = vmatprep.subr.bf16.mxu0 %v5886
        %7562 = vmatpush1.bf16.msra.mxu0 %v5885
        %7563 = vmatprep.subr.bf16.mxu0 %v5894
        %7564 = vmatpush1.bf16.msra.mxu0 %v5893
        %7565 = vmatprep.subr.bf16.mxu0 %v5902
        %7566 = vmatpush1.bf16.msra.mxu0 %v5901
        %7567 = vmatprep.subr.bf16.mxu0 %v5910
        %7568 = vmatpush1.bf16.msra.mxu0 %v5909
        %7569 = vmatprep.subr.bf16.mxu0 %v5918
        %7570 = vmatpush1.bf16.msra.mxu0 %v5917
        %7571 = vmatprep.subr.bf16.mxu0 %v5926
        %7572 = vmatpush1.bf16.msra.mxu0 %v5925
        %7573 = vmatprep.subr.bf16.mxu0 %v5934
        %7574 = vmatpush1.bf16.msra.mxu0 %v5933
        %7575 = vmatprep.subr.bf16.mxu0 %v5942
        %7576 = vmatpush1.bf16.msra.mxu0 %v5941
        %7577 = vmatprep.subr.bf16.mxu0 %v5950
        %7578 = vmatpush1.bf16.msra.mxu0 %v5949
        %7579 = vmatprep.subr.bf16.mxu0 %v5958
        %7580 = vmatpush1.bf16.msra.mxu0 %v5957
        %7581 = vmatprep.subr.bf16.mxu0 %v5966
        %7582 = vmatpush1.bf16.msra.mxu0 %v5965
        %7583 = vmatprep.subr.bf16.mxu0 %v5974
        %7584 = vmatpush1.bf16.msra.mxu0 %v5973
        %7585 = vmatprep.mubr.bf16.mxu0 %v1196
        %7586 = vmatmul.mubr.bf16.gmra.mrb[0].mxu0 %v1195
        %v7587 = vpop.f32.mrb[0].mxu0
        %v7588 = vadd.f32 %v7547, %v7587
        %v7589 = vpop.f32.mrb[0].mxu0
        %v7590 = vadd.f32 %v7549, %v7589
        %v7591 = vpop.f32.mrb[0].mxu0
        %v7592 = vpop.f32.mrb[0].mxu0
        %7593 = vdwg.mxu0
        %7594 = vmatprep.subr.bf16.mxu0 %v5982
        %7595 = vmatpush1.bf16.msra.mxu0 %v5981
        %7596 = vmatprep.subr.bf16.mxu0 %v5990
        %7597 = vmatpush1.bf16.msra.mxu0 %v5989
        %7598 = vmatprep.subr.bf16.mxu0 %v5998
        %7599 = vmatpush1.bf16.msra.mxu0 %v5997
        %7600 = vmatprep.subr.bf16.mxu0 %v6006
        %7601 = vmatpush1.bf16.msra.mxu0 %v6005
        %7602 = vmatprep.subr.bf16.mxu0 %v6014
        %7603 = vmatpush1.bf16.msra.mxu0 %v6013
        %7604 = vmatprep.subr.bf16.mxu0 %v6022
        %7605 = vmatpush1.bf16.msra.mxu0 %v6021
        %7606 = vmatprep.subr.bf16.mxu0 %v6030
        %7607 = vmatpush1.bf16.msra.mxu0 %v6029
        %7608 = vmatprep.subr.bf16.mxu0 %v6038
        %7609 = vmatpush1.bf16.msra.mxu0 %v6037
        %7610 = vmatprep.subr.bf16.mxu0 %v6046
        %7611 = vmatpush1.bf16.msra.mxu0 %v6045
        %7612 = vmatprep.subr.bf16.mxu0 %v6054
        %7613 = vmatpush1.bf16.msra.mxu0 %v6053
        %7614 = vmatprep.subr.bf16.mxu0 %v6062
        %7615 = vmatpush1.bf16.msra.mxu0 %v6061
        %7616 = vmatprep.subr.bf16.mxu0 %v6070
        %7617 = vmatpush1.bf16.msra.mxu0 %v6069
        %7618 = vmatprep.subr.bf16.mxu0 %v6078
        %7619 = vmatpush1.bf16.msra.mxu0 %v6077
        %7620 = vmatprep.subr.bf16.mxu0 %v6086
        %7621 = vmatpush1.bf16.msra.mxu0 %v6085
        %7622 = vmatprep.subr.bf16.mxu0 %v6094
        %7623 = vmatpush1.bf16.msra.mxu0 %v6093
        %7624 = vmatprep.subr.bf16.mxu0 %v6102
        %7625 = vmatpush1.bf16.msra.mxu0 %v6101
        %7626 = vmatprep.mubr.bf16.mxu0 %v1198
        %7627 = vmatmul.mubr.bf16.gmra.mrb[0].mxu0 %v1197
        %v7628 = vpop.f32.mrb[0].mxu0
        %v7629 = vadd.f32 %v7588, %v7628
        %v7630 = vpop.f32.mrb[0].mxu0
        %v7631 = vadd.f32 %v7590, %v7630
        %v7632 = vpop.f32.mrb[0].mxu0
        %v7633 = vpop.f32.mrb[0].mxu0
        %7634 = vdwg.mxu0
        %7635 = vmatprep.subr.bf16.mxu0 %v6110
        %7636 = vmatpush1.bf16.msra.mxu0 %v6109
        %7637 = vmatprep.subr.bf16.mxu0 %v6118
        %7638 = vmatpush1.bf16.msra.mxu0 %v6117
        %7639 = vmatprep.subr.bf16.mxu0 %v6126
        %7640 = vmatpush1.bf16.msra.mxu0 %v6125
        %7641 = vmatprep.subr.bf16.mxu0 %v6134
        %7642 = vmatpush1.bf16.msra.mxu0 %v6133
        %7643 = vmatprep.subr.bf16.mxu0 %v6142
        %7644 = vmatpush1.bf16.msra.mxu0 %v6141
        %7645 = vmatprep.subr.bf16.mxu0 %v6150
        %7646 = vmatpush1.bf16.msra.mxu0 %v6149
        %7647 = vmatprep.subr.bf16.mxu0 %v6158
        %7648 = vmatpush1.bf16.msra.mxu0 %v6157
        %7649 = vmatprep.subr.bf16.mxu0 %v6166
        %7650 = vmatpush1.bf16.msra.mxu0 %v6165
        %7651 = vmatprep.subr.bf16.mxu0 %v6174
        %7652 = vmatpush1.bf16.msra.mxu0 %v6173
        %7653 = vmatprep.subr.bf16.mxu0 %v6182
        %7654 = vmatpush1.bf16.msra.mxu0 %v6181
        %7655 = vmatprep.subr.bf16.mxu0 %v6190
        %7656 = vmatpush1.bf16.msra.mxu0 %v6189
        %7657 = vmatprep.subr.bf16.mxu0 %v6198
        %7658 = vmatpush1.bf16.msra.mxu0 %v6197
        %7659 = vmatprep.subr.bf16.mxu0 %v6206
        %7660 = vmatpush1.bf16.msra.mxu0 %v6205
        %7661 = vmatprep.subr.bf16.mxu0 %v6214
        %7662 = vmatpush1.bf16.msra.mxu0 %v6213
        %7663 = vmatprep.subr.bf16.mxu0 %v6222
        %7664 = vmatpush1.bf16.msra.mxu0 %v6221
        %7665 = vmatprep.subr.bf16.mxu0 %v6230
        %7666 = vmatpush1.bf16.msra.mxu0 %v6229
        %7667 = vmatprep.mubr.bf16.mxu0 %v1200
        %7668 = vmatmul.mubr.bf16.gmra.mrb[0].mxu0 %v1199
        %v7669 = vpop.f32.mrb[0].mxu0
        %v7670 = vadd.f32 %v7629, %v7669
        %v7671 = vpop.f32.mrb[0].mxu0
        %v7672 = vadd.f32 %v7631, %v7671
        %v7673 = vpop.f32.mrb[0].mxu0
        %v7674 = vpop.f32.mrb[0].mxu0
        %7675 = vdwg.mxu0
        %7676 = vmatprep.subr.bf16.mxu0 %v6238
        %7677 = vmatpush1.bf16.msra.mxu0 %v6237
        %7678 = vmatprep.subr.bf16.mxu0 %v6246
        %7679 = vmatpush1.bf16.msra.mxu0 %v6245
        %7680 = vmatprep.subr.bf16.mxu0 %v6254
        %7681 = vmatpush1.bf16.msra.mxu0 %v6253
        %7682 = vmatprep.subr.bf16.mxu0 %v6262
        %7683 = vmatpush1.bf16.msra.mxu0 %v6261
        %7684 = vmatprep.subr.bf16.mxu0 %v6270
        %7685 = vmatpush1.bf16.msra.mxu0 %v6269
        %7686 = vmatprep.subr.bf16.mxu0 %v6278
        %7687 = vmatpush1.bf16.msra.mxu0 %v6277
        %7688 = vmatprep.subr.bf16.mxu0 %v6286
        %7689 = vmatpush1.bf16.msra.mxu0 %v6285
        %7690 = vmatprep.subr.bf16.mxu0 %v6294
        %7691 = vmatpush1.bf16.msra.mxu0 %v6293
        %7692 = vmatprep.subr.bf16.mxu0 %v6302
        %7693 = vmatpush1.bf16.msra.mxu0 %v6301
        %7694 = vmatprep.subr.bf16.mxu0 %v6310
        %7695 = vmatpush1.bf16.msra.mxu0 %v6309
        %7696 = vmatprep.subr.bf16.mxu0 %v6318
        %7697 = vmatpush1.bf16.msra.mxu0 %v6317
        %7698 = vmatprep.subr.bf16.mxu0 %v6326
        %7699 = vmatpush1.bf16.msra.mxu0 %v6325
        %7700 = vmatprep.subr.bf16.mxu0 %v6334
        %7701 = vmatpush1.bf16.msra.mxu0 %v6333
        %7702 = vmatprep.subr.bf16.mxu0 %v6342
        %7703 = vmatpush1.bf16.msra.mxu0 %v6341
        %7704 = vmatprep.subr.bf16.mxu0 %v6350
        %7705 = vmatpush1.bf16.msra.mxu0 %v6349
        %7706 = vmatprep.subr.bf16.mxu0 %v6358
        %7707 = vmatpush1.bf16.msra.mxu0 %v6357
        %7708 = vmatprep.mubr.bf16.mxu0 %v1202
        %7709 = vmatmul.mubr.bf16.gmra.mrb[0].mxu0 %v1201
        %v7710 = vpop.f32.mrb[0].mxu0
        %v7711 = vadd.f32 %v7670, %v7710
        %v7712 = vpop.f32.mrb[0].mxu0
        %v7713 = vadd.f32 %v7672, %v7712
        %v7714 = vpop.f32.mrb[0].mxu0
        %v7715 = vpop.f32.mrb[0].mxu0
        %7716 = vdwg.mxu0
        %7717 = vmatprep.subr.bf16.mxu0 %v5344
        %7718 = vmatpush1.bf16.msra.mxu0 %v5343
        %7719 = vmatprep.subr.bf16.mxu0 %v5352
        %7720 = vmatpush1.bf16.msra.mxu0 %v5351
        %7721 = vmatprep.subr.bf16.mxu0 %v5360
        %7722 = vmatpush1.bf16.msra.mxu0 %v5359
        %7723 = vmatprep.subr.bf16.mxu0 %v5368
        %7724 = vmatpush1.bf16.msra.mxu0 %v5367
        %7725 = vmatprep.subr.bf16.mxu0 %v5376
        %7726 = vmatpush1.bf16.msra.mxu0 %v5375
        %7727 = vmatprep.subr.bf16.mxu0 %v5384
        %7728 = vmatpush1.bf16.msra.mxu0 %v5383
        %7729 = vmatprep.subr.bf16.mxu0 %v5392
        %7730 = vmatpush1.bf16.msra.mxu0 %v5391
        %7731 = vmatprep.subr.bf16.mxu0 %v5400
        %7732 = vmatpush1.bf16.msra.mxu0 %v5399
        %7733 = vmatprep.subr.bf16.mxu0 %v5408
        %7734 = vmatpush1.bf16.msra.mxu0 %v5407
        %7735 = vmatprep.subr.bf16.mxu0 %v5416
        %7736 = vmatpush1.bf16.msra.mxu0 %v5415
        %7737 = vmatprep.subr.bf16.mxu0 %v5424
        %7738 = vmatpush1.bf16.msra.mxu0 %v5423
        %7739 = vmatprep.subr.bf16.mxu0 %v5432
        %7740 = vmatpush1.bf16.msra.mxu0 %v5431
        %7741 = vmatprep.subr.bf16.mxu0 %v5440
        %7742 = vmatpush1.bf16.msra.mxu0 %v5439
        %7743 = vmatprep.subr.bf16.mxu0 %v5448
        %7744 = vmatpush1.bf16.msra.mxu0 %v5447
        %7745 = vmatprep.subr.bf16.mxu0 %v5456
        %7746 = vmatpush1.bf16.msra.mxu0 %v5455
        %7747 = vmatprep.subr.bf16.mxu0 %v5464
        %7748 = vmatpush1.bf16.msra.mxu0 %v5463
        %7749 = vmatprep.mubr.bf16.mxu0 %v1188
        %7750 = vmatmul.mubr.bf16.gmra.mrb[0].mxu0 %v1187
        %v7751 = vpop.f32.mrb[0].mxu0
        %v7752 = vadd.f32 %v2240, %v7751
        %v7753 = vpop.f32.mrb[0].mxu0
        %v7754 = vadd.f32 %v2244, %v7753
        %v7755 = vpop.f32.mrb[0].mxu0
        %v7756 = vpop.f32.mrb[0].mxu0
        %7757 = vdwg.mxu0
        %7758 = vmatprep.subr.bf16.mxu0 %v5472
        %7759 = vmatpush1.bf16.msra.mxu0 %v5471
        %7760 = vmatprep.subr.bf16.mxu0 %v5480
        %7761 = vmatpush1.bf16.msra.mxu0 %v5479
        %7762 = vmatprep.subr.bf16.mxu0 %v5488
        %7763 = vmatpush1.bf16.msra.mxu0 %v5487
        %7764 = vmatprep.subr.bf16.mxu0 %v5496
        %7765 = vmatpush1.bf16.msra.mxu0 %v5495
        %7766 = vmatprep.subr.bf16.mxu0 %v5504
        %7767 = vmatpush1.bf16.msra.mxu0 %v5503
        %7768 = vmatprep.subr.bf16.mxu0 %v5512
        %7769 = vmatpush1.bf16.msra.mxu0 %v5511
        %7770 = vmatprep.subr.bf16.mxu0 %v5520
        %7771 = vmatpush1.bf16.msra.mxu0 %v5519
        %7772 = vmatprep.subr.bf16.mxu0 %v5528
        %7773 = vmatpush1.bf16.msra.mxu0 %v5527
        %7774 = vmatprep.subr.bf16.mxu0 %v5536
        %7775 = vmatpush1.bf16.msra.mxu0 %v5535
        %7776 = vmatprep.subr.bf16.mxu0 %v5544
        %7777 = vmatpush1.bf16.msra.mxu0 %v5543
        %7778 = vmatprep.subr.bf16.mxu0 %v5552
        %7779 = vmatpush1.bf16.msra.mxu0 %v5551
        %7780 = vmatprep.subr.bf16.mxu0 %v5560
        %7781 = vmatpush1.bf16.msra.mxu0 %v5559
        %7782 = vmatprep.subr.bf16.mxu0 %v5568
        %7783 = vmatpush1.bf16.msra.mxu0 %v5567
        %7784 = vmatprep.subr.bf16.mxu0 %v5576
        %7785 = vmatpush1.bf16.msra.mxu0 %v5575
        %7786 = vmatprep.subr.bf16.mxu0 %v5584
        %7787 = vmatpush1.bf16.msra.mxu0 %v5583
        %7788 = vmatprep.subr.bf16.mxu0 %v5592
        %7789 = vmatpush1.bf16.msra.mxu0 %v5591
        %7790 = vmatprep.mubr.bf16.mxu0 %v1190
        %7791 = vmatmul.mubr.bf16.gmra.mrb[0].mxu0 %v1189
        %v7792 = vpop.f32.mrb[0].mxu0
        %v7793 = vadd.f32 %v7752, %v7792
        %v7794 = vpop.f32.mrb[0].mxu0
        %v7795 = vadd.f32 %v7754, %v7794
        %v7796 = vpop.f32.mrb[0].mxu0
        %v7797 = vpop.f32.mrb[0].mxu0
        %7798 = vdwg.mxu0
        %7799 = vmatprep.subr.bf16.mxu0 %v5600
        %7800 = vmatpush1.bf16.msra.mxu0 %v5599
        %7801 = vmatprep.subr.bf16.mxu0 %v5608
        %7802 = vmatpush1.bf16.msra.mxu0 %v5607
        %7803 = vmatprep.subr.bf16.mxu0 %v5616
        %7804 = vmatpush1.bf16.msra.mxu0 %v5615
        %7805 = vmatprep.subr.bf16.mxu0 %v5624
        %7806 = vmatpush1.bf16.msra.mxu0 %v5623
        %7807 = vmatprep.subr.bf16.mxu0 %v5632
        %7808 = vmatpush1.bf16.msra.mxu0 %v5631
        %7809 = vmatprep.subr.bf16.mxu0 %v5640
        %7810 = vmatpush1.bf16.msra.mxu0 %v5639
        %7811 = vmatprep.subr.bf16.mxu0 %v5648
        %7812 = vmatpush1.bf16.msra.mxu0 %v5647
        %7813 = vmatprep.subr.bf16.mxu0 %v5656
        %7814 = vmatpush1.bf16.msra.mxu0 %v5655
        %7815 = vmatprep.subr.bf16.mxu0 %v5664
        %7816 = vmatpush1.bf16.msra.mxu0 %v5663
        %7817 = vmatprep.subr.bf16.mxu0 %v5672
        %7818 = vmatpush1.bf16.msra.mxu0 %v5671
        %7819 = vmatprep.subr.bf16.mxu0 %v5680
        %7820 = vmatpush1.bf16.msra.mxu0 %v5679
        %7821 = vmatprep.subr.bf16.mxu0 %v5688
        %7822 = vmatpush1.bf16.msra.mxu0 %v5687
        %7823 = vmatprep.subr.bf16.mxu0 %v5696
        %7824 = vmatpush1.bf16.msra.mxu0 %v5695
        %7825 = vmatprep.subr.bf16.mxu0 %v5704
        %7826 = vmatpush1.bf16.msra.mxu0 %v5703
        %7827 = vmatprep.subr.bf16.mxu0 %v5712
        %7828 = vmatpush1.bf16.msra.mxu0 %v5711
        %7829 = vmatprep.subr.bf16.mxu0 %v5720
        %7830 = vmatpush1.bf16.msra.mxu0 %v5719
        %7831 = vmatprep.mubr.bf16.mxu0 %v1192
        %7832 = vmatmul.mubr.bf16.gmra.mrb[0].mxu0 %v1191
        %v7833 = vpop.f32.mrb[0].mxu0
        %v7834 = vadd.f32 %v7793, %v7833
        %v7835 = vpop.f32.mrb[0].mxu0
        %v7836 = vadd.f32 %v7795, %v7835
        %v7837 = vpop.f32.mrb[0].mxu0
        %v7838 = vpop.f32.mrb[0].mxu0
        %7839 = vdwg.mxu0
        %7840 = vmatprep.subr.bf16.mxu0 %v5728
        %7841 = vmatpush1.bf16.msra.mxu0 %v5727
        %7842 = vmatprep.subr.bf16.mxu0 %v5736
        %7843 = vmatpush1.bf16.msra.mxu0 %v5735
        %7844 = vmatprep.subr.bf16.mxu0 %v5744
        %7845 = vmatpush1.bf16.msra.mxu0 %v5743
        %7846 = vmatprep.subr.bf16.mxu0 %v5752
        %7847 = vmatpush1.bf16.msra.mxu0 %v5751
        %7848 = vmatprep.subr.bf16.mxu0 %v5760
        %7849 = vmatpush1.bf16.msra.mxu0 %v5759
        %7850 = vmatprep.subr.bf16.mxu0 %v5768
        %7851 = vmatpush1.bf16.msra.mxu0 %v5767
        %7852 = vmatprep.subr.bf16.mxu0 %v5776
        %7853 = vmatpush1.bf16.msra.mxu0 %v5775
        %7854 = vmatprep.subr.bf16.mxu0 %v5784
        %7855 = vmatpush1.bf16.msra.mxu0 %v5783
        %7856 = vmatprep.subr.bf16.mxu0 %v5792
        %7857 = vmatpush1.bf16.msra.mxu0 %v5791
        %7858 = vmatprep.subr.bf16.mxu0 %v5800
        %7859 = vmatpush1.bf16.msra.mxu0 %v5799
        %7860 = vmatprep.subr.bf16.mxu0 %v5808
        %7861 = vmatpush1.bf16.msra.mxu0 %v5807
        %7862 = vmatprep.subr.bf16.mxu0 %v5816
        %7863 = vmatpush1.bf16.msra.mxu0 %v5815
        %7864 = vmatprep.subr.bf16.mxu0 %v5824
        %7865 = vmatpush1.bf16.msra.mxu0 %v5823
        %7866 = vmatprep.subr.bf16.mxu0 %v5832
        %7867 = vmatpush1.bf16.msra.mxu0 %v5831
        %7868 = vmatprep.subr.bf16.mxu0 %v5840
        %7869 = vmatpush1.bf16.msra.mxu0 %v5839
        %7870 = vmatprep.subr.bf16.mxu0 %v5848
        %7871 = vmatpush1.bf16.msra.mxu0 %v5847
        %7872 = vmatprep.mubr.bf16.mxu0 %v1194
        %7873 = vmatmul.mubr.bf16.gmra.mrb[0].mxu0 %v1193
        %v7874 = vpop.f32.mrb[0].mxu0
        %v7875 = vadd.f32 %v7834, %v7874
        %v7876 = vpop.f32.mrb[0].mxu0
        %v7877 = vadd.f32 %v7836, %v7876
        %v7878 = vpop.f32.mrb[0].mxu0
        %v7879 = vpop.f32.mrb[0].mxu0
        %7880 = vdwg.mxu0
        %7881 = vmatprep.subr.bf16.mxu0 %v5856
        %7882 = vmatpush1.bf16.msra.mxu0 %v5855
        %7883 = vmatprep.subr.bf16.mxu0 %v5864
        %7884 = vmatpush1.bf16.msra.mxu0 %v5863
        %7885 = vmatprep.subr.bf16.mxu0 %v5872
        %7886 = vmatpush1.bf16.msra.mxu0 %v5871
        %7887 = vmatprep.subr.bf16.mxu0 %v5880
        %7888 = vmatpush1.bf16.msra.mxu0 %v5879
        %7889 = vmatprep.subr.bf16.mxu0 %v5888
        %7890 = vmatpush1.bf16.msra.mxu0 %v5887
        %7891 = vmatprep.subr.bf16.mxu0 %v5896
        %7892 = vmatpush1.bf16.msra.mxu0 %v5895
        %7893 = vmatprep.subr.bf16.mxu0 %v5904
        %7894 = vmatpush1.bf16.msra.mxu0 %v5903
        %7895 = vmatprep.subr.bf16.mxu0 %v5912
        %7896 = vmatpush1.bf16.msra.mxu0 %v5911
        %7897 = vmatprep.subr.bf16.mxu0 %v5920
        %7898 = vmatpush1.bf16.msra.mxu0 %v5919
        %7899 = vmatprep.subr.bf16.mxu0 %v5928
        %7900 = vmatpush1.bf16.msra.mxu0 %v5927
        %7901 = vmatprep.subr.bf16.mxu0 %v5936
        %7902 = vmatpush1.bf16.msra.mxu0 %v5935
        %7903 = vmatprep.subr.bf16.mxu0 %v5944
        %7904 = vmatpush1.bf16.msra.mxu0 %v5943
        %7905 = vmatprep.subr.bf16.mxu0 %v5952
        %7906 = vmatpush1.bf16.msra.mxu0 %v5951
        %7907 = vmatprep.subr.bf16.mxu0 %v5960
        %7908 = vmatpush1.bf16.msra.mxu0 %v5959
        %7909 = vmatprep.subr.bf16.mxu0 %v5968
        %7910 = vmatpush1.bf16.msra.mxu0 %v5967
        %7911 = vmatprep.subr.bf16.mxu0 %v5976
        %7912 = vmatpush1.bf16.msra.mxu0 %v5975
        %7913 = vmatprep.mubr.bf16.mxu0 %v1196
        %7914 = vmatmul.mubr.bf16.gmra.mrb[0].mxu0 %v1195
        %v7915 = vpop.f32.mrb[0].mxu0
        %v7916 = vadd.f32 %v7875, %v7915
        %v7917 = vpop.f32.mrb[0].mxu0
        %v7918 = vadd.f32 %v7877, %v7917
        %v7919 = vpop.f32.mrb[0].mxu0
        %v7920 = vpop.f32.mrb[0].mxu0
        %7921 = vdwg.mxu0
        %7922 = vmatprep.subr.bf16.mxu0 %v5984
        %7923 = vmatpush1.bf16.msra.mxu0 %v5983
        %7924 = vmatprep.subr.bf16.mxu0 %v5992
        %7925 = vmatpush1.bf16.msra.mxu0 %v5991
        %7926 = vmatprep.subr.bf16.mxu0 %v6000
        %7927 = vmatpush1.bf16.msra.mxu0 %v5999
        %7928 = vmatprep.subr.bf16.mxu0 %v6008
        %7929 = vmatpush1.bf16.msra.mxu0 %v6007
        %7930 = vmatprep.subr.bf16.mxu0 %v6016
        %7931 = vmatpush1.bf16.msra.mxu0 %v6015
        %7932 = vmatprep.subr.bf16.mxu0 %v6024
        %7933 = vmatpush1.bf16.msra.mxu0 %v6023
        %7934 = vmatprep.subr.bf16.mxu0 %v6032
        %7935 = vmatpush1.bf16.msra.mxu0 %v6031
        %7936 = vmatprep.subr.bf16.mxu0 %v6040
        %7937 = vmatpush1.bf16.msra.mxu0 %v6039
        %7938 = vmatprep.subr.bf16.mxu0 %v6048
        %7939 = vmatpush1.bf16.msra.mxu0 %v6047
        %7940 = vmatprep.subr.bf16.mxu0 %v6056
        %7941 = vmatpush1.bf16.msra.mxu0 %v6055
        %7942 = vmatprep.subr.bf16.mxu0 %v6064
        %7943 = vmatpush1.bf16.msra.mxu0 %v6063
        %7944 = vmatprep.subr.bf16.mxu0 %v6072
        %7945 = vmatpush1.bf16.msra.mxu0 %v6071
        %7946 = vmatprep.subr.bf16.mxu0 %v6080
        %7947 = vmatpush1.bf16.msra.mxu0 %v6079
        %7948 = vmatprep.subr.bf16.mxu0 %v6088
        %7949 = vmatpush1.bf16.msra.mxu0 %v6087
        %7950 = vmatprep.subr.bf16.mxu0 %v6096
        %7951 = vmatpush1.bf16.msra.mxu0 %v6095
        %7952 = vmatprep.subr.bf16.mxu0 %v6104
        %7953 = vmatpush1.bf16.msra.mxu0 %v6103
        %7954 = vmatprep.mubr.bf16.mxu0 %v1198
        %7955 = vmatmul.mubr.bf16.gmra.mrb[0].mxu0 %v1197
        %v7956 = vpop.f32.mrb[0].mxu0
        %v7957 = vadd.f32 %v7916, %v7956
        %v7958 = vpop.f32.mrb[0].mxu0
        %v7959 = vadd.f32 %v7918, %v7958
        %v7960 = vpop.f32.mrb[0].mxu0
        %v7961 = vpop.f32.mrb[0].mxu0
        %7962 = vdwg.mxu0
        %7963 = vmatprep.subr.bf16.mxu0 %v6112
        %7964 = vmatpush1.bf16.msra.mxu0 %v6111
        %7965 = vmatprep.subr.bf16.mxu0 %v6120
        %7966 = vmatpush1.bf16.msra.mxu0 %v6119
        %7967 = vmatprep.subr.bf16.mxu0 %v6128
        %7968 = vmatpush1.bf16.msra.mxu0 %v6127
        %7969 = vmatprep.subr.bf16.mxu0 %v6136
        %7970 = vmatpush1.bf16.msra.mxu0 %v6135
        %7971 = vmatprep.subr.bf16.mxu0 %v6144
        %7972 = vmatpush1.bf16.msra.mxu0 %v6143
        %7973 = vmatprep.subr.bf16.mxu0 %v6152
        %7974 = vmatpush1.bf16.msra.mxu0 %v6151
        %7975 = vmatprep.subr.bf16.mxu0 %v6160
        %7976 = vmatpush1.bf16.msra.mxu0 %v6159
        %7977 = vmatprep.subr.bf16.mxu0 %v6168
        %7978 = vmatpush1.bf16.msra.mxu0 %v6167
        %7979 = vmatprep.subr.bf16.mxu0 %v6176
        %7980 = vmatpush1.bf16.msra.mxu0 %v6175
        %7981 = vmatprep.subr.bf16.mxu0 %v6184
        %7982 = vmatpush1.bf16.msra.mxu0 %v6183
        %7983 = vmatprep.subr.bf16.mxu0 %v6192
        %7984 = vmatpush1.bf16.msra.mxu0 %v6191
        %7985 = vmatprep.subr.bf16.mxu0 %v6200
        %7986 = vmatpush1.bf16.msra.mxu0 %v6199
        %7987 = vmatprep.subr.bf16.mxu0 %v6208
        %7988 = vmatpush1.bf16.msra.mxu0 %v6207
        %7989 = vmatprep.subr.bf16.mxu0 %v6216
        %7990 = vmatpush1.bf16.msra.mxu0 %v6215
        %7991 = vmatprep.subr.bf16.mxu0 %v6224
        %7992 = vmatpush1.bf16.msra.mxu0 %v6223
        %7993 = vmatprep.subr.bf16.mxu0 %v6232
        %7994 = vmatpush1.bf16.msra.mxu0 %v6231
        %7995 = vmatprep.mubr.bf16.mxu0 %v1200
        %7996 = vmatmul.mubr.bf16.gmra.mrb[0].mxu0 %v1199
        %v7997 = vpop.f32.mrb[0].mxu0
        %v7998 = vadd.f32 %v7957, %v7997
        %v7999 = vpop.f32.mrb[0].mxu0
        %v8000 = vadd.f32 %v7959, %v7999
        %v8001 = vpop.f32.mrb[0].mxu0
        %v8002 = vpop.f32.mrb[0].mxu0
        %8003 = vdwg.mxu0
        %8004 = vmatprep.subr.bf16.mxu0 %v6240
        %8005 = vmatpush1.bf16.msra.mxu0 %v6239
        %8006 = vmatprep.subr.bf16.mxu0 %v6248
        %8007 = vmatpush1.bf16.msra.mxu0 %v6247
        %8008 = vmatprep.subr.bf16.mxu0 %v6256
        %8009 = vmatpush1.bf16.msra.mxu0 %v6255
        %8010 = vmatprep.subr.bf16.mxu0 %v6264
        %8011 = vmatpush1.bf16.msra.mxu0 %v6263
        %8012 = vmatprep.subr.bf16.mxu0 %v6272
        %8013 = vmatpush1.bf16.msra.mxu0 %v6271
        %8014 = vmatprep.subr.bf16.mxu0 %v6280
        %8015 = vmatpush1.bf16.msra.mxu0 %v6279
        %8016 = vmatprep.subr.bf16.mxu0 %v6288
        %8017 = vmatpush1.bf16.msra.mxu0 %v6287
        %8018 = vmatprep.subr.bf16.mxu0 %v6296
        %8019 = vmatpush1.bf16.msra.mxu0 %v6295
        %8020 = vmatprep.subr.bf16.mxu0 %v6304
        %8021 = vmatpush1.bf16.msra.mxu0 %v6303
        %8022 = vmatprep.subr.bf16.mxu0 %v6312
        %8023 = vmatpush1.bf16.msra.mxu0 %v6311
        %8024 = vmatprep.subr.bf16.mxu0 %v6320
        %8025 = vmatpush1.bf16.msra.mxu0 %v6319
        %8026 = vmatprep.subr.bf16.mxu0 %v6328
        %8027 = vmatpush1.bf16.msra.mxu0 %v6327
        %8028 = vmatprep.subr.bf16.mxu0 %v6336
        %8029 = vmatpush1.bf16.msra.mxu0 %v6335
        %8030 = vmatprep.subr.bf16.mxu0 %v6344
        %8031 = vmatpush1.bf16.msra.mxu0 %v6343
        %8032 = vmatprep.subr.bf16.mxu0 %v6352
        %8033 = vmatpush1.bf16.msra.mxu0 %v6351
        %8034 = vmatprep.subr.bf16.mxu0 %v6360
        %8035 = vmatpush1.bf16.msra.mxu0 %v6359
        %8036 = vmatprep.mubr.bf16.mxu0 %v1202
        %8037 = vmatmul.mubr.bf16.gmra.mrb[0].mxu0 %v1201
        %v8038 = vpop.f32.mrb[0].mxu0
        %v8039 = vadd.f32 %v7998, %v8038
        %v8040 = vpop.f32.mrb[0].mxu0
        %v8041 = vadd.f32 %v8000, %v8040
        %v8042 = vpop.f32.mrb[0].mxu0
        %v8043 = vpop.f32.mrb[0].mxu0
        %8044 = vdwg.mxu0
        %8045 = vmatprep.subr.bf16.mxu0 %v5346
        %8046 = vmatpush1.bf16.msra.mxu0 %v5345
        %8047 = vmatprep.subr.bf16.mxu0 %v5354
        %8048 = vmatpush1.bf16.msra.mxu0 %v5353
        %8049 = vmatprep.subr.bf16.mxu0 %v5362
        %8050 = vmatpush1.bf16.msra.mxu0 %v5361
        %8051 = vmatprep.subr.bf16.mxu0 %v5370
        %8052 = vmatpush1.bf16.msra.mxu0 %v5369
        %8053 = vmatprep.subr.bf16.mxu0 %v5378
        %8054 = vmatpush1.bf16.msra.mxu0 %v5377
        %8055 = vmatprep.subr.bf16.mxu0 %v5386
        %8056 = vmatpush1.bf16.msra.mxu0 %v5385
        %8057 = vmatprep.subr.bf16.mxu0 %v5394
        %8058 = vmatpush1.bf16.msra.mxu0 %v5393
        %8059 = vmatprep.subr.bf16.mxu0 %v5402
        %8060 = vmatpush1.bf16.msra.mxu0 %v5401
        %8061 = vmatprep.subr.bf16.mxu0 %v5410
        %8062 = vmatpush1.bf16.msra.mxu0 %v5409
        %8063 = vmatprep.subr.bf16.mxu0 %v5418
        %8064 = vmatpush1.bf16.msra.mxu0 %v5417
        %8065 = vmatprep.subr.bf16.mxu0 %v5426
        %8066 = vmatpush1.bf16.msra.mxu0 %v5425
        %8067 = vmatprep.subr.bf16.mxu0 %v5434
        %8068 = vmatpush1.bf16.msra.mxu0 %v5433
        %8069 = vmatprep.subr.bf16.mxu0 %v5442
        %8070 = vmatpush1.bf16.msra.mxu0 %v5441
        %8071 = vmatprep.subr.bf16.mxu0 %v5450
        %8072 = vmatpush1.bf16.msra.mxu0 %v5449
        %8073 = vmatprep.subr.bf16.mxu0 %v5458
        %8074 = vmatpush1.bf16.msra.mxu0 %v5457
        %8075 = vmatprep.subr.bf16.mxu0 %v5466
        %8076 = vmatpush1.bf16.msra.mxu0 %v5465
        %8077 = vmatprep.mubr.bf16.mxu0 %v1188
        %8078 = vmatmul.mubr.bf16.gmra.mrb[0].mxu0 %v1187
        %v8079 = vpop.f32.mrb[0].mxu0
        %v8080 = vadd.f32 %v2248, %v8079
        %v8081 = vpop.f32.mrb[0].mxu0
        %v8082 = vadd.f32 %v2252, %v8081
        %v8083 = vpop.f32.mrb[0].mxu0
        %v8084 = vpop.f32.mrb[0].mxu0
        %8085 = vdwg.mxu0
        %8086 = vmatprep.subr.bf16.mxu0 %v5474
        %8087 = vmatpush1.bf16.msra.mxu0 %v5473
        %8088 = vmatprep.subr.bf16.mxu0 %v5482
        %8089 = vmatpush1.bf16.msra.mxu0 %v5481
        %8090 = vmatprep.subr.bf16.mxu0 %v5490
        %8091 = vmatpush1.bf16.msra.mxu0 %v5489
        %8092 = vmatprep.subr.bf16.mxu0 %v5498
        %8093 = vmatpush1.bf16.msra.mxu0 %v5497
        %8094 = vmatprep.subr.bf16.mxu0 %v5506
        %8095 = vmatpush1.bf16.msra.mxu0 %v5505
        %8096 = vmatprep.subr.bf16.mxu0 %v5514
        %8097 = vmatpush1.bf16.msra.mxu0 %v5513
        %8098 = vmatprep.subr.bf16.mxu0 %v5522
        %8099 = vmatpush1.bf16.msra.mxu0 %v5521
        %8100 = vmatprep.subr.bf16.mxu0 %v5530
        %8101 = vmatpush1.bf16.msra.mxu0 %v5529
        %8102 = vmatprep.subr.bf16.mxu0 %v5538
        %8103 = vmatpush1.bf16.msra.mxu0 %v5537
        %8104 = vmatprep.subr.bf16.mxu0 %v5546
        %8105 = vmatpush1.bf16.msra.mxu0 %v5545
        %8106 = vmatprep.subr.bf16.mxu0 %v5554
        %8107 = vmatpush1.bf16.msra.mxu0 %v5553
        %8108 = vmatprep.subr.bf16.mxu0 %v5562
        %8109 = vmatpush1.bf16.msra.mxu0 %v5561
        %8110 = vmatprep.subr.bf16.mxu0 %v5570
        %8111 = vmatpush1.bf16.msra.mxu0 %v5569
        %8112 = vmatprep.subr.bf16.mxu0 %v5578
        %8113 = vmatpush1.bf16.msra.mxu0 %v5577
        %8114 = vmatprep.subr.bf16.mxu0 %v5586
        %8115 = vmatpush1.bf16.msra.mxu0 %v5585
        %8116 = vmatprep.subr.bf16.mxu0 %v5594
        %8117 = vmatpush1.bf16.msra.mxu0 %v5593
        %8118 = vmatprep.mubr.bf16.mxu0 %v1190
        %8119 = vmatmul.mubr.bf16.gmra.mrb[0].mxu0 %v1189
        %v8120 = vpop.f32.mrb[0].mxu0
        %v8121 = vadd.f32 %v8080, %v8120
        %v8122 = vpop.f32.mrb[0].mxu0
        %v8123 = vadd.f32 %v8082, %v8122
        %v8124 = vpop.f32.mrb[0].mxu0
        %v8125 = vpop.f32.mrb[0].mxu0
        %8126 = vdwg.mxu0
        %8127 = vmatprep.subr.bf16.mxu0 %v5602
        %8128 = vmatpush1.bf16.msra.mxu0 %v5601
        %8129 = vmatprep.subr.bf16.mxu0 %v5610
        %8130 = vmatpush1.bf16.msra.mxu0 %v5609
        %8131 = vmatprep.subr.bf16.mxu0 %v5618
        %8132 = vmatpush1.bf16.msra.mxu0 %v5617
        %8133 = vmatprep.subr.bf16.mxu0 %v5626
        %8134 = vmatpush1.bf16.msra.mxu0 %v5625
        %8135 = vmatprep.subr.bf16.mxu0 %v5634
        %8136 = vmatpush1.bf16.msra.mxu0 %v5633
        %8137 = vmatprep.subr.bf16.mxu0 %v5642
        %8138 = vmatpush1.bf16.msra.mxu0 %v5641
        %8139 = vmatprep.subr.bf16.mxu0 %v5650
        %8140 = vmatpush1.bf16.msra.mxu0 %v5649
        %8141 = vmatprep.subr.bf16.mxu0 %v5658
        %8142 = vmatpush1.bf16.msra.mxu0 %v5657
        %8143 = vmatprep.subr.bf16.mxu0 %v5666
        %8144 = vmatpush1.bf16.msra.mxu0 %v5665
        %8145 = vmatprep.subr.bf16.mxu0 %v5674
        %8146 = vmatpush1.bf16.msra.mxu0 %v5673
        %8147 = vmatprep.subr.bf16.mxu0 %v5682
        %8148 = vmatpush1.bf16.msra.mxu0 %v5681
        %8149 = vmatprep.subr.bf16.mxu0 %v5690
        %8150 = vmatpush1.bf16.msra.mxu0 %v5689
        %8151 = vmatprep.subr.bf16.mxu0 %v5698
        %8152 = vmatpush1.bf16.msra.mxu0 %v5697
        %8153 = vmatprep.subr.bf16.mxu0 %v5706
        %8154 = vmatpush1.bf16.msra.mxu0 %v5705
        %8155 = vmatprep.subr.bf16.mxu0 %v5714
        %8156 = vmatpush1.bf16.msra.mxu0 %v5713
        %8157 = vmatprep.subr.bf16.mxu0 %v5722
        %8158 = vmatpush1.bf16.msra.mxu0 %v5721
        %8159 = vmatprep.mubr.bf16.mxu0 %v1192
        %8160 = vmatmul.mubr.bf16.gmra.mrb[0].mxu0 %v1191
        %v8161 = vpop.f32.mrb[0].mxu0
        %v8162 = vadd.f32 %v8121, %v8161
        %v8163 = vpop.f32.mrb[0].mxu0
        %v8164 = vadd.f32 %v8123, %v8163
        %v8165 = vpop.f32.mrb[0].mxu0
        %v8166 = vpop.f32.mrb[0].mxu0
        %8167 = vdwg.mxu0
        %8168 = vmatprep.subr.bf16.mxu0 %v5730
        %8169 = vmatpush1.bf16.msra.mxu0 %v5729
        %8170 = vmatprep.subr.bf16.mxu0 %v5738
        %8171 = vmatpush1.bf16.msra.mxu0 %v5737
        %8172 = vmatprep.subr.bf16.mxu0 %v5746
        %8173 = vmatpush1.bf16.msra.mxu0 %v5745
        %8174 = vmatprep.subr.bf16.mxu0 %v5754
        %8175 = vmatpush1.bf16.msra.mxu0 %v5753
        %8176 = vmatprep.subr.bf16.mxu0 %v5762
        %8177 = vmatpush1.bf16.msra.mxu0 %v5761
        %8178 = vmatprep.subr.bf16.mxu0 %v5770
        %8179 = vmatpush1.bf16.msra.mxu0 %v5769
        %8180 = vmatprep.subr.bf16.mxu0 %v5778
        %8181 = vmatpush1.bf16.msra.mxu0 %v5777
        %8182 = vmatprep.subr.bf16.mxu0 %v5786
        %8183 = vmatpush1.bf16.msra.mxu0 %v5785
        %8184 = vmatprep.subr.bf16.mxu0 %v5794
        %8185 = vmatpush1.bf16.msra.mxu0 %v5793
        %8186 = vmatprep.subr.bf16.mxu0 %v5802
        %8187 = vmatpush1.bf16.msra.mxu0 %v5801
        %8188 = vmatprep.subr.bf16.mxu0 %v5810
        %8189 = vmatpush1.bf16.msra.mxu0 %v5809
        %8190 = vmatprep.subr.bf16.mxu0 %v5818
        %8191 = vmatpush1.bf16.msra.mxu0 %v5817
        %8192 = vmatprep.subr.bf16.mxu0 %v5826
        %8193 = vmatpush1.bf16.msra.mxu0 %v5825
        %8194 = vmatprep.subr.bf16.mxu0 %v5834
        %8195 = vmatpush1.bf16.msra.mxu0 %v5833
        %8196 = vmatprep.subr.bf16.mxu0 %v5842
        %8197 = vmatpush1.bf16.msra.mxu0 %v5841
        %8198 = vmatprep.subr.bf16.mxu0 %v5850
        %8199 = vmatpush1.bf16.msra.mxu0 %v5849
        %8200 = vmatprep.mubr.bf16.mxu0 %v1194
        %8201 = vmatmul.mubr.bf16.gmra.mrb[0].mxu0 %v1193
        %v8202 = vpop.f32.mrb[0].mxu0
        %v8203 = vadd.f32 %v8162, %v8202
        %v8204 = vpop.f32.mrb[0].mxu0
        %v8205 = vadd.f32 %v8164, %v8204
        %v8206 = vpop.f32.mrb[0].mxu0
        %v8207 = vpop.f32.mrb[0].mxu0
        %8208 = vdwg.mxu0
        %8209 = vmatprep.subr.bf16.mxu0 %v5858
        %8210 = vmatpush1.bf16.msra.mxu0 %v5857
        %8211 = vmatprep.subr.bf16.mxu0 %v5866
        %8212 = vmatpush1.bf16.msra.mxu0 %v5865
        %8213 = vmatprep.subr.bf16.mxu0 %v5874
        %8214 = vmatpush1.bf16.msra.mxu0 %v5873
        %8215 = vmatprep.subr.bf16.mxu0 %v5882
        %8216 = vmatpush1.bf16.msra.mxu0 %v5881
        %8217 = vmatprep.subr.bf16.mxu0 %v5890
        %8218 = vmatpush1.bf16.msra.mxu0 %v5889
        %8219 = vmatprep.subr.bf16.mxu0 %v5898
        %8220 = vmatpush1.bf16.msra.mxu0 %v5897
        %8221 = vmatprep.subr.bf16.mxu0 %v5906
        %8222 = vmatpush1.bf16.msra.mxu0 %v5905
        %8223 = vmatprep.subr.bf16.mxu0 %v5914
        %8224 = vmatpush1.bf16.msra.mxu0 %v5913
        %8225 = vmatprep.subr.bf16.mxu0 %v5922
        %8226 = vmatpush1.bf16.msra.mxu0 %v5921
        %8227 = vmatprep.subr.bf16.mxu0 %v5930
        %8228 = vmatpush1.bf16.msra.mxu0 %v5929
        %8229 = vmatprep.subr.bf16.mxu0 %v5938
        %8230 = vmatpush1.bf16.msra.mxu0 %v5937
        %8231 = vmatprep.subr.bf16.mxu0 %v5946
        %8232 = vmatpush1.bf16.msra.mxu0 %v5945
        %8233 = vmatprep.subr.bf16.mxu0 %v5954
        %8234 = vmatpush1.bf16.msra.mxu0 %v5953
        %8235 = vmatprep.subr.bf16.mxu0 %v5962
        %8236 = vmatpush1.bf16.msra.mxu0 %v5961
        %8237 = vmatprep.subr.bf16.mxu0 %v5970
        %8238 = vmatpush1.bf16.msra.mxu0 %v5969
        %8239 = vmatprep.subr.bf16.mxu0 %v5978
        %8240 = vmatpush1.bf16.msra.mxu0 %v5977
        %8241 = vmatprep.mubr.bf16.mxu0 %v1196
        %8242 = vmatmul.mubr.bf16.gmra.mrb[0].mxu0 %v1195
        %v8243 = vpop.f32.mrb[0].mxu0
        %v8244 = vadd.f32 %v8203, %v8243
        %v8245 = vpop.f32.mrb[0].mxu0
        %v8246 = vadd.f32 %v8205, %v8245
        %v8247 = vpop.f32.mrb[0].mxu0
        %v8248 = vpop.f32.mrb[0].mxu0
        %8249 = vdwg.mxu0
        %8250 = vmatprep.subr.bf16.mxu0 %v5986
        %8251 = vmatpush1.bf16.msra.mxu0 %v5985
        %8252 = vmatprep.subr.bf16.mxu0 %v5994
        %8253 = vmatpush1.bf16.msra.mxu0 %v5993
        %8254 = vmatprep.subr.bf16.mxu0 %v6002
        %8255 = vmatpush1.bf16.msra.mxu0 %v6001
        %8256 = vmatprep.subr.bf16.mxu0 %v6010
        %8257 = vmatpush1.bf16.msra.mxu0 %v6009
        %8258 = vmatprep.subr.bf16.mxu0 %v6018
        %8259 = vmatpush1.bf16.msra.mxu0 %v6017
        %8260 = vmatprep.subr.bf16.mxu0 %v6026
        %8261 = vmatpush1.bf16.msra.mxu0 %v6025
        %8262 = vmatprep.subr.bf16.mxu0 %v6034
        %8263 = vmatpush1.bf16.msra.mxu0 %v6033
        %8264 = vmatprep.subr.bf16.mxu0 %v6042
        %8265 = vmatpush1.bf16.msra.mxu0 %v6041
        %8266 = vmatprep.subr.bf16.mxu0 %v6050
        %8267 = vmatpush1.bf16.msra.mxu0 %v6049
        %8268 = vmatprep.subr.bf16.mxu0 %v6058
        %8269 = vmatpush1.bf16.msra.mxu0 %v6057
        %8270 = vmatprep.subr.bf16.mxu0 %v6066
        %8271 = vmatpush1.bf16.msra.mxu0 %v6065
        %8272 = vmatprep.subr.bf16.mxu0 %v6074
        %8273 = vmatpush1.bf16.msra.mxu0 %v6073
        %8274 = vmatprep.subr.bf16.mxu0 %v6082
        %8275 = vmatpush1.bf16.msra.mxu0 %v6081
        %8276 = vmatprep.subr.bf16.mxu0 %v6090
        %8277 = vmatpush1.bf16.msra.mxu0 %v6089
        %8278 = vmatprep.subr.bf16.mxu0 %v6098
        %8279 = vmatpush1.bf16.msra.mxu0 %v6097
        %8280 = vmatprep.subr.bf16.mxu0 %v6106
        %8281 = vmatpush1.bf16.msra.mxu0 %v6105
        %8282 = vmatprep.mubr.bf16.mxu0 %v1198
        %8283 = vmatmul.mubr.bf16.gmra.mrb[0].mxu0 %v1197
        %v8284 = vpop.f32.mrb[0].mxu0
        %v8285 = vadd.f32 %v8244, %v8284
        %v8286 = vpop.f32.mrb[0].mxu0
        %v8287 = vadd.f32 %v8246, %v8286
        %v8288 = vpop.f32.mrb[0].mxu0
        %v8289 = vpop.f32.mrb[0].mxu0
        %8290 = vdwg.mxu0
        %8291 = vmatprep.subr.bf16.mxu0 %v6114
        %8292 = vmatpush1.bf16.msra.mxu0 %v6113
        %8293 = vmatprep.subr.bf16.mxu0 %v6122
        %8294 = vmatpush1.bf16.msra.mxu0 %v6121
        %8295 = vmatprep.subr.bf16.mxu0 %v6130
        %8296 = vmatpush1.bf16.msra.mxu0 %v6129
        %8297 = vmatprep.subr.bf16.mxu0 %v6138
        %8298 = vmatpush1.bf16.msra.mxu0 %v6137
        %8299 = vmatprep.subr.bf16.mxu0 %v6146
        %8300 = vmatpush1.bf16.msra.mxu0 %v6145
        %8301 = vmatprep.subr.bf16.mxu0 %v6154
        %8302 = vmatpush1.bf16.msra.mxu0 %v6153
        %8303 = vmatprep.subr.bf16.mxu0 %v6162
        %8304 = vmatpush1.bf16.msra.mxu0 %v6161
        %8305 = vmatprep.subr.bf16.mxu0 %v6170
        %8306 = vmatpush1.bf16.msra.mxu0 %v6169
        %8307 = vmatprep.subr.bf16.mxu0 %v6178
        %8308 = vmatpush1.bf16.msra.mxu0 %v6177
        %8309 = vmatprep.subr.bf16.mxu0 %v6186
        %8310 = vmatpush1.bf16.msra.mxu0 %v6185
        %8311 = vmatprep.subr.bf16.mxu0 %v6194
        %8312 = vmatpush1.bf16.msra.mxu0 %v6193
        %8313 = vmatprep.subr.bf16.mxu0 %v6202
        %8314 = vmatpush1.bf16.msra.mxu0 %v6201
        %8315 = vmatprep.subr.bf16.mxu0 %v6210
        %8316 = vmatpush1.bf16.msra.mxu0 %v6209
        %8317 = vmatprep.subr.bf16.mxu0 %v6218
        %8318 = vmatpush1.bf16.msra.mxu0 %v6217
        %8319 = vmatprep.subr.bf16.mxu0 %v6226
        %8320 = vmatpush1.bf16.msra.mxu0 %v6225
        %8321 = vmatprep.subr.bf16.mxu0 %v6234
        %8322 = vmatpush1.bf16.msra.mxu0 %v6233
        %8323 = vmatprep.mubr.bf16.mxu0 %v1200
        %8324 = vmatmul.mubr.bf16.gmra.mrb[0].mxu0 %v1199
        %v8325 = vpop.f32.mrb[0].mxu0
        %v8326 = vadd.f32 %v8285, %v8325
        %v8327 = vpop.f32.mrb[0].mxu0
        %v8328 = vadd.f32 %v8287, %v8327
        %v8329 = vpop.f32.mrb[0].mxu0
        %v8330 = vpop.f32.mrb[0].mxu0
        %8331 = vdwg.mxu0
        %8332 = vmatprep.subr.bf16.mxu0 %v6242
        %8333 = vmatpush1.bf16.msra.mxu0 %v6241
        %8334 = vmatprep.subr.bf16.mxu0 %v6250
        %8335 = vmatpush1.bf16.msra.mxu0 %v6249
        %8336 = vmatprep.subr.bf16.mxu0 %v6258
        %8337 = vmatpush1.bf16.msra.mxu0 %v6257
        %8338 = vmatprep.subr.bf16.mxu0 %v6266
        %8339 = vmatpush1.bf16.msra.mxu0 %v6265
        %8340 = vmatprep.subr.bf16.mxu0 %v6274
        %8341 = vmatpush1.bf16.msra.mxu0 %v6273
        %8342 = vmatprep.subr.bf16.mxu0 %v6282
        %8343 = vmatpush1.bf16.msra.mxu0 %v6281
        %8344 = vmatprep.subr.bf16.mxu0 %v6290
        %8345 = vmatpush1.bf16.msra.mxu0 %v6289
        %8346 = vmatprep.subr.bf16.mxu0 %v6298
        %8347 = vmatpush1.bf16.msra.mxu0 %v6297
        %8348 = vmatprep.subr.bf16.mxu0 %v6306
        %8349 = vmatpush1.bf16.msra.mxu0 %v6305
        %8350 = vmatprep.subr.bf16.mxu0 %v6314
        %8351 = vmatpush1.bf16.msra.mxu0 %v6313
        %8352 = vmatprep.subr.bf16.mxu0 %v6322
        %8353 = vmatpush1.bf16.msra.mxu0 %v6321
        %8354 = vmatprep.subr.bf16.mxu0 %v6330
        %8355 = vmatpush1.bf16.msra.mxu0 %v6329
        %8356 = vmatprep.subr.bf16.mxu0 %v6338
        %8357 = vmatpush1.bf16.msra.mxu0 %v6337
        %8358 = vmatprep.subr.bf16.mxu0 %v6346
        %8359 = vmatpush1.bf16.msra.mxu0 %v6345
        %8360 = vmatprep.subr.bf16.mxu0 %v6354
        %8361 = vmatpush1.bf16.msra.mxu0 %v6353
        %8362 = vmatprep.subr.bf16.mxu0 %v6362
        %8363 = vmatpush1.bf16.msra.mxu0 %v6361
        %8364 = vmatprep.mubr.bf16.mxu0 %v1202
        %8365 = vmatmul.mubr.bf16.gmra.mrb[0].mxu0 %v1201
        %v8366 = vpop.f32.mrb[0].mxu0
        %v8367 = vadd.f32 %v8326, %v8366
        %v8368 = vpop.f32.mrb[0].mxu0
        %v8369 = vadd.f32 %v8328, %v8368
        %v8370 = vpop.f32.mrb[0].mxu0
        %v8371 = vpop.f32.mrb[0].mxu0
        %8372 = vdwg.mxu0
        %8373 = vmatprep.subr.bf16.mxu0 %v5348
        %8374 = vmatpush1.bf16.msra.mxu0 %v5347
        %8375 = vmatprep.subr.bf16.mxu0 %v5356
        %8376 = vmatpush1.bf16.msra.mxu0 %v5355
        %8377 = vmatprep.subr.bf16.mxu0 %v5364
        %8378 = vmatpush1.bf16.msra.mxu0 %v5363
        %8379 = vmatprep.subr.bf16.mxu0 %v5372
        %8380 = vmatpush1.bf16.msra.mxu0 %v5371
        %8381 = vmatprep.subr.bf16.mxu0 %v5380
        %8382 = vmatpush1.bf16.msra.mxu0 %v5379
        %8383 = vmatprep.subr.bf16.mxu0 %v5388
        %8384 = vmatpush1.bf16.msra.mxu0 %v5387
        %8385 = vmatprep.subr.bf16.mxu0 %v5396
        %8386 = vmatpush1.bf16.msra.mxu0 %v5395
        %8387 = vmatprep.subr.bf16.mxu0 %v5404
        %8388 = vmatpush1.bf16.msra.mxu0 %v5403
        %8389 = vmatprep.subr.bf16.mxu0 %v5412
        %8390 = vmatpush1.bf16.msra.mxu0 %v5411
        %8391 = vmatprep.subr.bf16.mxu0 %v5420
        %8392 = vmatpush1.bf16.msra.mxu0 %v5419
        %8393 = vmatprep.subr.bf16.mxu0 %v5428
        %8394 = vmatpush1.bf16.msra.mxu0 %v5427
        %8395 = vmatprep.subr.bf16.mxu0 %v5436
        %8396 = vmatpush1.bf16.msra.mxu0 %v5435
        %8397 = vmatprep.subr.bf16.mxu0 %v5444
        %8398 = vmatpush1.bf16.msra.mxu0 %v5443
        %8399 = vmatprep.subr.bf16.mxu0 %v5452
        %8400 = vmatpush1.bf16.msra.mxu0 %v5451
        %8401 = vmatprep.subr.bf16.mxu0 %v5460
        %8402 = vmatpush1.bf16.msra.mxu0 %v5459
        %8403 = vmatprep.subr.bf16.mxu0 %v5468
        %8404 = vmatpush1.bf16.msra.mxu0 %v5467
        %8405 = vmatprep.mubr.bf16.mxu0 %v1188
        %8406 = vmatmul.mubr.bf16.gmra.mrb[0].mxu0 %v1187
        %v8407 = vpop.f32.mrb[0].mxu0
        %v8408 = vadd.f32 %v2256, %v8407
        %v8409 = vpop.f32.mrb[0].mxu0
        %v8410 = vadd.f32 %v2260, %v8409
        %v8411 = vpop.f32.mrb[0].mxu0
        %v8412 = vpop.f32.mrb[0].mxu0
        %8413 = vdwg.mxu0
        %8414 = vmatprep.subr.bf16.mxu0 %v5476
        %8415 = vmatpush1.bf16.msra.mxu0 %v5475
        %8416 = vmatprep.subr.bf16.mxu0 %v5484
        %8417 = vmatpush1.bf16.msra.mxu0 %v5483
        %8418 = vmatprep.subr.bf16.mxu0 %v5492
        %8419 = vmatpush1.bf16.msra.mxu0 %v5491
        %8420 = vmatprep.subr.bf16.mxu0 %v5500
        %8421 = vmatpush1.bf16.msra.mxu0 %v5499
        %8422 = vmatprep.subr.bf16.mxu0 %v5508
        %8423 = vmatpush1.bf16.msra.mxu0 %v5507
        %8424 = vmatprep.subr.bf16.mxu0 %v5516
        %8425 = vmatpush1.bf16.msra.mxu0 %v5515
        %8426 = vmatprep.subr.bf16.mxu0 %v5524
        %8427 = vmatpush1.bf16.msra.mxu0 %v5523
        %8428 = vmatprep.subr.bf16.mxu0 %v5532
        %8429 = vmatpush1.bf16.msra.mxu0 %v5531
        %8430 = vmatprep.subr.bf16.mxu0 %v5540
        %8431 = vmatpush1.bf16.msra.mxu0 %v5539
        %8432 = vmatprep.subr.bf16.mxu0 %v5548
        %8433 = vmatpush1.bf16.msra.mxu0 %v5547
        %8434 = vmatprep.subr.bf16.mxu0 %v5556
        %8435 = vmatpush1.bf16.msra.mxu0 %v5555
        %8436 = vmatprep.subr.bf16.mxu0 %v5564
        %8437 = vmatpush1.bf16.msra.mxu0 %v5563
        %8438 = vmatprep.subr.bf16.mxu0 %v5572
        %8439 = vmatpush1.bf16.msra.mxu0 %v5571
        %8440 = vmatprep.subr.bf16.mxu0 %v5580
        %8441 = vmatpush1.bf16.msra.mxu0 %v5579
        %8442 = vmatprep.subr.bf16.mxu0 %v5588
        %8443 = vmatpush1.bf16.msra.mxu0 %v5587
        %8444 = vmatprep.subr.bf16.mxu0 %v5596
        %8445 = vmatpush1.bf16.msra.mxu0 %v5595
        %8446 = vmatprep.mubr.bf16.mxu0 %v1190
        %8447 = vmatmul.mubr.bf16.gmra.mrb[0].mxu0 %v1189
        %v8448 = vpop.f32.mrb[0].mxu0
        %v8449 = vadd.f32 %v8408, %v8448
        %v8450 = vpop.f32.mrb[0].mxu0
        %v8451 = vadd.f32 %v8410, %v8450
        %v8452 = vpop.f32.mrb[0].mxu0
        %v8453 = vpop.f32.mrb[0].mxu0
        %8454 = vdwg.mxu0
        %8455 = vmatprep.subr.bf16.mxu0 %v5604
        %8456 = vmatpush1.bf16.msra.mxu0 %v5603
        %8457 = vmatprep.subr.bf16.mxu0 %v5612
        %8458 = vmatpush1.bf16.msra.mxu0 %v5611
        %8459 = vmatprep.subr.bf16.mxu0 %v5620
        %8460 = vmatpush1.bf16.msra.mxu0 %v5619
        %8461 = vmatprep.subr.bf16.mxu0 %v5628
        %8462 = vmatpush1.bf16.msra.mxu0 %v5627
        %8463 = vmatprep.subr.bf16.mxu0 %v5636
        %8464 = vmatpush1.bf16.msra.mxu0 %v5635
        %8465 = vmatprep.subr.bf16.mxu0 %v5644
        %8466 = vmatpush1.bf16.msra.mxu0 %v5643
        %8467 = vmatprep.subr.bf16.mxu0 %v5652
        %8468 = vmatpush1.bf16.msra.mxu0 %v5651
        %8469 = vmatprep.subr.bf16.mxu0 %v5660
        %8470 = vmatpush1.bf16.msra.mxu0 %v5659
        %8471 = vmatprep.subr.bf16.mxu0 %v5668
        %8472 = vmatpush1.bf16.msra.mxu0 %v5667
        %8473 = vmatprep.subr.bf16.mxu0 %v5676
        %8474 = vmatpush1.bf16.msra.mxu0 %v5675
        %8475 = vmatprep.subr.bf16.mxu0 %v5684
        %8476 = vmatpush1.bf16.msra.mxu0 %v5683
        %8477 = vmatprep.subr.bf16.mxu0 %v5692
        %8478 = vmatpush1.bf16.msra.mxu0 %v5691
        %8479 = vmatprep.subr.bf16.mxu0 %v5700
        %8480 = vmatpush1.bf16.msra.mxu0 %v5699
        %8481 = vmatprep.subr.bf16.mxu0 %v5708
        %8482 = vmatpush1.bf16.msra.mxu0 %v5707
        %8483 = vmatprep.subr.bf16.mxu0 %v5716
        %8484 = vmatpush1.bf16.msra.mxu0 %v5715
        %8485 = vmatprep.subr.bf16.mxu0 %v5724
        %8486 = vmatpush1.bf16.msra.mxu0 %v5723
        %8487 = vmatprep.mubr.bf16.mxu0 %v1192
        %8488 = vmatmul.mubr.bf16.gmra.mrb[0].mxu0 %v1191
        %v8489 = vpop.f32.mrb[0].mxu0
        %v8490 = vadd.f32 %v8449, %v8489
        %v8491 = vpop.f32.mrb[0].mxu0
        %v8492 = vadd.f32 %v8451, %v8491
        %v8493 = vpop.f32.mrb[0].mxu0
        %v8494 = vpop.f32.mrb[0].mxu0
        %8495 = vdwg.mxu0
        %8496 = vmatprep.subr.bf16.mxu0 %v5732
        %8497 = vmatpush1.bf16.msra.mxu0 %v5731
        %8498 = vmatprep.subr.bf16.mxu0 %v5740
        %8499 = vmatpush1.bf16.msra.mxu0 %v5739
        %8500 = vmatprep.subr.bf16.mxu0 %v5748
        %8501 = vmatpush1.bf16.msra.mxu0 %v5747
        %8502 = vmatprep.subr.bf16.mxu0 %v5756
        %8503 = vmatpush1.bf16.msra.mxu0 %v5755
        %8504 = vmatprep.subr.bf16.mxu0 %v5764
        %8505 = vmatpush1.bf16.msra.mxu0 %v5763
        %8506 = vmatprep.subr.bf16.mxu0 %v5772
        %8507 = vmatpush1.bf16.msra.mxu0 %v5771
        %8508 = vmatprep.subr.bf16.mxu0 %v5780
        %8509 = vmatpush1.bf16.msra.mxu0 %v5779
        %8510 = vmatprep.subr.bf16.mxu0 %v5788
        %8511 = vmatpush1.bf16.msra.mxu0 %v5787
        %8512 = vmatprep.subr.bf16.mxu0 %v5796
        %8513 = vmatpush1.bf16.msra.mxu0 %v5795
        %8514 = vmatprep.subr.bf16.mxu0 %v5804
        %8515 = vmatpush1.bf16.msra.mxu0 %v5803
        %8516 = vmatprep.subr.bf16.mxu0 %v5812
        %8517 = vmatpush1.bf16.msra.mxu0 %v5811
        %8518 = vmatprep.subr.bf16.mxu0 %v5820
        %8519 = vmatpush1.bf16.msra.mxu0 %v5819
        %8520 = vmatprep.subr.bf16.mxu0 %v5828
        %8521 = vmatpush1.bf16.msra.mxu0 %v5827
        %8522 = vmatprep.subr.bf16.mxu0 %v5836
        %8523 = vmatpush1.bf16.msra.mxu0 %v5835
        %8524 = vmatprep.subr.bf16.mxu0 %v5844
        %8525 = vmatpush1.bf16.msra.mxu0 %v5843
        %8526 = vmatprep.subr.bf16.mxu0 %v5852
        %8527 = vmatpush1.bf16.msra.mxu0 %v5851
        %8528 = vmatprep.mubr.bf16.mxu0 %v1194
        %8529 = vmatmul.mubr.bf16.gmra.mrb[0].mxu0 %v1193
        %v8530 = vpop.f32.mrb[0].mxu0
        %v8531 = vadd.f32 %v8490, %v8530
        %v8532 = vpop.f32.mrb[0].mxu0
        %v8533 = vadd.f32 %v8492, %v8532
        %v8534 = vpop.f32.mrb[0].mxu0
        %v8535 = vpop.f32.mrb[0].mxu0
        %8536 = vdwg.mxu0
        %8537 = vmatprep.subr.bf16.mxu0 %v5860
        %8538 = vmatpush1.bf16.msra.mxu0 %v5859
        %8539 = vmatprep.subr.bf16.mxu0 %v5868
        %8540 = vmatpush1.bf16.msra.mxu0 %v5867
        %8541 = vmatprep.subr.bf16.mxu0 %v5876
        %8542 = vmatpush1.bf16.msra.mxu0 %v5875
        %8543 = vmatprep.subr.bf16.mxu0 %v5884
        %8544 = vmatpush1.bf16.msra.mxu0 %v5883
        %8545 = vmatprep.subr.bf16.mxu0 %v5892
        %8546 = vmatpush1.bf16.msra.mxu0 %v5891
        %8547 = vmatprep.subr.bf16.mxu0 %v5900
        %8548 = vmatpush1.bf16.msra.mxu0 %v5899
        %8549 = vmatprep.subr.bf16.mxu0 %v5908
        %8550 = vmatpush1.bf16.msra.mxu0 %v5907
        %8551 = vmatprep.subr.bf16.mxu0 %v5916
        %8552 = vmatpush1.bf16.msra.mxu0 %v5915
        %8553 = vmatprep.subr.bf16.mxu0 %v5924
        %8554 = vmatpush1.bf16.msra.mxu0 %v5923
        %8555 = vmatprep.subr.bf16.mxu0 %v5932
        %8556 = vmatpush1.bf16.msra.mxu0 %v5931
        %8557 = vmatprep.subr.bf16.mxu0 %v5940
        %8558 = vmatpush1.bf16.msra.mxu0 %v5939
        %8559 = vmatprep.subr.bf16.mxu0 %v5948
        %8560 = vmatpush1.bf16.msra.mxu0 %v5947
        %8561 = vmatprep.subr.bf16.mxu0 %v5956
        %8562 = vmatpush1.bf16.msra.mxu0 %v5955
        %8563 = vmatprep.subr.bf16.mxu0 %v5964
        %8564 = vmatpush1.bf16.msra.mxu0 %v5963
        %8565 = vmatprep.subr.bf16.mxu0 %v5972
        %8566 = vmatpush1.bf16.msra.mxu0 %v5971
        %8567 = vmatprep.subr.bf16.mxu0 %v5980
        %8568 = vmatpush1.bf16.msra.mxu0 %v5979
        %8569 = vmatprep.mubr.bf16.mxu0 %v1196
        %8570 = vmatmul.mubr.bf16.gmra.mrb[0].mxu0 %v1195
        %v8571 = vpop.f32.mrb[0].mxu0
        %v8572 = vadd.f32 %v8531, %v8571
        %v8573 = vpop.f32.mrb[0].mxu0
        %v8574 = vadd.f32 %v8533, %v8573
        %v8575 = vpop.f32.mrb[0].mxu0
        %v8576 = vpop.f32.mrb[0].mxu0
        %8577 = vdwg.mxu0
        %8578 = vmatprep.subr.bf16.mxu0 %v5988
        %8579 = vmatpush1.bf16.msra.mxu0 %v5987
        %8580 = vmatprep.subr.bf16.mxu0 %v5996
        %8581 = vmatpush1.bf16.msra.mxu0 %v5995
        %8582 = vmatprep.subr.bf16.mxu0 %v6004
        %8583 = vmatpush1.bf16.msra.mxu0 %v6003
        %8584 = vmatprep.subr.bf16.mxu0 %v6012
        %8585 = vmatpush1.bf16.msra.mxu0 %v6011
        %8586 = vmatprep.subr.bf16.mxu0 %v6020
        %8587 = vmatpush1.bf16.msra.mxu0 %v6019
        %8588 = vmatprep.subr.bf16.mxu0 %v6028
        %8589 = vmatpush1.bf16.msra.mxu0 %v6027
        %8590 = vmatprep.subr.bf16.mxu0 %v6036
        %8591 = vmatpush1.bf16.msra.mxu0 %v6035
        %8592 = vmatprep.subr.bf16.mxu0 %v6044
        %8593 = vmatpush1.bf16.msra.mxu0 %v6043
        %8594 = vmatprep.subr.bf16.mxu0 %v6052
        %8595 = vmatpush1.bf16.msra.mxu0 %v6051
        %8596 = vmatprep.subr.bf16.mxu0 %v6060
        %8597 = vmatpush1.bf16.msra.mxu0 %v6059
        %8598 = vmatprep.subr.bf16.mxu0 %v6068
        %8599 = vmatpush1.bf16.msra.mxu0 %v6067
        %8600 = vmatprep.subr.bf16.mxu0 %v6076
        %8601 = vmatpush1.bf16.msra.mxu0 %v6075
        %8602 = vmatprep.subr.bf16.mxu0 %v6084
        %8603 = vmatpush1.bf16.msra.mxu0 %v6083
        %8604 = vmatprep.subr.bf16.mxu0 %v6092
        %8605 = vmatpush1.bf16.msra.mxu0 %v6091
        %8606 = vmatprep.subr.bf16.mxu0 %v6100
        %8607 = vmatpush1.bf16.msra.mxu0 %v6099
        %8608 = vmatprep.subr.bf16.mxu0 %v6108
        %8609 = vmatpush1.bf16.msra.mxu0 %v6107
        %8610 = vmatprep.mubr.bf16.mxu0 %v1198
        %8611 = vmatmul.mubr.bf16.gmra.mrb[0].mxu0 %v1197
        %v8612 = vpop.f32.mrb[0].mxu0
        %v8613 = vadd.f32 %v8572, %v8612
        %v8614 = vpop.f32.mrb[0].mxu0
        %v8615 = vadd.f32 %v8574, %v8614
        %v8616 = vpop.f32.mrb[0].mxu0
        %v8617 = vpop.f32.mrb[0].mxu0
        %8618 = vdwg.mxu0
        %8619 = vmatprep.subr.bf16.mxu0 %v6116
        %8620 = vmatpush1.bf16.msra.mxu0 %v6115
        %8621 = vmatprep.subr.bf16.mxu0 %v6124
        %8622 = vmatpush1.bf16.msra.mxu0 %v6123
        %8623 = vmatprep.subr.bf16.mxu0 %v6132
        %8624 = vmatpush1.bf16.msra.mxu0 %v6131
        %8625 = vmatprep.subr.bf16.mxu0 %v6140
        %8626 = vmatpush1.bf16.msra.mxu0 %v6139
        %8627 = vmatprep.subr.bf16.mxu0 %v6148
        %8628 = vmatpush1.bf16.msra.mxu0 %v6147
        %8629 = vmatprep.subr.bf16.mxu0 %v6156
        %8630 = vmatpush1.bf16.msra.mxu0 %v6155
        %8631 = vmatprep.subr.bf16.mxu0 %v6164
        %8632 = vmatpush1.bf16.msra.mxu0 %v6163
        %8633 = vmatprep.subr.bf16.mxu0 %v6172
        %8634 = vmatpush1.bf16.msra.mxu0 %v6171
        %8635 = vmatprep.subr.bf16.mxu0 %v6180
        %8636 = vmatpush1.bf16.msra.mxu0 %v6179
        %8637 = vmatprep.subr.bf16.mxu0 %v6188
        %8638 = vmatpush1.bf16.msra.mxu0 %v6187
        %8639 = vmatprep.subr.bf16.mxu0 %v6196
        %8640 = vmatpush1.bf16.msra.mxu0 %v6195
        %8641 = vmatprep.subr.bf16.mxu0 %v6204
        %8642 = vmatpush1.bf16.msra.mxu0 %v6203
        %8643 = vmatprep.subr.bf16.mxu0 %v6212
        %8644 = vmatpush1.bf16.msra.mxu0 %v6211
        %8645 = vmatprep.subr.bf16.mxu0 %v6220
        %8646 = vmatpush1.bf16.msra.mxu0 %v6219
        %8647 = vmatprep.subr.bf16.mxu0 %v6228
        %8648 = vmatpush1.bf16.msra.mxu0 %v6227
        %8649 = vmatprep.subr.bf16.mxu0 %v6236
        %8650 = vmatpush1.bf16.msra.mxu0 %v6235
        %8651 = vmatprep.mubr.bf16.mxu0 %v1200
        %8652 = vmatmul.mubr.bf16.gmra.mrb[0].mxu0 %v1199
        %v8653 = vpop.f32.mrb[0].mxu0
        %v8654 = vadd.f32 %v8613, %v8653
        %v8655 = vpop.f32.mrb[0].mxu0
        %v8656 = vadd.f32 %v8615, %v8655
        %v8657 = vpop.f32.mrb[0].mxu0
        %v8658 = vpop.f32.mrb[0].mxu0
        %8659 = vdwg.mxu0
        %8660 = vmatprep.subr.bf16.mxu0 %v6244
        %8661 = vmatpush1.bf16.msra.mxu0 %v6243
        %8662 = vmatprep.subr.bf16.mxu0 %v6252
        %8663 = vmatpush1.bf16.msra.mxu0 %v6251
        %8664 = vmatprep.subr.bf16.mxu0 %v6260
        %8665 = vmatpush1.bf16.msra.mxu0 %v6259
        %8666 = vmatprep.subr.bf16.mxu0 %v6268
        %8667 = vmatpush1.bf16.msra.mxu0 %v6267
        %8668 = vmatprep.subr.bf16.mxu0 %v6276
        %8669 = vmatpush1.bf16.msra.mxu0 %v6275
        %8670 = vmatprep.subr.bf16.mxu0 %v6284
        %8671 = vmatpush1.bf16.msra.mxu0 %v6283
        %8672 = vmatprep.subr.bf16.mxu0 %v6292
        %8673 = vmatpush1.bf16.msra.mxu0 %v6291
        %8674 = vmatprep.subr.bf16.mxu0 %v6300
        %8675 = vmatpush1.bf16.msra.mxu0 %v6299
        %8676 = vmatprep.subr.bf16.mxu0 %v6308
        %8677 = vmatpush1.bf16.msra.mxu0 %v6307
        %8678 = vmatprep.subr.bf16.mxu0 %v6316
        %8679 = vmatpush1.bf16.msra.mxu0 %v6315
        %8680 = vmatprep.subr.bf16.mxu0 %v6324
        %8681 = vmatpush1.bf16.msra.mxu0 %v6323
        %8682 = vmatprep.subr.bf16.mxu0 %v6332
        %8683 = vmatpush1.bf16.msra.mxu0 %v6331
        %8684 = vmatprep.subr.bf16.mxu0 %v6340
        %8685 = vmatpush1.bf16.msra.mxu0 %v6339
        %8686 = vmatprep.subr.bf16.mxu0 %v6348
        %8687 = vmatpush1.bf16.msra.mxu0 %v6347
        %8688 = vmatprep.subr.bf16.mxu0 %v6356
        %8689 = vmatpush1.bf16.msra.mxu0 %v6355
        %8690 = vmatprep.subr.bf16.mxu0 %v6364
        %8691 = vmatpush1.bf16.msra.mxu0 %v6363
        %8692 = vmatprep.mubr.bf16.mxu0 %v1202
        %8693 = vmatmul.mubr.bf16.gmra.mrb[0].mxu0 %v1201
        %v8694 = vpop.f32.mrb[0].mxu0
        %v8695 = vadd.f32 %v8654, %v8694
        %v8696 = vpop.f32.mrb[0].mxu0
        %v8697 = vadd.f32 %v8656, %v8696
        %v8698 = vpop.f32.mrb[0].mxu0
        %v8699 = vpop.f32.mrb[0].mxu0
        %8700 = vdwg.mxu0
        %v8701 = vmax.f32 %v7711, 0.0
        %v8702 = vmax.f32 %v7713, 0.0
        %v8703 = vmax.f32 %v8039, 0.0
        %v8704 = vmax.f32 %v8041, 0.0
        %v8705 = vmax.f32 %v8367, 0.0
        %v8706 = vmax.f32 %v8369, 0.0
        %v8707 = vmax.f32 %v8695, 0.0
        %v8708 = vmax.f32 %v8697, 0.0
        %s8709 = smul.u32 %s30, 1024
        %s8710 = sshra.s32 %s8709, 7
        %s8711 = sand.u32 %s8709, 127
        %s8712 = smul.u32 %s389, 16
        %s8713 = sadd.s32 %s8710, %s8712
        %s8714 = smul.addr %s8713, 8
        %s8715 = scalar_lea.vmem [#allocation2], %s8714
        %8716 = vst [vmem:[%s8715] sm:$0xff] %v8701
        %8717 = vst [vmem:[%s8715 + $0x8] sm:$0xff] %v8702
        %8718 = vst [vmem:[%s8715 + $0x10] sm:$0xff] %v8703
        %8719 = vst [vmem:[%s8715 + $0x18] sm:$0xff] %v8704
        %8720 = vst [vmem:[%s8715 + $0x20] sm:$0xff] %v8705
        %8721 = vst [vmem:[%s8715 + $0x28] sm:$0xff] %v8706
        %8722 = vst [vmem:[%s8715 + $0x30] sm:$0xff] %v8707
        %8723 = vst [vmem:[%s8715 + $0x38] sm:$0xff] %v8708
        %p8724 = scmp.eq.s32.totalorder %s29, 4
        %p8725 = scmp.eq.s32.totalorder %s30, 1
        %p8726 = pnand %p8724, %p8725
        %p8727 = pneg %p8726
        // Predicated region
        $region73: #{neunet_forward.1} parent=47 // pred_check
          _
        $region74: #{neunet_forward.1} parent=47 // pred_check_branch
          %8729 = sbr.rel (%p8726) target = $region76
        $region75: #{neunet_forward.1} parent=47 // pred_region
          %s8730 = smul.addr %s8712, 8
          %s8731 = scalar_lea.vmem [#allocation2], %s8730
          %v8732 = vld [vmem:[%s8731] sm:$0xff]
          %v8733 = vld [vmem:[%s8731 + $0x8] sm:$0xff]
          %v8734 = vld [vmem:[%s8731 + $0x10] sm:$0xff]
          %v8735 = vld [vmem:[%s8731 + $0x18] sm:$0xff]
          %v8736 = vld [vmem:[%s8731 + $0x20] sm:$0xff]
          %v8737 = vld [vmem:[%s8731 + $0x28] sm:$0xff]
          %v8738 = vld [vmem:[%s8731 + $0x30] sm:$0xff]
          %v8739 = vld [vmem:[%s8731 + $0x38] sm:$0xff]
          %v8740 = vld [vmem:[%s8731 + $0x40] sm:$0xff]
          %v8741 = vld [vmem:[%s8731 + $0x48] sm:$0xff]
          %v8742 = vld [vmem:[%s8731 + $0x50] sm:$0xff]
          %v8743 = vld [vmem:[%s8731 + $0x58] sm:$0xff]
          %v8744 = vld [vmem:[%s8731 + $0x60] sm:$0xff]
          %v8745 = vld [vmem:[%s8731 + $0x68] sm:$0xff]
          %v8746 = vld [vmem:[%s8731 + $0x70] sm:$0xff]
          %v8747 = vld [vmem:[%s8731 + $0x78] sm:$0xff]
          %v8748 = vpack.c.bf16 %v8732, %v8732
          %v8749 = vpack.c.bf16 %v8733, %v8733
          %v8750 = vpack.c.bf16 %v8734, %v8734
          %v8751 = vpack.c.bf16 %v8735, %v8735
          %v8752 = vpack.c.bf16 %v8736, %v8736
          %v8753 = vpack.c.bf16 %v8737, %v8737
          %v8754 = vpack.c.bf16 %v8738, %v8738
          %v8755 = vpack.c.bf16 %v8739, %v8739
          %v8756 = vpack.c.bf16 %v8740, %v8740
          %v8757 = vpack.c.bf16 %v8741, %v8741
          %v8758 = vpack.c.bf16 %v8742, %v8742
          %v8759 = vpack.c.bf16 %v8743, %v8743
          %v8760 = vpack.c.bf16 %v8744, %v8744
          %v8761 = vpack.c.bf16 %v8745, %v8745
          %v8762 = vpack.c.bf16 %v8746, %v8746
          %v8763 = vpack.c.bf16 %v8747, %v8747
          %v8764 = vld [vmem:[%s5] sm:$0xf]
          %v8765 = vld [vmem:[%s5 + $0x4] sm:$0xf]
          %v8766 = vld [vmem:[%s5 + $0x8] sm:$0xf]
          %v8767 = vld [vmem:[%s5 + $0xc] sm:$0xf]
          %v8768 = vld [vmem:[%s5 + $0x10] sm:$0xf]
          %v8769 = vld [vmem:[%s5 + $0x14] sm:$0xf]
          %v8770 = vld [vmem:[%s5 + $0x18] sm:$0xf]
          %v8771 = vld [vmem:[%s5 + $0x1c] sm:$0xf]
          %v8772 = vld [vmem:[%s5 + $0x20] sm:$0xf]
          %v8773 = vld [vmem:[%s5 + $0x24] sm:$0xf]
          %v8774 = vld [vmem:[%s5 + $0x28] sm:$0xf]
          %v8775 = vld [vmem:[%s5 + $0x2c] sm:$0xf]
          %v8776 = vld [vmem:[%s5 + $0x30] sm:$0xf]
          %v8777 = vld [vmem:[%s5 + $0x34] sm:$0xf]
          %v8778 = vld [vmem:[%s5 + $0x38] sm:$0xf]
          %v8779 = vld [vmem:[%s5 + $0x3c] sm:$0xf]
          %v8780 = vld [vmem:[%s5 + $0x40] sm:$0xf]
          %v8781 = vld [vmem:[%s5 + $0x44] sm:$0xf]
          %v8782 = vld [vmem:[%s5 + $0x48] sm:$0xf]
          %v8783 = vld [vmem:[%s5 + $0x4c] sm:$0xf]
          %v8784 = vld [vmem:[%s5 + $0x50] sm:$0xf]
          %v8785 = vld [vmem:[%s5 + $0x54] sm:$0xf]
          %v8786 = vld [vmem:[%s5 + $0x58] sm:$0xf]
          %v8787 = vld [vmem:[%s5 + $0x5c] sm:$0xf]
          %v8788 = vld [vmem:[%s5 + $0x60] sm:$0xf]
          %v8789 = vld [vmem:[%s5 + $0x64] sm:$0xf]
          %v8790 = vld [vmem:[%s5 + $0x68] sm:$0xf]
          %v8791 = vld [vmem:[%s5 + $0x6c] sm:$0xf]
          %v8792 = vld [vmem:[%s5 + $0x70] sm:$0xf]
          %v8793 = vld [vmem:[%s5 + $0x74] sm:$0xf]
          %v8794 = vld [vmem:[%s5 + $0x78] sm:$0xf]
          %v8795 = vld [vmem:[%s5 + $0x7c] sm:$0xf]
          %v8796 = vld [vmem:[%s5 + $0x80] sm:$0xf]
          %v8797 = vld [vmem:[%s5 + $0x84] sm:$0xf]
          %v8798 = vld [vmem:[%s5 + $0x88] sm:$0xf]
          %v8799 = vld [vmem:[%s5 + $0x8c] sm:$0xf]
          %v8800 = vld [vmem:[%s5 + $0x90] sm:$0xf]
          %v8801 = vld [vmem:[%s5 + $0x94] sm:$0xf]
          %v8802 = vld [vmem:[%s5 + $0x98] sm:$0xf]
          %v8803 = vld [vmem:[%s5 + $0x9c] sm:$0xf]
          %v8804 = vld [vmem:[%s5 + $0xa0] sm:$0xf]
          %v8805 = vld [vmem:[%s5 + $0xa4] sm:$0xf]
          %v8806 = vld [vmem:[%s5 + $0xa8] sm:$0xf]
          %v8807 = vld [vmem:[%s5 + $0xac] sm:$0xf]
          %v8808 = vld [vmem:[%s5 + $0xb0] sm:$0xf]
          %v8809 = vld [vmem:[%s5 + $0xb4] sm:$0xf]
          %v8810 = vld [vmem:[%s5 + $0xb8] sm:$0xf]
          %v8811 = vld [vmem:[%s5 + $0xbc] sm:$0xf]
          %v8812 = vld [vmem:[%s5 + $0xc0] sm:$0xf]
          %v8813 = vld [vmem:[%s5 + $0xc4] sm:$0xf]
          %v8814 = vld [vmem:[%s5 + $0xc8] sm:$0xf]
          %v8815 = vld [vmem:[%s5 + $0xcc] sm:$0xf]
          %v8816 = vld [vmem:[%s5 + $0xd0] sm:$0xf]
          %v8817 = vld [vmem:[%s5 + $0xd4] sm:$0xf]
          %v8818 = vld [vmem:[%s5 + $0xd8] sm:$0xf]
          %v8819 = vld [vmem:[%s5 + $0xdc] sm:$0xf]
          %v8820 = vld [vmem:[%s5 + $0xe0] sm:$0xf]
          %v8821 = vld [vmem:[%s5 + $0xe4] sm:$0xf]
          %v8822 = vld [vmem:[%s5 + $0xe8] sm:$0xf]
          %v8823 = vld [vmem:[%s5 + $0xec] sm:$0xf]
          %v8824 = vld [vmem:[%s5 + $0xf0] sm:$0xf]
          %v8825 = vld [vmem:[%s5 + $0xf4] sm:$0xf]
          %v8826 = vld [vmem:[%s5 + $0xf8] sm:$0xf]
          %v8827 = vld [vmem:[%s5 + $0xfc] sm:$0xf]
          %v8828 = vld [vmem:[%s5 + $0x100] sm:$0xf]
          %v8829 = vld [vmem:[%s5 + $0x104] sm:$0xf]
          %v8830 = vld [vmem:[%s5 + $0x108] sm:$0xf]
          %v8831 = vld [vmem:[%s5 + $0x10c] sm:$0xf]
          %v8832 = vld [vmem:[%s5 + $0x110] sm:$0xf]
          %v8833 = vld [vmem:[%s5 + $0x114] sm:$0xf]
          %v8834 = vld [vmem:[%s5 + $0x118] sm:$0xf]
          %v8835 = vld [vmem:[%s5 + $0x11c] sm:$0xf]
          %v8836 = vld [vmem:[%s5 + $0x120] sm:$0xf]
          %v8837 = vld [vmem:[%s5 + $0x124] sm:$0xf]
          %v8838 = vld [vmem:[%s5 + $0x128] sm:$0xf]
          %v8839 = vld [vmem:[%s5 + $0x12c] sm:$0xf]
          %v8840 = vld [vmem:[%s5 + $0x130] sm:$0xf]
          %v8841 = vld [vmem:[%s5 + $0x134] sm:$0xf]
          %v8842 = vld [vmem:[%s5 + $0x138] sm:$0xf]
          %v8843 = vld [vmem:[%s5 + $0x13c] sm:$0xf]
          %v8844 = vld [vmem:[%s5 + $0x140] sm:$0xf]
          %v8845 = vld [vmem:[%s5 + $0x144] sm:$0xf]
          %v8846 = vld [vmem:[%s5 + $0x148] sm:$0xf]
          %v8847 = vld [vmem:[%s5 + $0x14c] sm:$0xf]
          %v8848 = vld [vmem:[%s5 + $0x150] sm:$0xf]
          %v8849 = vld [vmem:[%s5 + $0x154] sm:$0xf]
          %v8850 = vld [vmem:[%s5 + $0x158] sm:$0xf]
          %v8851 = vld [vmem:[%s5 + $0x15c] sm:$0xf]
          %v8852 = vld [vmem:[%s5 + $0x160] sm:$0xf]
          %v8853 = vld [vmem:[%s5 + $0x164] sm:$0xf]
          %v8854 = vld [vmem:[%s5 + $0x168] sm:$0xf]
          %v8855 = vld [vmem:[%s5 + $0x16c] sm:$0xf]
          %v8856 = vld [vmem:[%s5 + $0x170] sm:$0xf]
          %v8857 = vld [vmem:[%s5 + $0x174] sm:$0xf]
          %v8858 = vld [vmem:[%s5 + $0x178] sm:$0xf]
          %v8859 = vld [vmem:[%s5 + $0x17c] sm:$0xf]
          %v8860 = vld [vmem:[%s5 + $0x180] sm:$0xf]
          %v8861 = vld [vmem:[%s5 + $0x184] sm:$0xf]
          %v8862 = vld [vmem:[%s5 + $0x188] sm:$0xf]
          %v8863 = vld [vmem:[%s5 + $0x18c] sm:$0xf]
          %v8864 = vld [vmem:[%s5 + $0x190] sm:$0xf]
          %v8865 = vld [vmem:[%s5 + $0x194] sm:$0xf]
          %v8866 = vld [vmem:[%s5 + $0x198] sm:$0xf]
          %v8867 = vld [vmem:[%s5 + $0x19c] sm:$0xf]
          %v8868 = vld [vmem:[%s5 + $0x1a0] sm:$0xf]
          %v8869 = vld [vmem:[%s5 + $0x1a4] sm:$0xf]
          %v8870 = vld [vmem:[%s5 + $0x1a8] sm:$0xf]
          %v8871 = vld [vmem:[%s5 + $0x1ac] sm:$0xf]
          %v8872 = vld [vmem:[%s5 + $0x1b0] sm:$0xf]
          %v8873 = vld [vmem:[%s5 + $0x1b4] sm:$0xf]
          %v8874 = vld [vmem:[%s5 + $0x1b8] sm:$0xf]
          %v8875 = vld [vmem:[%s5 + $0x1bc] sm:$0xf]
          %v8876 = vld [vmem:[%s5 + $0x1c0] sm:$0xf]
          %v8877 = vld [vmem:[%s5 + $0x1c4] sm:$0xf]
          %v8878 = vld [vmem:[%s5 + $0x1c8] sm:$0xf]
          %v8879 = vld [vmem:[%s5 + $0x1cc] sm:$0xf]
          %v8880 = vld [vmem:[%s5 + $0x1d0] sm:$0xf]
          %v8881 = vld [vmem:[%s5 + $0x1d4] sm:$0xf]
          %v8882 = vld [vmem:[%s5 + $0x1d8] sm:$0xf]
          %v8883 = vld [vmem:[%s5 + $0x1dc] sm:$0xf]
          %v8884 = vld [vmem:[%s5 + $0x1e0] sm:$0xf]
          %v8885 = vld [vmem:[%s5 + $0x1e4] sm:$0xf]
          %v8886 = vld [vmem:[%s5 + $0x1e8] sm:$0xf]
          %v8887 = vld [vmem:[%s5 + $0x1ec] sm:$0xf]
          %v8888 = vld [vmem:[%s5 + $0x1f0] sm:$0xf]
          %v8889 = vld [vmem:[%s5 + $0x1f4] sm:$0xf]
          %v8890 = vld [vmem:[%s5 + $0x1f8] sm:$0xf]
          %v8891 = vld [vmem:[%s5 + $0x1fc] sm:$0xf]
          %v8892 = vld [vmem:[%s5 + $0x200] sm:$0xf]
          %v8893 = vld [vmem:[%s5 + $0x204] sm:$0xf]
          %v8894 = vld [vmem:[%s5 + $0x208] sm:$0xf]
          %v8895 = vld [vmem:[%s5 + $0x20c] sm:$0xf]
          %v8896 = vld [vmem:[%s5 + $0x210] sm:$0xf]
          %v8897 = vld [vmem:[%s5 + $0x214] sm:$0xf]
          %v8898 = vld [vmem:[%s5 + $0x218] sm:$0xf]
          %v8899 = vld [vmem:[%s5 + $0x21c] sm:$0xf]
          %v8900 = vld [vmem:[%s5 + $0x220] sm:$0xf]
          %v8901 = vld [vmem:[%s5 + $0x224] sm:$0xf]
          %v8902 = vld [vmem:[%s5 + $0x228] sm:$0xf]
          %v8903 = vld [vmem:[%s5 + $0x22c] sm:$0xf]
          %v8904 = vld [vmem:[%s5 + $0x230] sm:$0xf]
          %v8905 = vld [vmem:[%s5 + $0x234] sm:$0xf]
          %v8906 = vld [vmem:[%s5 + $0x238] sm:$0xf]
          %v8907 = vld [vmem:[%s5 + $0x23c] sm:$0xf]
          %v8908 = vld [vmem:[%s5 + $0x240] sm:$0xf]
          %v8909 = vld [vmem:[%s5 + $0x244] sm:$0xf]
          %v8910 = vld [vmem:[%s5 + $0x248] sm:$0xf]
          %v8911 = vld [vmem:[%s5 + $0x24c] sm:$0xf]
          %v8912 = vld [vmem:[%s5 + $0x250] sm:$0xf]
          %v8913 = vld [vmem:[%s5 + $0x254] sm:$0xf]
          %v8914 = vld [vmem:[%s5 + $0x258] sm:$0xf]
          %v8915 = vld [vmem:[%s5 + $0x25c] sm:$0xf]
          %v8916 = vld [vmem:[%s5 + $0x260] sm:$0xf]
          %v8917 = vld [vmem:[%s5 + $0x264] sm:$0xf]
          %v8918 = vld [vmem:[%s5 + $0x268] sm:$0xf]
          %v8919 = vld [vmem:[%s5 + $0x26c] sm:$0xf]
          %v8920 = vld [vmem:[%s5 + $0x270] sm:$0xf]
          %v8921 = vld [vmem:[%s5 + $0x274] sm:$0xf]
          %v8922 = vld [vmem:[%s5 + $0x278] sm:$0xf]
          %v8923 = vld [vmem:[%s5 + $0x27c] sm:$0xf]
          %v8924 = vld [vmem:[%s5 + $0x280] sm:$0xf]
          %v8925 = vld [vmem:[%s5 + $0x284] sm:$0xf]
          %v8926 = vld [vmem:[%s5 + $0x288] sm:$0xf]
          %v8927 = vld [vmem:[%s5 + $0x28c] sm:$0xf]
          %v8928 = vld [vmem:[%s5 + $0x290] sm:$0xf]
          %v8929 = vld [vmem:[%s5 + $0x294] sm:$0xf]
          %v8930 = vld [vmem:[%s5 + $0x298] sm:$0xf]
          %v8931 = vld [vmem:[%s5 + $0x29c] sm:$0xf]
          %v8932 = vld [vmem:[%s5 + $0x2a0] sm:$0xf]
          %v8933 = vld [vmem:[%s5 + $0x2a4] sm:$0xf]
          %v8934 = vld [vmem:[%s5 + $0x2a8] sm:$0xf]
          %v8935 = vld [vmem:[%s5 + $0x2ac] sm:$0xf]
          %v8936 = vld [vmem:[%s5 + $0x2b0] sm:$0xf]
          %v8937 = vld [vmem:[%s5 + $0x2b4] sm:$0xf]
          %v8938 = vld [vmem:[%s5 + $0x2b8] sm:$0xf]
          %v8939 = vld [vmem:[%s5 + $0x2bc] sm:$0xf]
          %v8940 = vld [vmem:[%s5 + $0x2c0] sm:$0xf]
          %v8941 = vld [vmem:[%s5 + $0x2c4] sm:$0xf]
          %v8942 = vld [vmem:[%s5 + $0x2c8] sm:$0xf]
          %v8943 = vld [vmem:[%s5 + $0x2cc] sm:$0xf]
          %v8944 = vld [vmem:[%s5 + $0x2d0] sm:$0xf]
          %v8945 = vld [vmem:[%s5 + $0x2d4] sm:$0xf]
          %v8946 = vld [vmem:[%s5 + $0x2d8] sm:$0xf]
          %v8947 = vld [vmem:[%s5 + $0x2dc] sm:$0xf]
          %v8948 = vld [vmem:[%s5 + $0x2e0] sm:$0xf]
          %v8949 = vld [vmem:[%s5 + $0x2e4] sm:$0xf]
          %v8950 = vld [vmem:[%s5 + $0x2e8] sm:$0xf]
          %v8951 = vld [vmem:[%s5 + $0x2ec] sm:$0xf]
          %v8952 = vld [vmem:[%s5 + $0x2f0] sm:$0xf]
          %v8953 = vld [vmem:[%s5 + $0x2f4] sm:$0xf]
          %v8954 = vld [vmem:[%s5 + $0x2f8] sm:$0xf]
          %v8955 = vld [vmem:[%s5 + $0x2fc] sm:$0xf]
          %v8956 = vld [vmem:[%s5 + $0x300] sm:$0xf]
          %v8957 = vld [vmem:[%s5 + $0x304] sm:$0xf]
          %v8958 = vld [vmem:[%s5 + $0x308] sm:$0xf]
          %v8959 = vld [vmem:[%s5 + $0x30c] sm:$0xf]
          %v8960 = vld [vmem:[%s5 + $0x310] sm:$0xf]
          %v8961 = vld [vmem:[%s5 + $0x314] sm:$0xf]
          %v8962 = vld [vmem:[%s5 + $0x318] sm:$0xf]
          %v8963 = vld [vmem:[%s5 + $0x31c] sm:$0xf]
          %v8964 = vld [vmem:[%s5 + $0x320] sm:$0xf]
          %v8965 = vld [vmem:[%s5 + $0x324] sm:$0xf]
          %v8966 = vld [vmem:[%s5 + $0x328] sm:$0xf]
          %v8967 = vld [vmem:[%s5 + $0x32c] sm:$0xf]
          %v8968 = vld [vmem:[%s5 + $0x330] sm:$0xf]
          %v8969 = vld [vmem:[%s5 + $0x334] sm:$0xf]
          %v8970 = vld [vmem:[%s5 + $0x338] sm:$0xf]
          %v8971 = vld [vmem:[%s5 + $0x33c] sm:$0xf]
          %v8972 = vld [vmem:[%s5 + $0x340] sm:$0xf]
          %v8973 = vld [vmem:[%s5 + $0x344] sm:$0xf]
          %v8974 = vld [vmem:[%s5 + $0x348] sm:$0xf]
          %v8975 = vld [vmem:[%s5 + $0x34c] sm:$0xf]
          %v8976 = vld [vmem:[%s5 + $0x350] sm:$0xf]
          %v8977 = vld [vmem:[%s5 + $0x354] sm:$0xf]
          %v8978 = vld [vmem:[%s5 + $0x358] sm:$0xf]
          %v8979 = vld [vmem:[%s5 + $0x35c] sm:$0xf]
          %v8980 = vld [vmem:[%s5 + $0x360] sm:$0xf]
          %v8981 = vld [vmem:[%s5 + $0x364] sm:$0xf]
          %v8982 = vld [vmem:[%s5 + $0x368] sm:$0xf]
          %v8983 = vld [vmem:[%s5 + $0x36c] sm:$0xf]
          %v8984 = vld [vmem:[%s5 + $0x370] sm:$0xf]
          %v8985 = vld [vmem:[%s5 + $0x374] sm:$0xf]
          %v8986 = vld [vmem:[%s5 + $0x378] sm:$0xf]
          %v8987 = vld [vmem:[%s5 + $0x37c] sm:$0xf]
          %v8988 = vld [vmem:[%s5 + $0x380] sm:$0xf]
          %v8989 = vld [vmem:[%s5 + $0x384] sm:$0xf]
          %v8990 = vld [vmem:[%s5 + $0x388] sm:$0xf]
          %v8991 = vld [vmem:[%s5 + $0x38c] sm:$0xf]
          %v8992 = vld [vmem:[%s5 + $0x390] sm:$0xf]
          %v8993 = vld [vmem:[%s5 + $0x394] sm:$0xf]
          %v8994 = vld [vmem:[%s5 + $0x398] sm:$0xf]
          %v8995 = vld [vmem:[%s5 + $0x39c] sm:$0xf]
          %v8996 = vld [vmem:[%s5 + $0x3a0] sm:$0xf]
          %v8997 = vld [vmem:[%s5 + $0x3a4] sm:$0xf]
          %v8998 = vld [vmem:[%s5 + $0x3a8] sm:$0xf]
          %v8999 = vld [vmem:[%s5 + $0x3ac] sm:$0xf]
          %v9000 = vld [vmem:[%s5 + $0x3b0] sm:$0xf]
          %v9001 = vld [vmem:[%s5 + $0x3b4] sm:$0xf]
          %v9002 = vld [vmem:[%s5 + $0x3b8] sm:$0xf]
          %v9003 = vld [vmem:[%s5 + $0x3bc] sm:$0xf]
          %v9004 = vld [vmem:[%s5 + $0x3c0] sm:$0xf]
          %v9005 = vld [vmem:[%s5 + $0x3c4] sm:$0xf]
          %v9006 = vld [vmem:[%s5 + $0x3c8] sm:$0xf]
          %v9007 = vld [vmem:[%s5 + $0x3cc] sm:$0xf]
          %v9008 = vld [vmem:[%s5 + $0x3d0] sm:$0xf]
          %v9009 = vld [vmem:[%s5 + $0x3d4] sm:$0xf]
          %v9010 = vld [vmem:[%s5 + $0x3d8] sm:$0xf]
          %v9011 = vld [vmem:[%s5 + $0x3dc] sm:$0xf]
          %v9012 = vld [vmem:[%s5 + $0x3e0] sm:$0xf]
          %v9013 = vld [vmem:[%s5 + $0x3e4] sm:$0xf]
          %v9014 = vld [vmem:[%s5 + $0x3e8] sm:$0xf]
          %v9015 = vld [vmem:[%s5 + $0x3ec] sm:$0xf]
          %v9016 = vld [vmem:[%s5 + $0x3f0] sm:$0xf]
          %v9017 = vld [vmem:[%s5 + $0x3f4] sm:$0xf]
          %v9018 = vld [vmem:[%s5 + $0x3f8] sm:$0xf]
          %v9019 = vld [vmem:[%s5 + $0x3fc] sm:$0xf]
          %v9020 = vld [vmem:[#allocation3] sm:$0x1]
          %v9022 = vlaneseq
          %v9023 = vshrl.u32 %v9022, 7
          %v9024 = vsub.s32 0, %v9023
          %v9025 = vrot.slane %v9020, %v9024
          %v9283 = vunpack.c.l.b16 %v8764
          %v9284 = vunpack.c.l.b16 %v8765
          %v9285 = vunpack.c.l.b16 %v8766
          %v9286 = vunpack.c.l.b16 %v8767
          %v9287 = vunpack.c.l.b16 %v8768
          %v9288 = vunpack.c.l.b16 %v8769
          %v9289 = vunpack.c.l.b16 %v8770
          %v9290 = vunpack.c.l.b16 %v8771
          %v9291 = vunpack.c.l.b16 %v8772
          %v9292 = vunpack.c.l.b16 %v8773
          %v9293 = vunpack.c.l.b16 %v8774
          %v9294 = vunpack.c.l.b16 %v8775
          %v9295 = vunpack.c.l.b16 %v8776
          %v9296 = vunpack.c.l.b16 %v8777
          %v9297 = vunpack.c.l.b16 %v8778
          %v9298 = vunpack.c.l.b16 %v8779
          %v9299 = vunpack.c.l.b16 %v8780
          %v9300 = vunpack.c.l.b16 %v8781
          %v9301 = vunpack.c.l.b16 %v8782
          %v9302 = vunpack.c.l.b16 %v8783
          %v9303 = vunpack.c.l.b16 %v8784
          %v9304 = vunpack.c.l.b16 %v8785
          %v9305 = vunpack.c.l.b16 %v8786
          %v9306 = vunpack.c.l.b16 %v8787
          %v9307 = vunpack.c.l.b16 %v8788
          %v9308 = vunpack.c.l.b16 %v8789
          %v9309 = vunpack.c.l.b16 %v8790
          %v9310 = vunpack.c.l.b16 %v8791
          %v9311 = vunpack.c.l.b16 %v8792
          %v9312 = vunpack.c.l.b16 %v8793
          %v9313 = vunpack.c.l.b16 %v8794
          %v9314 = vunpack.c.l.b16 %v8795
          %v9315 = vunpack.c.l.b16 %v8796
          %v9316 = vunpack.c.l.b16 %v8797
          %v9317 = vunpack.c.l.b16 %v8798
          %v9318 = vunpack.c.l.b16 %v8799
          %v9319 = vunpack.c.l.b16 %v8800
          %v9320 = vunpack.c.l.b16 %v8801
          %v9321 = vunpack.c.l.b16 %v8802
          %v9322 = vunpack.c.l.b16 %v8803
          %v9323 = vunpack.c.l.b16 %v8804
          %v9324 = vunpack.c.l.b16 %v8805
          %v9325 = vunpack.c.l.b16 %v8806
          %v9326 = vunpack.c.l.b16 %v8807
          %v9327 = vunpack.c.l.b16 %v8808
          %v9328 = vunpack.c.l.b16 %v8809
          %v9329 = vunpack.c.l.b16 %v8810
          %v9330 = vunpack.c.l.b16 %v8811
          %v9331 = vunpack.c.l.b16 %v8812
          %v9332 = vunpack.c.l.b16 %v8813
          %v9333 = vunpack.c.l.b16 %v8814
          %v9334 = vunpack.c.l.b16 %v8815
          %v9335 = vunpack.c.l.b16 %v8816
          %v9336 = vunpack.c.l.b16 %v8817
          %v9337 = vunpack.c.l.b16 %v8818
          %v9338 = vunpack.c.l.b16 %v8819
          %v9339 = vunpack.c.l.b16 %v8820
          %v9340 = vunpack.c.l.b16 %v8821
          %v9341 = vunpack.c.l.b16 %v8822
          %v9342 = vunpack.c.l.b16 %v8823
          %v9343 = vunpack.c.l.b16 %v8824
          %v9344 = vunpack.c.l.b16 %v8825
          %v9345 = vunpack.c.l.b16 %v8826
          %v9346 = vunpack.c.l.b16 %v8827
          %v9347 = vunpack.c.l.b16 %v8828
          %v9348 = vunpack.c.l.b16 %v8829
          %v9349 = vunpack.c.l.b16 %v8830
          %v9350 = vunpack.c.l.b16 %v8831
          %v9351 = vunpack.c.l.b16 %v8832
          %v9352 = vunpack.c.l.b16 %v8833
          %v9353 = vunpack.c.l.b16 %v8834
          %v9354 = vunpack.c.l.b16 %v8835
          %v9355 = vunpack.c.l.b16 %v8836
          %v9356 = vunpack.c.l.b16 %v8837
          %v9357 = vunpack.c.l.b16 %v8838
          %v9358 = vunpack.c.l.b16 %v8839
          %v9359 = vunpack.c.l.b16 %v8840
          %v9360 = vunpack.c.l.b16 %v8841
          %v9361 = vunpack.c.l.b16 %v8842
          %v9362 = vunpack.c.l.b16 %v8843
          %v9363 = vunpack.c.l.b16 %v8844
          %v9364 = vunpack.c.l.b16 %v8845
          %v9365 = vunpack.c.l.b16 %v8846
          %v9366 = vunpack.c.l.b16 %v8847
          %v9367 = vunpack.c.l.b16 %v8848
          %v9368 = vunpack.c.l.b16 %v8849
          %v9369 = vunpack.c.l.b16 %v8850
          %v9370 = vunpack.c.l.b16 %v8851
          %v9371 = vunpack.c.l.b16 %v8852
          %v9372 = vunpack.c.l.b16 %v8853
          %v9373 = vunpack.c.l.b16 %v8854
          %v9374 = vunpack.c.l.b16 %v8855
          %v9375 = vunpack.c.l.b16 %v8856
          %v9376 = vunpack.c.l.b16 %v8857
          %v9377 = vunpack.c.l.b16 %v8858
          %v9378 = vunpack.c.l.b16 %v8859
          %v9379 = vunpack.c.l.b16 %v8860
          %v9380 = vunpack.c.l.b16 %v8861
          %v9381 = vunpack.c.l.b16 %v8862
          %v9382 = vunpack.c.l.b16 %v8863
          %v9383 = vunpack.c.l.b16 %v8864
          %v9384 = vunpack.c.l.b16 %v8865
          %v9385 = vunpack.c.l.b16 %v8866
          %v9386 = vunpack.c.l.b16 %v8867
          %v9387 = vunpack.c.l.b16 %v8868
          %v9388 = vunpack.c.l.b16 %v8869
          %v9389 = vunpack.c.l.b16 %v8870
          %v9390 = vunpack.c.l.b16 %v8871
          %v9391 = vunpack.c.l.b16 %v8872
          %v9392 = vunpack.c.l.b16 %v8873
          %v9393 = vunpack.c.l.b16 %v8874
          %v9394 = vunpack.c.l.b16 %v8875
          %v9395 = vunpack.c.l.b16 %v8876
          %v9396 = vunpack.c.l.b16 %v8877
          %v9397 = vunpack.c.l.b16 %v8878
          %v9398 = vunpack.c.l.b16 %v8879
          %v9399 = vunpack.c.l.b16 %v8880
          %v9400 = vunpack.c.l.b16 %v8881
          %v9401 = vunpack.c.l.b16 %v8882
          %v9402 = vunpack.c.l.b16 %v8883
          %v9403 = vunpack.c.l.b16 %v8884
          %v9404 = vunpack.c.l.b16 %v8885
          %v9405 = vunpack.c.l.b16 %v8886
          %v9406 = vunpack.c.l.b16 %v8887
          %v9407 = vunpack.c.l.b16 %v8888
          %v9408 = vunpack.c.l.b16 %v8889
          %v9409 = vunpack.c.l.b16 %v8890
          %v9410 = vunpack.c.l.b16 %v8891
          %v9411 = vunpack.c.l.b16 %v8892
          %v9412 = vunpack.c.l.b16 %v8893
          %v9413 = vunpack.c.l.b16 %v8894
          %v9414 = vunpack.c.l.b16 %v8895
          %v9415 = vunpack.c.l.b16 %v8896
          %v9416 = vunpack.c.l.b16 %v8897
          %v9417 = vunpack.c.l.b16 %v8898
          %v9418 = vunpack.c.l.b16 %v8899
          %v9419 = vunpack.c.l.b16 %v8900
          %v9420 = vunpack.c.l.b16 %v8901
          %v9421 = vunpack.c.l.b16 %v8902
          %v9422 = vunpack.c.l.b16 %v8903
          %v9423 = vunpack.c.l.b16 %v8904
          %v9424 = vunpack.c.l.b16 %v8905
          %v9425 = vunpack.c.l.b16 %v8906
          %v9426 = vunpack.c.l.b16 %v8907
          %v9427 = vunpack.c.l.b16 %v8908
          %v9428 = vunpack.c.l.b16 %v8909
          %v9429 = vunpack.c.l.b16 %v8910
          %v9430 = vunpack.c.l.b16 %v8911
          %v9431 = vunpack.c.l.b16 %v8912
          %v9432 = vunpack.c.l.b16 %v8913
          %v9433 = vunpack.c.l.b16 %v8914
          %v9434 = vunpack.c.l.b16 %v8915
          %v9435 = vunpack.c.l.b16 %v8916
          %v9436 = vunpack.c.l.b16 %v8917
          %v9437 = vunpack.c.l.b16 %v8918
          %v9438 = vunpack.c.l.b16 %v8919
          %v9439 = vunpack.c.l.b16 %v8920
          %v9440 = vunpack.c.l.b16 %v8921
          %v9441 = vunpack.c.l.b16 %v8922
          %v9442 = vunpack.c.l.b16 %v8923
          %v9443 = vunpack.c.l.b16 %v8924
          %v9444 = vunpack.c.l.b16 %v8925
          %v9445 = vunpack.c.l.b16 %v8926
          %v9446 = vunpack.c.l.b16 %v8927
          %v9447 = vunpack.c.l.b16 %v8928
          %v9448 = vunpack.c.l.b16 %v8929
          %v9449 = vunpack.c.l.b16 %v8930
          %v9450 = vunpack.c.l.b16 %v8931
          %v9451 = vunpack.c.l.b16 %v8932
          %v9452 = vunpack.c.l.b16 %v8933
          %v9453 = vunpack.c.l.b16 %v8934
          %v9454 = vunpack.c.l.b16 %v8935
          %v9455 = vunpack.c.l.b16 %v8936
          %v9456 = vunpack.c.l.b16 %v8937
          %v9457 = vunpack.c.l.b16 %v8938
          %v9458 = vunpack.c.l.b16 %v8939
          %v9459 = vunpack.c.l.b16 %v8940
          %v9460 = vunpack.c.l.b16 %v8941
          %v9461 = vunpack.c.l.b16 %v8942
          %v9462 = vunpack.c.l.b16 %v8943
          %v9463 = vunpack.c.l.b16 %v8944
          %v9464 = vunpack.c.l.b16 %v8945
          %v9465 = vunpack.c.l.b16 %v8946
          %v9466 = vunpack.c.l.b16 %v8947
          %v9467 = vunpack.c.l.b16 %v8948
          %v9468 = vunpack.c.l.b16 %v8949
          %v9469 = vunpack.c.l.b16 %v8950
          %v9470 = vunpack.c.l.b16 %v8951
          %v9471 = vunpack.c.l.b16 %v8952
          %v9472 = vunpack.c.l.b16 %v8953
          %v9473 = vunpack.c.l.b16 %v8954
          %v9474 = vunpack.c.l.b16 %v8955
          %v9475 = vunpack.c.l.b16 %v8956
          %v9476 = vunpack.c.l.b16 %v8957
          %v9477 = vunpack.c.l.b16 %v8958
          %v9478 = vunpack.c.l.b16 %v8959
          %v9479 = vunpack.c.l.b16 %v8960
          %v9480 = vunpack.c.l.b16 %v8961
          %v9481 = vunpack.c.l.b16 %v8962
          %v9482 = vunpack.c.l.b16 %v8963
          %v9483 = vunpack.c.l.b16 %v8964
          %v9484 = vunpack.c.l.b16 %v8965
          %v9485 = vunpack.c.l.b16 %v8966
          %v9486 = vunpack.c.l.b16 %v8967
          %v9487 = vunpack.c.l.b16 %v8968
          %v9488 = vunpack.c.l.b16 %v8969
          %v9489 = vunpack.c.l.b16 %v8970
          %v9490 = vunpack.c.l.b16 %v8971
          %v9491 = vunpack.c.l.b16 %v8972
          %v9492 = vunpack.c.l.b16 %v8973
          %v9493 = vunpack.c.l.b16 %v8974
          %v9494 = vunpack.c.l.b16 %v8975
          %v9495 = vunpack.c.l.b16 %v8976
          %v9496 = vunpack.c.l.b16 %v8977
          %v9497 = vunpack.c.l.b16 %v8978
          %v9498 = vunpack.c.l.b16 %v8979
          %v9499 = vunpack.c.l.b16 %v8980
          %v9500 = vunpack.c.l.b16 %v8981
          %v9501 = vunpack.c.l.b16 %v8982
          %v9502 = vunpack.c.l.b16 %v8983
          %v9503 = vunpack.c.l.b16 %v8984
          %v9504 = vunpack.c.l.b16 %v8985
          %v9505 = vunpack.c.l.b16 %v8986
          %v9506 = vunpack.c.l.b16 %v8987
          %v9507 = vunpack.c.l.b16 %v8988
          %v9508 = vunpack.c.l.b16 %v8989
          %v9509 = vunpack.c.l.b16 %v8990
          %v9510 = vunpack.c.l.b16 %v8991
          %v9511 = vunpack.c.l.b16 %v8992
          %v9512 = vunpack.c.l.b16 %v8993
          %v9513 = vunpack.c.l.b16 %v8994
          %v9514 = vunpack.c.l.b16 %v8995
          %v9515 = vunpack.c.l.b16 %v8996
          %v9516 = vunpack.c.l.b16 %v8997
          %v9517 = vunpack.c.l.b16 %v8998
          %v9518 = vunpack.c.l.b16 %v8999
          %v9519 = vunpack.c.l.b16 %v9000
          %v9520 = vunpack.c.l.b16 %v9001
          %v9521 = vunpack.c.l.b16 %v9002
          %v9522 = vunpack.c.l.b16 %v9003
          %v9523 = vunpack.c.l.b16 %v9004
          %v9524 = vunpack.c.l.b16 %v9005
          %v9525 = vunpack.c.l.b16 %v9006
          %v9526 = vunpack.c.l.b16 %v9007
          %v9527 = vunpack.c.l.b16 %v9008
          %v9528 = vunpack.c.l.b16 %v9009
          %v9529 = vunpack.c.l.b16 %v9010
          %v9530 = vunpack.c.l.b16 %v9011
          %v9531 = vunpack.c.l.b16 %v9012
          %v9532 = vunpack.c.l.b16 %v9013
          %v9533 = vunpack.c.l.b16 %v9014
          %v9534 = vunpack.c.l.b16 %v9015
          %v9535 = vunpack.c.l.b16 %v9016
          %v9536 = vunpack.c.l.b16 %v9017
          %v9537 = vunpack.c.l.b16 %v9018
          %v9538 = vunpack.c.l.b16 %v9019
          %v9539 = vpack.c.b16 %v9284, %v9283
          %v9540 = vpack.c.b16 %v9286, %v9285
          %v9541 = vpack.c.b16 %v9288, %v9287
          %v9542 = vpack.c.b16 %v9290, %v9289
          %v9543 = vpack.c.b16 %v9292, %v9291
          %v9544 = vpack.c.b16 %v9294, %v9293
          %v9545 = vpack.c.b16 %v9296, %v9295
          %v9546 = vpack.c.b16 %v9298, %v9297
          %v9547 = vpack.c.b16 %v9300, %v9299
          %v9548 = vpack.c.b16 %v9302, %v9301
          %v9549 = vpack.c.b16 %v9304, %v9303
          %v9550 = vpack.c.b16 %v9306, %v9305
          %v9551 = vpack.c.b16 %v9308, %v9307
          %v9552 = vpack.c.b16 %v9310, %v9309
          %v9553 = vpack.c.b16 %v9312, %v9311
          %v9554 = vpack.c.b16 %v9314, %v9313
          %v9555 = vpack.c.b16 %v9316, %v9315
          %v9556 = vpack.c.b16 %v9318, %v9317
          %v9557 = vpack.c.b16 %v9320, %v9319
          %v9558 = vpack.c.b16 %v9322, %v9321
          %v9559 = vpack.c.b16 %v9324, %v9323
          %v9560 = vpack.c.b16 %v9326, %v9325
          %v9561 = vpack.c.b16 %v9328, %v9327
          %v9562 = vpack.c.b16 %v9330, %v9329
          %v9563 = vpack.c.b16 %v9332, %v9331
          %v9564 = vpack.c.b16 %v9334, %v9333
          %v9565 = vpack.c.b16 %v9336, %v9335
          %v9566 = vpack.c.b16 %v9338, %v9337
          %v9567 = vpack.c.b16 %v9340, %v9339
          %v9568 = vpack.c.b16 %v9342, %v9341
          %v9569 = vpack.c.b16 %v9344, %v9343
          %v9570 = vpack.c.b16 %v9346, %v9345
          %v9571 = vpack.c.b16 %v9348, %v9347
          %v9572 = vpack.c.b16 %v9350, %v9349
          %v9573 = vpack.c.b16 %v9352, %v9351
          %v9574 = vpack.c.b16 %v9354, %v9353
          %v9575 = vpack.c.b16 %v9356, %v9355
          %v9576 = vpack.c.b16 %v9358, %v9357
          %v9577 = vpack.c.b16 %v9360, %v9359
          %v9578 = vpack.c.b16 %v9362, %v9361
          %v9579 = vpack.c.b16 %v9364, %v9363
          %v9580 = vpack.c.b16 %v9366, %v9365
          %v9581 = vpack.c.b16 %v9368, %v9367
          %v9582 = vpack.c.b16 %v9370, %v9369
          %v9583 = vpack.c.b16 %v9372, %v9371
          %v9584 = vpack.c.b16 %v9374, %v9373
          %v9585 = vpack.c.b16 %v9376, %v9375
          %v9586 = vpack.c.b16 %v9378, %v9377
          %v9587 = vpack.c.b16 %v9380, %v9379
          %v9588 = vpack.c.b16 %v9382, %v9381
          %v9589 = vpack.c.b16 %v9384, %v9383
          %v9590 = vpack.c.b16 %v9386, %v9385
          %v9591 = vpack.c.b16 %v9388, %v9387
          %v9592 = vpack.c.b16 %v9390, %v9389
          %v9593 = vpack.c.b16 %v9392, %v9391
          %v9594 = vpack.c.b16 %v9394, %v9393
          %v9595 = vpack.c.b16 %v9396, %v9395
          %v9596 = vpack.c.b16 %v9398, %v9397
          %v9597 = vpack.c.b16 %v9400, %v9399
          %v9598 = vpack.c.b16 %v9402, %v9401
          %v9599 = vpack.c.b16 %v9404, %v9403
          %v9600 = vpack.c.b16 %v9406, %v9405
          %v9601 = vpack.c.b16 %v9408, %v9407
          %v9602 = vpack.c.b16 %v9410, %v9409
          %v9603 = vpack.c.b16 %v9412, %v9411
          %v9604 = vpack.c.b16 %v9414, %v9413
          %v9605 = vpack.c.b16 %v9416, %v9415
          %v9606 = vpack.c.b16 %v9418, %v9417
          %v9607 = vpack.c.b16 %v9420, %v9419
          %v9608 = vpack.c.b16 %v9422, %v9421
          %v9609 = vpack.c.b16 %v9424, %v9423
          %v9610 = vpack.c.b16 %v9426, %v9425
          %v9611 = vpack.c.b16 %v9428, %v9427
          %v9612 = vpack.c.b16 %v9430, %v9429
          %v9613 = vpack.c.b16 %v9432, %v9431
          %v9614 = vpack.c.b16 %v9434, %v9433
          %v9615 = vpack.c.b16 %v9436, %v9435
          %v9616 = vpack.c.b16 %v9438, %v9437
          %v9617 = vpack.c.b16 %v9440, %v9439
          %v9618 = vpack.c.b16 %v9442, %v9441
          %v9619 = vpack.c.b16 %v9444, %v9443
          %v9620 = vpack.c.b16 %v9446, %v9445
          %v9621 = vpack.c.b16 %v9448, %v9447
          %v9622 = vpack.c.b16 %v9450, %v9449
          %v9623 = vpack.c.b16 %v9452, %v9451
          %v9624 = vpack.c.b16 %v9454, %v9453
          %v9625 = vpack.c.b16 %v9456, %v9455
          %v9626 = vpack.c.b16 %v9458, %v9457
          %v9627 = vpack.c.b16 %v9460, %v9459
          %v9628 = vpack.c.b16 %v9462, %v9461
          %v9629 = vpack.c.b16 %v9464, %v9463
          %v9630 = vpack.c.b16 %v9466, %v9465
          %v9631 = vpack.c.b16 %v9468, %v9467
          %v9632 = vpack.c.b16 %v9470, %v9469
          %v9633 = vpack.c.b16 %v9472, %v9471
          %v9634 = vpack.c.b16 %v9474, %v9473
          %v9635 = vpack.c.b16 %v9476, %v9475
          %v9636 = vpack.c.b16 %v9478, %v9477
          %v9637 = vpack.c.b16 %v9480, %v9479
          %v9638 = vpack.c.b16 %v9482, %v9481
          %v9639 = vpack.c.b16 %v9484, %v9483
          %v9640 = vpack.c.b16 %v9486, %v9485
          %v9641 = vpack.c.b16 %v9488, %v9487
          %v9642 = vpack.c.b16 %v9490, %v9489
          %v9643 = vpack.c.b16 %v9492, %v9491
          %v9644 = vpack.c.b16 %v9494, %v9493
          %v9645 = vpack.c.b16 %v9496, %v9495
          %v9646 = vpack.c.b16 %v9498, %v9497
          %v9647 = vpack.c.b16 %v9500, %v9499
          %v9648 = vpack.c.b16 %v9502, %v9501
          %v9649 = vpack.c.b16 %v9504, %v9503
          %v9650 = vpack.c.b16 %v9506, %v9505
          %v9651 = vpack.c.b16 %v9508, %v9507
          %v9652 = vpack.c.b16 %v9510, %v9509
          %v9653 = vpack.c.b16 %v9512, %v9511
          %v9654 = vpack.c.b16 %v9514, %v9513
          %v9655 = vpack.c.b16 %v9516, %v9515
          %v9656 = vpack.c.b16 %v9518, %v9517
          %v9657 = vpack.c.b16 %v9520, %v9519
          %v9658 = vpack.c.b16 %v9522, %v9521
          %v9659 = vpack.c.b16 %v9524, %v9523
          %v9660 = vpack.c.b16 %v9526, %v9525
          %v9661 = vpack.c.b16 %v9528, %v9527
          %v9662 = vpack.c.b16 %v9530, %v9529
          %v9663 = vpack.c.b16 %v9532, %v9531
          %v9664 = vpack.c.b16 %v9534, %v9533
          %v9665 = vpack.c.b16 %v9536, %v9535
          %v9666 = vpack.c.b16 %v9538, %v9537
          %9795 = vmatprep.subr.bf16.mxu0 0
          %9796 = vmatpush1.bf16.msra.mxu0 %v9539
          %9797 = vmatprep.subr.bf16.mxu0 0
          %9798 = vmatpush1.bf16.msra.mxu0 %v9540
          %9799 = vmatprep.subr.bf16.mxu0 0
          %9800 = vmatpush1.bf16.msra.mxu0 %v9541
          %9801 = vmatprep.subr.bf16.mxu0 0
          %9802 = vmatpush1.bf16.msra.mxu0 %v9542
          %9803 = vmatprep.subr.bf16.mxu0 0
          %9804 = vmatpush1.bf16.msra.mxu0 %v9543
          %9805 = vmatprep.subr.bf16.mxu0 0
          %9806 = vmatpush1.bf16.msra.mxu0 %v9544
          %9807 = vmatprep.subr.bf16.mxu0 0
          %9808 = vmatpush1.bf16.msra.mxu0 %v9545
          %9809 = vmatprep.subr.bf16.mxu0 0
          %9810 = vmatpush1.bf16.msra.mxu0 %v9546
          %9811 = vmatprep.subr.bf16.mxu0 0
          %9812 = vmatpush1.bf16.msra.mxu0 %v9547
          %9813 = vmatprep.subr.bf16.mxu0 0
          %9814 = vmatpush1.bf16.msra.mxu0 %v9548
          %9815 = vmatprep.subr.bf16.mxu0 0
          %9816 = vmatpush1.bf16.msra.mxu0 %v9549
          %9817 = vmatprep.subr.bf16.mxu0 0
          %9818 = vmatpush1.bf16.msra.mxu0 %v9550
          %9819 = vmatprep.subr.bf16.mxu0 0
          %9820 = vmatpush1.bf16.msra.mxu0 %v9551
          %9821 = vmatprep.subr.bf16.mxu0 0
          %9822 = vmatpush1.bf16.msra.mxu0 %v9552
          %9823 = vmatprep.subr.bf16.mxu0 0
          %9824 = vmatpush1.bf16.msra.mxu0 %v9553
          %9825 = vmatprep.subr.bf16.mxu0 0
          %9826 = vmatpush1.bf16.msra.mxu0 %v9554
          %9827 = vmatprep.mubr.bf16.mxu0 %v8749
          %9828 = vmatmul.mubr.bf16.gmra.mrb[0].mxu0 %v8748
          %v9829 = vpop.f32.mrb[0].mxu0
          %v9830 = vadd.f32 %v9025, %v9829
          %v9831 = vpop.f32.mrb[0].mxu0
          %v9832 = vpop.f32.mrb[0].mxu0
          %v9833 = vpop.f32.mrb[0].mxu0
          %9834 = vdwg.mxu0
          %9835 = vmatprep.subr.bf16.mxu0 0
          %9836 = vmatpush1.bf16.msra.mxu0 %v9555
          %9837 = vmatprep.subr.bf16.mxu0 0
          %9838 = vmatpush1.bf16.msra.mxu0 %v9556
          %9839 = vmatprep.subr.bf16.mxu0 0
          %9840 = vmatpush1.bf16.msra.mxu0 %v9557
          %9841 = vmatprep.subr.bf16.mxu0 0
          %9842 = vmatpush1.bf16.msra.mxu0 %v9558
          %9843 = vmatprep.subr.bf16.mxu0 0
          %9844 = vmatpush1.bf16.msra.mxu0 %v9559
          %9845 = vmatprep.subr.bf16.mxu0 0
          %9846 = vmatpush1.bf16.msra.mxu0 %v9560
          %9847 = vmatprep.subr.bf16.mxu0 0
          %9848 = vmatpush1.bf16.msra.mxu0 %v9561
          %9849 = vmatprep.subr.bf16.mxu0 0
          %9850 = vmatpush1.bf16.msra.mxu0 %v9562
          %9851 = vmatprep.subr.bf16.mxu0 0
          %9852 = vmatpush1.bf16.msra.mxu0 %v9563
          %9853 = vmatprep.subr.bf16.mxu0 0
          %9854 = vmatpush1.bf16.msra.mxu0 %v9564
          %9855 = vmatprep.subr.bf16.mxu0 0
          %9856 = vmatpush1.bf16.msra.mxu0 %v9565
          %9857 = vmatprep.subr.bf16.mxu0 0
          %9858 = vmatpush1.bf16.msra.mxu0 %v9566
          %9859 = vmatprep.subr.bf16.mxu0 0
          %9860 = vmatpush1.bf16.msra.mxu0 %v9567
          %9861 = vmatprep.subr.bf16.mxu0 0
          %9862 = vmatpush1.bf16.msra.mxu0 %v9568
          %9863 = vmatprep.subr.bf16.mxu0 0
          %9864 = vmatpush1.bf16.msra.mxu0 %v9569
          %9865 = vmatprep.subr.bf16.mxu0 0
          %9866 = vmatpush1.bf16.msra.mxu0 %v9570
          %9867 = vmatprep.mubr.bf16.mxu0 %v8751
          %9868 = vmatmul.mubr.bf16.gmra.mrb[0].mxu0 %v8750
          %v9869 = vpop.f32.mrb[0].mxu0
          %v9870 = vadd.f32 %v9830, %v9869
          %v9871 = vpop.f32.mrb[0].mxu0
          %v9872 = vpop.f32.mrb[0].mxu0
          %v9873 = vpop.f32.mrb[0].mxu0
          %9874 = vdwg.mxu0
          %9875 = vmatprep.subr.bf16.mxu0 0
          %9876 = vmatpush1.bf16.msra.mxu0 %v9571
          %9877 = vmatprep.subr.bf16.mxu0 0
          %9878 = vmatpush1.bf16.msra.mxu0 %v9572
          %9879 = vmatprep.subr.bf16.mxu0 0
          %9880 = vmatpush1.bf16.msra.mxu0 %v9573
          %9881 = vmatprep.subr.bf16.mxu0 0
          %9882 = vmatpush1.bf16.msra.mxu0 %v9574
          %9883 = vmatprep.subr.bf16.mxu0 0
          %9884 = vmatpush1.bf16.msra.mxu0 %v9575
          %9885 = vmatprep.subr.bf16.mxu0 0
          %9886 = vmatpush1.bf16.msra.mxu0 %v9576
          %9887 = vmatprep.subr.bf16.mxu0 0
          %9888 = vmatpush1.bf16.msra.mxu0 %v9577
          %9889 = vmatprep.subr.bf16.mxu0 0
          %9890 = vmatpush1.bf16.msra.mxu0 %v9578
          %9891 = vmatprep.subr.bf16.mxu0 0
          %9892 = vmatpush1.bf16.msra.mxu0 %v9579
          %9893 = vmatprep.subr.bf16.mxu0 0
          %9894 = vmatpush1.bf16.msra.mxu0 %v9580
          %9895 = vmatprep.subr.bf16.mxu0 0
          %9896 = vmatpush1.bf16.msra.mxu0 %v9581
          %9897 = vmatprep.subr.bf16.mxu0 0
          %9898 = vmatpush1.bf16.msra.mxu0 %v9582
          %9899 = vmatprep.subr.bf16.mxu0 0
          %9900 = vmatpush1.bf16.msra.mxu0 %v9583
          %9901 = vmatprep.subr.bf16.mxu0 0
          %9902 = vmatpush1.bf16.msra.mxu0 %v9584
          %9903 = vmatprep.subr.bf16.mxu0 0
          %9904 = vmatpush1.bf16.msra.mxu0 %v9585
          %9905 = vmatprep.subr.bf16.mxu0 0
          %9906 = vmatpush1.bf16.msra.mxu0 %v9586
          %9907 = vmatprep.mubr.bf16.mxu0 %v8753
          %9908 = vmatmul.mubr.bf16.gmra.mrb[0].mxu0 %v8752
          %v9909 = vpop.f32.mrb[0].mxu0
          %v9910 = vadd.f32 %v9870, %v9909
          %v9911 = vpop.f32.mrb[0].mxu0
          %v9912 = vpop.f32.mrb[0].mxu0
          %v9913 = vpop.f32.mrb[0].mxu0
          %9914 = vdwg.mxu0
          %9915 = vmatprep.subr.bf16.mxu0 0
          %9916 = vmatpush1.bf16.msra.mxu0 %v9587
          %9917 = vmatprep.subr.bf16.mxu0 0
          %9918 = vmatpush1.bf16.msra.mxu0 %v9588
          %9919 = vmatprep.subr.bf16.mxu0 0
          %9920 = vmatpush1.bf16.msra.mxu0 %v9589
          %9921 = vmatprep.subr.bf16.mxu0 0
          %9922 = vmatpush1.bf16.msra.mxu0 %v9590
          %9923 = vmatprep.subr.bf16.mxu0 0
          %9924 = vmatpush1.bf16.msra.mxu0 %v9591
          %9925 = vmatprep.subr.bf16.mxu0 0
          %9926 = vmatpush1.bf16.msra.mxu0 %v9592
          %9927 = vmatprep.subr.bf16.mxu0 0
          %9928 = vmatpush1.bf16.msra.mxu0 %v9593
          %9929 = vmatprep.subr.bf16.mxu0 0
          %9930 = vmatpush1.bf16.msra.mxu0 %v9594
          %9931 = vmatprep.subr.bf16.mxu0 0
          %9932 = vmatpush1.bf16.msra.mxu0 %v9595
          %9933 = vmatprep.subr.bf16.mxu0 0
          %9934 = vmatpush1.bf16.msra.mxu0 %v9596
          %9935 = vmatprep.subr.bf16.mxu0 0
          %9936 = vmatpush1.bf16.msra.mxu0 %v9597
          %9937 = vmatprep.subr.bf16.mxu0 0
          %9938 = vmatpush1.bf16.msra.mxu0 %v9598
          %9939 = vmatprep.subr.bf16.mxu0 0
          %9940 = vmatpush1.bf16.msra.mxu0 %v9599
          %9941 = vmatprep.subr.bf16.mxu0 0
          %9942 = vmatpush1.bf16.msra.mxu0 %v9600
          %9943 = vmatprep.subr.bf16.mxu0 0
          %9944 = vmatpush1.bf16.msra.mxu0 %v9601
          %9945 = vmatprep.subr.bf16.mxu0 0
          %9946 = vmatpush1.bf16.msra.mxu0 %v9602
          %9947 = vmatprep.mubr.bf16.mxu0 %v8755
          %9948 = vmatmul.mubr.bf16.gmra.mrb[0].mxu0 %v8754
          %v9949 = vpop.f32.mrb[0].mxu0
          %v9950 = vadd.f32 %v9910, %v9949
          %v9951 = vpop.f32.mrb[0].mxu0
          %v9952 = vpop.f32.mrb[0].mxu0
          %v9953 = vpop.f32.mrb[0].mxu0
          %9954 = vdwg.mxu0
          %9955 = vmatprep.subr.bf16.mxu0 0
          %9956 = vmatpush1.bf16.msra.mxu0 %v9603
          %9957 = vmatprep.subr.bf16.mxu0 0
          %9958 = vmatpush1.bf16.msra.mxu0 %v9604
          %9959 = vmatprep.subr.bf16.mxu0 0
          %9960 = vmatpush1.bf16.msra.mxu0 %v9605
          %9961 = vmatprep.subr.bf16.mxu0 0
          %9962 = vmatpush1.bf16.msra.mxu0 %v9606
          %9963 = vmatprep.subr.bf16.mxu0 0
          %9964 = vmatpush1.bf16.msra.mxu0 %v9607
          %9965 = vmatprep.subr.bf16.mxu0 0
          %9966 = vmatpush1.bf16.msra.mxu0 %v9608
          %9967 = vmatprep.subr.bf16.mxu0 0
          %9968 = vmatpush1.bf16.msra.mxu0 %v9609
          %9969 = vmatprep.subr.bf16.mxu0 0
          %9970 = vmatpush1.bf16.msra.mxu0 %v9610
          %9971 = vmatprep.subr.bf16.mxu0 0
          %9972 = vmatpush1.bf16.msra.mxu0 %v9611
          %9973 = vmatprep.subr.bf16.mxu0 0
          %9974 = vmatpush1.bf16.msra.mxu0 %v9612
          %9975 = vmatprep.subr.bf16.mxu0 0
          %9976 = vmatpush1.bf16.msra.mxu0 %v9613
          %9977 = vmatprep.subr.bf16.mxu0 0
          %9978 = vmatpush1.bf16.msra.mxu0 %v9614
          %9979 = vmatprep.subr.bf16.mxu0 0
          %9980 = vmatpush1.bf16.msra.mxu0 %v9615
          %9981 = vmatprep.subr.bf16.mxu0 0
          %9982 = vmatpush1.bf16.msra.mxu0 %v9616
          %9983 = vmatprep.subr.bf16.mxu0 0
          %9984 = vmatpush1.bf16.msra.mxu0 %v9617
          %9985 = vmatprep.subr.bf16.mxu0 0
          %9986 = vmatpush1.bf16.msra.mxu0 %v9618
          %9987 = vmatprep.mubr.bf16.mxu0 %v8757
          %9988 = vmatmul.mubr.bf16.gmra.mrb[0].mxu0 %v8756
          %v9989 = vpop.f32.mrb[0].mxu0
          %v9990 = vadd.f32 %v9950, %v9989
          %v9991 = vpop.f32.mrb[0].mxu0
          %v9992 = vpop.f32.mrb[0].mxu0
          %v9993 = vpop.f32.mrb[0].mxu0
          %9994 = vdwg.mxu0
          %9995 = vmatprep.subr.bf16.mxu0 0
          %9996 = vmatpush1.bf16.msra.mxu0 %v9619
          %9997 = vmatprep.subr.bf16.mxu0 0
          %9998 = vmatpush1.bf16.msra.mxu0 %v9620
          %9999 = vmatprep.subr.bf16.mxu0 0
          %10000 = vmatpush1.bf16.msra.mxu0 %v9621
          %10001 = vmatprep.subr.bf16.mxu0 0
          %10002 = vmatpush1.bf16.msra.mxu0 %v9622
          %10003 = vmatprep.subr.bf16.mxu0 0
          %10004 = vmatpush1.bf16.msra.mxu0 %v9623
          %10005 = vmatprep.subr.bf16.mxu0 0
          %10006 = vmatpush1.bf16.msra.mxu0 %v9624
          %10007 = vmatprep.subr.bf16.mxu0 0
          %10008 = vmatpush1.bf16.msra.mxu0 %v9625
          %10009 = vmatprep.subr.bf16.mxu0 0
          %10010 = vmatpush1.bf16.msra.mxu0 %v9626
          %10011 = vmatprep.subr.bf16.mxu0 0
          %10012 = vmatpush1.bf16.msra.mxu0 %v9627
          %10013 = vmatprep.subr.bf16.mxu0 0
          %10014 = vmatpush1.bf16.msra.mxu0 %v9628
          %10015 = vmatprep.subr.bf16.mxu0 0
          %10016 = vmatpush1.bf16.msra.mxu0 %v9629
          %10017 = vmatprep.subr.bf16.mxu0 0
          %10018 = vmatpush1.bf16.msra.mxu0 %v9630
          %10019 = vmatprep.subr.bf16.mxu0 0
          %10020 = vmatpush1.bf16.msra.mxu0 %v9631
          %10021 = vmatprep.subr.bf16.mxu0 0
          %10022 = vmatpush1.bf16.msra.mxu0 %v9632
          %10023 = vmatprep.subr.bf16.mxu0 0
          %10024 = vmatpush1.bf16.msra.mxu0 %v9633
          %10025 = vmatprep.subr.bf16.mxu0 0
          %10026 = vmatpush1.bf16.msra.mxu0 %v9634
          %10027 = vmatprep.mubr.bf16.mxu0 %v8759
          %10028 = vmatmul.mubr.bf16.gmra.mrb[0].mxu0 %v8758
          %v10029 = vpop.f32.mrb[0].mxu0
          %v10030 = vadd.f32 %v9990, %v10029
          %v10031 = vpop.f32.mrb[0].mxu0
          %v10032 = vpop.f32.mrb[0].mxu0
          %v10033 = vpop.f32.mrb[0].mxu0
          %10034 = vdwg.mxu0
          %10035 = vmatprep.subr.bf16.mxu0 0
          %10036 = vmatpush1.bf16.msra.mxu0 %v9635
          %10037 = vmatprep.subr.bf16.mxu0 0
          %10038 = vmatpush1.bf16.msra.mxu0 %v9636
          %10039 = vmatprep.subr.bf16.mxu0 0
          %10040 = vmatpush1.bf16.msra.mxu0 %v9637
          %10041 = vmatprep.subr.bf16.mxu0 0
          %10042 = vmatpush1.bf16.msra.mxu0 %v9638
          %10043 = vmatprep.subr.bf16.mxu0 0
          %10044 = vmatpush1.bf16.msra.mxu0 %v9639
          %10045 = vmatprep.subr.bf16.mxu0 0
          %10046 = vmatpush1.bf16.msra.mxu0 %v9640
          %10047 = vmatprep.subr.bf16.mxu0 0
          %10048 = vmatpush1.bf16.msra.mxu0 %v9641
          %10049 = vmatprep.subr.bf16.mxu0 0
          %10050 = vmatpush1.bf16.msra.mxu0 %v9642
          %10051 = vmatprep.subr.bf16.mxu0 0
          %10052 = vmatpush1.bf16.msra.mxu0 %v9643
          %10053 = vmatprep.subr.bf16.mxu0 0
          %10054 = vmatpush1.bf16.msra.mxu0 %v9644
          %10055 = vmatprep.subr.bf16.mxu0 0
          %10056 = vmatpush1.bf16.msra.mxu0 %v9645
          %10057 = vmatprep.subr.bf16.mxu0 0
          %10058 = vmatpush1.bf16.msra.mxu0 %v9646
          %10059 = vmatprep.subr.bf16.mxu0 0
          %10060 = vmatpush1.bf16.msra.mxu0 %v9647
          %10061 = vmatprep.subr.bf16.mxu0 0
          %10062 = vmatpush1.bf16.msra.mxu0 %v9648
          %10063 = vmatprep.subr.bf16.mxu0 0
          %10064 = vmatpush1.bf16.msra.mxu0 %v9649
          %10065 = vmatprep.subr.bf16.mxu0 0
          %10066 = vmatpush1.bf16.msra.mxu0 %v9650
          %10067 = vmatprep.mubr.bf16.mxu0 %v8761
          %10068 = vmatmul.mubr.bf16.gmra.mrb[0].mxu0 %v8760
          %v10069 = vpop.f32.mrb[0].mxu0
          %v10070 = vadd.f32 %v10030, %v10069
          %v10071 = vpop.f32.mrb[0].mxu0
          %v10072 = vpop.f32.mrb[0].mxu0
          %v10073 = vpop.f32.mrb[0].mxu0
          %10074 = vdwg.mxu0
          %10075 = vmatprep.subr.bf16.mxu0 0
          %10076 = vmatpush1.bf16.msra.mxu0 %v9651
          %10077 = vmatprep.subr.bf16.mxu0 0
          %10078 = vmatpush1.bf16.msra.mxu0 %v9652
          %10079 = vmatprep.subr.bf16.mxu0 0
          %10080 = vmatpush1.bf16.msra.mxu0 %v9653
          %10081 = vmatprep.subr.bf16.mxu0 0
          %10082 = vmatpush1.bf16.msra.mxu0 %v9654
          %10083 = vmatprep.subr.bf16.mxu0 0
          %10084 = vmatpush1.bf16.msra.mxu0 %v9655
          %10085 = vmatprep.subr.bf16.mxu0 0
          %10086 = vmatpush1.bf16.msra.mxu0 %v9656
          %10087 = vmatprep.subr.bf16.mxu0 0
          %10088 = vmatpush1.bf16.msra.mxu0 %v9657
          %10089 = vmatprep.subr.bf16.mxu0 0
          %10090 = vmatpush1.bf16.msra.mxu0 %v9658
          %10091 = vmatprep.subr.bf16.mxu0 0
          %10092 = vmatpush1.bf16.msra.mxu0 %v9659
          %10093 = vmatprep.subr.bf16.mxu0 0
          %10094 = vmatpush1.bf16.msra.mxu0 %v9660
          %10095 = vmatprep.subr.bf16.mxu0 0
          %10096 = vmatpush1.bf16.msra.mxu0 %v9661
          %10097 = vmatprep.subr.bf16.mxu0 0
          %10098 = vmatpush1.bf16.msra.mxu0 %v9662
          %10099 = vmatprep.subr.bf16.mxu0 0
          %10100 = vmatpush1.bf16.msra.mxu0 %v9663
          %10101 = vmatprep.subr.bf16.mxu0 0
          %10102 = vmatpush1.bf16.msra.mxu0 %v9664
          %10103 = vmatprep.subr.bf16.mxu0 0
          %10104 = vmatpush1.bf16.msra.mxu0 %v9665
          %10105 = vmatprep.subr.bf16.mxu0 0
          %10106 = vmatpush1.bf16.msra.mxu0 %v9666
          %10107 = vmatprep.mubr.bf16.mxu0 %v8763
          %10108 = vmatmul.mubr.bf16.gmra.mrb[0].mxu0 %v8762
          %v10109 = vpop.f32.mrb[0].mxu0
          %v10110 = vadd.f32 %v10070, %v10109
          %v10111 = vpop.f32.mrb[0].mxu0
          %v10112 = vpop.f32.mrb[0].mxu0
          %v10113 = vpop.f32.mrb[0].mxu0
          %10114 = vdwg.mxu0
          %vm10115 = vcmask 7168
          %10116 = vst.msk [vmem:[%s7] sm:$0xff] %vm10115, %v10110
        $region76: #{neunet_forward.1} parent=47 // pred_fallthru
          _
        // Predicated region
        $region77: #{neunet_forward.1} parent=47 // pred_check
          %p10117 = pneg %p211
        $region78: #{neunet_forward.1} parent=47 // pred_check_branch
          %10119 = sbr.rel (%p10117) target = $region80
        $region79: #{neunet_forward.1} parent=47 // pred_region
          _
        $region80: #{neunet_forward.1} parent=47 // pred_fallthru
          _
        // Predicated region
        $region81: #{neunet_forward.1} parent=47 // pred_check
          %p10120 = pneg %p211
        $region82: #{neunet_forward.1} parent=47 // pred_check_branch
          %10122 = sbr.rel (%p10120) target = $region84
        $region83: #{neunet_forward.1} parent=47 // pred_region
          _
        $region84: #{neunet_forward.1} parent=47 // pred_fallthru
          _
      $region48: #{neunet_forward.1} parent=5 // pred_fallthru
        _
      %p10123 = scmp.le.s32.totalorder 2, %s20
      // Predicated region
      $region85: #{neunet_forward.1} parent=5 // pred_check
        %p10124 = pneg %p10123
      $region86: #{neunet_forward.1} parent=5 // pred_check_branch
        %10126 = sbr.rel (%p10124) target = $region88
      $region87: #{neunet_forward.1} parent=5 // pred_region
        %s10127 = ssub.s32 %s20, 2
      $region88: #{neunet_forward.1} parent=5 // pred_fallthru
        _
    $region6: #{neunet_forward.1} parent=1 // loop_footer
      %s24 = sadd.s32 1, %s20
    $region7: #{neunet_forward.1} parent=1 // loop_footer_branch
      %19 = sbr.rel target = $region3
    $region8: #{neunet_forward.1} parent=1 // loop_exit
      _
    %10128 = vsyncpa [#allocation5], 1
    %s10129 = scalar_lea.sflag [#allocation5], 1
    %10130 = vsyncpa %s10129, 1
    %10131 = vsyncpa [#allocation7], 1
    %10132 = vsyncpa [#allocation10], 1
    %s10133 = scalar_lea.sflag [#allocation10], 1
    %10134 = vsyncpa %s10133, 1

</llo_original>
